<compile_context>
chip_gen: v7x
topology: tpu7x:2x2x1
jax: 0.10.0
libtpu: 0.0.40
codegen_flags: <defaults>
</compile_context>

<pallas_src>
import jax
import jax.numpy as jnp
from jax.experimental import pallas as pl
from jax.experimental.pallas import tpu as pltpu


# Static network configuration implied by the PyTorch module (fc1 in_features
# = 2304 = 256*3*3 forces an 8x8 single-channel input through five 2x2 convs).
H0 = W0 = 8
IMG = H0 * W0                    # rows per image in the full-width slab
FC_OUT = 3
FC_NP = 128                      # lane-padded fc1 output width inside the kernel
PAD_CONV = 16                    # slab row padding (conv shifts reach +9)
PAD_FC = 24                      # conv5 slab padding (fc1-as-conv shifts reach +18)
TAP_SHIFTS = (0, 1, 8, 9)        # row shift kh*8 + kw for tap t = kh*2 + kw


# ----------------------------------------------------------------------------- #
# Fused kernel body (built per static batch size)
# ----------------------------------------------------------------------------- #
def _make_kernel(batch):
    R = batch * IMG              # valid rows in every activation slab

    def kernel(x_ref,
               w1_ref, b1_ref, w2_ref, b2_ref, w3_ref, b3_ref,
               w4_ref, b4_ref, w5_ref, b5_ref, wfc_ref, bfc_ref,
               out_ref,
               a1_ref, a2_ref, a3_ref, a4_ref, a5_ref):

        # Zero the trailing pad rows once so shifted reads past the last image
        # are deterministic (they only ever feed the invalid bottom/right region).
        for ref, pad in ((a1_ref, PAD_CONV), (a2_ref, PAD_CONV),
                         (a3_ref, PAD_CONV), (a4_ref, PAD_CONV),
                         (a5_ref, PAD_FC)):
            ref[pl.ds(R, pad), :] = jnp.zeros((pad, ref.shape[1]), ref.dtype)

        # ---- conv1: taps were pre-stacked into 4 lanes in the wrapper, so it
        #      is one (R, 4) @ (4, 32) MXU matmul + bias + ReLU. ----
        a1 = jnp.dot(x_ref[...], w1_ref[...], preferred_element_type=jnp.float32)
        a1_ref[pl.ds(0, R), :] = jnp.maximum(a1 + b1_ref[...], 0.0)

        # ---- conv2..conv5: 4 accumulated full-width shifted matmuls each. ----
        def conv(xin_ref, w_ref, b_ref, yout_ref, cout):
            acc = jnp.zeros((R, cout), jnp.float32)
            for t, shift in enumerate(TAP_SHIFTS):
                xs = xin_ref[pl.ds(shift, R), :].astype(jnp.bfloat16)
                acc = acc + jnp.dot(xs, w_ref[t],
                                    preferred_element_type=jnp.float32)
            yout_ref[pl.ds(0, R), :] = jnp.maximum(acc + b_ref[...], 0.0)

        conv(a1_ref, w2_ref, b2_ref, a2_ref, 64)
        conv(a2_ref, w3_ref, b3_ref, a3_ref, 128)
        conv(a3_ref, w4_ref, b4_ref, a4_ref, 256)
        conv(a4_ref, w5_ref, b5_ref, a5_ref, 256)

        # ---- fc1 as a 3x3 "conv" over the full-width conv5 slab: 9 matmuls of
        #      (R, 256) @ (256, 128).  Valid result for image b lives at row
        #      b*64 (the h=w=0 corner); padded output lanes are ReLU(0)=0. ----
        accf = jnp.zeros((R, FC_NP), jnp.float32)
        for h in range(3):
            for w in range(3):
                s = h * 3 + w
                shift = h * W0 + w
                xs = a5_ref[pl.ds(shift, R), :].astype(jnp.bfloat16)
                accf = accf + jnp.dot(xs, wfc_ref[s],
                                      preferred_element_type=jnp.float32)
        out_ref[...] = jnp.maximum(accf + bfc_ref[...], 0.0)

    return kernel


# ----------------------------------------------------------------------------- #
# Forward pass: one pallas_call, zero per-call weight reshuffling
# ----------------------------------------------------------------------------- #
@jax.jit
def cnn_up_forward(packed, x):
    """x: (B, 1, 8, 8) NCHW float32 -> (B, 1, 3)."""
    batch = x.shape[0]
    R = batch * IMG

    # Pre-stack the 4 conv1 taps into 4 lanes (tiny: B*64*4 values).  Tap order
    # t = kh*2 + kw matches the packed conv1 weight rows; the zero pad only
    # feeds the invalid bottom/right region of the 8x8 slab.
    img = x.reshape(batch, H0, W0).astype(jnp.float32)
    imgp = jnp.pad(img, ((0, 0), (0, 1), (0, 1)))
    taps = jnp.stack([imgp[:, kh:kh + H0, kw:kw + W0]
                      for kh in (0, 1) for kw in (0, 1)], axis=-1)   # (B,8,8,4)
    x2d = taps.reshape(R, 4).astype(jnp.bfloat16)

    inputs = (x2d,
              packed["w1"], packed["b1"], packed["w2"], packed["b2"],
              packed["w3"], packed["b3"], packed["w4"], packed["b4"],
              packed["w5"], packed["b5"], packed["wfc"], packed["bfc"])

    def full_spec(a):
        nd = a.ndim
        return pl.BlockSpec(a.shape, lambda _nd=nd: (0,) * _nd)

    out = pl.pallas_call(
        _make_kernel(batch),
        out_shape=jax.ShapeDtypeStruct((R, FC_NP), jnp.float32),
        in_specs=[full_spec(a) for a in inputs],
        out_specs=pl.BlockSpec((R, FC_NP), lambda: (0, 0)),
        scratch_shapes=[
            pltpu.VMEM((R + PAD_CONV, 32), jnp.float32),    # conv1 out slab
            pltpu.VMEM((R + PAD_CONV, 64), jnp.float32),    # conv2 out slab
            pltpu.VMEM((R + PAD_CONV, 128), jnp.float32),   # conv3 out slab
            pltpu.VMEM((R + PAD_CONV, 256), jnp.float32),   # conv4 out slab
            pltpu.VMEM((R + PAD_FC, 256), jnp.float32),     # conv5 out slab
        ],
    )(*inputs)

    # Row b*64 holds the (h=0, w=0) valid fc1 result of image b.
    return out.reshape(batch, IMG, FC_NP)[:, 0, :FC_OUT].reshape(batch, 1, FC_OUT)


# ----------------------------------------------------------------------------- #
# Deterministic parameter init (PyTorch-default-style uniform bounds)
# ----------------------------------------------------------------------------- #
def init_conv(key, cout, cin, kh, kw):
    k1, k2 = jax.random.split(key)
    bound = 1.0 / jnp.sqrt(cin * kh * kw)
    w = jax.random.uniform(k1, (cout, cin, kh, kw), jnp.float32, -bound, bound)
    b = jax.random.uniform(k2, (cout,), jnp.float32, -bound, bound)
    return w, b


def init_linear(key, out_f, in_f):
    k1, k2 = jax.random.split(key)
    bound = 1.0 / jnp.sqrt(in_f)
    w = jax.random.uniform(k1, (out_f, in_f), jnp.float32, -bound, bound)
    b = jax.random.uniform(k2, (out_f,), jnp.float32, -bound, bound)
    return w, b


def init_params(key):
    ks = jax.random.split(key, 6)
    return {
        "conv1": init_conv(ks[0], 32, 1, 2, 2),
        "conv2": init_conv(ks[1], 64, 32, 2, 2),
        "conv3": init_conv(ks[2], 128, 64, 2, 2),
        "conv4": init_conv(ks[3], 256, 128, 2, 2),
        "conv5": init_conv(ks[4], 256, 256, 2, 2),
        "fc1": init_linear(ks[5], 3, 2304),
        # fc2 / fc3 / dropout exist in __init__ but are unused in forward().
    }


def pack_params(params):
    """One-time weight packing into the kernel's MXU-ready (bf16) layouts."""
    packed = {}
    for idx, name in enumerate(("conv1", "conv2", "conv3", "conv4", "conv5"), 1):
        w, b = params[name]
        cout, cin = w.shape[0], w.shape[1]
        # (Cout, Cin, 2, 2) -> (t = kh*2+kw, Cin, Cout)
        wk = jnp.transpose(w, (2, 3, 1, 0)).reshape(4, cin, cout)
        packed[f"w{idx}"] = wk.astype(jnp.bfloat16)
        packed[f"b{idx}"] = b.reshape(1, cout).astype(jnp.float32)
    packed["w1"] = packed["w1"].reshape(4, 32)          # Cin=1 -> (4, 32)

    # fc1: PyTorch weight (3, 2304) with column index c*9 + h*3 + w (NCHW
    # flatten of the 256x3x3 conv5 output).  Re-pack to (s, c, o) with
    # s = h*3 + w (matching the kernel's channels-last slab rows) and lane-pad
    # the 3 outputs to 128 so the fc output store is lane-dense.
    w_fc, b_fc = params["fc1"]
    wf = w_fc.reshape(FC_OUT, 256, 9)                   # [o, c, s]
    wf = jnp.transpose(wf, (2, 1, 0))                   # (9, 256, 3)
    wfc = jnp.zeros((9, 256, FC_NP), jnp.float32).at[:, :, :FC_OUT].set(wf)
    packed["wfc"] = wfc.astype(jnp.bfloat16)
    packed["bfc"] = (jnp.zeros((1, FC_NP), jnp.float32)
                     .at[0, :FC_OUT].set(b_fc.astype(jnp.float32)))
    return packed


# ----------------------------------------------------------------------------- #
# Plain-JAX f32 reference (numerical verification only)
# ----------------------------------------------------------------------------- #
def cnn_up_reference(params, x):
    for name in ("conv1", "conv2", "conv3", "conv4", "conv5"):
        w, b = params[name]
        dn = jax.lax.conv_dimension_numbers(x.shape, w.shape,
                                            ("NCHW", "OIHW", "NCHW"))
        x = jax.lax.conv_general_dilated(x, w, (1, 1), "VALID",
                                         dimension_numbers=dn)
        x = jax.nn.relu(x + b[None, :, None, None])
    B = x.shape[0]
    x_flat = x.reshape(B, -1)
    w_fc, b_fc = params["fc1"]
    y = jax.nn.relu(x_flat @ w_fc.T + b_fc)
    return y.reshape(B, 1, 3)


if __name__ == "__main__":
    key = jax.random.PRNGKey(0)
    pkey, xkey = jax.random.split(key)
    params = init_params(pkey)
    packed = pack_params(params)        # packed once, reused every forward

    # Input must be 8x8 so five 2x2 valid convs yield 3x3x256 = 2304 for fc1.
    x = jax.random.normal(xkey, (2, 1, 8, 8), jnp.float32)

    out = jax.block_until_ready(cnn_up_forward(packed, x))
    ref = jax.block_until_ready(cnn_up_reference(params, x))

    assert out.shape == (2, 1, 3), out.shape
    # bf16 MXU operands (f32 accumulation) -> tolerance loosened vs pure f32.
    assert jnp.allclose(out, ref, atol=1e-2, rtol=1e-2), (
        "mismatch vs reference: max abs err "
        f"{float(jnp.max(jnp.abs(out - ref)))}")

    print("KERNEL_OK")
</pallas_src>

<mosaic_0001>
module attributes {stable_mosaic.version = 11 : i64} {
  func.func @kernel(%arg0: memref<128x4xbf16, #tpu.memory_space<vmem>>, %arg1: memref<4x32xbf16, #tpu.memory_space<vmem>>, %arg2: memref<1x32xf32, #tpu.memory_space<vmem>>, %arg3: memref<4x32x64xbf16, #tpu.memory_space<vmem>>, %arg4: memref<1x64xf32, #tpu.memory_space<vmem>>, %arg5: memref<4x64x128xbf16, #tpu.memory_space<vmem>>, %arg6: memref<1x128xf32, #tpu.memory_space<vmem>>, %arg7: memref<4x128x256xbf16, #tpu.memory_space<vmem>>, %arg8: memref<1x256xf32, #tpu.memory_space<vmem>>, %arg9: memref<4x256x256xbf16, #tpu.memory_space<vmem>>, %arg10: memref<1x256xf32, #tpu.memory_space<vmem>>, %arg11: memref<9x256x128xbf16, #tpu.memory_space<vmem>>, %arg12: memref<1x128xf32, #tpu.memory_space<vmem>>, %arg13: memref<128x128xf32, #tpu.memory_space<vmem>>, %arg14: memref<144x32xf32, #tpu.memory_space<vmem>>, %arg15: memref<144x64xf32, #tpu.memory_space<vmem>>, %arg16: memref<144x128xf32, #tpu.memory_space<vmem>>, %arg17: memref<144x256xf32, #tpu.memory_space<vmem>>, %arg18: memref<152x256xf32, #tpu.memory_space<vmem>>) attributes {dimension_semantics = [], scalar_prefetch = 0 : i64, scratch_operands = 5 : i64, tpu.core_type = #tpu.core_type<tc>} {
    %cst = arith.constant 0.000000e+00 : f32
    %0 = vector.broadcast %cst : f32 to vector<16x32xf32>
    %c128 = arith.constant 128 : index
    %c0 = arith.constant 0 : index
    %1 = vector.load %arg14[%c128, %c0] : memref<144x32xf32, #tpu.memory_space<vmem>>, vector<16x32xf32>
    tpu.vector_store %arg14[%c128, %c0], %0 {strides = array<i32>} : memref<144x32xf32, #tpu.memory_space<vmem>>, vector<16x32xf32>,
    %cst_0 = arith.constant 0.000000e+00 : f32
    %2 = vector.broadcast %cst_0 : f32 to vector<16x64xf32>
    %c128_1 = arith.constant 128 : index
    %c0_2 = arith.constant 0 : index
    %3 = vector.load %arg15[%c128_1, %c0_2] : memref<144x64xf32, #tpu.memory_space<vmem>>, vector<16x64xf32>
    tpu.vector_store %arg15[%c128_1, %c0_2], %2 {strides = array<i32>} : memref<144x64xf32, #tpu.memory_space<vmem>>, vector<16x64xf32>,
    %cst_3 = arith.constant 0.000000e+00 : f32
    %4 = vector.broadcast %cst_3 : f32 to vector<16x128xf32>
    %c128_4 = arith.constant 128 : index
    %c0_5 = arith.constant 0 : index
    %5 = vector.load %arg16[%c128_4, %c0_5] : memref<144x128xf32, #tpu.memory_space<vmem>>, vector<16x128xf32>
    tpu.vector_store %arg16[%c128_4, %c0_5], %4 {strides = array<i32>} : memref<144x128xf32, #tpu.memory_space<vmem>>, vector<16x128xf32>,
    %cst_6 = arith.constant 0.000000e+00 : f32
    %6 = vector.broadcast %cst_6 : f32 to vector<16x256xf32>
    %c128_7 = arith.constant 128 : index
    %c0_8 = arith.constant 0 : index
    %7 = vector.load %arg17[%c128_7, %c0_8] : memref<144x256xf32, #tpu.memory_space<vmem>>, vector<16x256xf32>
    tpu.vector_store %arg17[%c128_7, %c0_8], %6 {strides = array<i32>} : memref<144x256xf32, #tpu.memory_space<vmem>>, vector<16x256xf32>,
    %cst_9 = arith.constant 0.000000e+00 : f32
    %8 = vector.broadcast %cst_9 : f32 to vector<24x256xf32>
    %c128_10 = arith.constant 128 : index
    %c0_11 = arith.constant 0 : index
    %9 = vector.load %arg18[%c128_10, %c0_11] : memref<152x256xf32, #tpu.memory_space<vmem>>, vector<24x256xf32>
    tpu.vector_store %arg18[%c128_10, %c0_11], %8 {strides = array<i32>} : memref<152x256xf32, #tpu.memory_space<vmem>>, vector<24x256xf32>,
    %c0_12 = arith.constant 0 : index
    %c0_13 = arith.constant 0 : index
    %10 = vector.load %arg0[%c0_12, %c0_13] : memref<128x4xbf16, #tpu.memory_space<vmem>>, vector<128x4xbf16>
    %c0_14 = arith.constant 0 : index
    %c0_15 = arith.constant 0 : index
    %11 = vector.load %arg1[%c0_14, %c0_15] : memref<4x32xbf16, #tpu.memory_space<vmem>>, vector<4x32xbf16>
    %cst_16 = arith.constant dense<0.000000e+00> : vector<128x32xf32>
    %12 = tpu.matmul %10, %11, %cst_16 {dimension_numbers = #tpu.dot_dimension_numbers<[1], [0], [0], [1], [0, 0, 1, 1], [], []>} : vector<128x4xbf16>, vector<4x32xbf16>, vector<128x32xf32> -> vector<128x32xf32>
    %c0_17 = arith.constant 0 : index
    %c0_18 = arith.constant 0 : index
    %13 = vector.load %arg2[%c0_17, %c0_18] : memref<1x32xf32, #tpu.memory_space<vmem>>, vector<1x32xf32>
    %14 = vector.broadcast %13 : vector<1x32xf32> to vector<128x32xf32>
    %15 = arith.addf %12, %14 : vector<128x32xf32>
    %cst_19 = arith.constant 0.000000e+00 : f32
    %16 = vector.broadcast %cst_19 : f32 to vector<128x32xf32>
    %17 = arith.maximumf %15, %16 : vector<128x32xf32>
    %c0_20 = arith.constant 0 : index
    %c0_21 = arith.constant 0 : index
    %18 = vector.load %arg14[%c0_20, %c0_21] : memref<144x32xf32, #tpu.memory_space<vmem>>, vector<128x32xf32>
    tpu.vector_store %arg14[%c0_20, %c0_21], %17 {strides = array<i32>} : memref<144x32xf32, #tpu.memory_space<vmem>>, vector<128x32xf32>,
    %cst_22 = arith.constant 0.000000e+00 : f32
    %19 = vector.broadcast %cst_22 : f32 to vector<128x64xf32>
    %c0_23 = arith.constant 0 : index
    %c0_24 = arith.constant 0 : index
    %20 = vector.load %arg14[%c0_23, %c0_24] : memref<144x32xf32, #tpu.memory_space<vmem>>, vector<128x32xf32>
    %21 = arith.truncf %20 : vector<128x32xf32> to vector<128x32xbf16>
    %c0_25 = arith.constant 0 : index
    %c0_26 = arith.constant 0 : index
    %c0_27 = arith.constant 0 : index
    %22 = vector.load %arg3[%c0_25, %c0_26, %c0_27] : memref<4x32x64xbf16, #tpu.memory_space<vmem>>, vector<1x32x64xbf16>
    %23 = vector.shape_cast %22 : vector<1x32x64xbf16> to vector<32x64xbf16>
    %cst_28 = arith.constant dense<0.000000e+00> : vector<128x64xf32>
    %24 = tpu.matmul %21, %23, %cst_28 {dimension_numbers = #tpu.dot_dimension_numbers<[1], [0], [0], [1], [0, 0, 1, 1], [], []>} : vector<128x32xbf16>, vector<32x64xbf16>, vector<128x64xf32> -> vector<128x64xf32>
    %25 = arith.addf %19, %24 : vector<128x64xf32>
    %c1 = arith.constant 1 : index
    %c0_29 = arith.constant 0 : index
    %26 = vector.load %arg14[%c1, %c0_29] : memref<144x32xf32, #tpu.memory_space<vmem>>, vector<128x32xf32>
    %27 = arith.truncf %26 : vector<128x32xf32> to vector<128x32xbf16>
    %c1_30 = arith.constant 1 : index
    %c0_31 = arith.constant 0 : index
    %c0_32 = arith.constant 0 : index
    %28 = vector.load %arg3[%c1_30, %c0_31, %c0_32] : memref<4x32x64xbf16, #tpu.memory_space<vmem>>, vector<1x32x64xbf16>
    %29 = vector.shape_cast %28 : vector<1x32x64xbf16> to vector<32x64xbf16>
    %cst_33 = arith.constant dense<0.000000e+00> : vector<128x64xf32>
    %30 = tpu.matmul %27, %29, %cst_33 {dimension_numbers = #tpu.dot_dimension_numbers<[1], [0], [0], [1], [0, 0, 1, 1], [], []>} : vector<128x32xbf16>, vector<32x64xbf16>, vector<128x64xf32> -> vector<128x64xf32>
    %31 = arith.addf %25, %30 : vector<128x64xf32>
    %c8 = arith.constant 8 : index
    %c0_34 = arith.constant 0 : index
    %32 = vector.load %arg14[%c8, %c0_34] : memref<144x32xf32, #tpu.memory_space<vmem>>, vector<128x32xf32>
    %33 = arith.truncf %32 : vector<128x32xf32> to vector<128x32xbf16>
    %c2 = arith.constant 2 : index
    %c0_35 = arith.constant 0 : index
    %c0_36 = arith.constant 0 : index
    %34 = vector.load %arg3[%c2, %c0_35, %c0_36] : memref<4x32x64xbf16, #tpu.memory_space<vmem>>, vector<1x32x64xbf16>
    %35 = vector.shape_cast %34 : vector<1x32x64xbf16> to vector<32x64xbf16>
    %cst_37 = arith.constant dense<0.000000e+00> : vector<128x64xf32>
    %36 = tpu.matmul %33, %35, %cst_37 {dimension_numbers = #tpu.dot_dimension_numbers<[1], [0], [0], [1], [0, 0, 1, 1], [], []>} : vector<128x32xbf16>, vector<32x64xbf16>, vector<128x64xf32> -> vector<128x64xf32>
    %37 = arith.addf %31, %36 : vector<128x64xf32>
    %c9 = arith.constant 9 : index
    %c0_38 = arith.constant 0 : index
    %38 = vector.load %arg14[%c9, %c0_38] : memref<144x32xf32, #tpu.memory_space<vmem>>, vector<128x32xf32>
    %39 = arith.truncf %38 : vector<128x32xf32> to vector<128x32xbf16>
    %c3 = arith.constant 3 : index
    %c0_39 = arith.constant 0 : index
    %c0_40 = arith.constant 0 : index
    %40 = vector.load %arg3[%c3, %c0_39, %c0_40] : memref<4x32x64xbf16, #tpu.memory_space<vmem>>, vector<1x32x64xbf16>
    %41 = vector.shape_cast %40 : vector<1x32x64xbf16> to vector<32x64xbf16>
    %cst_41 = arith.constant dense<0.000000e+00> : vector<128x64xf32>
    %42 = tpu.matmul %39, %41, %cst_41 {dimension_numbers = #tpu.dot_dimension_numbers<[1], [0], [0], [1], [0, 0, 1, 1], [], []>} : vector<128x32xbf16>, vector<32x64xbf16>, vector<128x64xf32> -> vector<128x64xf32>
    %43 = arith.addf %37, %42 : vector<128x64xf32>
    %c0_42 = arith.constant 0 : index
    %c0_43 = arith.constant 0 : index
    %44 = vector.load %arg4[%c0_42, %c0_43] : memref<1x64xf32, #tpu.memory_space<vmem>>, vector<1x64xf32>
    %45 = vector.broadcast %44 : vector<1x64xf32> to vector<128x64xf32>
    %46 = arith.addf %43, %45 : vector<128x64xf32>
    %cst_44 = arith.constant 0.000000e+00 : f32
    %47 = vector.broadcast %cst_44 : f32 to vector<128x64xf32>
    %48 = arith.maximumf %46, %47 : vector<128x64xf32>
    %c0_45 = arith.constant 0 : index
    %c0_46 = arith.constant 0 : index
    %49 = vector.load %arg15[%c0_45, %c0_46] : memref<144x64xf32, #tpu.memory_space<vmem>>, vector<128x64xf32>
    tpu.vector_store %arg15[%c0_45, %c0_46], %48 {strides = array<i32>} : memref<144x64xf32, #tpu.memory_space<vmem>>, vector<128x64xf32>,
    %cst_47 = arith.constant 0.000000e+00 : f32
    %50 = vector.broadcast %cst_47 : f32 to vector<128x128xf32>
    %c0_48 = arith.constant 0 : index
    %c0_49 = arith.constant 0 : index
    %51 = vector.load %arg15[%c0_48, %c0_49] : memref<144x64xf32, #tpu.memory_space<vmem>>, vector<128x64xf32>
    %52 = arith.truncf %51 : vector<128x64xf32> to vector<128x64xbf16>
    %c0_50 = arith.constant 0 : index
    %c0_51 = arith.constant 0 : index
    %c0_52 = arith.constant 0 : index
    %53 = vector.load %arg5[%c0_50, %c0_51, %c0_52] : memref<4x64x128xbf16, #tpu.memory_space<vmem>>, vector<1x64x128xbf16>
    %54 = vector.shape_cast %53 : vector<1x64x128xbf16> to vector<64x128xbf16>
    %cst_53 = arith.constant dense<0.000000e+00> : vector<128x128xf32>
    %55 = tpu.matmul %52, %54, %cst_53 {dimension_numbers = #tpu.dot_dimension_numbers<[1], [0], [0], [1], [0, 0, 1, 1], [], []>} : vector<128x64xbf16>, vector<64x128xbf16>, vector<128x128xf32> -> vector<128x128xf32>
    %56 = arith.addf %50, %55 : vector<128x128xf32>
    %c1_54 = arith.constant 1 : index
    %c0_55 = arith.constant 0 : index
    %57 = vector.load %arg15[%c1_54, %c0_55] : memref<144x64xf32, #tpu.memory_space<vmem>>, vector<128x64xf32>
    %58 = arith.truncf %57 : vector<128x64xf32> to vector<128x64xbf16>
    %c1_56 = arith.constant 1 : index
    %c0_57 = arith.constant 0 : index
    %c0_58 = arith.constant 0 : index
    %59 = vector.load %arg5[%c1_56, %c0_57, %c0_58] : memref<4x64x128xbf16, #tpu.memory_space<vmem>>, vector<1x64x128xbf16>
    %60 = vector.shape_cast %59 : vector<1x64x128xbf16> to vector<64x128xbf16>
    %cst_59 = arith.constant dense<0.000000e+00> : vector<128x128xf32>
    %61 = tpu.matmul %58, %60, %cst_59 {dimension_numbers = #tpu.dot_dimension_numbers<[1], [0], [0], [1], [0, 0, 1, 1], [], []>} : vector<128x64xbf16>, vector<64x128xbf16>, vector<128x128xf32> -> vector<128x128xf32>
    %62 = arith.addf %56, %61 : vector<128x128xf32>
    %c8_60 = arith.constant 8 : index
    %c0_61 = arith.constant 0 : index
    %63 = vector.load %arg15[%c8_60, %c0_61] : memref<144x64xf32, #tpu.memory_space<vmem>>, vector<128x64xf32>
    %64 = arith.truncf %63 : vector<128x64xf32> to vector<128x64xbf16>
    %c2_62 = arith.constant 2 : index
    %c0_63 = arith.constant 0 : index
    %c0_64 = arith.constant 0 : index
    %65 = vector.load %arg5[%c2_62, %c0_63, %c0_64] : memref<4x64x128xbf16, #tpu.memory_space<vmem>>, vector<1x64x128xbf16>
    %66 = vector.shape_cast %65 : vector<1x64x128xbf16> to vector<64x128xbf16>
    %cst_65 = arith.constant dense<0.000000e+00> : vector<128x128xf32>
    %67 = tpu.matmul %64, %66, %cst_65 {dimension_numbers = #tpu.dot_dimension_numbers<[1], [0], [0], [1], [0, 0, 1, 1], [], []>} : vector<128x64xbf16>, vector<64x128xbf16>, vector<128x128xf32> -> vector<128x128xf32>
    %68 = arith.addf %62, %67 : vector<128x128xf32>
    %c9_66 = arith.constant 9 : index
    %c0_67 = arith.constant 0 : index
    %69 = vector.load %arg15[%c9_66, %c0_67] : memref<144x64xf32, #tpu.memory_space<vmem>>, vector<128x64xf32>
    %70 = arith.truncf %69 : vector<128x64xf32> to vector<128x64xbf16>
    %c3_68 = arith.constant 3 : index
    %c0_69 = arith.constant 0 : index
    %c0_70 = arith.constant 0 : index
    %71 = vector.load %arg5[%c3_68, %c0_69, %c0_70] : memref<4x64x128xbf16, #tpu.memory_space<vmem>>, vector<1x64x128xbf16>
    %72 = vector.shape_cast %71 : vector<1x64x128xbf16> to vector<64x128xbf16>
    %cst_71 = arith.constant dense<0.000000e+00> : vector<128x128xf32>
    %73 = tpu.matmul %70, %72, %cst_71 {dimension_numbers = #tpu.dot_dimension_numbers<[1], [0], [0], [1], [0, 0, 1, 1], [], []>} : vector<128x64xbf16>, vector<64x128xbf16>, vector<128x128xf32> -> vector<128x128xf32>
    %74 = arith.addf %68, %73 : vector<128x128xf32>
    %c0_72 = arith.constant 0 : index
    %c0_73 = arith.constant 0 : index
    %75 = vector.load %arg6[%c0_72, %c0_73] : memref<1x128xf32, #tpu.memory_space<vmem>>, vector<1x128xf32>
    %76 = vector.broadcast %75 : vector<1x128xf32> to vector<128x128xf32>
    %77 = arith.addf %74, %76 : vector<128x128xf32>
    %cst_74 = arith.constant 0.000000e+00 : f32
    %78 = vector.broadcast %cst_74 : f32 to vector<128x128xf32>
    %79 = arith.maximumf %77, %78 : vector<128x128xf32>
    %c0_75 = arith.constant 0 : index
    %c0_76 = arith.constant 0 : index
    %80 = vector.load %arg16[%c0_75, %c0_76] : memref<144x128xf32, #tpu.memory_space<vmem>>, vector<128x128xf32>
    tpu.vector_store %arg16[%c0_75, %c0_76], %79 {strides = array<i32>} : memref<144x128xf32, #tpu.memory_space<vmem>>, vector<128x128xf32>,
    %cst_77 = arith.constant 0.000000e+00 : f32
    %81 = vector.broadcast %cst_77 : f32 to vector<128x256xf32>
    %c0_78 = arith.constant 0 : index
    %c0_79 = arith.constant 0 : index
    %82 = vector.load %arg16[%c0_78, %c0_79] : memref<144x128xf32, #tpu.memory_space<vmem>>, vector<128x128xf32>
    %83 = arith.truncf %82 : vector<128x128xf32> to vector<128x128xbf16>
    %c0_80 = arith.constant 0 : index
    %c0_81 = arith.constant 0 : index
    %c0_82 = arith.constant 0 : index
    %84 = vector.load %arg7[%c0_80, %c0_81, %c0_82] : memref<4x128x256xbf16, #tpu.memory_space<vmem>>, vector<1x128x256xbf16>
    %85 = vector.shape_cast %84 : vector<1x128x256xbf16> to vector<128x256xbf16>
    %cst_83 = arith.constant dense<0.000000e+00> : vector<128x256xf32>
    %86 = tpu.matmul %83, %85, %cst_83 {dimension_numbers = #tpu.dot_dimension_numbers<[1], [0], [0], [1], [0, 0, 1, 1], [], []>} : vector<128x128xbf16>, vector<128x256xbf16>, vector<128x256xf32> -> vector<128x256xf32>
    %87 = arith.addf %81, %86 : vector<128x256xf32>
    %c1_84 = arith.constant 1 : index
    %c0_85 = arith.constant 0 : index
    %88 = vector.load %arg16[%c1_84, %c0_85] : memref<144x128xf32, #tpu.memory_space<vmem>>, vector<128x128xf32>
    %89 = arith.truncf %88 : vector<128x128xf32> to vector<128x128xbf16>
    %c1_86 = arith.constant 1 : index
    %c0_87 = arith.constant 0 : index
    %c0_88 = arith.constant 0 : index
    %90 = vector.load %arg7[%c1_86, %c0_87, %c0_88] : memref<4x128x256xbf16, #tpu.memory_space<vmem>>, vector<1x128x256xbf16>
    %91 = vector.shape_cast %90 : vector<1x128x256xbf16> to vector<128x256xbf16>
    %cst_89 = arith.constant dense<0.000000e+00> : vector<128x256xf32>
    %92 = tpu.matmul %89, %91, %cst_89 {dimension_numbers = #tpu.dot_dimension_numbers<[1], [0], [0], [1], [0, 0, 1, 1], [], []>} : vector<128x128xbf16>, vector<128x256xbf16>, vector<128x256xf32> -> vector<128x256xf32>
    %93 = arith.addf %87, %92 : vector<128x256xf32>
    %c8_90 = arith.constant 8 : index
    %c0_91 = arith.constant 0 : index
    %94 = vector.load %arg16[%c8_90, %c0_91] : memref<144x128xf32, #tpu.memory_space<vmem>>, vector<128x128xf32>
    %95 = arith.truncf %94 : vector<128x128xf32> to vector<128x128xbf16>
    %c2_92 = arith.constant 2 : index
    %c0_93 = arith.constant 0 : index
    %c0_94 = arith.constant 0 : index
    %96 = vector.load %arg7[%c2_92, %c0_93, %c0_94] : memref<4x128x256xbf16, #tpu.memory_space<vmem>>, vector<1x128x256xbf16>
    %97 = vector.shape_cast %96 : vector<1x128x256xbf16> to vector<128x256xbf16>
    %cst_95 = arith.constant dense<0.000000e+00> : vector<128x256xf32>
    %98 = tpu.matmul %95, %97, %cst_95 {dimension_numbers = #tpu.dot_dimension_numbers<[1], [0], [0], [1], [0, 0, 1, 1], [], []>} : vector<128x128xbf16>, vector<128x256xbf16>, vector<128x256xf32> -> vector<128x256xf32>
    %99 = arith.addf %93, %98 : vector<128x256xf32>
    %c9_96 = arith.constant 9 : index
    %c0_97 = arith.constant 0 : index
    %100 = vector.load %arg16[%c9_96, %c0_97] : memref<144x128xf32, #tpu.memory_space<vmem>>, vector<128x128xf32>
    %101 = arith.truncf %100 : vector<128x128xf32> to vector<128x128xbf16>
    %c3_98 = arith.constant 3 : index
    %c0_99 = arith.constant 0 : index
    %c0_100 = arith.constant 0 : index
    %102 = vector.load %arg7[%c3_98, %c0_99, %c0_100] : memref<4x128x256xbf16, #tpu.memory_space<vmem>>, vector<1x128x256xbf16>
    %103 = vector.shape_cast %102 : vector<1x128x256xbf16> to vector<128x256xbf16>
    %cst_101 = arith.constant dense<0.000000e+00> : vector<128x256xf32>
    %104 = tpu.matmul %101, %103, %cst_101 {dimension_numbers = #tpu.dot_dimension_numbers<[1], [0], [0], [1], [0, 0, 1, 1], [], []>} : vector<128x128xbf16>, vector<128x256xbf16>, vector<128x256xf32> -> vector<128x256xf32>
    %105 = arith.addf %99, %104 : vector<128x256xf32>
    %c0_102 = arith.constant 0 : index
    %c0_103 = arith.constant 0 : index
    %106 = vector.load %arg8[%c0_102, %c0_103] : memref<1x256xf32, #tpu.memory_space<vmem>>, vector<1x256xf32>
    %107 = vector.broadcast %106 : vector<1x256xf32> to vector<128x256xf32>
    %108 = arith.addf %105, %107 : vector<128x256xf32>
    %cst_104 = arith.constant 0.000000e+00 : f32
    %109 = vector.broadcast %cst_104 : f32 to vector<128x256xf32>
    %110 = arith.maximumf %108, %109 : vector<128x256xf32>
    %c0_105 = arith.constant 0 : index
    %c0_106 = arith.constant 0 : index
    %111 = vector.load %arg17[%c0_105, %c0_106] : memref<144x256xf32, #tpu.memory_space<vmem>>, vector<128x256xf32>
    tpu.vector_store %arg17[%c0_105, %c0_106], %110 {strides = array<i32>} : memref<144x256xf32, #tpu.memory_space<vmem>>, vector<128x256xf32>,
    %cst_107 = arith.constant 0.000000e+00 : f32
    %112 = vector.broadcast %cst_107 : f32 to vector<128x256xf32>
    %c0_108 = arith.constant 0 : index
    %c0_109 = arith.constant 0 : index
    %113 = vector.load %arg17[%c0_108, %c0_109] : memref<144x256xf32, #tpu.memory_space<vmem>>, vector<128x256xf32>
    %114 = arith.truncf %113 : vector<128x256xf32> to vector<128x256xbf16>
    %c0_110 = arith.constant 0 : index
    %c0_111 = arith.constant 0 : index
    %c0_112 = arith.constant 0 : index
    %115 = vector.load %arg9[%c0_110, %c0_111, %c0_112] : memref<4x256x256xbf16, #tpu.memory_space<vmem>>, vector<1x256x256xbf16>
    %116 = vector.shape_cast %115 : vector<1x256x256xbf16> to vector<256x256xbf16>
    %cst_113 = arith.constant dense<0.000000e+00> : vector<128x256xf32>
    %117 = tpu.matmul %114, %116, %cst_113 {dimension_numbers = #tpu.dot_dimension_numbers<[1], [0], [0], [1], [0, 0, 1, 1], [], []>} : vector<128x256xbf16>, vector<256x256xbf16>, vector<128x256xf32> -> vector<128x256xf32>
    %118 = arith.addf %112, %117 : vector<128x256xf32>
    %c1_114 = arith.constant 1 : index
    %c0_115 = arith.constant 0 : index
    %119 = vector.load %arg17[%c1_114, %c0_115] : memref<144x256xf32, #tpu.memory_space<vmem>>, vector<128x256xf32>
    %120 = arith.truncf %119 : vector<128x256xf32> to vector<128x256xbf16>
    %c1_116 = arith.constant 1 : index
    %c0_117 = arith.constant 0 : index
    %c0_118 = arith.constant 0 : index
    %121 = vector.load %arg9[%c1_116, %c0_117, %c0_118] : memref<4x256x256xbf16, #tpu.memory_space<vmem>>, vector<1x256x256xbf16>
    %122 = vector.shape_cast %121 : vector<1x256x256xbf16> to vector<256x256xbf16>
    %cst_119 = arith.constant dense<0.000000e+00> : vector<128x256xf32>
    %123 = tpu.matmul %120, %122, %cst_119 {dimension_numbers = #tpu.dot_dimension_numbers<[1], [0], [0], [1], [0, 0, 1, 1], [], []>} : vector<128x256xbf16>, vector<256x256xbf16>, vector<128x256xf32> -> vector<128x256xf32>
    %124 = arith.addf %118, %123 : vector<128x256xf32>
    %c8_120 = arith.constant 8 : index
    %c0_121 = arith.constant 0 : index
    %125 = vector.load %arg17[%c8_120, %c0_121] : memref<144x256xf32, #tpu.memory_space<vmem>>, vector<128x256xf32>
    %126 = arith.truncf %125 : vector<128x256xf32> to vector<128x256xbf16>
    %c2_122 = arith.constant 2 : index
    %c0_123 = arith.constant 0 : index
    %c0_124 = arith.constant 0 : index
    %127 = vector.load %arg9[%c2_122, %c0_123, %c0_124] : memref<4x256x256xbf16, #tpu.memory_space<vmem>>, vector<1x256x256xbf16>
    %128 = vector.shape_cast %127 : vector<1x256x256xbf16> to vector<256x256xbf16>
    %cst_125 = arith.constant dense<0.000000e+00> : vector<128x256xf32>
    %129 = tpu.matmul %126, %128, %cst_125 {dimension_numbers = #tpu.dot_dimension_numbers<[1], [0], [0], [1], [0, 0, 1, 1], [], []>} : vector<128x256xbf16>, vector<256x256xbf16>, vector<128x256xf32> -> vector<128x256xf32>
    %130 = arith.addf %124, %129 : vector<128x256xf32>
    %c9_126 = arith.constant 9 : index
    %c0_127 = arith.constant 0 : index
    %131 = vector.load %arg17[%c9_126, %c0_127] : memref<144x256xf32, #tpu.memory_space<vmem>>, vector<128x256xf32>
    %132 = arith.truncf %131 : vector<128x256xf32> to vector<128x256xbf16>
    %c3_128 = arith.constant 3 : index
    %c0_129 = arith.constant 0 : index
    %c0_130 = arith.constant 0 : index
    %133 = vector.load %arg9[%c3_128, %c0_129, %c0_130] : memref<4x256x256xbf16, #tpu.memory_space<vmem>>, vector<1x256x256xbf16>
    %134 = vector.shape_cast %133 : vector<1x256x256xbf16> to vector<256x256xbf16>
    %cst_131 = arith.constant dense<0.000000e+00> : vector<128x256xf32>
    %135 = tpu.matmul %132, %134, %cst_131 {dimension_numbers = #tpu.dot_dimension_numbers<[1], [0], [0], [1], [0, 0, 1, 1], [], []>} : vector<128x256xbf16>, vector<256x256xbf16>, vector<128x256xf32> -> vector<128x256xf32>
    %136 = arith.addf %130, %135 : vector<128x256xf32>
    %c0_132 = arith.constant 0 : index
    %c0_133 = arith.constant 0 : index
    %137 = vector.load %arg10[%c0_132, %c0_133] : memref<1x256xf32, #tpu.memory_space<vmem>>, vector<1x256xf32>
    %138 = vector.broadcast %137 : vector<1x256xf32> to vector<128x256xf32>
    %139 = arith.addf %136, %138 : vector<128x256xf32>
    %cst_134 = arith.constant 0.000000e+00 : f32
    %140 = vector.broadcast %cst_134 : f32 to vector<128x256xf32>
    %141 = arith.maximumf %139, %140 : vector<128x256xf32>
    %c0_135 = arith.constant 0 : index
    %c0_136 = arith.constant 0 : index
    %142 = vector.load %arg18[%c0_135, %c0_136] : memref<152x256xf32, #tpu.memory_space<vmem>>, vector<128x256xf32>
    tpu.vector_store %arg18[%c0_135, %c0_136], %141 {strides = array<i32>} : memref<152x256xf32, #tpu.memory_space<vmem>>, vector<128x256xf32>,
    %cst_137 = arith.constant 0.000000e+00 : f32
    %143 = vector.broadcast %cst_137 : f32 to vector<128x128xf32>
    %c0_138 = arith.constant 0 : index
    %c0_139 = arith.constant 0 : index
    %144 = vector.load %arg18[%c0_138, %c0_139] : memref<152x256xf32, #tpu.memory_space<vmem>>, vector<128x256xf32>
    %145 = arith.truncf %144 : vector<128x256xf32> to vector<128x256xbf16>
    %c0_140 = arith.constant 0 : index
    %c0_141 = arith.constant 0 : index
    %c0_142 = arith.constant 0 : index
    %146 = vector.load %arg11[%c0_140, %c0_141, %c0_142] : memref<9x256x128xbf16, #tpu.memory_space<vmem>>, vector<1x256x128xbf16>
    %147 = vector.shape_cast %146 : vector<1x256x128xbf16> to vector<256x128xbf16>
    %cst_143 = arith.constant dense<0.000000e+00> : vector<128x128xf32>
    %148 = tpu.matmul %145, %147, %cst_143 {dimension_numbers = #tpu.dot_dimension_numbers<[1], [0], [0], [1], [0, 0, 1, 1], [], []>} : vector<128x256xbf16>, vector<256x128xbf16>, vector<128x128xf32> -> vector<128x128xf32>
    %149 = arith.addf %143, %148 : vector<128x128xf32>
    %c1_144 = arith.constant 1 : index
    %c0_145 = arith.constant 0 : index
    %150 = vector.load %arg18[%c1_144, %c0_145] : memref<152x256xf32, #tpu.memory_space<vmem>>, vector<128x256xf32>
    %151 = arith.truncf %150 : vector<128x256xf32> to vector<128x256xbf16>
    %c1_146 = arith.constant 1 : index
    %c0_147 = arith.constant 0 : index
    %c0_148 = arith.constant 0 : index
    %152 = vector.load %arg11[%c1_146, %c0_147, %c0_148] : memref<9x256x128xbf16, #tpu.memory_space<vmem>>, vector<1x256x128xbf16>
    %153 = vector.shape_cast %152 : vector<1x256x128xbf16> to vector<256x128xbf16>
    %cst_149 = arith.constant dense<0.000000e+00> : vector<128x128xf32>
    %154 = tpu.matmul %151, %153, %cst_149 {dimension_numbers = #tpu.dot_dimension_numbers<[1], [0], [0], [1], [0, 0, 1, 1], [], []>} : vector<128x256xbf16>, vector<256x128xbf16>, vector<128x128xf32> -> vector<128x128xf32>
    %155 = arith.addf %149, %154 : vector<128x128xf32>
    %c2_150 = arith.constant 2 : index
    %c0_151 = arith.constant 0 : index
    %156 = vector.load %arg18[%c2_150, %c0_151] : memref<152x256xf32, #tpu.memory_space<vmem>>, vector<128x256xf32>
    %157 = arith.truncf %156 : vector<128x256xf32> to vector<128x256xbf16>
    %c2_152 = arith.constant 2 : index
    %c0_153 = arith.constant 0 : index
    %c0_154 = arith.constant 0 : index
    %158 = vector.load %arg11[%c2_152, %c0_153, %c0_154] : memref<9x256x128xbf16, #tpu.memory_space<vmem>>, vector<1x256x128xbf16>
    %159 = vector.shape_cast %158 : vector<1x256x128xbf16> to vector<256x128xbf16>
    %cst_155 = arith.constant dense<0.000000e+00> : vector<128x128xf32>
    %160 = tpu.matmul %157, %159, %cst_155 {dimension_numbers = #tpu.dot_dimension_numbers<[1], [0], [0], [1], [0, 0, 1, 1], [], []>} : vector<128x256xbf16>, vector<256x128xbf16>, vector<128x128xf32> -> vector<128x128xf32>
    %161 = arith.addf %155, %160 : vector<128x128xf32>
    %c8_156 = arith.constant 8 : index
    %c0_157 = arith.constant 0 : index
    %162 = vector.load %arg18[%c8_156, %c0_157] : memref<152x256xf32, #tpu.memory_space<vmem>>, vector<128x256xf32>
    %163 = arith.truncf %162 : vector<128x256xf32> to vector<128x256xbf16>
    %c3_158 = arith.constant 3 : index
    %c0_159 = arith.constant 0 : index
    %c0_160 = arith.constant 0 : index
    %164 = vector.load %arg11[%c3_158, %c0_159, %c0_160] : memref<9x256x128xbf16, #tpu.memory_space<vmem>>, vector<1x256x128xbf16>
    %165 = vector.shape_cast %164 : vector<1x256x128xbf16> to vector<256x128xbf16>
    %cst_161 = arith.constant dense<0.000000e+00> : vector<128x128xf32>
    %166 = tpu.matmul %163, %165, %cst_161 {dimension_numbers = #tpu.dot_dimension_numbers<[1], [0], [0], [1], [0, 0, 1, 1], [], []>} : vector<128x256xbf16>, vector<256x128xbf16>, vector<128x128xf32> -> vector<128x128xf32>
    %167 = arith.addf %161, %166 : vector<128x128xf32>
    %c9_162 = arith.constant 9 : index
    %c0_163 = arith.constant 0 : index
    %168 = vector.load %arg18[%c9_162, %c0_163] : memref<152x256xf32, #tpu.memory_space<vmem>>, vector<128x256xf32>
    %169 = arith.truncf %168 : vector<128x256xf32> to vector<128x256xbf16>
    %c4 = arith.constant 4 : index
    %c0_164 = arith.constant 0 : index
    %c0_165 = arith.constant 0 : index
    %170 = vector.load %arg11[%c4, %c0_164, %c0_165] : memref<9x256x128xbf16, #tpu.memory_space<vmem>>, vector<1x256x128xbf16>
    %171 = vector.shape_cast %170 : vector<1x256x128xbf16> to vector<256x128xbf16>
    %cst_166 = arith.constant dense<0.000000e+00> : vector<128x128xf32>
    %172 = tpu.matmul %169, %171, %cst_166 {dimension_numbers = #tpu.dot_dimension_numbers<[1], [0], [0], [1], [0, 0, 1, 1], [], []>} : vector<128x256xbf16>, vector<256x128xbf16>, vector<128x128xf32> -> vector<128x128xf32>
    %173 = arith.addf %167, %172 : vector<128x128xf32>
    %c10 = arith.constant 10 : index
    %c0_167 = arith.constant 0 : index
    %174 = vector.load %arg18[%c10, %c0_167] : memref<152x256xf32, #tpu.memory_space<vmem>>, vector<128x256xf32>
    %175 = arith.truncf %174 : vector<128x256xf32> to vector<128x256xbf16>
    %c5 = arith.constant 5 : index
    %c0_168 = arith.constant 0 : index
    %c0_169 = arith.constant 0 : index
    %176 = vector.load %arg11[%c5, %c0_168, %c0_169] : memref<9x256x128xbf16, #tpu.memory_space<vmem>>, vector<1x256x128xbf16>
    %177 = vector.shape_cast %176 : vector<1x256x128xbf16> to vector<256x128xbf16>
    %cst_170 = arith.constant dense<0.000000e+00> : vector<128x128xf32>
    %178 = tpu.matmul %175, %177, %cst_170 {dimension_numbers = #tpu.dot_dimension_numbers<[1], [0], [0], [1], [0, 0, 1, 1], [], []>} : vector<128x256xbf16>, vector<256x128xbf16>, vector<128x128xf32> -> vector<128x128xf32>
    %179 = arith.addf %173, %178 : vector<128x128xf32>
    %c16 = arith.constant 16 : index
    %c0_171 = arith.constant 0 : index
    %180 = vector.load %arg18[%c16, %c0_171] : memref<152x256xf32, #tpu.memory_space<vmem>>, vector<128x256xf32>
    %181 = arith.truncf %180 : vector<128x256xf32> to vector<128x256xbf16>
    %c6 = arith.constant 6 : index
    %c0_172 = arith.constant 0 : index
    %c0_173 = arith.constant 0 : index
    %182 = vector.load %arg11[%c6, %c0_172, %c0_173] : memref<9x256x128xbf16, #tpu.memory_space<vmem>>, vector<1x256x128xbf16>
    %183 = vector.shape_cast %182 : vector<1x256x128xbf16> to vector<256x128xbf16>
    %cst_174 = arith.constant dense<0.000000e+00> : vector<128x128xf32>
    %184 = tpu.matmul %181, %183, %cst_174 {dimension_numbers = #tpu.dot_dimension_numbers<[1], [0], [0], [1], [0, 0, 1, 1], [], []>} : vector<128x256xbf16>, vector<256x128xbf16>, vector<128x128xf32> -> vector<128x128xf32>
    %185 = arith.addf %179, %184 : vector<128x128xf32>
    %c17 = arith.constant 17 : index
    %c0_175 = arith.constant 0 : index
    %186 = vector.load %arg18[%c17, %c0_175] : memref<152x256xf32, #tpu.memory_space<vmem>>, vector<128x256xf32>
    %187 = arith.truncf %186 : vector<128x256xf32> to vector<128x256xbf16>
    %c7 = arith.constant 7 : index
    %c0_176 = arith.constant 0 : index
    %c0_177 = arith.constant 0 : index
    %188 = vector.load %arg11[%c7, %c0_176, %c0_177] : memref<9x256x128xbf16, #tpu.memory_space<vmem>>, vector<1x256x128xbf16>
    %189 = vector.shape_cast %188 : vector<1x256x128xbf16> to vector<256x128xbf16>
    %cst_178 = arith.constant dense<0.000000e+00> : vector<128x128xf32>
    %190 = tpu.matmul %187, %189, %cst_178 {dimension_numbers = #tpu.dot_dimension_numbers<[1], [0], [0], [1], [0, 0, 1, 1], [], []>} : vector<128x256xbf16>, vector<256x128xbf16>, vector<128x128xf32> -> vector<128x128xf32>
    %191 = arith.addf %185, %190 : vector<128x128xf32>
    %c18 = arith.constant 18 : index
    %c0_179 = arith.constant 0 : index
    %192 = vector.load %arg18[%c18, %c0_179] : memref<152x256xf32, #tpu.memory_space<vmem>>, vector<128x256xf32>
    %193 = arith.truncf %192 : vector<128x256xf32> to vector<128x256xbf16>
    %c8_180 = arith.constant 8 : index
    %c0_181 = arith.constant 0 : index
    %c0_182 = arith.constant 0 : index
    %194 = vector.load %arg11[%c8_180, %c0_181, %c0_182] : memref<9x256x128xbf16, #tpu.memory_space<vmem>>, vector<1x256x128xbf16>
    %195 = vector.shape_cast %194 : vector<1x256x128xbf16> to vector<256x128xbf16>
    %cst_183 = arith.constant dense<0.000000e+00> : vector<128x128xf32>
    %196 = tpu.matmul %193, %195, %cst_183 {dimension_numbers = #tpu.dot_dimension_numbers<[1], [0], [0], [1], [0, 0, 1, 1], [], []>} : vector<128x256xbf16>, vector<256x128xbf16>, vector<128x128xf32> -> vector<128x128xf32>
    %197 = arith.addf %191, %196 : vector<128x128xf32>
    %c0_184 = arith.constant 0 : index
    %c0_185 = arith.constant 0 : index
    %198 = vector.load %arg12[%c0_184, %c0_185] : memref<1x128xf32, #tpu.memory_space<vmem>>, vector<1x128xf32>
    %199 = vector.broadcast %198 : vector<1x128xf32> to vector<128x128xf32>
    %200 = arith.addf %197, %199 : vector<128x128xf32>
    %cst_186 = arith.constant 0.000000e+00 : f32
    %201 = vector.broadcast %cst_186 : f32 to vector<128x128xf32>
    %202 = arith.maximumf %200, %201 : vector<128x128xf32>
    %c0_187 = arith.constant 0 : index
    %c0_188 = arith.constant 0 : index
    %203 = vector.load %arg13[%c0_187, %c0_188] : memref<128x128xf32, #tpu.memory_space<vmem>>, vector<128x128xf32>
    tpu.vector_store %arg13[%c0_187, %c0_188], %202 {strides = array<i32>} : memref<128x128xf32, #tpu.memory_space<vmem>>, vector<128x128xf32>,
    return
  }
}

</mosaic_0001>

<llo_original>
// kernel: cnn_up_forward.1
$region0: #{cnn_up_forward.1}
  #allocation0 [shape = 'u32[]', space=smem, size = 0x4, offset = 0x4, fixed_abs, tag = 'smem constant byte address 0x4 - core index']
  #allocation1 [shape = 'u32[144,128]{1,0:T(1,128)}', space=vmem, size = 0x12000, scoped, tag = 'internal scratch']
  #allocation2 [shape = 'f32[144,32]{1,0:T(8,128)}', space=vmem, size = 0x12000, scoped, tag = 'scratch operand']
  #allocation3 [shape = 'f32[144,64]{1,0:T(8,128)}', space=vmem, size = 0x12000, scoped, tag = 'scratch operand']
  #allocation4 [shape = 'f32[144,128]{1,0:T(8,128)}', space=vmem, size = 0x12000, scoped, tag = 'scratch operand']
  #allocation5 [shape = 'f32[144,256]{1,0:T(8,128)}', space=vmem, size = 0x24000, scoped, tag = 'scratch operand']
  #allocation6 [shape = 'f32[152,256]{1,0:T(8,128)}', space=vmem, size = 0x26000, scoped, tag = 'scratch operand']
  %s0 = inlined_call_operand.vmem [shape: bf16[128,4], index: 0, kind: input, shape index: {}]
  %s1 = inlined_call_operand.vmem [shape: bf16[4,32], index: 1, kind: input, shape index: {}]
  %s2 = inlined_call_operand.vmem [shape: f32[1,32], index: 2, kind: input, shape index: {}]
  %s3 = inlined_call_operand.vmem [shape: bf16[4,32,64], index: 3, kind: input, shape index: {}]
  %s4 = inlined_call_operand.vmem [shape: f32[1,64], index: 4, kind: input, shape index: {}]
  %s5 = inlined_call_operand.vmem [shape: bf16[4,64,128], index: 5, kind: input, shape index: {}]
  %s6 = inlined_call_operand.vmem [shape: f32[1,128], index: 6, kind: input, shape index: {}]
  %s7 = inlined_call_operand.hbm [shape: bf16[4,128,256], index: 7, kind: input, shape index: {}]
  %s8 = inlined_call_operand.vmem [shape: f32[1,256], index: 8, kind: input, shape index: {}]
  %s9 = inlined_call_operand.hbm [shape: bf16[4,256,256], index: 9, kind: input, shape index: {}]
  %s10 = inlined_call_operand.vmem [shape: f32[1,256], index: 10, kind: input, shape index: {}]
  %s11 = inlined_call_operand.hbm [shape: bf16[9,256,128], index: 11, kind: input, shape index: {}]
  %s12 = inlined_call_operand.vmem [shape: f32[1,128], index: 12, kind: input, shape index: {}]
  %s13 = inlined_call_operand.vmem [shape: f32[128,128], index: 13, kind: output, shape index: {}]
  %s14 = sld [smem:[#allocation0]]
  $region74: #{cnn_up_forward.1} parent=0
    _
  %s16 = ssub.s32 1, %s14
  %s17 = scalar_select 0, %s16, %s14
  $region1: #{cnn_up_forward.1} parent=0
    #allocation7 [shape = 'u8[262144]{0}', space=vmem, size = 0x40000, scoped, tag = 'input window, operand 7, single buffered']
    #allocation8 [shape = 's32[1]{0}', space=sflag, size = 0x4, scoped, tag = 'scoped memory for cnn_up_forward.1']
    #allocation9 [shape = 'u8[524288]{0}', space=vmem, size = 0x80000, scoped, tag = 'input window, operand 9, single buffered']
    #allocation10 [shape = 's32[1]{0}', space=sflag, size = 0x4, scoped, tag = 'scoped memory for cnn_up_forward.1']
    #allocation11 [shape = 'u8[589824]{0}', space=vmem, size = 0x90000, scoped, tag = 'input window, operand 11, single buffered']
    %18 = vsyncpa [#allocation8], 0
    %19 = vsyncpa [#allocation10], 0
    // Predicated region
    $region2: #{cnn_up_forward.1} parent=1 // pred_check
      _
    $region3: #{cnn_up_forward.1} parent=1 // pred_check_branch
      %21 = sbr.rel (0) target = $region5
    $region4: #{cnn_up_forward.1} parent=1 // pred_region
      _
    $region5: #{cnn_up_forward.1} parent=1 // pred_fallthru
      _
    // Predicated region
    $region6: #{cnn_up_forward.1} parent=1 // pred_check
      _
    $region7: #{cnn_up_forward.1} parent=1 // pred_check_branch
      %23 = sbr.rel (0) target = $region9
    $region8: #{cnn_up_forward.1} parent=1 // pred_region
      _
    $region9: #{cnn_up_forward.1} parent=1 // pred_fallthru
      _
    // Predicated region
    $region10: #{cnn_up_forward.1} parent=1 // pred_check
      _
    $region11: #{cnn_up_forward.1} parent=1 // pred_check_branch
      %25 = sbr.rel (0) target = $region13
    $region12: #{cnn_up_forward.1} parent=1 // pred_region
      _
    $region13: #{cnn_up_forward.1} parent=1 // pred_fallthru
      _
    // Predicated region
    $region14: #{cnn_up_forward.1} parent=1 // pred_check
      _
    $region15: #{cnn_up_forward.1} parent=1 // pred_check_branch
      %27 = sbr.rel (0) target = $region17
    $region16: #{cnn_up_forward.1} parent=1 // pred_region
      _
    $region17: #{cnn_up_forward.1} parent=1 // pred_fallthru
      _
    // Predicated region
    $region18: #{cnn_up_forward.1} parent=1 // pred_check
      _
    $region19: #{cnn_up_forward.1} parent=1 // pred_check_branch
      %29 = sbr.rel (0) target = $region21
    $region20: #{cnn_up_forward.1} parent=1 // pred_region
      _
    $region21: #{cnn_up_forward.1} parent=1 // pred_fallthru
      _
    // Predicated region
    $region22: #{cnn_up_forward.1} parent=1 // pred_check
      _
    $region23: #{cnn_up_forward.1} parent=1 // pred_check_branch
      %31 = sbr.rel (0) target = $region25
    $region24: #{cnn_up_forward.1} parent=1 // pred_region
      _
    $region25: #{cnn_up_forward.1} parent=1 // pred_fallthru
      _
    // Predicated region
    $region26: #{cnn_up_forward.1} parent=1 // pred_check
      _
    $region27: #{cnn_up_forward.1} parent=1 // pred_check_branch
      %33 = sbr.rel (0) target = $region29
    $region28: #{cnn_up_forward.1} parent=1 // pred_region
      _
    $region29: #{cnn_up_forward.1} parent=1 // pred_fallthru
      _
    // Predicated region
    $region30: #{cnn_up_forward.1} parent=1 // pred_check
      _
    $region31: #{cnn_up_forward.1} parent=1 // pred_check_branch
      %35 = sbr.rel (0) target = $region33
    $region32: #{cnn_up_forward.1} parent=1 // pred_region
      %s37 = ssub.s32 8192, 8192
      %38 = vsyncadd [#allocation8], %s37
      %s39 = sshll.u32 [#allocation7], 4
      %s40 = int_to_ptr.vmem [resolvable:$true] %s39
      %45 = dma.hbm_to_vmem [thread:$0]  %s7, 8192, %s40, [#allocation8], 128, 128, 8
    $region33: #{cnn_up_forward.1} parent=1 // pred_fallthru
      _
    // Predicated region
    $region34: #{cnn_up_forward.1} parent=1 // pred_check
      _
    $region35: #{cnn_up_forward.1} parent=1 // pred_check_branch
      %47 = sbr.rel (0) target = $region37
    $region36: #{cnn_up_forward.1} parent=1 // pred_region
      _
    $region37: #{cnn_up_forward.1} parent=1 // pred_fallthru
      _
    // Predicated region
    $region38: #{cnn_up_forward.1} parent=1 // pred_check
      _
    $region39: #{cnn_up_forward.1} parent=1 // pred_check_branch
      %49 = sbr.rel (0) target = $region41
    $region40: #{cnn_up_forward.1} parent=1 // pred_region
      %s51 = ssub.s32 16384, 16384
      %52 = vsyncadd [#allocation10], %s51
      %s53 = sshll.u32 [#allocation9], 4
      %s54 = int_to_ptr.vmem [resolvable:$true] %s53
      %59 = dma.hbm_to_vmem [thread:$0]  %s9, 16384, %s54, [#allocation10], 128, 128, 8
    $region41: #{cnn_up_forward.1} parent=1 // pred_fallthru
      _
    // Predicated region
    $region42: #{cnn_up_forward.1} parent=1 // pred_check
      _
    $region43: #{cnn_up_forward.1} parent=1 // pred_check_branch
      %61 = sbr.rel (0) target = $region45
    $region44: #{cnn_up_forward.1} parent=1 // pred_region
      _
    $region45: #{cnn_up_forward.1} parent=1 // pred_fallthru
      _
    // Predicated region
    $region46: #{cnn_up_forward.1} parent=1 // pred_check
      _
    $region47: #{cnn_up_forward.1} parent=1 // pred_check_branch
      %63 = sbr.rel (0) target = $region49
    $region48: #{cnn_up_forward.1} parent=1 // pred_region
      %s65 = ssub.s32 18432, 18432
      %66 = vsyncadd [#allocation10], %s65
      %s67 = sshll.u32 [#allocation11], 4
      %s68 = int_to_ptr.vmem [resolvable:$true] %s67
      %73 = dma.hbm_to_vmem [thread:$0]  %s11, 18432, %s68, [#allocation10], 64, 64, 4
    $region49: #{cnn_up_forward.1} parent=1 // pred_fallthru
      _
    // Predicated region
    $region50: #{cnn_up_forward.1} parent=1 // pred_check
      _
    $region51: #{cnn_up_forward.1} parent=1 // pred_check_branch
      %75 = sbr.rel (0) target = $region53
    $region52: #{cnn_up_forward.1} parent=1 // pred_region
      _
    $region53: #{cnn_up_forward.1} parent=1 // pred_fallthru
      _
    // Predicated region
    $region54: #{cnn_up_forward.1} parent=1 // pred_check
      _
    $region55: #{cnn_up_forward.1} parent=1 // pred_check_branch
      %77 = sbr.rel (0) target = $region57
    $region56: #{cnn_up_forward.1} parent=1 // pred_region
      %78 = dma.done [#allocation8], 8192
    $region57: #{cnn_up_forward.1} parent=1 // pred_fallthru
      _
    // Predicated region
    $region58: #{cnn_up_forward.1} parent=1 // pred_check
      _
    $region59: #{cnn_up_forward.1} parent=1 // pred_check_branch
      %80 = sbr.rel (0) target = $region61
    $region60: #{cnn_up_forward.1} parent=1 // pred_region
      %81 = dma.done [#allocation10], 16384
    $region61: #{cnn_up_forward.1} parent=1 // pred_fallthru
      _
    // Predicated region
    $region62: #{cnn_up_forward.1} parent=1 // pred_check
      _
    $region63: #{cnn_up_forward.1} parent=1 // pred_check_branch
      %83 = sbr.rel (0) target = $region65
    $region64: #{cnn_up_forward.1} parent=1 // pred_region
      %84 = dma.done [#allocation10], 18432
    $region65: #{cnn_up_forward.1} parent=1 // pred_fallthru
      _
    %vm86 = vcmask 261120
    %87 = vst.msk [vmem:[#allocation2 + $0x80] sm:$0xff] %vm86, 0.0
    %88 = vst.msk [vmem:[#allocation2 + $0x88] sm:$0xff] %vm86, 0.0
    %vm89 = vcmask 523264
    %90 = vst.msk [vmem:[#allocation3 + $0x80] sm:$0xff] %vm89, 0.0
    %91 = vst.msk [vmem:[#allocation3 + $0x88] sm:$0xff] %vm89, 0.0
    %92 = vst [vmem:[#allocation4 + $0x80] sm:$0xff] 0.0
    %93 = vst [vmem:[#allocation4 + $0x88] sm:$0xff] 0.0
    %94 = vst [vmem:[#allocation5 + $0x100] sm:$0xff] 0.0
    %95 = vst [vmem:[#allocation5 + $0x108] sm:$0xff] 0.0
    %96 = vst [vmem:[#allocation5 + $0x110] sm:$0xff] 0.0
    %97 = vst [vmem:[#allocation5 + $0x118] sm:$0xff] 0.0
    %98 = vst [vmem:[#allocation6 + $0x100] sm:$0xff] 0.0
    %99 = vst [vmem:[#allocation6 + $0x108] sm:$0xff] 0.0
    %100 = vst [vmem:[#allocation6 + $0x110] sm:$0xff] 0.0
    %101 = vst [vmem:[#allocation6 + $0x118] sm:$0xff] 0.0
    %102 = vst [vmem:[#allocation6 + $0x120] sm:$0xff] 0.0
    %103 = vst [vmem:[#allocation6 + $0x128] sm:$0xff] 0.0
    %v104 = vld [vmem:[%s0] sm:$0xf]
    %v105 = vld [vmem:[%s0 + $0x4] sm:$0xf]
    %v106 = vld [vmem:[%s0 + $0x8] sm:$0xf]
    %v107 = vld [vmem:[%s0 + $0xc] sm:$0xf]
    %v108 = vld [vmem:[%s0 + $0x10] sm:$0xf]
    %v109 = vld [vmem:[%s0 + $0x14] sm:$0xf]
    %v110 = vld [vmem:[%s0 + $0x18] sm:$0xf]
    %v111 = vld [vmem:[%s0 + $0x1c] sm:$0xf]
    %v112 = vld [vmem:[%s0 + $0x20] sm:$0xf]
    %v113 = vld [vmem:[%s0 + $0x24] sm:$0xf]
    %v114 = vld [vmem:[%s0 + $0x28] sm:$0xf]
    %v115 = vld [vmem:[%s0 + $0x2c] sm:$0xf]
    %v116 = vld [vmem:[%s0 + $0x30] sm:$0xf]
    %v117 = vld [vmem:[%s0 + $0x34] sm:$0xf]
    %v118 = vld [vmem:[%s0 + $0x38] sm:$0xf]
    %v119 = vld [vmem:[%s0 + $0x3c] sm:$0xf]
    %v120 = vld [vmem:[%s1] sm:$0x3]
    %v121 = vld [vmem:[%s2] sm:$0x1]
    %v123 = vlaneseq
    %v124 = vshrl.u32 %v123, 7
    %v125 = vsub.s32 0, %v124
    %v126 = vrot.slane %v121, %v125
    %v144 = vunpack.c.l.b16 %v104
    %v145 = vunpack.c.l.b16 %v105
    %v146 = vunpack.c.l.b16 %v106
    %v147 = vunpack.c.l.b16 %v107
    %v148 = vunpack.c.l.b16 %v108
    %v149 = vunpack.c.l.b16 %v109
    %v150 = vunpack.c.l.b16 %v110
    %v151 = vunpack.c.l.b16 %v111
    %v152 = vunpack.c.l.b16 %v112
    %v153 = vunpack.c.l.b16 %v113
    %v154 = vunpack.c.l.b16 %v114
    %v155 = vunpack.c.l.b16 %v115
    %v156 = vunpack.c.l.b16 %v116
    %v157 = vunpack.c.l.b16 %v117
    %v158 = vunpack.c.l.b16 %v118
    %v159 = vunpack.c.l.b16 %v119
    %v160 = vpack.c.b16 %v145, %v144
    %v161 = vpack.c.b16 %v147, %v146
    %v162 = vpack.c.b16 %v149, %v148
    %v163 = vpack.c.b16 %v151, %v150
    %v164 = vpack.c.b16 %v153, %v152
    %v165 = vpack.c.b16 %v155, %v154
    %v166 = vpack.c.b16 %v157, %v156
    %v167 = vpack.c.b16 %v159, %v158
    %vm168 = vcmask 31744
    %v170 = vsel %vm168, %v160, 0
    %v173 = vsel %vm168, %v161, 0
    %v176 = vsel %vm168, %v162, 0
    %v179 = vsel %vm168, %v163, 0
    %v182 = vsel %vm168, %v164, 0
    %v185 = vsel %vm168, %v165, 0
    %v188 = vsel %vm168, %v166, 0
    %v191 = vsel %vm168, %v167, 0
    %vm193 = vcmask 1041408
    %v195 = vsel %vm193, %v120, 0
    %197 = vmatprep.subr.bf16.mxu0 0
    %198 = vmatpush1.bf16.msra.mxu0 %v195
    %199 = vmatprep.subr.bf16.mxu0 0
    %200 = vmatpush1.bf16.msra.mxu0 0
    %201 = vmatprep.subr.bf16.mxu0 0
    %202 = vmatpush1.bf16.msra.mxu0 0
    %203 = vmatprep.subr.bf16.mxu0 0
    %204 = vmatpush1.bf16.msra.mxu0 0
    %205 = vmatprep.subr.bf16.mxu0 0
    %206 = vmatpush1.bf16.msra.mxu0 0
    %207 = vmatprep.subr.bf16.mxu0 0
    %208 = vmatpush1.bf16.msra.mxu0 0
    %209 = vmatprep.subr.bf16.mxu0 0
    %210 = vmatpush1.bf16.msra.mxu0 0
    %211 = vmatprep.subr.bf16.mxu0 0
    %212 = vmatpush1.bf16.msra.mxu0 0
    %213 = vmatprep.subr.bf16.mxu0 0
    %214 = vmatpush1.bf16.msra.mxu0 0
    %215 = vmatprep.subr.bf16.mxu0 0
    %216 = vmatpush1.bf16.msra.mxu0 0
    %217 = vmatprep.subr.bf16.mxu0 0
    %218 = vmatpush1.bf16.msra.mxu0 0
    %219 = vmatprep.subr.bf16.mxu0 0
    %220 = vmatpush1.bf16.msra.mxu0 0
    %221 = vmatprep.subr.bf16.mxu0 0
    %222 = vmatpush1.bf16.msra.mxu0 0
    %223 = vmatprep.subr.bf16.mxu0 0
    %224 = vmatpush1.bf16.msra.mxu0 0
    %225 = vmatprep.subr.bf16.mxu0 0
    %226 = vmatpush1.bf16.msra.mxu0 0
    %227 = vmatprep.subr.bf16.mxu0 0
    %228 = vmatpush1.bf16.msra.mxu0 0
    %229 = vmatprep.mubr.bf16.mxu0 0
    %230 = vmatmul.mubr.bf16.gmra.mrb[0].mxu0 %v170
    %v231 = vpop.f32.mrb[0].mxu0
    %v232 = vadd.f32 %v126, %v231
    %v233 = vpop.f32.mrb[0].mxu0
    %v234 = vpop.f32.mrb[0].mxu0
    %v235 = vadd.f32 %v126, %v234
    %v236 = vpop.f32.mrb[0].mxu0
    %237 = vmatprep.mubr.bf16.mxu0 0
    %238 = vmatmul.mubr.bf16.gmra.mrb[0].mxu0 %v173
    %v239 = vpop.f32.mrb[0].mxu0
    %v240 = vadd.f32 %v126, %v239
    %v241 = vpop.f32.mrb[0].mxu0
    %v242 = vpop.f32.mrb[0].mxu0
    %v243 = vadd.f32 %v126, %v242
    %v244 = vpop.f32.mrb[0].mxu0
    %245 = vmatprep.mubr.bf16.mxu0 0
    %246 = vmatmul.mubr.bf16.gmra.mrb[0].mxu0 %v176
    %v247 = vpop.f32.mrb[0].mxu0
    %v248 = vadd.f32 %v126, %v247
    %v249 = vpop.f32.mrb[0].mxu0
    %v250 = vpop.f32.mrb[0].mxu0
    %v251 = vadd.f32 %v126, %v250
    %v252 = vpop.f32.mrb[0].mxu0
    %253 = vmatprep.mubr.bf16.mxu0 0
    %254 = vmatmul.mubr.bf16.gmra.mrb[0].mxu0 %v179
    %v255 = vpop.f32.mrb[0].mxu0
    %v256 = vadd.f32 %v126, %v255
    %v257 = vpop.f32.mrb[0].mxu0
    %v258 = vpop.f32.mrb[0].mxu0
    %v259 = vadd.f32 %v126, %v258
    %v260 = vpop.f32.mrb[0].mxu0
    %261 = vmatprep.mubr.bf16.mxu0 0
    %262 = vmatmul.mubr.bf16.gmra.mrb[0].mxu0 %v182
    %v263 = vpop.f32.mrb[0].mxu0
    %v264 = vadd.f32 %v126, %v263
    %v265 = vpop.f32.mrb[0].mxu0
    %v266 = vpop.f32.mrb[0].mxu0
    %v267 = vadd.f32 %v126, %v266
    %v268 = vpop.f32.mrb[0].mxu0
    %269 = vmatprep.mubr.bf16.mxu0 0
    %270 = vmatmul.mubr.bf16.gmra.mrb[0].mxu0 %v185
    %v271 = vpop.f32.mrb[0].mxu0
    %v272 = vadd.f32 %v126, %v271
    %v273 = vpop.f32.mrb[0].mxu0
    %v274 = vpop.f32.mrb[0].mxu0
    %v275 = vadd.f32 %v126, %v274
    %v276 = vpop.f32.mrb[0].mxu0
    %277 = vmatprep.mubr.bf16.mxu0 0
    %278 = vmatmul.mubr.bf16.gmra.mrb[0].mxu0 %v188
    %v279 = vpop.f32.mrb[0].mxu0
    %v280 = vadd.f32 %v126, %v279
    %v281 = vpop.f32.mrb[0].mxu0
    %v282 = vpop.f32.mrb[0].mxu0
    %v283 = vadd.f32 %v126, %v282
    %v284 = vpop.f32.mrb[0].mxu0
    %285 = vmatprep.mubr.bf16.mxu0 0
    %286 = vmatmul.mubr.bf16.gmra.mrb[0].mxu0 %v191
    %v287 = vpop.f32.mrb[0].mxu0
    %v288 = vadd.f32 %v126, %v287
    %v289 = vpop.f32.mrb[0].mxu0
    %v290 = vpop.f32.mrb[0].mxu0
    %v291 = vadd.f32 %v126, %v290
    %v292 = vpop.f32.mrb[0].mxu0
    %293 = vdwg.mxu0
    %v294 = vmax.f32 %v232, 0.0
    %v295 = vmax.f32 %v235, 0.0
    %v296 = vmax.f32 %v240, 0.0
    %v297 = vmax.f32 %v243, 0.0
    %v298 = vmax.f32 %v248, 0.0
    %v299 = vmax.f32 %v251, 0.0
    %v300 = vmax.f32 %v256, 0.0
    %v301 = vmax.f32 %v259, 0.0
    %v302 = vmax.f32 %v264, 0.0
    %v303 = vmax.f32 %v267, 0.0
    %v304 = vmax.f32 %v272, 0.0
    %v305 = vmax.f32 %v275, 0.0
    %v306 = vmax.f32 %v280, 0.0
    %v307 = vmax.f32 %v283, 0.0
    %v308 = vmax.f32 %v288, 0.0
    %v309 = vmax.f32 %v291, 0.0
    %310 = vst.msk [vmem:[#allocation2] sm:$0xff] %vm86, %v294
    %311 = vst.msk [vmem:[#allocation2 + $0x8] sm:$0xff] %vm86, %v295
    %312 = vst.msk [vmem:[#allocation2 + $0x10] sm:$0xff] %vm86, %v296
    %313 = vst.msk [vmem:[#allocation2 + $0x18] sm:$0xff] %vm86, %v297
    %314 = vst.msk [vmem:[#allocation2 + $0x20] sm:$0xff] %vm86, %v298
    %315 = vst.msk [vmem:[#allocation2 + $0x28] sm:$0xff] %vm86, %v299
    %316 = vst.msk [vmem:[#allocation2 + $0x30] sm:$0xff] %vm86, %v300
    %317 = vst.msk [vmem:[#allocation2 + $0x38] sm:$0xff] %vm86, %v301
    %318 = vst.msk [vmem:[#allocation2 + $0x40] sm:$0xff] %vm86, %v302
    %319 = vst.msk [vmem:[#allocation2 + $0x48] sm:$0xff] %vm86, %v303
    %320 = vst.msk [vmem:[#allocation2 + $0x50] sm:$0xff] %vm86, %v304
    %321 = vst.msk [vmem:[#allocation2 + $0x58] sm:$0xff] %vm86, %v305
    %322 = vst.msk [vmem:[#allocation2 + $0x60] sm:$0xff] %vm86, %v306
    %323 = vst.msk [vmem:[#allocation2 + $0x68] sm:$0xff] %vm86, %v307
    %324 = vst.msk [vmem:[#allocation2 + $0x70] sm:$0xff] %vm86, %v308
    %325 = vst.msk [vmem:[#allocation2 + $0x78] sm:$0xff] %vm86, %v309
    %v326 = vld [vmem:[#allocation2] sm:$0xff]
    %v327 = vld [vmem:[#allocation2 + $0x8] sm:$0xff]
    %v328 = vld [vmem:[#allocation2 + $0x10] sm:$0xff]
    %v329 = vld [vmem:[#allocation2 + $0x18] sm:$0xff]
    %v330 = vld [vmem:[#allocation2 + $0x20] sm:$0xff]
    %v331 = vld [vmem:[#allocation2 + $0x28] sm:$0xff]
    %v332 = vld [vmem:[#allocation2 + $0x30] sm:$0xff]
    %v333 = vld [vmem:[#allocation2 + $0x38] sm:$0xff]
    %v334 = vld [vmem:[#allocation2 + $0x40] sm:$0xff]
    %v335 = vld [vmem:[#allocation2 + $0x48] sm:$0xff]
    %v336 = vld [vmem:[#allocation2 + $0x50] sm:$0xff]
    %v337 = vld [vmem:[#allocation2 + $0x58] sm:$0xff]
    %v338 = vld [vmem:[#allocation2 + $0x60] sm:$0xff]
    %v339 = vld [vmem:[#allocation2 + $0x68] sm:$0xff]
    %v340 = vld [vmem:[#allocation2 + $0x70] sm:$0xff]
    %v341 = vld [vmem:[#allocation2 + $0x78] sm:$0xff]
    %v342 = vpack.c.bf16 %v327, %v326
    %v343 = vpack.c.bf16 %v329, %v328
    %v344 = vpack.c.bf16 %v331, %v330
    %v345 = vpack.c.bf16 %v333, %v332
    %v346 = vpack.c.bf16 %v335, %v334
    %v347 = vpack.c.bf16 %v337, %v336
    %v348 = vpack.c.bf16 %v339, %v338
    %v349 = vpack.c.bf16 %v341, %v340
    %v350 = vld [vmem:[%s3] sm:$0xf]
    %v351 = vld [vmem:[%s3 + $0x4] sm:$0xf]
    %v352 = vld [vmem:[%s3 + $0x8] sm:$0xf]
    %v353 = vld [vmem:[%s3 + $0xc] sm:$0xf]
    %v354 = vld [vmem:[#allocation2 + $0x1] sm:$0xff]
    %v355 = vld [vmem:[#allocation2 + $0x9] sm:$0xff]
    %v356 = vld [vmem:[#allocation2 + $0x11] sm:$0xff]
    %v357 = vld [vmem:[#allocation2 + $0x19] sm:$0xff]
    %v358 = vld [vmem:[#allocation2 + $0x21] sm:$0xff]
    %v359 = vld [vmem:[#allocation2 + $0x29] sm:$0xff]
    %v360 = vld [vmem:[#allocation2 + $0x31] sm:$0xff]
    %v361 = vld [vmem:[#allocation2 + $0x39] sm:$0xff]
    %v362 = vld [vmem:[#allocation2 + $0x41] sm:$0xff]
    %v363 = vld [vmem:[#allocation2 + $0x49] sm:$0xff]
    %v364 = vld [vmem:[#allocation2 + $0x51] sm:$0xff]
    %v365 = vld [vmem:[#allocation2 + $0x59] sm:$0xff]
    %v366 = vld [vmem:[#allocation2 + $0x61] sm:$0xff]
    %v367 = vld [vmem:[#allocation2 + $0x69] sm:$0xff]
    %v368 = vld [vmem:[#allocation2 + $0x71] sm:$0xff]
    %v369 = vld [vmem:[#allocation2 + $0x79] sm:$0xff]
    %v370 = vpack.c.bf16 %v355, %v354
    %v371 = vpack.c.bf16 %v357, %v356
    %v372 = vpack.c.bf16 %v359, %v358
    %v373 = vpack.c.bf16 %v361, %v360
    %v374 = vpack.c.bf16 %v363, %v362
    %v375 = vpack.c.bf16 %v365, %v364
    %v376 = vpack.c.bf16 %v367, %v366
    %v377 = vpack.c.bf16 %v369, %v368
    %s378 = scalar_lea.vmem %s3, 16
    %v379 = vld [vmem:[%s378] sm:$0xf]
    %v380 = vld [vmem:[%s378 + $0x4] sm:$0xf]
    %v381 = vld [vmem:[%s378 + $0x8] sm:$0xf]
    %v382 = vld [vmem:[%s378 + $0xc] sm:$0xf]
    %v387 = vunpack.c.l.b16 %v379
    %v388 = vunpack.c.l.b16 %v380
    %v389 = vunpack.c.l.b16 %v381
    %v390 = vunpack.c.l.b16 %v382
    %v391 = vpack.c.b16 %v388, %v387
    %v392 = vpack.c.b16 %v390, %v389
    %v396 = vsel %vm86, %v370, 0
    %v399 = vsel %vm86, %v371, 0
    %v402 = vsel %vm86, %v372, 0
    %v405 = vsel %vm86, %v373, 0
    %v408 = vsel %vm86, %v374, 0
    %v411 = vsel %vm86, %v375, 0
    %v414 = vsel %vm86, %v376, 0
    %v417 = vsel %vm86, %v377, 0
    %419 = vmatprep.subr.bf16.mxu0 0
    %420 = vmatpush1.bf16.msra.mxu0 %v391
    %421 = vmatprep.subr.bf16.mxu0 0
    %422 = vmatpush1.bf16.msra.mxu0 %v392
    %423 = vmatprep.subr.bf16.mxu0 0
    %424 = vmatpush1.bf16.msra.mxu0 0
    %425 = vmatprep.subr.bf16.mxu0 0
    %426 = vmatpush1.bf16.msra.mxu0 0
    %427 = vmatprep.subr.bf16.mxu0 0
    %428 = vmatpush1.bf16.msra.mxu0 0
    %429 = vmatprep.subr.bf16.mxu0 0
    %430 = vmatpush1.bf16.msra.mxu0 0
    %431 = vmatprep.subr.bf16.mxu0 0
    %432 = vmatpush1.bf16.msra.mxu0 0
    %433 = vmatprep.subr.bf16.mxu0 0
    %434 = vmatpush1.bf16.msra.mxu0 0
    %435 = vmatprep.subr.bf16.mxu0 0
    %436 = vmatpush1.bf16.msra.mxu0 0
    %437 = vmatprep.subr.bf16.mxu0 0
    %438 = vmatpush1.bf16.msra.mxu0 0
    %439 = vmatprep.subr.bf16.mxu0 0
    %440 = vmatpush1.bf16.msra.mxu0 0
    %441 = vmatprep.subr.bf16.mxu0 0
    %442 = vmatpush1.bf16.msra.mxu0 0
    %443 = vmatprep.subr.bf16.mxu0 0
    %444 = vmatpush1.bf16.msra.mxu0 0
    %445 = vmatprep.subr.bf16.mxu0 0
    %446 = vmatpush1.bf16.msra.mxu0 0
    %447 = vmatprep.subr.bf16.mxu0 0
    %448 = vmatpush1.bf16.msra.mxu0 0
    %449 = vmatprep.subr.bf16.mxu0 0
    %450 = vmatpush1.bf16.msra.mxu0 0
    %451 = vmatprep.mubr.bf16.mxu0 0
    %452 = vmatmul.mubr.bf16.gmra.mrb[0].mxu0 %v396
    %v453 = vpop.f32.mrb[0].mxu0
    %v454 = vadd.f32 0.0, %v453
    %v455 = vpop.f32.mrb[0].mxu0
    %v456 = vpop.f32.mrb[0].mxu0
    %v457 = vadd.f32 0.0, %v456
    %v458 = vpop.f32.mrb[0].mxu0
    %459 = vmatprep.mubr.bf16.mxu0 0
    %460 = vmatmul.mubr.bf16.gmra.mrb[0].mxu0 %v399
    %v461 = vpop.f32.mrb[0].mxu0
    %v462 = vadd.f32 0.0, %v461
    %v463 = vpop.f32.mrb[0].mxu0
    %v464 = vpop.f32.mrb[0].mxu0
    %v465 = vadd.f32 0.0, %v464
    %v466 = vpop.f32.mrb[0].mxu0
    %467 = vmatprep.mubr.bf16.mxu0 0
    %468 = vmatmul.mubr.bf16.gmra.mrb[0].mxu0 %v402
    %v469 = vpop.f32.mrb[0].mxu0
    %v470 = vadd.f32 0.0, %v469
    %v471 = vpop.f32.mrb[0].mxu0
    %v472 = vpop.f32.mrb[0].mxu0
    %v473 = vadd.f32 0.0, %v472
    %v474 = vpop.f32.mrb[0].mxu0
    %475 = vmatprep.mubr.bf16.mxu0 0
    %476 = vmatmul.mubr.bf16.gmra.mrb[0].mxu0 %v405
    %v477 = vpop.f32.mrb[0].mxu0
    %v478 = vadd.f32 0.0, %v477
    %v479 = vpop.f32.mrb[0].mxu0
    %v480 = vpop.f32.mrb[0].mxu0
    %v481 = vadd.f32 0.0, %v480
    %v482 = vpop.f32.mrb[0].mxu0
    %483 = vmatprep.mubr.bf16.mxu0 0
    %484 = vmatmul.mubr.bf16.gmra.mrb[0].mxu0 %v408
    %v485 = vpop.f32.mrb[0].mxu0
    %v486 = vadd.f32 0.0, %v485
    %v487 = vpop.f32.mrb[0].mxu0
    %v488 = vpop.f32.mrb[0].mxu0
    %v489 = vadd.f32 0.0, %v488
    %v490 = vpop.f32.mrb[0].mxu0
    %491 = vmatprep.mubr.bf16.mxu0 0
    %492 = vmatmul.mubr.bf16.gmra.mrb[0].mxu0 %v411
    %v493 = vpop.f32.mrb[0].mxu0
    %v494 = vadd.f32 0.0, %v493
    %v495 = vpop.f32.mrb[0].mxu0
    %v496 = vpop.f32.mrb[0].mxu0
    %v497 = vadd.f32 0.0, %v496
    %v498 = vpop.f32.mrb[0].mxu0
    %499 = vmatprep.mubr.bf16.mxu0 0
    %500 = vmatmul.mubr.bf16.gmra.mrb[0].mxu0 %v414
    %v501 = vpop.f32.mrb[0].mxu0
    %v502 = vadd.f32 0.0, %v501
    %v503 = vpop.f32.mrb[0].mxu0
    %v504 = vpop.f32.mrb[0].mxu0
    %v505 = vadd.f32 0.0, %v504
    %v506 = vpop.f32.mrb[0].mxu0
    %507 = vmatprep.mubr.bf16.mxu0 0
    %508 = vmatmul.mubr.bf16.gmra.mrb[0].mxu0 %v417
    %v509 = vpop.f32.mrb[0].mxu0
    %v510 = vadd.f32 0.0, %v509
    %v511 = vpop.f32.mrb[0].mxu0
    %v512 = vpop.f32.mrb[0].mxu0
    %v513 = vadd.f32 0.0, %v512
    %v514 = vpop.f32.mrb[0].mxu0
    %515 = vdwg.mxu0
    %v520 = vunpack.c.l.b16 %v350
    %v521 = vunpack.c.l.b16 %v351
    %v522 = vunpack.c.l.b16 %v352
    %v523 = vunpack.c.l.b16 %v353
    %v524 = vpack.c.b16 %v521, %v520
    %v525 = vpack.c.b16 %v523, %v522
    %v529 = vsel %vm86, %v342, 0
    %v532 = vsel %vm86, %v343, 0
    %v535 = vsel %vm86, %v344, 0
    %v538 = vsel %vm86, %v345, 0
    %v541 = vsel %vm86, %v346, 0
    %v544 = vsel %vm86, %v347, 0
    %v547 = vsel %vm86, %v348, 0
    %v550 = vsel %vm86, %v349, 0
    %552 = vmatprep.subr.bf16.mxu0 0
    %553 = vmatpush1.bf16.msra.mxu0 %v524
    %554 = vmatprep.subr.bf16.mxu0 0
    %555 = vmatpush1.bf16.msra.mxu0 %v525
    %556 = vmatprep.subr.bf16.mxu0 0
    %557 = vmatpush1.bf16.msra.mxu0 0
    %558 = vmatprep.subr.bf16.mxu0 0
    %559 = vmatpush1.bf16.msra.mxu0 0
    %560 = vmatprep.subr.bf16.mxu0 0
    %561 = vmatpush1.bf16.msra.mxu0 0
    %562 = vmatprep.subr.bf16.mxu0 0
    %563 = vmatpush1.bf16.msra.mxu0 0
    %564 = vmatprep.subr.bf16.mxu0 0
    %565 = vmatpush1.bf16.msra.mxu0 0
    %566 = vmatprep.subr.bf16.mxu0 0
    %567 = vmatpush1.bf16.msra.mxu0 0
    %568 = vmatprep.subr.bf16.mxu0 0
    %569 = vmatpush1.bf16.msra.mxu0 0
    %570 = vmatprep.subr.bf16.mxu0 0
    %571 = vmatpush1.bf16.msra.mxu0 0
    %572 = vmatprep.subr.bf16.mxu0 0
    %573 = vmatpush1.bf16.msra.mxu0 0
    %574 = vmatprep.subr.bf16.mxu0 0
    %575 = vmatpush1.bf16.msra.mxu0 0
    %576 = vmatprep.subr.bf16.mxu0 0
    %577 = vmatpush1.bf16.msra.mxu0 0
    %578 = vmatprep.subr.bf16.mxu0 0
    %579 = vmatpush1.bf16.msra.mxu0 0
    %580 = vmatprep.subr.bf16.mxu0 0
    %581 = vmatpush1.bf16.msra.mxu0 0
    %582 = vmatprep.subr.bf16.mxu0 0
    %583 = vmatpush1.bf16.msra.mxu0 0
    %584 = vmatprep.mubr.bf16.mxu0 0
    %585 = vmatmul.mubr.bf16.gmra.mrb[0].mxu0 %v529
    %v586 = vpop.f32.mrb[0].mxu0
    %v587 = vadd.f32 %v454, %v586
    %v588 = vpop.f32.mrb[0].mxu0
    %v589 = vpop.f32.mrb[0].mxu0
    %v590 = vadd.f32 %v457, %v589
    %v591 = vpop.f32.mrb[0].mxu0
    %592 = vmatprep.mubr.bf16.mxu0 0
    %593 = vmatmul.mubr.bf16.gmra.mrb[0].mxu0 %v532
    %v594 = vpop.f32.mrb[0].mxu0
    %v595 = vadd.f32 %v462, %v594
    %v596 = vpop.f32.mrb[0].mxu0
    %v597 = vpop.f32.mrb[0].mxu0
    %v598 = vadd.f32 %v465, %v597
    %v599 = vpop.f32.mrb[0].mxu0
    %600 = vmatprep.mubr.bf16.mxu0 0
    %601 = vmatmul.mubr.bf16.gmra.mrb[0].mxu0 %v535
    %v602 = vpop.f32.mrb[0].mxu0
    %v603 = vadd.f32 %v470, %v602
    %v604 = vpop.f32.mrb[0].mxu0
    %v605 = vpop.f32.mrb[0].mxu0
    %v606 = vadd.f32 %v473, %v605
    %v607 = vpop.f32.mrb[0].mxu0
    %608 = vmatprep.mubr.bf16.mxu0 0
    %609 = vmatmul.mubr.bf16.gmra.mrb[0].mxu0 %v538
    %v610 = vpop.f32.mrb[0].mxu0
    %v611 = vadd.f32 %v478, %v610
    %v612 = vpop.f32.mrb[0].mxu0
    %v613 = vpop.f32.mrb[0].mxu0
    %v614 = vadd.f32 %v481, %v613
    %v615 = vpop.f32.mrb[0].mxu0
    %616 = vmatprep.mubr.bf16.mxu0 0
    %617 = vmatmul.mubr.bf16.gmra.mrb[0].mxu0 %v541
    %v618 = vpop.f32.mrb[0].mxu0
    %v619 = vadd.f32 %v486, %v618
    %v620 = vpop.f32.mrb[0].mxu0
    %v621 = vpop.f32.mrb[0].mxu0
    %v622 = vadd.f32 %v489, %v621
    %v623 = vpop.f32.mrb[0].mxu0
    %624 = vmatprep.mubr.bf16.mxu0 0
    %625 = vmatmul.mubr.bf16.gmra.mrb[0].mxu0 %v544
    %v626 = vpop.f32.mrb[0].mxu0
    %v627 = vadd.f32 %v494, %v626
    %v628 = vpop.f32.mrb[0].mxu0
    %v629 = vpop.f32.mrb[0].mxu0
    %v630 = vadd.f32 %v497, %v629
    %v631 = vpop.f32.mrb[0].mxu0
    %632 = vmatprep.mubr.bf16.mxu0 0
    %633 = vmatmul.mubr.bf16.gmra.mrb[0].mxu0 %v547
    %v634 = vpop.f32.mrb[0].mxu0
    %v635 = vadd.f32 %v502, %v634
    %v636 = vpop.f32.mrb[0].mxu0
    %v637 = vpop.f32.mrb[0].mxu0
    %v638 = vadd.f32 %v505, %v637
    %v639 = vpop.f32.mrb[0].mxu0
    %640 = vmatprep.mubr.bf16.mxu0 0
    %641 = vmatmul.mubr.bf16.gmra.mrb[0].mxu0 %v550
    %v642 = vpop.f32.mrb[0].mxu0
    %v643 = vadd.f32 %v510, %v642
    %v644 = vpop.f32.mrb[0].mxu0
    %v645 = vpop.f32.mrb[0].mxu0
    %v646 = vadd.f32 %v513, %v645
    %v647 = vpop.f32.mrb[0].mxu0
    %648 = vdwg.mxu0
    %v649 = vld [vmem:[#allocation2 + $0x8] sm:$0xff]
    %v650 = vld [vmem:[#allocation2 + $0x10] sm:$0xff]
    %v651 = vld [vmem:[#allocation2 + $0x18] sm:$0xff]
    %v652 = vld [vmem:[#allocation2 + $0x20] sm:$0xff]
    %v653 = vld [vmem:[#allocation2 + $0x28] sm:$0xff]
    %v654 = vld [vmem:[#allocation2 + $0x30] sm:$0xff]
    %v655 = vld [vmem:[#allocation2 + $0x38] sm:$0xff]
    %v656 = vld [vmem:[#allocation2 + $0x40] sm:$0xff]
    %v657 = vld [vmem:[#allocation2 + $0x48] sm:$0xff]
    %v658 = vld [vmem:[#allocation2 + $0x50] sm:$0xff]
    %v659 = vld [vmem:[#allocation2 + $0x58] sm:$0xff]
    %v660 = vld [vmem:[#allocation2 + $0x60] sm:$0xff]
    %v661 = vld [vmem:[#allocation2 + $0x68] sm:$0xff]
    %v662 = vld [vmem:[#allocation2 + $0x70] sm:$0xff]
    %v663 = vld [vmem:[#allocation2 + $0x78] sm:$0xff]
    %v664 = vld [vmem:[#allocation2 + $0x80] sm:$0xff]
    %v665 = vpack.c.bf16 %v650, %v649
    %v666 = vpack.c.bf16 %v652, %v651
    %v667 = vpack.c.bf16 %v654, %v653
    %v668 = vpack.c.bf16 %v656, %v655
    %v669 = vpack.c.bf16 %v658, %v657
    %v670 = vpack.c.bf16 %v660, %v659
    %v671 = vpack.c.bf16 %v662, %v661
    %v672 = vpack.c.bf16 %v664, %v663
    %s673 = scalar_lea.vmem %s3, 32
    %v674 = vld [vmem:[%s673] sm:$0xf]
    %v675 = vld [vmem:[%s673 + $0x4] sm:$0xf]
    %v676 = vld [vmem:[%s673 + $0x8] sm:$0xf]
    %v677 = vld [vmem:[%s673 + $0xc] sm:$0xf]
    %v682 = vunpack.c.l.b16 %v674
    %v683 = vunpack.c.l.b16 %v675
    %v684 = vunpack.c.l.b16 %v676
    %v685 = vunpack.c.l.b16 %v677
    %v686 = vpack.c.b16 %v683, %v682
    %v687 = vpack.c.b16 %v685, %v684
    %v691 = vsel %vm86, %v665, 0
    %v694 = vsel %vm86, %v666, 0
    %v697 = vsel %vm86, %v667, 0
    %v700 = vsel %vm86, %v668, 0
    %v703 = vsel %vm86, %v669, 0
    %v706 = vsel %vm86, %v670, 0
    %v709 = vsel %vm86, %v671, 0
    %v712 = vsel %vm86, %v672, 0
    %714 = vmatprep.subr.bf16.mxu0 0
    %715 = vmatpush1.bf16.msra.mxu0 %v686
    %716 = vmatprep.subr.bf16.mxu0 0
    %717 = vmatpush1.bf16.msra.mxu0 %v687
    %718 = vmatprep.subr.bf16.mxu0 0
    %719 = vmatpush1.bf16.msra.mxu0 0
    %720 = vmatprep.subr.bf16.mxu0 0
    %721 = vmatpush1.bf16.msra.mxu0 0
    %722 = vmatprep.subr.bf16.mxu0 0
    %723 = vmatpush1.bf16.msra.mxu0 0
    %724 = vmatprep.subr.bf16.mxu0 0
    %725 = vmatpush1.bf16.msra.mxu0 0
    %726 = vmatprep.subr.bf16.mxu0 0
    %727 = vmatpush1.bf16.msra.mxu0 0
    %728 = vmatprep.subr.bf16.mxu0 0
    %729 = vmatpush1.bf16.msra.mxu0 0
    %730 = vmatprep.subr.bf16.mxu0 0
    %731 = vmatpush1.bf16.msra.mxu0 0
    %732 = vmatprep.subr.bf16.mxu0 0
    %733 = vmatpush1.bf16.msra.mxu0 0
    %734 = vmatprep.subr.bf16.mxu0 0
    %735 = vmatpush1.bf16.msra.mxu0 0
    %736 = vmatprep.subr.bf16.mxu0 0
    %737 = vmatpush1.bf16.msra.mxu0 0
    %738 = vmatprep.subr.bf16.mxu0 0
    %739 = vmatpush1.bf16.msra.mxu0 0
    %740 = vmatprep.subr.bf16.mxu0 0
    %741 = vmatpush1.bf16.msra.mxu0 0
    %742 = vmatprep.subr.bf16.mxu0 0
    %743 = vmatpush1.bf16.msra.mxu0 0
    %744 = vmatprep.subr.bf16.mxu0 0
    %745 = vmatpush1.bf16.msra.mxu0 0
    %746 = vmatprep.mubr.bf16.mxu0 0
    %747 = vmatmul.mubr.bf16.gmra.mrb[0].mxu0 %v691
    %v748 = vpop.f32.mrb[0].mxu0
    %v749 = vadd.f32 0.0, %v748
    %v750 = vpop.f32.mrb[0].mxu0
    %v751 = vpop.f32.mrb[0].mxu0
    %v752 = vadd.f32 0.0, %v751
    %v753 = vpop.f32.mrb[0].mxu0
    %754 = vmatprep.mubr.bf16.mxu0 0
    %755 = vmatmul.mubr.bf16.gmra.mrb[0].mxu0 %v694
    %v756 = vpop.f32.mrb[0].mxu0
    %v757 = vadd.f32 0.0, %v756
    %v758 = vpop.f32.mrb[0].mxu0
    %v759 = vpop.f32.mrb[0].mxu0
    %v760 = vadd.f32 0.0, %v759
    %v761 = vpop.f32.mrb[0].mxu0
    %762 = vmatprep.mubr.bf16.mxu0 0
    %763 = vmatmul.mubr.bf16.gmra.mrb[0].mxu0 %v697
    %v764 = vpop.f32.mrb[0].mxu0
    %v765 = vadd.f32 0.0, %v764
    %v766 = vpop.f32.mrb[0].mxu0
    %v767 = vpop.f32.mrb[0].mxu0
    %v768 = vadd.f32 0.0, %v767
    %v769 = vpop.f32.mrb[0].mxu0
    %770 = vmatprep.mubr.bf16.mxu0 0
    %771 = vmatmul.mubr.bf16.gmra.mrb[0].mxu0 %v700
    %v772 = vpop.f32.mrb[0].mxu0
    %v773 = vadd.f32 0.0, %v772
    %v774 = vpop.f32.mrb[0].mxu0
    %v775 = vpop.f32.mrb[0].mxu0
    %v776 = vadd.f32 0.0, %v775
    %v777 = vpop.f32.mrb[0].mxu0
    %778 = vmatprep.mubr.bf16.mxu0 0
    %779 = vmatmul.mubr.bf16.gmra.mrb[0].mxu0 %v703
    %v780 = vpop.f32.mrb[0].mxu0
    %v781 = vadd.f32 0.0, %v780
    %v782 = vpop.f32.mrb[0].mxu0
    %v783 = vpop.f32.mrb[0].mxu0
    %v784 = vadd.f32 0.0, %v783
    %v785 = vpop.f32.mrb[0].mxu0
    %786 = vmatprep.mubr.bf16.mxu0 0
    %787 = vmatmul.mubr.bf16.gmra.mrb[0].mxu0 %v706
    %v788 = vpop.f32.mrb[0].mxu0
    %v789 = vadd.f32 0.0, %v788
    %v790 = vpop.f32.mrb[0].mxu0
    %v791 = vpop.f32.mrb[0].mxu0
    %v792 = vadd.f32 0.0, %v791
    %v793 = vpop.f32.mrb[0].mxu0
    %794 = vmatprep.mubr.bf16.mxu0 0
    %795 = vmatmul.mubr.bf16.gmra.mrb[0].mxu0 %v709
    %v796 = vpop.f32.mrb[0].mxu0
    %v797 = vadd.f32 0.0, %v796
    %v798 = vpop.f32.mrb[0].mxu0
    %v799 = vpop.f32.mrb[0].mxu0
    %v800 = vadd.f32 0.0, %v799
    %v801 = vpop.f32.mrb[0].mxu0
    %802 = vmatprep.mubr.bf16.mxu0 0
    %803 = vmatmul.mubr.bf16.gmra.mrb[0].mxu0 %v712
    %v804 = vpop.f32.mrb[0].mxu0
    %v805 = vadd.f32 0.0, %v804
    %v806 = vpop.f32.mrb[0].mxu0
    %v807 = vpop.f32.mrb[0].mxu0
    %v808 = vadd.f32 0.0, %v807
    %v809 = vpop.f32.mrb[0].mxu0
    %810 = vdwg.mxu0
    %v811 = vadd.f32 %v587, %v749
    %v812 = vadd.f32 %v590, %v752
    %v813 = vadd.f32 %v595, %v757
    %v814 = vadd.f32 %v598, %v760
    %v815 = vadd.f32 %v603, %v765
    %v816 = vadd.f32 %v606, %v768
    %v817 = vadd.f32 %v611, %v773
    %v818 = vadd.f32 %v614, %v776
    %v819 = vadd.f32 %v619, %v781
    %v820 = vadd.f32 %v622, %v784
    %v821 = vadd.f32 %v627, %v789
    %v822 = vadd.f32 %v630, %v792
    %v823 = vadd.f32 %v635, %v797
    %v824 = vadd.f32 %v638, %v800
    %v825 = vadd.f32 %v643, %v805
    %v826 = vadd.f32 %v646, %v808
    %v827 = vld [vmem:[#allocation2 + $0x9] sm:$0xff]
    %v828 = vld [vmem:[#allocation2 + $0x11] sm:$0xff]
    %v829 = vld [vmem:[#allocation2 + $0x19] sm:$0xff]
    %v830 = vld [vmem:[#allocation2 + $0x21] sm:$0xff]
    %v831 = vld [vmem:[#allocation2 + $0x29] sm:$0xff]
    %v832 = vld [vmem:[#allocation2 + $0x31] sm:$0xff]
    %v833 = vld [vmem:[#allocation2 + $0x39] sm:$0xff]
    %v834 = vld [vmem:[#allocation2 + $0x41] sm:$0xff]
    %v835 = vld [vmem:[#allocation2 + $0x49] sm:$0xff]
    %v836 = vld [vmem:[#allocation2 + $0x51] sm:$0xff]
    %v837 = vld [vmem:[#allocation2 + $0x59] sm:$0xff]
    %v838 = vld [vmem:[#allocation2 + $0x61] sm:$0xff]
    %v839 = vld [vmem:[#allocation2 + $0x69] sm:$0xff]
    %v840 = vld [vmem:[#allocation2 + $0x71] sm:$0xff]
    %v841 = vld [vmem:[#allocation2 + $0x79] sm:$0xff]
    %v842 = vld [vmem:[#allocation2 + $0x81] sm:$0xff]
    %v843 = vpack.c.bf16 %v828, %v827
    %v844 = vpack.c.bf16 %v830, %v829
    %v845 = vpack.c.bf16 %v832, %v831
    %v846 = vpack.c.bf16 %v834, %v833
    %v847 = vpack.c.bf16 %v836, %v835
    %v848 = vpack.c.bf16 %v838, %v837
    %v849 = vpack.c.bf16 %v840, %v839
    %v850 = vpack.c.bf16 %v842, %v841
    %s851 = scalar_lea.vmem %s3, 48
    %v852 = vld [vmem:[%s851] sm:$0xf]
    %v853 = vld [vmem:[%s851 + $0x4] sm:$0xf]
    %v854 = vld [vmem:[%s851 + $0x8] sm:$0xf]
    %v855 = vld [vmem:[%s851 + $0xc] sm:$0xf]
    %v860 = vunpack.c.l.b16 %v852
    %v861 = vunpack.c.l.b16 %v853
    %v862 = vunpack.c.l.b16 %v854
    %v863 = vunpack.c.l.b16 %v855
    %v864 = vpack.c.b16 %v861, %v860
    %v865 = vpack.c.b16 %v863, %v862
    %v869 = vsel %vm86, %v843, 0
    %v872 = vsel %vm86, %v844, 0
    %v875 = vsel %vm86, %v845, 0
    %v878 = vsel %vm86, %v846, 0
    %v881 = vsel %vm86, %v847, 0
    %v884 = vsel %vm86, %v848, 0
    %v887 = vsel %vm86, %v849, 0
    %v890 = vsel %vm86, %v850, 0
    %892 = vmatprep.subr.bf16.mxu0 0
    %893 = vmatpush1.bf16.msra.mxu0 %v864
    %894 = vmatprep.subr.bf16.mxu0 0
    %895 = vmatpush1.bf16.msra.mxu0 %v865
    %896 = vmatprep.subr.bf16.mxu0 0
    %897 = vmatpush1.bf16.msra.mxu0 0
    %898 = vmatprep.subr.bf16.mxu0 0
    %899 = vmatpush1.bf16.msra.mxu0 0
    %900 = vmatprep.subr.bf16.mxu0 0
    %901 = vmatpush1.bf16.msra.mxu0 0
    %902 = vmatprep.subr.bf16.mxu0 0
    %903 = vmatpush1.bf16.msra.mxu0 0
    %904 = vmatprep.subr.bf16.mxu0 0
    %905 = vmatpush1.bf16.msra.mxu0 0
    %906 = vmatprep.subr.bf16.mxu0 0
    %907 = vmatpush1.bf16.msra.mxu0 0
    %908 = vmatprep.subr.bf16.mxu0 0
    %909 = vmatpush1.bf16.msra.mxu0 0
    %910 = vmatprep.subr.bf16.mxu0 0
    %911 = vmatpush1.bf16.msra.mxu0 0
    %912 = vmatprep.subr.bf16.mxu0 0
    %913 = vmatpush1.bf16.msra.mxu0 0
    %914 = vmatprep.subr.bf16.mxu0 0
    %915 = vmatpush1.bf16.msra.mxu0 0
    %916 = vmatprep.subr.bf16.mxu0 0
    %917 = vmatpush1.bf16.msra.mxu0 0
    %918 = vmatprep.subr.bf16.mxu0 0
    %919 = vmatpush1.bf16.msra.mxu0 0
    %920 = vmatprep.subr.bf16.mxu0 0
    %921 = vmatpush1.bf16.msra.mxu0 0
    %922 = vmatprep.subr.bf16.mxu0 0
    %923 = vmatpush1.bf16.msra.mxu0 0
    %924 = vmatprep.mubr.bf16.mxu0 0
    %925 = vmatmul.mubr.bf16.gmra.mrb[0].mxu0 %v869
    %v926 = vpop.f32.mrb[0].mxu0
    %v927 = vadd.f32 0.0, %v926
    %v928 = vpop.f32.mrb[0].mxu0
    %v929 = vpop.f32.mrb[0].mxu0
    %v930 = vadd.f32 0.0, %v929
    %v931 = vpop.f32.mrb[0].mxu0
    %932 = vmatprep.mubr.bf16.mxu0 0
    %933 = vmatmul.mubr.bf16.gmra.mrb[0].mxu0 %v872
    %v934 = vpop.f32.mrb[0].mxu0
    %v935 = vadd.f32 0.0, %v934
    %v936 = vpop.f32.mrb[0].mxu0
    %v937 = vpop.f32.mrb[0].mxu0
    %v938 = vadd.f32 0.0, %v937
    %v939 = vpop.f32.mrb[0].mxu0
    %940 = vmatprep.mubr.bf16.mxu0 0
    %941 = vmatmul.mubr.bf16.gmra.mrb[0].mxu0 %v875
    %v942 = vpop.f32.mrb[0].mxu0
    %v943 = vadd.f32 0.0, %v942
    %v944 = vpop.f32.mrb[0].mxu0
    %v945 = vpop.f32.mrb[0].mxu0
    %v946 = vadd.f32 0.0, %v945
    %v947 = vpop.f32.mrb[0].mxu0
    %948 = vmatprep.mubr.bf16.mxu0 0
    %949 = vmatmul.mubr.bf16.gmra.mrb[0].mxu0 %v878
    %v950 = vpop.f32.mrb[0].mxu0
    %v951 = vadd.f32 0.0, %v950
    %v952 = vpop.f32.mrb[0].mxu0
    %v953 = vpop.f32.mrb[0].mxu0
    %v954 = vadd.f32 0.0, %v953
    %v955 = vpop.f32.mrb[0].mxu0
    %956 = vmatprep.mubr.bf16.mxu0 0
    %957 = vmatmul.mubr.bf16.gmra.mrb[0].mxu0 %v881
    %v958 = vpop.f32.mrb[0].mxu0
    %v959 = vadd.f32 0.0, %v958
    %v960 = vpop.f32.mrb[0].mxu0
    %v961 = vpop.f32.mrb[0].mxu0
    %v962 = vadd.f32 0.0, %v961
    %v963 = vpop.f32.mrb[0].mxu0
    %964 = vmatprep.mubr.bf16.mxu0 0
    %965 = vmatmul.mubr.bf16.gmra.mrb[0].mxu0 %v884
    %v966 = vpop.f32.mrb[0].mxu0
    %v967 = vadd.f32 0.0, %v966
    %v968 = vpop.f32.mrb[0].mxu0
    %v969 = vpop.f32.mrb[0].mxu0
    %v970 = vadd.f32 0.0, %v969
    %v971 = vpop.f32.mrb[0].mxu0
    %972 = vmatprep.mubr.bf16.mxu0 0
    %973 = vmatmul.mubr.bf16.gmra.mrb[0].mxu0 %v887
    %v974 = vpop.f32.mrb[0].mxu0
    %v975 = vadd.f32 0.0, %v974
    %v976 = vpop.f32.mrb[0].mxu0
    %v977 = vpop.f32.mrb[0].mxu0
    %v978 = vadd.f32 0.0, %v977
    %v979 = vpop.f32.mrb[0].mxu0
    %980 = vmatprep.mubr.bf16.mxu0 0
    %981 = vmatmul.mubr.bf16.gmra.mrb[0].mxu0 %v890
    %v982 = vpop.f32.mrb[0].mxu0
    %v983 = vadd.f32 0.0, %v982
    %v984 = vpop.f32.mrb[0].mxu0
    %v985 = vpop.f32.mrb[0].mxu0
    %v986 = vadd.f32 0.0, %v985
    %v987 = vpop.f32.mrb[0].mxu0
    %988 = vdwg.mxu0
    %v989 = vadd.f32 %v811, %v927
    %v990 = vadd.f32 %v812, %v930
    %v991 = vadd.f32 %v813, %v935
    %v992 = vadd.f32 %v814, %v938
    %v993 = vadd.f32 %v815, %v943
    %v994 = vadd.f32 %v816, %v946
    %v995 = vadd.f32 %v817, %v951
    %v996 = vadd.f32 %v818, %v954
    %v997 = vadd.f32 %v819, %v959
    %v998 = vadd.f32 %v820, %v962
    %v999 = vadd.f32 %v821, %v967
    %v1000 = vadd.f32 %v822, %v970
    %v1001 = vadd.f32 %v823, %v975
    %v1002 = vadd.f32 %v824, %v978
    %v1003 = vadd.f32 %v825, %v983
    %v1004 = vadd.f32 %v826, %v986
    %v1005 = vld [vmem:[%s4] sm:$0x1]
    %v1007 = vlaneseq
    %v1008 = vshrl.u32 %v1007, 7
    %v1009 = vsub.s32 0, %v1008
    %v1010 = vrot.slane %v1005, %v1009
    %v1012 = vadd.f32 %v989, %v1010
    %v1013 = vadd.f32 %v990, %v1010
    %v1014 = vadd.f32 %v991, %v1010
    %v1015 = vadd.f32 %v992, %v1010
    %v1016 = vadd.f32 %v993, %v1010
    %v1017 = vadd.f32 %v994, %v1010
    %v1018 = vadd.f32 %v995, %v1010
    %v1019 = vadd.f32 %v996, %v1010
    %v1020 = vadd.f32 %v997, %v1010
    %v1021 = vadd.f32 %v998, %v1010
    %v1022 = vadd.f32 %v999, %v1010
    %v1023 = vadd.f32 %v1000, %v1010
    %v1024 = vadd.f32 %v1001, %v1010
    %v1025 = vadd.f32 %v1002, %v1010
    %v1026 = vadd.f32 %v1003, %v1010
    %v1027 = vadd.f32 %v1004, %v1010
    %v1028 = vmax.f32 %v1012, 0.0
    %v1029 = vmax.f32 %v1013, 0.0
    %v1030 = vmax.f32 %v1014, 0.0
    %v1031 = vmax.f32 %v1015, 0.0
    %v1032 = vmax.f32 %v1016, 0.0
    %v1033 = vmax.f32 %v1017, 0.0
    %v1034 = vmax.f32 %v1018, 0.0
    %v1035 = vmax.f32 %v1019, 0.0
    %v1036 = vmax.f32 %v1020, 0.0
    %v1037 = vmax.f32 %v1021, 0.0
    %v1038 = vmax.f32 %v1022, 0.0
    %v1039 = vmax.f32 %v1023, 0.0
    %v1040 = vmax.f32 %v1024, 0.0
    %v1041 = vmax.f32 %v1025, 0.0
    %v1042 = vmax.f32 %v1026, 0.0
    %v1043 = vmax.f32 %v1027, 0.0
    %1044 = vst.msk [vmem:[#allocation3] sm:$0xff] %vm89, %v1028
    %1045 = vst.msk [vmem:[#allocation3 + $0x8] sm:$0xff] %vm89, %v1029
    %1046 = vst.msk [vmem:[#allocation3 + $0x10] sm:$0xff] %vm89, %v1030
    %1047 = vst.msk [vmem:[#allocation3 + $0x18] sm:$0xff] %vm89, %v1031
    %1048 = vst.msk [vmem:[#allocation3 + $0x20] sm:$0xff] %vm89, %v1032
    %1049 = vst.msk [vmem:[#allocation3 + $0x28] sm:$0xff] %vm89, %v1033
    %1050 = vst.msk [vmem:[#allocation3 + $0x30] sm:$0xff] %vm89, %v1034
    %1051 = vst.msk [vmem:[#allocation3 + $0x38] sm:$0xff] %vm89, %v1035
    %1052 = vst.msk [vmem:[#allocation3 + $0x40] sm:$0xff] %vm89, %v1036
    %1053 = vst.msk [vmem:[#allocation3 + $0x48] sm:$0xff] %vm89, %v1037
    %1054 = vst.msk [vmem:[#allocation3 + $0x50] sm:$0xff] %vm89, %v1038
    %1055 = vst.msk [vmem:[#allocation3 + $0x58] sm:$0xff] %vm89, %v1039
    %1056 = vst.msk [vmem:[#allocation3 + $0x60] sm:$0xff] %vm89, %v1040
    %1057 = vst.msk [vmem:[#allocation3 + $0x68] sm:$0xff] %vm89, %v1041
    %1058 = vst.msk [vmem:[#allocation3 + $0x70] sm:$0xff] %vm89, %v1042
    %1059 = vst.msk [vmem:[#allocation3 + $0x78] sm:$0xff] %vm89, %v1043
    %v1060 = vld [vmem:[#allocation3] sm:$0xff]
    %v1061 = vld [vmem:[#allocation3 + $0x8] sm:$0xff]
    %v1062 = vld [vmem:[#allocation3 + $0x10] sm:$0xff]
    %v1063 = vld [vmem:[#allocation3 + $0x18] sm:$0xff]
    %v1064 = vld [vmem:[#allocation3 + $0x20] sm:$0xff]
    %v1065 = vld [vmem:[#allocation3 + $0x28] sm:$0xff]
    %v1066 = vld [vmem:[#allocation3 + $0x30] sm:$0xff]
    %v1067 = vld [vmem:[#allocation3 + $0x38] sm:$0xff]
    %v1068 = vld [vmem:[#allocation3 + $0x40] sm:$0xff]
    %v1069 = vld [vmem:[#allocation3 + $0x48] sm:$0xff]
    %v1070 = vld [vmem:[#allocation3 + $0x50] sm:$0xff]
    %v1071 = vld [vmem:[#allocation3 + $0x58] sm:$0xff]
    %v1072 = vld [vmem:[#allocation3 + $0x60] sm:$0xff]
    %v1073 = vld [vmem:[#allocation3 + $0x68] sm:$0xff]
    %v1074 = vld [vmem:[#allocation3 + $0x70] sm:$0xff]
    %v1075 = vld [vmem:[#allocation3 + $0x78] sm:$0xff]
    %v1076 = vpack.c.bf16 %v1061, %v1060
    %v1077 = vpack.c.bf16 %v1063, %v1062
    %v1078 = vpack.c.bf16 %v1065, %v1064
    %v1079 = vpack.c.bf16 %v1067, %v1066
    %v1080 = vpack.c.bf16 %v1069, %v1068
    %v1081 = vpack.c.bf16 %v1071, %v1070
    %v1082 = vpack.c.bf16 %v1073, %v1072
    %v1083 = vpack.c.bf16 %v1075, %v1074
    %v1084 = vld [vmem:[%s5] sm:$0xf]
    %v1085 = vld [vmem:[%s5 + $0x4] sm:$0xf]
    %v1086 = vld [vmem:[%s5 + $0x8] sm:$0xf]
    %v1087 = vld [vmem:[%s5 + $0xc] sm:$0xf]
    %v1088 = vld [vmem:[%s5 + $0x10] sm:$0xf]
    %v1089 = vld [vmem:[%s5 + $0x14] sm:$0xf]
    %v1090 = vld [vmem:[%s5 + $0x18] sm:$0xf]
    %v1091 = vld [vmem:[%s5 + $0x1c] sm:$0xf]
    %v1092 = vld [vmem:[#allocation3 + $0x1] sm:$0xff]
    %v1093 = vld [vmem:[#allocation3 + $0x9] sm:$0xff]
    %v1094 = vld [vmem:[#allocation3 + $0x11] sm:$0xff]
    %v1095 = vld [vmem:[#allocation3 + $0x19] sm:$0xff]
    %v1096 = vld [vmem:[#allocation3 + $0x21] sm:$0xff]
    %v1097 = vld [vmem:[#allocation3 + $0x29] sm:$0xff]
    %v1098 = vld [vmem:[#allocation3 + $0x31] sm:$0xff]
    %v1099 = vld [vmem:[#allocation3 + $0x39] sm:$0xff]
    %v1100 = vld [vmem:[#allocation3 + $0x41] sm:$0xff]
    %v1101 = vld [vmem:[#allocation3 + $0x49] sm:$0xff]
    %v1102 = vld [vmem:[#allocation3 + $0x51] sm:$0xff]
    %v1103 = vld [vmem:[#allocation3 + $0x59] sm:$0xff]
    %v1104 = vld [vmem:[#allocation3 + $0x61] sm:$0xff]
    %v1105 = vld [vmem:[#allocation3 + $0x69] sm:$0xff]
    %v1106 = vld [vmem:[#allocation3 + $0x71] sm:$0xff]
    %v1107 = vld [vmem:[#allocation3 + $0x79] sm:$0xff]
    %v1108 = vpack.c.bf16 %v1093, %v1092
    %v1109 = vpack.c.bf16 %v1095, %v1094
    %v1110 = vpack.c.bf16 %v1097, %v1096
    %v1111 = vpack.c.bf16 %v1099, %v1098
    %v1112 = vpack.c.bf16 %v1101, %v1100
    %v1113 = vpack.c.bf16 %v1103, %v1102
    %v1114 = vpack.c.bf16 %v1105, %v1104
    %v1115 = vpack.c.bf16 %v1107, %v1106
    %s1116 = scalar_lea.vmem %s5, 32
    %v1117 = vld [vmem:[%s1116] sm:$0xf]
    %v1118 = vld [vmem:[%s1116 + $0x4] sm:$0xf]
    %v1119 = vld [vmem:[%s1116 + $0x8] sm:$0xf]
    %v1120 = vld [vmem:[%s1116 + $0xc] sm:$0xf]
    %v1121 = vld [vmem:[%s1116 + $0x10] sm:$0xf]
    %v1122 = vld [vmem:[%s1116 + $0x14] sm:$0xf]
    %v1123 = vld [vmem:[%s1116 + $0x18] sm:$0xf]
    %v1124 = vld [vmem:[%s1116 + $0x1c] sm:$0xf]
    %v1133 = vunpack.c.l.b16 %v1117
    %v1134 = vunpack.c.l.b16 %v1118
    %v1135 = vunpack.c.l.b16 %v1119
    %v1136 = vunpack.c.l.b16 %v1120
    %v1137 = vunpack.c.l.b16 %v1121
    %v1138 = vunpack.c.l.b16 %v1122
    %v1139 = vunpack.c.l.b16 %v1123
    %v1140 = vunpack.c.l.b16 %v1124
    %v1141 = vpack.c.b16 %v1134, %v1133
    %v1142 = vpack.c.b16 %v1136, %v1135
    %v1143 = vpack.c.b16 %v1138, %v1137
    %v1144 = vpack.c.b16 %v1140, %v1139
    %v1150 = vsel %vm89, %v1108, 0
    %v1153 = vsel %vm89, %v1109, 0
    %v1156 = vsel %vm89, %v1110, 0
    %v1159 = vsel %vm89, %v1111, 0
    %v1162 = vsel %vm89, %v1112, 0
    %v1165 = vsel %vm89, %v1113, 0
    %v1168 = vsel %vm89, %v1114, 0
    %v1171 = vsel %vm89, %v1115, 0
    %1173 = vmatprep.subr.bf16.mxu0 0
    %1174 = vmatpush1.bf16.msra.mxu0 %v1141
    %1175 = vmatprep.subr.bf16.mxu0 0
    %1176 = vmatpush1.bf16.msra.mxu0 %v1142
    %1177 = vmatprep.subr.bf16.mxu0 0
    %1178 = vmatpush1.bf16.msra.mxu0 %v1143
    %1179 = vmatprep.subr.bf16.mxu0 0
    %1180 = vmatpush1.bf16.msra.mxu0 %v1144
    %1181 = vmatprep.subr.bf16.mxu0 0
    %1182 = vmatpush1.bf16.msra.mxu0 0
    %1183 = vmatprep.subr.bf16.mxu0 0
    %1184 = vmatpush1.bf16.msra.mxu0 0
    %1185 = vmatprep.subr.bf16.mxu0 0
    %1186 = vmatpush1.bf16.msra.mxu0 0
    %1187 = vmatprep.subr.bf16.mxu0 0
    %1188 = vmatpush1.bf16.msra.mxu0 0
    %1189 = vmatprep.subr.bf16.mxu0 0
    %1190 = vmatpush1.bf16.msra.mxu0 0
    %1191 = vmatprep.subr.bf16.mxu0 0
    %1192 = vmatpush1.bf16.msra.mxu0 0
    %1193 = vmatprep.subr.bf16.mxu0 0
    %1194 = vmatpush1.bf16.msra.mxu0 0
    %1195 = vmatprep.subr.bf16.mxu0 0
    %1196 = vmatpush1.bf16.msra.mxu0 0
    %1197 = vmatprep.subr.bf16.mxu0 0
    %1198 = vmatpush1.bf16.msra.mxu0 0
    %1199 = vmatprep.subr.bf16.mxu0 0
    %1200 = vmatpush1.bf16.msra.mxu0 0
    %1201 = vmatprep.subr.bf16.mxu0 0
    %1202 = vmatpush1.bf16.msra.mxu0 0
    %1203 = vmatprep.subr.bf16.mxu0 0
    %1204 = vmatpush1.bf16.msra.mxu0 0
    %1205 = vmatprep.mubr.bf16.mxu0 0
    %1206 = vmatmul.mubr.bf16.gmra.mrb[0].mxu0 %v1150
    %v1207 = vpop.f32.mrb[0].mxu0
    %v1208 = vadd.f32 0.0, %v1207
    %v1209 = vpop.f32.mrb[0].mxu0
    %v1210 = vpop.f32.mrb[0].mxu0
    %v1211 = vadd.f32 0.0, %v1210
    %v1212 = vpop.f32.mrb[0].mxu0
    %1213 = vmatprep.mubr.bf16.mxu0 0
    %1214 = vmatmul.mubr.bf16.gmra.mrb[0].mxu0 %v1153
    %v1215 = vpop.f32.mrb[0].mxu0
    %v1216 = vadd.f32 0.0, %v1215
    %v1217 = vpop.f32.mrb[0].mxu0
    %v1218 = vpop.f32.mrb[0].mxu0
    %v1219 = vadd.f32 0.0, %v1218
    %v1220 = vpop.f32.mrb[0].mxu0
    %1221 = vmatprep.mubr.bf16.mxu0 0
    %1222 = vmatmul.mubr.bf16.gmra.mrb[0].mxu0 %v1156
    %v1223 = vpop.f32.mrb[0].mxu0
    %v1224 = vadd.f32 0.0, %v1223
    %v1225 = vpop.f32.mrb[0].mxu0
    %v1226 = vpop.f32.mrb[0].mxu0
    %v1227 = vadd.f32 0.0, %v1226
    %v1228 = vpop.f32.mrb[0].mxu0
    %1229 = vmatprep.mubr.bf16.mxu0 0
    %1230 = vmatmul.mubr.bf16.gmra.mrb[0].mxu0 %v1159
    %v1231 = vpop.f32.mrb[0].mxu0
    %v1232 = vadd.f32 0.0, %v1231
    %v1233 = vpop.f32.mrb[0].mxu0
    %v1234 = vpop.f32.mrb[0].mxu0
    %v1235 = vadd.f32 0.0, %v1234
    %v1236 = vpop.f32.mrb[0].mxu0
    %1237 = vmatprep.mubr.bf16.mxu0 0
    %1238 = vmatmul.mubr.bf16.gmra.mrb[0].mxu0 %v1162
    %v1239 = vpop.f32.mrb[0].mxu0
    %v1240 = vadd.f32 0.0, %v1239
    %v1241 = vpop.f32.mrb[0].mxu0
    %v1242 = vpop.f32.mrb[0].mxu0
    %v1243 = vadd.f32 0.0, %v1242
    %v1244 = vpop.f32.mrb[0].mxu0
    %1245 = vmatprep.mubr.bf16.mxu0 0
    %1246 = vmatmul.mubr.bf16.gmra.mrb[0].mxu0 %v1165
    %v1247 = vpop.f32.mrb[0].mxu0
    %v1248 = vadd.f32 0.0, %v1247
    %v1249 = vpop.f32.mrb[0].mxu0
    %v1250 = vpop.f32.mrb[0].mxu0
    %v1251 = vadd.f32 0.0, %v1250
    %v1252 = vpop.f32.mrb[0].mxu0
    %1253 = vmatprep.mubr.bf16.mxu0 0
    %1254 = vmatmul.mubr.bf16.gmra.mrb[0].mxu0 %v1168
    %v1255 = vpop.f32.mrb[0].mxu0
    %v1256 = vadd.f32 0.0, %v1255
    %v1257 = vpop.f32.mrb[0].mxu0
    %v1258 = vpop.f32.mrb[0].mxu0
    %v1259 = vadd.f32 0.0, %v1258
    %v1260 = vpop.f32.mrb[0].mxu0
    %1261 = vmatprep.mubr.bf16.mxu0 0
    %1262 = vmatmul.mubr.bf16.gmra.mrb[0].mxu0 %v1171
    %v1263 = vpop.f32.mrb[0].mxu0
    %v1264 = vadd.f32 0.0, %v1263
    %v1265 = vpop.f32.mrb[0].mxu0
    %v1266 = vpop.f32.mrb[0].mxu0
    %v1267 = vadd.f32 0.0, %v1266
    %v1268 = vpop.f32.mrb[0].mxu0
    %1269 = vdwg.mxu0
    %v1278 = vunpack.c.l.b16 %v1084
    %v1279 = vunpack.c.l.b16 %v1085
    %v1280 = vunpack.c.l.b16 %v1086
    %v1281 = vunpack.c.l.b16 %v1087
    %v1282 = vunpack.c.l.b16 %v1088
    %v1283 = vunpack.c.l.b16 %v1089
    %v1284 = vunpack.c.l.b16 %v1090
    %v1285 = vunpack.c.l.b16 %v1091
    %v1286 = vpack.c.b16 %v1279, %v1278
    %v1287 = vpack.c.b16 %v1281, %v1280
    %v1288 = vpack.c.b16 %v1283, %v1282
    %v1289 = vpack.c.b16 %v1285, %v1284
    %v1295 = vsel %vm89, %v1076, 0
    %v1298 = vsel %vm89, %v1077, 0
    %v1301 = vsel %vm89, %v1078, 0
    %v1304 = vsel %vm89, %v1079, 0
    %v1307 = vsel %vm89, %v1080, 0
    %v1310 = vsel %vm89, %v1081, 0
    %v1313 = vsel %vm89, %v1082, 0
    %v1316 = vsel %vm89, %v1083, 0
    %1318 = vmatprep.subr.bf16.mxu0 0
    %1319 = vmatpush1.bf16.msra.mxu0 %v1286
    %1320 = vmatprep.subr.bf16.mxu0 0
    %1321 = vmatpush1.bf16.msra.mxu0 %v1287
    %1322 = vmatprep.subr.bf16.mxu0 0
    %1323 = vmatpush1.bf16.msra.mxu0 %v1288
    %1324 = vmatprep.subr.bf16.mxu0 0
    %1325 = vmatpush1.bf16.msra.mxu0 %v1289
    %1326 = vmatprep.subr.bf16.mxu0 0
    %1327 = vmatpush1.bf16.msra.mxu0 0
    %1328 = vmatprep.subr.bf16.mxu0 0
    %1329 = vmatpush1.bf16.msra.mxu0 0
    %1330 = vmatprep.subr.bf16.mxu0 0
    %1331 = vmatpush1.bf16.msra.mxu0 0
    %1332 = vmatprep.subr.bf16.mxu0 0
    %1333 = vmatpush1.bf16.msra.mxu0 0
    %1334 = vmatprep.subr.bf16.mxu0 0
    %1335 = vmatpush1.bf16.msra.mxu0 0
    %1336 = vmatprep.subr.bf16.mxu0 0
    %1337 = vmatpush1.bf16.msra.mxu0 0
    %1338 = vmatprep.subr.bf16.mxu0 0
    %1339 = vmatpush1.bf16.msra.mxu0 0
    %1340 = vmatprep.subr.bf16.mxu0 0
    %1341 = vmatpush1.bf16.msra.mxu0 0
    %1342 = vmatprep.subr.bf16.mxu0 0
    %1343 = vmatpush1.bf16.msra.mxu0 0
    %1344 = vmatprep.subr.bf16.mxu0 0
    %1345 = vmatpush1.bf16.msra.mxu0 0
    %1346 = vmatprep.subr.bf16.mxu0 0
    %1347 = vmatpush1.bf16.msra.mxu0 0
    %1348 = vmatprep.subr.bf16.mxu0 0
    %1349 = vmatpush1.bf16.msra.mxu0 0
    %1350 = vmatprep.mubr.bf16.mxu0 0
    %1351 = vmatmul.mubr.bf16.gmra.mrb[0].mxu0 %v1295
    %v1352 = vpop.f32.mrb[0].mxu0
    %v1353 = vadd.f32 %v1208, %v1352
    %v1354 = vpop.f32.mrb[0].mxu0
    %v1355 = vpop.f32.mrb[0].mxu0
    %v1356 = vadd.f32 %v1211, %v1355
    %v1357 = vpop.f32.mrb[0].mxu0
    %1358 = vmatprep.mubr.bf16.mxu0 0
    %1359 = vmatmul.mubr.bf16.gmra.mrb[0].mxu0 %v1298
    %v1360 = vpop.f32.mrb[0].mxu0
    %v1361 = vadd.f32 %v1216, %v1360
    %v1362 = vpop.f32.mrb[0].mxu0
    %v1363 = vpop.f32.mrb[0].mxu0
    %v1364 = vadd.f32 %v1219, %v1363
    %v1365 = vpop.f32.mrb[0].mxu0
    %1366 = vmatprep.mubr.bf16.mxu0 0
    %1367 = vmatmul.mubr.bf16.gmra.mrb[0].mxu0 %v1301
    %v1368 = vpop.f32.mrb[0].mxu0
    %v1369 = vadd.f32 %v1224, %v1368
    %v1370 = vpop.f32.mrb[0].mxu0
    %v1371 = vpop.f32.mrb[0].mxu0
    %v1372 = vadd.f32 %v1227, %v1371
    %v1373 = vpop.f32.mrb[0].mxu0
    %1374 = vmatprep.mubr.bf16.mxu0 0
    %1375 = vmatmul.mubr.bf16.gmra.mrb[0].mxu0 %v1304
    %v1376 = vpop.f32.mrb[0].mxu0
    %v1377 = vadd.f32 %v1232, %v1376
    %v1378 = vpop.f32.mrb[0].mxu0
    %v1379 = vpop.f32.mrb[0].mxu0
    %v1380 = vadd.f32 %v1235, %v1379
    %v1381 = vpop.f32.mrb[0].mxu0
    %1382 = vmatprep.mubr.bf16.mxu0 0
    %1383 = vmatmul.mubr.bf16.gmra.mrb[0].mxu0 %v1307
    %v1384 = vpop.f32.mrb[0].mxu0
    %v1385 = vadd.f32 %v1240, %v1384
    %v1386 = vpop.f32.mrb[0].mxu0
    %v1387 = vpop.f32.mrb[0].mxu0
    %v1388 = vadd.f32 %v1243, %v1387
    %v1389 = vpop.f32.mrb[0].mxu0
    %1390 = vmatprep.mubr.bf16.mxu0 0
    %1391 = vmatmul.mubr.bf16.gmra.mrb[0].mxu0 %v1310
    %v1392 = vpop.f32.mrb[0].mxu0
    %v1393 = vadd.f32 %v1248, %v1392
    %v1394 = vpop.f32.mrb[0].mxu0
    %v1395 = vpop.f32.mrb[0].mxu0
    %v1396 = vadd.f32 %v1251, %v1395
    %v1397 = vpop.f32.mrb[0].mxu0
    %1398 = vmatprep.mubr.bf16.mxu0 0
    %1399 = vmatmul.mubr.bf16.gmra.mrb[0].mxu0 %v1313
    %v1400 = vpop.f32.mrb[0].mxu0
    %v1401 = vadd.f32 %v1256, %v1400
    %v1402 = vpop.f32.mrb[0].mxu0
    %v1403 = vpop.f32.mrb[0].mxu0
    %v1404 = vadd.f32 %v1259, %v1403
    %v1405 = vpop.f32.mrb[0].mxu0
    %1406 = vmatprep.mubr.bf16.mxu0 0
    %1407 = vmatmul.mubr.bf16.gmra.mrb[0].mxu0 %v1316
    %v1408 = vpop.f32.mrb[0].mxu0
    %v1409 = vadd.f32 %v1264, %v1408
    %v1410 = vpop.f32.mrb[0].mxu0
    %v1411 = vpop.f32.mrb[0].mxu0
    %v1412 = vadd.f32 %v1267, %v1411
    %v1413 = vpop.f32.mrb[0].mxu0
    %1414 = vdwg.mxu0
    %v1415 = vld [vmem:[#allocation3 + $0x8] sm:$0xff]
    %v1416 = vld [vmem:[#allocation3 + $0x10] sm:$0xff]
    %v1417 = vld [vmem:[#allocation3 + $0x18] sm:$0xff]
    %v1418 = vld [vmem:[#allocation3 + $0x20] sm:$0xff]
    %v1419 = vld [vmem:[#allocation3 + $0x28] sm:$0xff]
    %v1420 = vld [vmem:[#allocation3 + $0x30] sm:$0xff]
    %v1421 = vld [vmem:[#allocation3 + $0x38] sm:$0xff]
    %v1422 = vld [vmem:[#allocation3 + $0x40] sm:$0xff]
    %v1423 = vld [vmem:[#allocation3 + $0x48] sm:$0xff]
    %v1424 = vld [vmem:[#allocation3 + $0x50] sm:$0xff]
    %v1425 = vld [vmem:[#allocation3 + $0x58] sm:$0xff]
    %v1426 = vld [vmem:[#allocation3 + $0x60] sm:$0xff]
    %v1427 = vld [vmem:[#allocation3 + $0x68] sm:$0xff]
    %v1428 = vld [vmem:[#allocation3 + $0x70] sm:$0xff]
    %v1429 = vld [vmem:[#allocation3 + $0x78] sm:$0xff]
    %v1430 = vld [vmem:[#allocation3 + $0x80] sm:$0xff]
    %v1431 = vpack.c.bf16 %v1416, %v1415
    %v1432 = vpack.c.bf16 %v1418, %v1417
    %v1433 = vpack.c.bf16 %v1420, %v1419
    %v1434 = vpack.c.bf16 %v1422, %v1421
    %v1435 = vpack.c.bf16 %v1424, %v1423
    %v1436 = vpack.c.bf16 %v1426, %v1425
    %v1437 = vpack.c.bf16 %v1428, %v1427
    %v1438 = vpack.c.bf16 %v1430, %v1429
    %s1439 = scalar_lea.vmem %s5, 64
    %v1440 = vld [vmem:[%s1439] sm:$0xf]
    %v1441 = vld [vmem:[%s1439 + $0x4] sm:$0xf]
    %v1442 = vld [vmem:[%s1439 + $0x8] sm:$0xf]
    %v1443 = vld [vmem:[%s1439 + $0xc] sm:$0xf]
    %v1444 = vld [vmem:[%s1439 + $0x10] sm:$0xf]
    %v1445 = vld [vmem:[%s1439 + $0x14] sm:$0xf]
    %v1446 = vld [vmem:[%s1439 + $0x18] sm:$0xf]
    %v1447 = vld [vmem:[%s1439 + $0x1c] sm:$0xf]
    %v1456 = vunpack.c.l.b16 %v1440
    %v1457 = vunpack.c.l.b16 %v1441
    %v1458 = vunpack.c.l.b16 %v1442
    %v1459 = vunpack.c.l.b16 %v1443
    %v1460 = vunpack.c.l.b16 %v1444
    %v1461 = vunpack.c.l.b16 %v1445
    %v1462 = vunpack.c.l.b16 %v1446
    %v1463 = vunpack.c.l.b16 %v1447
    %v1464 = vpack.c.b16 %v1457, %v1456
    %v1465 = vpack.c.b16 %v1459, %v1458
    %v1466 = vpack.c.b16 %v1461, %v1460
    %v1467 = vpack.c.b16 %v1463, %v1462
    %v1473 = vsel %vm89, %v1431, 0
    %v1476 = vsel %vm89, %v1432, 0
    %v1479 = vsel %vm89, %v1433, 0
    %v1482 = vsel %vm89, %v1434, 0
    %v1485 = vsel %vm89, %v1435, 0
    %v1488 = vsel %vm89, %v1436, 0
    %v1491 = vsel %vm89, %v1437, 0
    %v1494 = vsel %vm89, %v1438, 0
    %1496 = vmatprep.subr.bf16.mxu0 0
    %1497 = vmatpush1.bf16.msra.mxu0 %v1464
    %1498 = vmatprep.subr.bf16.mxu0 0
    %1499 = vmatpush1.bf16.msra.mxu0 %v1465
    %1500 = vmatprep.subr.bf16.mxu0 0
    %1501 = vmatpush1.bf16.msra.mxu0 %v1466
    %1502 = vmatprep.subr.bf16.mxu0 0
    %1503 = vmatpush1.bf16.msra.mxu0 %v1467
    %1504 = vmatprep.subr.bf16.mxu0 0
    %1505 = vmatpush1.bf16.msra.mxu0 0
    %1506 = vmatprep.subr.bf16.mxu0 0
    %1507 = vmatpush1.bf16.msra.mxu0 0
    %1508 = vmatprep.subr.bf16.mxu0 0
    %1509 = vmatpush1.bf16.msra.mxu0 0
    %1510 = vmatprep.subr.bf16.mxu0 0
    %1511 = vmatpush1.bf16.msra.mxu0 0
    %1512 = vmatprep.subr.bf16.mxu0 0
    %1513 = vmatpush1.bf16.msra.mxu0 0
    %1514 = vmatprep.subr.bf16.mxu0 0
    %1515 = vmatpush1.bf16.msra.mxu0 0
    %1516 = vmatprep.subr.bf16.mxu0 0
    %1517 = vmatpush1.bf16.msra.mxu0 0
    %1518 = vmatprep.subr.bf16.mxu0 0
    %1519 = vmatpush1.bf16.msra.mxu0 0
    %1520 = vmatprep.subr.bf16.mxu0 0
    %1521 = vmatpush1.bf16.msra.mxu0 0
    %1522 = vmatprep.subr.bf16.mxu0 0
    %1523 = vmatpush1.bf16.msra.mxu0 0
    %1524 = vmatprep.subr.bf16.mxu0 0
    %1525 = vmatpush1.bf16.msra.mxu0 0
    %1526 = vmatprep.subr.bf16.mxu0 0
    %1527 = vmatpush1.bf16.msra.mxu0 0
    %1528 = vmatprep.mubr.bf16.mxu0 0
    %1529 = vmatmul.mubr.bf16.gmra.mrb[0].mxu0 %v1473
    %v1530 = vpop.f32.mrb[0].mxu0
    %v1531 = vadd.f32 0.0, %v1530
    %v1532 = vpop.f32.mrb[0].mxu0
    %v1533 = vpop.f32.mrb[0].mxu0
    %v1534 = vadd.f32 0.0, %v1533
    %v1535 = vpop.f32.mrb[0].mxu0
    %1536 = vmatprep.mubr.bf16.mxu0 0
    %1537 = vmatmul.mubr.bf16.gmra.mrb[0].mxu0 %v1476
    %v1538 = vpop.f32.mrb[0].mxu0
    %v1539 = vadd.f32 0.0, %v1538
    %v1540 = vpop.f32.mrb[0].mxu0
    %v1541 = vpop.f32.mrb[0].mxu0
    %v1542 = vadd.f32 0.0, %v1541
    %v1543 = vpop.f32.mrb[0].mxu0
    %1544 = vmatprep.mubr.bf16.mxu0 0
    %1545 = vmatmul.mubr.bf16.gmra.mrb[0].mxu0 %v1479
    %v1546 = vpop.f32.mrb[0].mxu0
    %v1547 = vadd.f32 0.0, %v1546
    %v1548 = vpop.f32.mrb[0].mxu0
    %v1549 = vpop.f32.mrb[0].mxu0
    %v1550 = vadd.f32 0.0, %v1549
    %v1551 = vpop.f32.mrb[0].mxu0
    %1552 = vmatprep.mubr.bf16.mxu0 0
    %1553 = vmatmul.mubr.bf16.gmra.mrb[0].mxu0 %v1482
    %v1554 = vpop.f32.mrb[0].mxu0
    %v1555 = vadd.f32 0.0, %v1554
    %v1556 = vpop.f32.mrb[0].mxu0
    %v1557 = vpop.f32.mrb[0].mxu0
    %v1558 = vadd.f32 0.0, %v1557
    %v1559 = vpop.f32.mrb[0].mxu0
    %1560 = vmatprep.mubr.bf16.mxu0 0
    %1561 = vmatmul.mubr.bf16.gmra.mrb[0].mxu0 %v1485
    %v1562 = vpop.f32.mrb[0].mxu0
    %v1563 = vadd.f32 0.0, %v1562
    %v1564 = vpop.f32.mrb[0].mxu0
    %v1565 = vpop.f32.mrb[0].mxu0
    %v1566 = vadd.f32 0.0, %v1565
    %v1567 = vpop.f32.mrb[0].mxu0
    %1568 = vmatprep.mubr.bf16.mxu0 0
    %1569 = vmatmul.mubr.bf16.gmra.mrb[0].mxu0 %v1488
    %v1570 = vpop.f32.mrb[0].mxu0
    %v1571 = vadd.f32 0.0, %v1570
    %v1572 = vpop.f32.mrb[0].mxu0
    %v1573 = vpop.f32.mrb[0].mxu0
    %v1574 = vadd.f32 0.0, %v1573
    %v1575 = vpop.f32.mrb[0].mxu0
    %1576 = vmatprep.mubr.bf16.mxu0 0
    %1577 = vmatmul.mubr.bf16.gmra.mrb[0].mxu0 %v1491
    %v1578 = vpop.f32.mrb[0].mxu0
    %v1579 = vadd.f32 0.0, %v1578
    %v1580 = vpop.f32.mrb[0].mxu0
    %v1581 = vpop.f32.mrb[0].mxu0
    %v1582 = vadd.f32 0.0, %v1581
    %v1583 = vpop.f32.mrb[0].mxu0
    %1584 = vmatprep.mubr.bf16.mxu0 0
    %1585 = vmatmul.mubr.bf16.gmra.mrb[0].mxu0 %v1494
    %v1586 = vpop.f32.mrb[0].mxu0
    %v1587 = vadd.f32 0.0, %v1586
    %v1588 = vpop.f32.mrb[0].mxu0
    %v1589 = vpop.f32.mrb[0].mxu0
    %v1590 = vadd.f32 0.0, %v1589
    %v1591 = vpop.f32.mrb[0].mxu0
    %1592 = vdwg.mxu0
    %v1593 = vadd.f32 %v1353, %v1531
    %v1594 = vadd.f32 %v1356, %v1534
    %v1595 = vadd.f32 %v1361, %v1539
    %v1596 = vadd.f32 %v1364, %v1542
    %v1597 = vadd.f32 %v1369, %v1547
    %v1598 = vadd.f32 %v1372, %v1550
    %v1599 = vadd.f32 %v1377, %v1555
    %v1600 = vadd.f32 %v1380, %v1558
    %v1601 = vadd.f32 %v1385, %v1563
    %v1602 = vadd.f32 %v1388, %v1566
    %v1603 = vadd.f32 %v1393, %v1571
    %v1604 = vadd.f32 %v1396, %v1574
    %v1605 = vadd.f32 %v1401, %v1579
    %v1606 = vadd.f32 %v1404, %v1582
    %v1607 = vadd.f32 %v1409, %v1587
    %v1608 = vadd.f32 %v1412, %v1590
    %v1609 = vld [vmem:[#allocation3 + $0x9] sm:$0xff]
    %v1610 = vld [vmem:[#allocation3 + $0x11] sm:$0xff]
    %v1611 = vld [vmem:[#allocation3 + $0x19] sm:$0xff]
    %v1612 = vld [vmem:[#allocation3 + $0x21] sm:$0xff]
    %v1613 = vld [vmem:[#allocation3 + $0x29] sm:$0xff]
    %v1614 = vld [vmem:[#allocation3 + $0x31] sm:$0xff]
    %v1615 = vld [vmem:[#allocation3 + $0x39] sm:$0xff]
    %v1616 = vld [vmem:[#allocation3 + $0x41] sm:$0xff]
    %v1617 = vld [vmem:[#allocation3 + $0x49] sm:$0xff]
    %v1618 = vld [vmem:[#allocation3 + $0x51] sm:$0xff]
    %v1619 = vld [vmem:[#allocation3 + $0x59] sm:$0xff]
    %v1620 = vld [vmem:[#allocation3 + $0x61] sm:$0xff]
    %v1621 = vld [vmem:[#allocation3 + $0x69] sm:$0xff]
    %v1622 = vld [vmem:[#allocation3 + $0x71] sm:$0xff]
    %v1623 = vld [vmem:[#allocation3 + $0x79] sm:$0xff]
    %v1624 = vld [vmem:[#allocation3 + $0x81] sm:$0xff]
    %v1625 = vpack.c.bf16 %v1610, %v1609
    %v1626 = vpack.c.bf16 %v1612, %v1611
    %v1627 = vpack.c.bf16 %v1614, %v1613
    %v1628 = vpack.c.bf16 %v1616, %v1615
    %v1629 = vpack.c.bf16 %v1618, %v1617
    %v1630 = vpack.c.bf16 %v1620, %v1619
    %v1631 = vpack.c.bf16 %v1622, %v1621
    %v1632 = vpack.c.bf16 %v1624, %v1623
    %s1633 = scalar_lea.vmem %s5, 96
    %v1634 = vld [vmem:[%s1633] sm:$0xf]
    %v1635 = vld [vmem:[%s1633 + $0x4] sm:$0xf]
    %v1636 = vld [vmem:[%s1633 + $0x8] sm:$0xf]
    %v1637 = vld [vmem:[%s1633 + $0xc] sm:$0xf]
    %v1638 = vld [vmem:[%s1633 + $0x10] sm:$0xf]
    %v1639 = vld [vmem:[%s1633 + $0x14] sm:$0xf]
    %v1640 = vld [vmem:[%s1633 + $0x18] sm:$0xf]
    %v1641 = vld [vmem:[%s1633 + $0x1c] sm:$0xf]
    %v1650 = vunpack.c.l.b16 %v1634
    %v1651 = vunpack.c.l.b16 %v1635
    %v1652 = vunpack.c.l.b16 %v1636
    %v1653 = vunpack.c.l.b16 %v1637
    %v1654 = vunpack.c.l.b16 %v1638
    %v1655 = vunpack.c.l.b16 %v1639
    %v1656 = vunpack.c.l.b16 %v1640
    %v1657 = vunpack.c.l.b16 %v1641
    %v1658 = vpack.c.b16 %v1651, %v1650
    %v1659 = vpack.c.b16 %v1653, %v1652
    %v1660 = vpack.c.b16 %v1655, %v1654
    %v1661 = vpack.c.b16 %v1657, %v1656
    %v1667 = vsel %vm89, %v1625, 0
    %v1670 = vsel %vm89, %v1626, 0
    %v1673 = vsel %vm89, %v1627, 0
    %v1676 = vsel %vm89, %v1628, 0
    %v1679 = vsel %vm89, %v1629, 0
    %v1682 = vsel %vm89, %v1630, 0
    %v1685 = vsel %vm89, %v1631, 0
    %v1688 = vsel %vm89, %v1632, 0
    %1690 = vmatprep.subr.bf16.mxu0 0
    %1691 = vmatpush1.bf16.msra.mxu0 %v1658
    %1692 = vmatprep.subr.bf16.mxu0 0
    %1693 = vmatpush1.bf16.msra.mxu0 %v1659
    %1694 = vmatprep.subr.bf16.mxu0 0
    %1695 = vmatpush1.bf16.msra.mxu0 %v1660
    %1696 = vmatprep.subr.bf16.mxu0 0
    %1697 = vmatpush1.bf16.msra.mxu0 %v1661
    %1698 = vmatprep.subr.bf16.mxu0 0
    %1699 = vmatpush1.bf16.msra.mxu0 0
    %1700 = vmatprep.subr.bf16.mxu0 0
    %1701 = vmatpush1.bf16.msra.mxu0 0
    %1702 = vmatprep.subr.bf16.mxu0 0
    %1703 = vmatpush1.bf16.msra.mxu0 0
    %1704 = vmatprep.subr.bf16.mxu0 0
    %1705 = vmatpush1.bf16.msra.mxu0 0
    %1706 = vmatprep.subr.bf16.mxu0 0
    %1707 = vmatpush1.bf16.msra.mxu0 0
    %1708 = vmatprep.subr.bf16.mxu0 0
    %1709 = vmatpush1.bf16.msra.mxu0 0
    %1710 = vmatprep.subr.bf16.mxu0 0
    %1711 = vmatpush1.bf16.msra.mxu0 0
    %1712 = vmatprep.subr.bf16.mxu0 0
    %1713 = vmatpush1.bf16.msra.mxu0 0
    %1714 = vmatprep.subr.bf16.mxu0 0
    %1715 = vmatpush1.bf16.msra.mxu0 0
    %1716 = vmatprep.subr.bf16.mxu0 0
    %1717 = vmatpush1.bf16.msra.mxu0 0
    %1718 = vmatprep.subr.bf16.mxu0 0
    %1719 = vmatpush1.bf16.msra.mxu0 0
    %1720 = vmatprep.subr.bf16.mxu0 0
    %1721 = vmatpush1.bf16.msra.mxu0 0
    %1722 = vmatprep.mubr.bf16.mxu0 0
    %1723 = vmatmul.mubr.bf16.gmra.mrb[0].mxu0 %v1667
    %v1724 = vpop.f32.mrb[0].mxu0
    %v1725 = vadd.f32 0.0, %v1724
    %v1726 = vpop.f32.mrb[0].mxu0
    %v1727 = vpop.f32.mrb[0].mxu0
    %v1728 = vadd.f32 0.0, %v1727
    %v1729 = vpop.f32.mrb[0].mxu0
    %1730 = vmatprep.mubr.bf16.mxu0 0
    %1731 = vmatmul.mubr.bf16.gmra.mrb[0].mxu0 %v1670
    %v1732 = vpop.f32.mrb[0].mxu0
    %v1733 = vadd.f32 0.0, %v1732
    %v1734 = vpop.f32.mrb[0].mxu0
    %v1735 = vpop.f32.mrb[0].mxu0
    %v1736 = vadd.f32 0.0, %v1735
    %v1737 = vpop.f32.mrb[0].mxu0
    %1738 = vmatprep.mubr.bf16.mxu0 0
    %1739 = vmatmul.mubr.bf16.gmra.mrb[0].mxu0 %v1673
    %v1740 = vpop.f32.mrb[0].mxu0
    %v1741 = vadd.f32 0.0, %v1740
    %v1742 = vpop.f32.mrb[0].mxu0
    %v1743 = vpop.f32.mrb[0].mxu0
    %v1744 = vadd.f32 0.0, %v1743
    %v1745 = vpop.f32.mrb[0].mxu0
    %1746 = vmatprep.mubr.bf16.mxu0 0
    %1747 = vmatmul.mubr.bf16.gmra.mrb[0].mxu0 %v1676
    %v1748 = vpop.f32.mrb[0].mxu0
    %v1749 = vadd.f32 0.0, %v1748
    %v1750 = vpop.f32.mrb[0].mxu0
    %v1751 = vpop.f32.mrb[0].mxu0
    %v1752 = vadd.f32 0.0, %v1751
    %v1753 = vpop.f32.mrb[0].mxu0
    %1754 = vmatprep.mubr.bf16.mxu0 0
    %1755 = vmatmul.mubr.bf16.gmra.mrb[0].mxu0 %v1679
    %v1756 = vpop.f32.mrb[0].mxu0
    %v1757 = vadd.f32 0.0, %v1756
    %v1758 = vpop.f32.mrb[0].mxu0
    %v1759 = vpop.f32.mrb[0].mxu0
    %v1760 = vadd.f32 0.0, %v1759
    %v1761 = vpop.f32.mrb[0].mxu0
    %1762 = vmatprep.mubr.bf16.mxu0 0
    %1763 = vmatmul.mubr.bf16.gmra.mrb[0].mxu0 %v1682
    %v1764 = vpop.f32.mrb[0].mxu0
    %v1765 = vadd.f32 0.0, %v1764
    %v1766 = vpop.f32.mrb[0].mxu0
    %v1767 = vpop.f32.mrb[0].mxu0
    %v1768 = vadd.f32 0.0, %v1767
    %v1769 = vpop.f32.mrb[0].mxu0
    %1770 = vmatprep.mubr.bf16.mxu0 0
    %1771 = vmatmul.mubr.bf16.gmra.mrb[0].mxu0 %v1685
    %v1772 = vpop.f32.mrb[0].mxu0
    %v1773 = vadd.f32 0.0, %v1772
    %v1774 = vpop.f32.mrb[0].mxu0
    %v1775 = vpop.f32.mrb[0].mxu0
    %v1776 = vadd.f32 0.0, %v1775
    %v1777 = vpop.f32.mrb[0].mxu0
    %1778 = vmatprep.mubr.bf16.mxu0 0
    %1779 = vmatmul.mubr.bf16.gmra.mrb[0].mxu0 %v1688
    %v1780 = vpop.f32.mrb[0].mxu0
    %v1781 = vadd.f32 0.0, %v1780
    %v1782 = vpop.f32.mrb[0].mxu0
    %v1783 = vpop.f32.mrb[0].mxu0
    %v1784 = vadd.f32 0.0, %v1783
    %v1785 = vpop.f32.mrb[0].mxu0
    %1786 = vdwg.mxu0
    %v1787 = vadd.f32 %v1593, %v1725
    %v1788 = vadd.f32 %v1594, %v1728
    %v1789 = vadd.f32 %v1595, %v1733
    %v1790 = vadd.f32 %v1596, %v1736
    %v1791 = vadd.f32 %v1597, %v1741
    %v1792 = vadd.f32 %v1598, %v1744
    %v1793 = vadd.f32 %v1599, %v1749
    %v1794 = vadd.f32 %v1600, %v1752
    %v1795 = vadd.f32 %v1601, %v1757
    %v1796 = vadd.f32 %v1602, %v1760
    %v1797 = vadd.f32 %v1603, %v1765
    %v1798 = vadd.f32 %v1604, %v1768
    %v1799 = vadd.f32 %v1605, %v1773
    %v1800 = vadd.f32 %v1606, %v1776
    %v1801 = vadd.f32 %v1607, %v1781
    %v1802 = vadd.f32 %v1608, %v1784
    %v1803 = vld [vmem:[%s6] sm:$0x1]
    %v1805 = vlaneseq
    %v1806 = vshrl.u32 %v1805, 7
    %v1807 = vsub.s32 0, %v1806
    %v1808 = vrot.slane %v1803, %v1807
    %v1810 = vadd.f32 %v1787, %v1808
    %v1811 = vadd.f32 %v1788, %v1808
    %v1812 = vadd.f32 %v1789, %v1808
    %v1813 = vadd.f32 %v1790, %v1808
    %v1814 = vadd.f32 %v1791, %v1808
    %v1815 = vadd.f32 %v1792, %v1808
    %v1816 = vadd.f32 %v1793, %v1808
    %v1817 = vadd.f32 %v1794, %v1808
    %v1818 = vadd.f32 %v1795, %v1808
    %v1819 = vadd.f32 %v1796, %v1808
    %v1820 = vadd.f32 %v1797, %v1808
    %v1821 = vadd.f32 %v1798, %v1808
    %v1822 = vadd.f32 %v1799, %v1808
    %v1823 = vadd.f32 %v1800, %v1808
    %v1824 = vadd.f32 %v1801, %v1808
    %v1825 = vadd.f32 %v1802, %v1808
    %v1826 = vmax.f32 %v1810, 0.0
    %v1827 = vmax.f32 %v1811, 0.0
    %v1828 = vmax.f32 %v1812, 0.0
    %v1829 = vmax.f32 %v1813, 0.0
    %v1830 = vmax.f32 %v1814, 0.0
    %v1831 = vmax.f32 %v1815, 0.0
    %v1832 = vmax.f32 %v1816, 0.0
    %v1833 = vmax.f32 %v1817, 0.0
    %v1834 = vmax.f32 %v1818, 0.0
    %v1835 = vmax.f32 %v1819, 0.0
    %v1836 = vmax.f32 %v1820, 0.0
    %v1837 = vmax.f32 %v1821, 0.0
    %v1838 = vmax.f32 %v1822, 0.0
    %v1839 = vmax.f32 %v1823, 0.0
    %v1840 = vmax.f32 %v1824, 0.0
    %v1841 = vmax.f32 %v1825, 0.0
    %1842 = vst [vmem:[#allocation4] sm:$0xff] %v1826
    %1843 = vst [vmem:[#allocation4 + $0x8] sm:$0xff] %v1827
    %1844 = vst [vmem:[#allocation4 + $0x10] sm:$0xff] %v1828
    %1845 = vst [vmem:[#allocation4 + $0x18] sm:$0xff] %v1829
    %1846 = vst [vmem:[#allocation4 + $0x20] sm:$0xff] %v1830
    %1847 = vst [vmem:[#allocation4 + $0x28] sm:$0xff] %v1831
    %1848 = vst [vmem:[#allocation4 + $0x30] sm:$0xff] %v1832
    %1849 = vst [vmem:[#allocation4 + $0x38] sm:$0xff] %v1833
    %1850 = vst [vmem:[#allocation4 + $0x40] sm:$0xff] %v1834
    %1851 = vst [vmem:[#allocation4 + $0x48] sm:$0xff] %v1835
    %1852 = vst [vmem:[#allocation4 + $0x50] sm:$0xff] %v1836
    %1853 = vst [vmem:[#allocation4 + $0x58] sm:$0xff] %v1837
    %1854 = vst [vmem:[#allocation4 + $0x60] sm:$0xff] %v1838
    %1855 = vst [vmem:[#allocation4 + $0x68] sm:$0xff] %v1839
    %1856 = vst [vmem:[#allocation4 + $0x70] sm:$0xff] %v1840
    %1857 = vst [vmem:[#allocation4 + $0x78] sm:$0xff] %v1841
    %v1858 = vld [vmem:[#allocation4] sm:$0xff]
    %v1859 = vld [vmem:[#allocation4 + $0x8] sm:$0xff]
    %v1860 = vld [vmem:[#allocation4 + $0x10] sm:$0xff]
    %v1861 = vld [vmem:[#allocation4 + $0x18] sm:$0xff]
    %v1862 = vld [vmem:[#allocation4 + $0x20] sm:$0xff]
    %v1863 = vld [vmem:[#allocation4 + $0x28] sm:$0xff]
    %v1864 = vld [vmem:[#allocation4 + $0x30] sm:$0xff]
    %v1865 = vld [vmem:[#allocation4 + $0x38] sm:$0xff]
    %v1866 = vld [vmem:[#allocation4 + $0x40] sm:$0xff]
    %v1867 = vld [vmem:[#allocation4 + $0x48] sm:$0xff]
    %v1868 = vld [vmem:[#allocation4 + $0x50] sm:$0xff]
    %v1869 = vld [vmem:[#allocation4 + $0x58] sm:$0xff]
    %v1870 = vld [vmem:[#allocation4 + $0x60] sm:$0xff]
    %v1871 = vld [vmem:[#allocation4 + $0x68] sm:$0xff]
    %v1872 = vld [vmem:[#allocation4 + $0x70] sm:$0xff]
    %v1873 = vld [vmem:[#allocation4 + $0x78] sm:$0xff]
    %v1874 = vpack.c.bf16 %v1859, %v1858
    %v1875 = vpack.c.bf16 %v1861, %v1860
    %v1876 = vpack.c.bf16 %v1863, %v1862
    %v1877 = vpack.c.bf16 %v1865, %v1864
    %v1878 = vpack.c.bf16 %v1867, %v1866
    %v1879 = vpack.c.bf16 %v1869, %v1868
    %v1880 = vpack.c.bf16 %v1871, %v1870
    %v1881 = vpack.c.bf16 %v1873, %v1872
    %v1882 = vld [vmem:[#allocation7] sm:$0xff]
    %v1883 = vld [vmem:[#allocation7 + $0x8] sm:$0xff]
    %v1884 = vld [vmem:[#allocation7 + $0x10] sm:$0xff]
    %v1885 = vld [vmem:[#allocation7 + $0x18] sm:$0xff]
    %v1886 = vld [vmem:[#allocation7 + $0x20] sm:$0xff]
    %v1887 = vld [vmem:[#allocation7 + $0x28] sm:$0xff]
    %v1888 = vld [vmem:[#allocation7 + $0x30] sm:$0xff]
    %v1889 = vld [vmem:[#allocation7 + $0x38] sm:$0xff]
    %v1890 = vld [vmem:[#allocation7 + $0x40] sm:$0xff]
    %v1891 = vld [vmem:[#allocation7 + $0x48] sm:$0xff]
    %v1892 = vld [vmem:[#allocation7 + $0x50] sm:$0xff]
    %v1893 = vld [vmem:[#allocation7 + $0x58] sm:$0xff]
    %v1894 = vld [vmem:[#allocation7 + $0x60] sm:$0xff]
    %v1895 = vld [vmem:[#allocation7 + $0x68] sm:$0xff]
    %v1896 = vld [vmem:[#allocation7 + $0x70] sm:$0xff]
    %v1897 = vld [vmem:[#allocation7 + $0x78] sm:$0xff]
    %v1898 = vld [vmem:[#allocation4 + $0x1] sm:$0xff]
    %v1899 = vld [vmem:[#allocation4 + $0x9] sm:$0xff]
    %v1900 = vld [vmem:[#allocation4 + $0x11] sm:$0xff]
    %v1901 = vld [vmem:[#allocation4 + $0x19] sm:$0xff]
    %v1902 = vld [vmem:[#allocation4 + $0x21] sm:$0xff]
    %v1903 = vld [vmem:[#allocation4 + $0x29] sm:$0xff]
    %v1904 = vld [vmem:[#allocation4 + $0x31] sm:$0xff]
    %v1905 = vld [vmem:[#allocation4 + $0x39] sm:$0xff]
    %v1906 = vld [vmem:[#allocation4 + $0x41] sm:$0xff]
    %v1907 = vld [vmem:[#allocation4 + $0x49] sm:$0xff]
    %v1908 = vld [vmem:[#allocation4 + $0x51] sm:$0xff]
    %v1909 = vld [vmem:[#allocation4 + $0x59] sm:$0xff]
    %v1910 = vld [vmem:[#allocation4 + $0x61] sm:$0xff]
    %v1911 = vld [vmem:[#allocation4 + $0x69] sm:$0xff]
    %v1912 = vld [vmem:[#allocation4 + $0x71] sm:$0xff]
    %v1913 = vld [vmem:[#allocation4 + $0x79] sm:$0xff]
    %v1914 = vpack.c.bf16 %v1899, %v1898
    %v1915 = vpack.c.bf16 %v1901, %v1900
    %v1916 = vpack.c.bf16 %v1903, %v1902
    %v1917 = vpack.c.bf16 %v1905, %v1904
    %v1918 = vpack.c.bf16 %v1907, %v1906
    %v1919 = vpack.c.bf16 %v1909, %v1908
    %v1920 = vpack.c.bf16 %v1911, %v1910
    %v1921 = vpack.c.bf16 %v1913, %v1912
    %s1922 = scalar_lea.vmem [#allocation7], 128
    %v1923 = vld [vmem:[%s1922] sm:$0xff]
    %v1924 = vld [vmem:[%s1922 + $0x8] sm:$0xff]
    %v1925 = vld [vmem:[%s1922 + $0x10] sm:$0xff]
    %v1926 = vld [vmem:[%s1922 + $0x18] sm:$0xff]
    %v1927 = vld [vmem:[%s1922 + $0x20] sm:$0xff]
    %v1928 = vld [vmem:[%s1922 + $0x28] sm:$0xff]
    %v1929 = vld [vmem:[%s1922 + $0x30] sm:$0xff]
    %v1930 = vld [vmem:[%s1922 + $0x38] sm:$0xff]
    %v1931 = vld [vmem:[%s1922 + $0x40] sm:$0xff]
    %v1932 = vld [vmem:[%s1922 + $0x48] sm:$0xff]
    %v1933 = vld [vmem:[%s1922 + $0x50] sm:$0xff]
    %v1934 = vld [vmem:[%s1922 + $0x58] sm:$0xff]
    %v1935 = vld [vmem:[%s1922 + $0x60] sm:$0xff]
    %v1936 = vld [vmem:[%s1922 + $0x68] sm:$0xff]
    %v1937 = vld [vmem:[%s1922 + $0x70] sm:$0xff]
    %v1938 = vld [vmem:[%s1922 + $0x78] sm:$0xff]
    %v1955 = vunpack.c.l.b16 %v1923
    %v1956 = vunpack.c.h.b16 %v1923
    %v1957 = vunpack.c.l.b16 %v1924
    %v1958 = vunpack.c.h.b16 %v1924
    %v1959 = vunpack.c.l.b16 %v1925
    %v1960 = vunpack.c.h.b16 %v1925
    %v1961 = vunpack.c.l.b16 %v1926
    %v1962 = vunpack.c.h.b16 %v1926
    %v1963 = vunpack.c.l.b16 %v1927
    %v1964 = vunpack.c.h.b16 %v1927
    %v1965 = vunpack.c.l.b16 %v1928
    %v1966 = vunpack.c.h.b16 %v1928
    %v1967 = vunpack.c.l.b16 %v1929
    %v1968 = vunpack.c.h.b16 %v1929
    %v1969 = vunpack.c.l.b16 %v1930
    %v1970 = vunpack.c.h.b16 %v1930
    %v1971 = vunpack.c.l.b16 %v1931
    %v1972 = vunpack.c.h.b16 %v1931
    %v1973 = vunpack.c.l.b16 %v1932
    %v1974 = vunpack.c.h.b16 %v1932
    %v1975 = vunpack.c.l.b16 %v1933
    %v1976 = vunpack.c.h.b16 %v1933
    %v1977 = vunpack.c.l.b16 %v1934
    %v1978 = vunpack.c.h.b16 %v1934
    %v1979 = vunpack.c.l.b16 %v1935
    %v1980 = vunpack.c.h.b16 %v1935
    %v1981 = vunpack.c.l.b16 %v1936
    %v1982 = vunpack.c.h.b16 %v1936
    %v1983 = vunpack.c.l.b16 %v1937
    %v1984 = vunpack.c.h.b16 %v1937
    %v1985 = vunpack.c.l.b16 %v1938
    %v1986 = vunpack.c.h.b16 %v1938
    %v1987 = vpack.c.b16 %v1957, %v1955
    %v1988 = vpack.c.b16 %v1958, %v1956
    %v1989 = vpack.c.b16 %v1961, %v1959
    %v1990 = vpack.c.b16 %v1962, %v1960
    %v1991 = vpack.c.b16 %v1965, %v1963
    %v1992 = vpack.c.b16 %v1966, %v1964
    %v1993 = vpack.c.b16 %v1969, %v1967
    %v1994 = vpack.c.b16 %v1970, %v1968
    %v1995 = vpack.c.b16 %v1973, %v1971
    %v1996 = vpack.c.b16 %v1974, %v1972
    %v1997 = vpack.c.b16 %v1977, %v1975
    %v1998 = vpack.c.b16 %v1978, %v1976
    %v1999 = vpack.c.b16 %v1981, %v1979
    %v2000 = vpack.c.b16 %v1982, %v1980
    %v2001 = vpack.c.b16 %v1985, %v1983
    %v2002 = vpack.c.b16 %v1986, %v1984
    %2019 = vmatprep.subr.bf16.mxu0 %v1988
    %2020 = vmatpush1.bf16.msra.mxu0 %v1987
    %2021 = vmatprep.subr.bf16.mxu0 %v1990
    %2022 = vmatpush1.bf16.msra.mxu0 %v1989
    %2023 = vmatprep.subr.bf16.mxu0 %v1992
    %2024 = vmatpush1.bf16.msra.mxu0 %v1991
    %2025 = vmatprep.subr.bf16.mxu0 %v1994
    %2026 = vmatpush1.bf16.msra.mxu0 %v1993
    %2027 = vmatprep.subr.bf16.mxu0 %v1996
    %2028 = vmatpush1.bf16.msra.mxu0 %v1995
    %2029 = vmatprep.subr.bf16.mxu0 %v1998
    %2030 = vmatpush1.bf16.msra.mxu0 %v1997
    %2031 = vmatprep.subr.bf16.mxu0 %v2000
    %2032 = vmatpush1.bf16.msra.mxu0 %v1999
    %2033 = vmatprep.subr.bf16.mxu0 %v2002
    %2034 = vmatpush1.bf16.msra.mxu0 %v2001
    %2035 = vmatprep.subr.bf16.mxu0 0
    %2036 = vmatpush1.bf16.msra.mxu0 0
    %2037 = vmatprep.subr.bf16.mxu0 0
    %2038 = vmatpush1.bf16.msra.mxu0 0
    %2039 = vmatprep.subr.bf16.mxu0 0
    %2040 = vmatpush1.bf16.msra.mxu0 0
    %2041 = vmatprep.subr.bf16.mxu0 0
    %2042 = vmatpush1.bf16.msra.mxu0 0
    %2043 = vmatprep.subr.bf16.mxu0 0
    %2044 = vmatpush1.bf16.msra.mxu0 0
    %2045 = vmatprep.subr.bf16.mxu0 0
    %2046 = vmatpush1.bf16.msra.mxu0 0
    %2047 = vmatprep.subr.bf16.mxu0 0
    %2048 = vmatpush1.bf16.msra.mxu0 0
    %2049 = vmatprep.subr.bf16.mxu0 0
    %2050 = vmatpush1.bf16.msra.mxu0 0
    %2051 = vmatprep.mubr.bf16.mxu0 0
    %2052 = vmatmul.mubr.bf16.gmra.mrb[0].mxu0 %v1914
    %v2053 = vpop.f32.mrb[0].mxu0
    %v2054 = vadd.f32 0.0, %v2053
    %v2055 = vpop.f32.mrb[0].mxu0
    %v2056 = vadd.f32 0.0, %v2055
    %v2057 = vpop.f32.mrb[0].mxu0
    %v2058 = vadd.f32 0.0, %v2057
    %v2059 = vpop.f32.mrb[0].mxu0
    %v2060 = vadd.f32 0.0, %v2059
    %2061 = vmatprep.mubr.bf16.mxu0 0
    %2062 = vmatmul.mubr.bf16.gmra.mrb[0].mxu0 %v1915
    %v2063 = vpop.f32.mrb[0].mxu0
    %v2064 = vadd.f32 0.0, %v2063
    %v2065 = vpop.f32.mrb[0].mxu0
    %v2066 = vadd.f32 0.0, %v2065
    %v2067 = vpop.f32.mrb[0].mxu0
    %v2068 = vadd.f32 0.0, %v2067
    %v2069 = vpop.f32.mrb[0].mxu0
    %v2070 = vadd.f32 0.0, %v2069
    %2071 = vmatprep.mubr.bf16.mxu0 0
    %2072 = vmatmul.mubr.bf16.gmra.mrb[0].mxu0 %v1916
    %v2073 = vpop.f32.mrb[0].mxu0
    %v2074 = vadd.f32 0.0, %v2073
    %v2075 = vpop.f32.mrb[0].mxu0
    %v2076 = vadd.f32 0.0, %v2075
    %v2077 = vpop.f32.mrb[0].mxu0
    %v2078 = vadd.f32 0.0, %v2077
    %v2079 = vpop.f32.mrb[0].mxu0
    %v2080 = vadd.f32 0.0, %v2079
    %2081 = vmatprep.mubr.bf16.mxu0 0
    %2082 = vmatmul.mubr.bf16.gmra.mrb[0].mxu0 %v1917
    %v2083 = vpop.f32.mrb[0].mxu0
    %v2084 = vadd.f32 0.0, %v2083
    %v2085 = vpop.f32.mrb[0].mxu0
    %v2086 = vadd.f32 0.0, %v2085
    %v2087 = vpop.f32.mrb[0].mxu0
    %v2088 = vadd.f32 0.0, %v2087
    %v2089 = vpop.f32.mrb[0].mxu0
    %v2090 = vadd.f32 0.0, %v2089
    %2091 = vmatprep.mubr.bf16.mxu0 0
    %2092 = vmatmul.mubr.bf16.gmra.mrb[0].mxu0 %v1918
    %v2093 = vpop.f32.mrb[0].mxu0
    %v2094 = vadd.f32 0.0, %v2093
    %v2095 = vpop.f32.mrb[0].mxu0
    %v2096 = vadd.f32 0.0, %v2095
    %v2097 = vpop.f32.mrb[0].mxu0
    %v2098 = vadd.f32 0.0, %v2097
    %v2099 = vpop.f32.mrb[0].mxu0
    %v2100 = vadd.f32 0.0, %v2099
    %2101 = vmatprep.mubr.bf16.mxu0 0
    %2102 = vmatmul.mubr.bf16.gmra.mrb[0].mxu0 %v1919
    %v2103 = vpop.f32.mrb[0].mxu0
    %v2104 = vadd.f32 0.0, %v2103
    %v2105 = vpop.f32.mrb[0].mxu0
    %v2106 = vadd.f32 0.0, %v2105
    %v2107 = vpop.f32.mrb[0].mxu0
    %v2108 = vadd.f32 0.0, %v2107
    %v2109 = vpop.f32.mrb[0].mxu0
    %v2110 = vadd.f32 0.0, %v2109
    %2111 = vmatprep.mubr.bf16.mxu0 0
    %2112 = vmatmul.mubr.bf16.gmra.mrb[0].mxu0 %v1920
    %v2113 = vpop.f32.mrb[0].mxu0
    %v2114 = vadd.f32 0.0, %v2113
    %v2115 = vpop.f32.mrb[0].mxu0
    %v2116 = vadd.f32 0.0, %v2115
    %v2117 = vpop.f32.mrb[0].mxu0
    %v2118 = vadd.f32 0.0, %v2117
    %v2119 = vpop.f32.mrb[0].mxu0
    %v2120 = vadd.f32 0.0, %v2119
    %2121 = vmatprep.mubr.bf16.mxu0 0
    %2122 = vmatmul.mubr.bf16.gmra.mrb[0].mxu0 %v1921
    %v2123 = vpop.f32.mrb[0].mxu0
    %v2124 = vadd.f32 0.0, %v2123
    %v2125 = vpop.f32.mrb[0].mxu0
    %v2126 = vadd.f32 0.0, %v2125
    %v2127 = vpop.f32.mrb[0].mxu0
    %v2128 = vadd.f32 0.0, %v2127
    %v2129 = vpop.f32.mrb[0].mxu0
    %v2130 = vadd.f32 0.0, %v2129
    %2131 = vdwg.mxu0
    %v2148 = vunpack.c.l.b16 %v1882
    %v2149 = vunpack.c.h.b16 %v1882
    %v2150 = vunpack.c.l.b16 %v1883
    %v2151 = vunpack.c.h.b16 %v1883
    %v2152 = vunpack.c.l.b16 %v1884
    %v2153 = vunpack.c.h.b16 %v1884
    %v2154 = vunpack.c.l.b16 %v1885
    %v2155 = vunpack.c.h.b16 %v1885
    %v2156 = vunpack.c.l.b16 %v1886
    %v2157 = vunpack.c.h.b16 %v1886
    %v2158 = vunpack.c.l.b16 %v1887
    %v2159 = vunpack.c.h.b16 %v1887
    %v2160 = vunpack.c.l.b16 %v1888
    %v2161 = vunpack.c.h.b16 %v1888
    %v2162 = vunpack.c.l.b16 %v1889
    %v2163 = vunpack.c.h.b16 %v1889
    %v2164 = vunpack.c.l.b16 %v1890
    %v2165 = vunpack.c.h.b16 %v1890
    %v2166 = vunpack.c.l.b16 %v1891
    %v2167 = vunpack.c.h.b16 %v1891
    %v2168 = vunpack.c.l.b16 %v1892
    %v2169 = vunpack.c.h.b16 %v1892
    %v2170 = vunpack.c.l.b16 %v1893
    %v2171 = vunpack.c.h.b16 %v1893
    %v2172 = vunpack.c.l.b16 %v1894
    %v2173 = vunpack.c.h.b16 %v1894
    %v2174 = vunpack.c.l.b16 %v1895
    %v2175 = vunpack.c.h.b16 %v1895
    %v2176 = vunpack.c.l.b16 %v1896
    %v2177 = vunpack.c.h.b16 %v1896
    %v2178 = vunpack.c.l.b16 %v1897
    %v2179 = vunpack.c.h.b16 %v1897
    %v2180 = vpack.c.b16 %v2150, %v2148
    %v2181 = vpack.c.b16 %v2151, %v2149
    %v2182 = vpack.c.b16 %v2154, %v2152
    %v2183 = vpack.c.b16 %v2155, %v2153
    %v2184 = vpack.c.b16 %v2158, %v2156
    %v2185 = vpack.c.b16 %v2159, %v2157
    %v2186 = vpack.c.b16 %v2162, %v2160
    %v2187 = vpack.c.b16 %v2163, %v2161
    %v2188 = vpack.c.b16 %v2166, %v2164
    %v2189 = vpack.c.b16 %v2167, %v2165
    %v2190 = vpack.c.b16 %v2170, %v2168
    %v2191 = vpack.c.b16 %v2171, %v2169
    %v2192 = vpack.c.b16 %v2174, %v2172
    %v2193 = vpack.c.b16 %v2175, %v2173
    %v2194 = vpack.c.b16 %v2178, %v2176
    %v2195 = vpack.c.b16 %v2179, %v2177
    %2212 = vmatprep.subr.bf16.mxu0 %v2181
    %2213 = vmatpush1.bf16.msra.mxu0 %v2180
    %2214 = vmatprep.subr.bf16.mxu0 %v2183
    %2215 = vmatpush1.bf16.msra.mxu0 %v2182
    %2216 = vmatprep.subr.bf16.mxu0 %v2185
    %2217 = vmatpush1.bf16.msra.mxu0 %v2184
    %2218 = vmatprep.subr.bf16.mxu0 %v2187
    %2219 = vmatpush1.bf16.msra.mxu0 %v2186
    %2220 = vmatprep.subr.bf16.mxu0 %v2189
    %2221 = vmatpush1.bf16.msra.mxu0 %v2188
    %2222 = vmatprep.subr.bf16.mxu0 %v2191
    %2223 = vmatpush1.bf16.msra.mxu0 %v2190
    %2224 = vmatprep.subr.bf16.mxu0 %v2193
    %2225 = vmatpush1.bf16.msra.mxu0 %v2192
    %2226 = vmatprep.subr.bf16.mxu0 %v2195
    %2227 = vmatpush1.bf16.msra.mxu0 %v2194
    %2228 = vmatprep.subr.bf16.mxu0 0
    %2229 = vmatpush1.bf16.msra.mxu0 0
    %2230 = vmatprep.subr.bf16.mxu0 0
    %2231 = vmatpush1.bf16.msra.mxu0 0
    %2232 = vmatprep.subr.bf16.mxu0 0
    %2233 = vmatpush1.bf16.msra.mxu0 0
    %2234 = vmatprep.subr.bf16.mxu0 0
    %2235 = vmatpush1.bf16.msra.mxu0 0
    %2236 = vmatprep.subr.bf16.mxu0 0
    %2237 = vmatpush1.bf16.msra.mxu0 0
    %2238 = vmatprep.subr.bf16.mxu0 0
    %2239 = vmatpush1.bf16.msra.mxu0 0
    %2240 = vmatprep.subr.bf16.mxu0 0
    %2241 = vmatpush1.bf16.msra.mxu0 0
    %2242 = vmatprep.subr.bf16.mxu0 0
    %2243 = vmatpush1.bf16.msra.mxu0 0
    %2244 = vmatprep.mubr.bf16.mxu0 0
    %2245 = vmatmul.mubr.bf16.gmra.mrb[0].mxu0 %v1874
    %v2246 = vpop.f32.mrb[0].mxu0
    %v2247 = vadd.f32 %v2054, %v2246
    %v2248 = vpop.f32.mrb[0].mxu0
    %v2249 = vadd.f32 %v2056, %v2248
    %v2250 = vpop.f32.mrb[0].mxu0
    %v2251 = vadd.f32 %v2058, %v2250
    %v2252 = vpop.f32.mrb[0].mxu0
    %v2253 = vadd.f32 %v2060, %v2252
    %2254 = vmatprep.mubr.bf16.mxu0 0
    %2255 = vmatmul.mubr.bf16.gmra.mrb[0].mxu0 %v1875
    %v2256 = vpop.f32.mrb[0].mxu0
    %v2257 = vadd.f32 %v2064, %v2256
    %v2258 = vpop.f32.mrb[0].mxu0
    %v2259 = vadd.f32 %v2066, %v2258
    %v2260 = vpop.f32.mrb[0].mxu0
    %v2261 = vadd.f32 %v2068, %v2260
    %v2262 = vpop.f32.mrb[0].mxu0
    %v2263 = vadd.f32 %v2070, %v2262
    %2264 = vmatprep.mubr.bf16.mxu0 0
    %2265 = vmatmul.mubr.bf16.gmra.mrb[0].mxu0 %v1876
    %v2266 = vpop.f32.mrb[0].mxu0
    %v2267 = vadd.f32 %v2074, %v2266
    %v2268 = vpop.f32.mrb[0].mxu0
    %v2269 = vadd.f32 %v2076, %v2268
    %v2270 = vpop.f32.mrb[0].mxu0
    %v2271 = vadd.f32 %v2078, %v2270
    %v2272 = vpop.f32.mrb[0].mxu0
    %v2273 = vadd.f32 %v2080, %v2272
    %2274 = vmatprep.mubr.bf16.mxu0 0
    %2275 = vmatmul.mubr.bf16.gmra.mrb[0].mxu0 %v1877
    %v2276 = vpop.f32.mrb[0].mxu0
    %v2277 = vadd.f32 %v2084, %v2276
    %v2278 = vpop.f32.mrb[0].mxu0
    %v2279 = vadd.f32 %v2086, %v2278
    %v2280 = vpop.f32.mrb[0].mxu0
    %v2281 = vadd.f32 %v2088, %v2280
    %v2282 = vpop.f32.mrb[0].mxu0
    %v2283 = vadd.f32 %v2090, %v2282
    %2284 = vmatprep.mubr.bf16.mxu0 0
    %2285 = vmatmul.mubr.bf16.gmra.mrb[0].mxu0 %v1878
    %v2286 = vpop.f32.mrb[0].mxu0
    %v2287 = vadd.f32 %v2094, %v2286
    %v2288 = vpop.f32.mrb[0].mxu0
    %v2289 = vadd.f32 %v2096, %v2288
    %v2290 = vpop.f32.mrb[0].mxu0
    %v2291 = vadd.f32 %v2098, %v2290
    %v2292 = vpop.f32.mrb[0].mxu0
    %v2293 = vadd.f32 %v2100, %v2292
    %2294 = vmatprep.mubr.bf16.mxu0 0
    %2295 = vmatmul.mubr.bf16.gmra.mrb[0].mxu0 %v1879
    %v2296 = vpop.f32.mrb[0].mxu0
    %v2297 = vadd.f32 %v2104, %v2296
    %v2298 = vpop.f32.mrb[0].mxu0
    %v2299 = vadd.f32 %v2106, %v2298
    %v2300 = vpop.f32.mrb[0].mxu0
    %v2301 = vadd.f32 %v2108, %v2300
    %v2302 = vpop.f32.mrb[0].mxu0
    %v2303 = vadd.f32 %v2110, %v2302
    %2304 = vmatprep.mubr.bf16.mxu0 0
    %2305 = vmatmul.mubr.bf16.gmra.mrb[0].mxu0 %v1880
    %v2306 = vpop.f32.mrb[0].mxu0
    %v2307 = vadd.f32 %v2114, %v2306
    %v2308 = vpop.f32.mrb[0].mxu0
    %v2309 = vadd.f32 %v2116, %v2308
    %v2310 = vpop.f32.mrb[0].mxu0
    %v2311 = vadd.f32 %v2118, %v2310
    %v2312 = vpop.f32.mrb[0].mxu0
    %v2313 = vadd.f32 %v2120, %v2312
    %2314 = vmatprep.mubr.bf16.mxu0 0
    %2315 = vmatmul.mubr.bf16.gmra.mrb[0].mxu0 %v1881
    %v2316 = vpop.f32.mrb[0].mxu0
    %v2317 = vadd.f32 %v2124, %v2316
    %v2318 = vpop.f32.mrb[0].mxu0
    %v2319 = vadd.f32 %v2126, %v2318
    %v2320 = vpop.f32.mrb[0].mxu0
    %v2321 = vadd.f32 %v2128, %v2320
    %v2322 = vpop.f32.mrb[0].mxu0
    %v2323 = vadd.f32 %v2130, %v2322
    %2324 = vdwg.mxu0
    %v2325 = vld [vmem:[#allocation4 + $0x8] sm:$0xff]
    %v2326 = vld [vmem:[#allocation4 + $0x10] sm:$0xff]
    %v2327 = vld [vmem:[#allocation4 + $0x18] sm:$0xff]
    %v2328 = vld [vmem:[#allocation4 + $0x20] sm:$0xff]
    %v2329 = vld [vmem:[#allocation4 + $0x28] sm:$0xff]
    %v2330 = vld [vmem:[#allocation4 + $0x30] sm:$0xff]
    %v2331 = vld [vmem:[#allocation4 + $0x38] sm:$0xff]
    %v2332 = vld [vmem:[#allocation4 + $0x40] sm:$0xff]
    %v2333 = vld [vmem:[#allocation4 + $0x48] sm:$0xff]
    %v2334 = vld [vmem:[#allocation4 + $0x50] sm:$0xff]
    %v2335 = vld [vmem:[#allocation4 + $0x58] sm:$0xff]
    %v2336 = vld [vmem:[#allocation4 + $0x60] sm:$0xff]
    %v2337 = vld [vmem:[#allocation4 + $0x68] sm:$0xff]
    %v2338 = vld [vmem:[#allocation4 + $0x70] sm:$0xff]
    %v2339 = vld [vmem:[#allocation4 + $0x78] sm:$0xff]
    %v2340 = vld [vmem:[#allocation4 + $0x80] sm:$0xff]
    %v2341 = vpack.c.bf16 %v2326, %v2325
    %v2342 = vpack.c.bf16 %v2328, %v2327
    %v2343 = vpack.c.bf16 %v2330, %v2329
    %v2344 = vpack.c.bf16 %v2332, %v2331
    %v2345 = vpack.c.bf16 %v2334, %v2333
    %v2346 = vpack.c.bf16 %v2336, %v2335
    %v2347 = vpack.c.bf16 %v2338, %v2337
    %v2348 = vpack.c.bf16 %v2340, %v2339
    %s2349 = scalar_lea.vmem [#allocation7], 256
    %v2350 = vld [vmem:[%s2349] sm:$0xff]
    %v2351 = vld [vmem:[%s2349 + $0x8] sm:$0xff]
    %v2352 = vld [vmem:[%s2349 + $0x10] sm:$0xff]
    %v2353 = vld [vmem:[%s2349 + $0x18] sm:$0xff]
    %v2354 = vld [vmem:[%s2349 + $0x20] sm:$0xff]
    %v2355 = vld [vmem:[%s2349 + $0x28] sm:$0xff]
    %v2356 = vld [vmem:[%s2349 + $0x30] sm:$0xff]
    %v2357 = vld [vmem:[%s2349 + $0x38] sm:$0xff]
    %v2358 = vld [vmem:[%s2349 + $0x40] sm:$0xff]
    %v2359 = vld [vmem:[%s2349 + $0x48] sm:$0xff]
    %v2360 = vld [vmem:[%s2349 + $0x50] sm:$0xff]
    %v2361 = vld [vmem:[%s2349 + $0x58] sm:$0xff]
    %v2362 = vld [vmem:[%s2349 + $0x60] sm:$0xff]
    %v2363 = vld [vmem:[%s2349 + $0x68] sm:$0xff]
    %v2364 = vld [vmem:[%s2349 + $0x70] sm:$0xff]
    %v2365 = vld [vmem:[%s2349 + $0x78] sm:$0xff]
    %v2382 = vunpack.c.l.b16 %v2350
    %v2383 = vunpack.c.h.b16 %v2350
    %v2384 = vunpack.c.l.b16 %v2351
    %v2385 = vunpack.c.h.b16 %v2351
    %v2386 = vunpack.c.l.b16 %v2352
    %v2387 = vunpack.c.h.b16 %v2352
    %v2388 = vunpack.c.l.b16 %v2353
    %v2389 = vunpack.c.h.b16 %v2353
    %v2390 = vunpack.c.l.b16 %v2354
    %v2391 = vunpack.c.h.b16 %v2354
    %v2392 = vunpack.c.l.b16 %v2355
    %v2393 = vunpack.c.h.b16 %v2355
    %v2394 = vunpack.c.l.b16 %v2356
    %v2395 = vunpack.c.h.b16 %v2356
    %v2396 = vunpack.c.l.b16 %v2357
    %v2397 = vunpack.c.h.b16 %v2357
    %v2398 = vunpack.c.l.b16 %v2358
    %v2399 = vunpack.c.h.b16 %v2358
    %v2400 = vunpack.c.l.b16 %v2359
    %v2401 = vunpack.c.h.b16 %v2359
    %v2402 = vunpack.c.l.b16 %v2360
    %v2403 = vunpack.c.h.b16 %v2360
    %v2404 = vunpack.c.l.b16 %v2361
    %v2405 = vunpack.c.h.b16 %v2361
    %v2406 = vunpack.c.l.b16 %v2362
    %v2407 = vunpack.c.h.b16 %v2362
    %v2408 = vunpack.c.l.b16 %v2363
    %v2409 = vunpack.c.h.b16 %v2363
    %v2410 = vunpack.c.l.b16 %v2364
    %v2411 = vunpack.c.h.b16 %v2364
    %v2412 = vunpack.c.l.b16 %v2365
    %v2413 = vunpack.c.h.b16 %v2365
    %v2414 = vpack.c.b16 %v2384, %v2382
    %v2415 = vpack.c.b16 %v2385, %v2383
    %v2416 = vpack.c.b16 %v2388, %v2386
    %v2417 = vpack.c.b16 %v2389, %v2387
    %v2418 = vpack.c.b16 %v2392, %v2390
    %v2419 = vpack.c.b16 %v2393, %v2391
    %v2420 = vpack.c.b16 %v2396, %v2394
    %v2421 = vpack.c.b16 %v2397, %v2395
    %v2422 = vpack.c.b16 %v2400, %v2398
    %v2423 = vpack.c.b16 %v2401, %v2399
    %v2424 = vpack.c.b16 %v2404, %v2402
    %v2425 = vpack.c.b16 %v2405, %v2403
    %v2426 = vpack.c.b16 %v2408, %v2406
    %v2427 = vpack.c.b16 %v2409, %v2407
    %v2428 = vpack.c.b16 %v2412, %v2410
    %v2429 = vpack.c.b16 %v2413, %v2411
    %2446 = vmatprep.subr.bf16.mxu0 %v2415
    %2447 = vmatpush1.bf16.msra.mxu0 %v2414
    %2448 = vmatprep.subr.bf16.mxu0 %v2417
    %2449 = vmatpush1.bf16.msra.mxu0 %v2416
    %2450 = vmatprep.subr.bf16.mxu0 %v2419
    %2451 = vmatpush1.bf16.msra.mxu0 %v2418
    %2452 = vmatprep.subr.bf16.mxu0 %v2421
    %2453 = vmatpush1.bf16.msra.mxu0 %v2420
    %2454 = vmatprep.subr.bf16.mxu0 %v2423
    %2455 = vmatpush1.bf16.msra.mxu0 %v2422
    %2456 = vmatprep.subr.bf16.mxu0 %v2425
    %2457 = vmatpush1.bf16.msra.mxu0 %v2424
    %2458 = vmatprep.subr.bf16.mxu0 %v2427
    %2459 = vmatpush1.bf16.msra.mxu0 %v2426
    %2460 = vmatprep.subr.bf16.mxu0 %v2429
    %2461 = vmatpush1.bf16.msra.mxu0 %v2428
    %2462 = vmatprep.subr.bf16.mxu0 0
    %2463 = vmatpush1.bf16.msra.mxu0 0
    %2464 = vmatprep.subr.bf16.mxu0 0
    %2465 = vmatpush1.bf16.msra.mxu0 0
    %2466 = vmatprep.subr.bf16.mxu0 0
    %2467 = vmatpush1.bf16.msra.mxu0 0
    %2468 = vmatprep.subr.bf16.mxu0 0
    %2469 = vmatpush1.bf16.msra.mxu0 0
    %2470 = vmatprep.subr.bf16.mxu0 0
    %2471 = vmatpush1.bf16.msra.mxu0 0
    %2472 = vmatprep.subr.bf16.mxu0 0
    %2473 = vmatpush1.bf16.msra.mxu0 0
    %2474 = vmatprep.subr.bf16.mxu0 0
    %2475 = vmatpush1.bf16.msra.mxu0 0
    %2476 = vmatprep.subr.bf16.mxu0 0
    %2477 = vmatpush1.bf16.msra.mxu0 0
    %2478 = vmatprep.mubr.bf16.mxu0 0
    %2479 = vmatmul.mubr.bf16.gmra.mrb[0].mxu0 %v2341
    %v2480 = vpop.f32.mrb[0].mxu0
    %v2481 = vadd.f32 0.0, %v2480
    %v2482 = vpop.f32.mrb[0].mxu0
    %v2483 = vadd.f32 0.0, %v2482
    %v2484 = vpop.f32.mrb[0].mxu0
    %v2485 = vadd.f32 0.0, %v2484
    %v2486 = vpop.f32.mrb[0].mxu0
    %v2487 = vadd.f32 0.0, %v2486
    %2488 = vmatprep.mubr.bf16.mxu0 0
    %2489 = vmatmul.mubr.bf16.gmra.mrb[0].mxu0 %v2342
    %v2490 = vpop.f32.mrb[0].mxu0
    %v2491 = vadd.f32 0.0, %v2490
    %v2492 = vpop.f32.mrb[0].mxu0
    %v2493 = vadd.f32 0.0, %v2492
    %v2494 = vpop.f32.mrb[0].mxu0
    %v2495 = vadd.f32 0.0, %v2494
    %v2496 = vpop.f32.mrb[0].mxu0
    %v2497 = vadd.f32 0.0, %v2496
    %2498 = vmatprep.mubr.bf16.mxu0 0
    %2499 = vmatmul.mubr.bf16.gmra.mrb[0].mxu0 %v2343
    %v2500 = vpop.f32.mrb[0].mxu0
    %v2501 = vadd.f32 0.0, %v2500
    %v2502 = vpop.f32.mrb[0].mxu0
    %v2503 = vadd.f32 0.0, %v2502
    %v2504 = vpop.f32.mrb[0].mxu0
    %v2505 = vadd.f32 0.0, %v2504
    %v2506 = vpop.f32.mrb[0].mxu0
    %v2507 = vadd.f32 0.0, %v2506
    %2508 = vmatprep.mubr.bf16.mxu0 0
    %2509 = vmatmul.mubr.bf16.gmra.mrb[0].mxu0 %v2344
    %v2510 = vpop.f32.mrb[0].mxu0
    %v2511 = vadd.f32 0.0, %v2510
    %v2512 = vpop.f32.mrb[0].mxu0
    %v2513 = vadd.f32 0.0, %v2512
    %v2514 = vpop.f32.mrb[0].mxu0
    %v2515 = vadd.f32 0.0, %v2514
    %v2516 = vpop.f32.mrb[0].mxu0
    %v2517 = vadd.f32 0.0, %v2516
    %2518 = vmatprep.mubr.bf16.mxu0 0
    %2519 = vmatmul.mubr.bf16.gmra.mrb[0].mxu0 %v2345
    %v2520 = vpop.f32.mrb[0].mxu0
    %v2521 = vadd.f32 0.0, %v2520
    %v2522 = vpop.f32.mrb[0].mxu0
    %v2523 = vadd.f32 0.0, %v2522
    %v2524 = vpop.f32.mrb[0].mxu0
    %v2525 = vadd.f32 0.0, %v2524
    %v2526 = vpop.f32.mrb[0].mxu0
    %v2527 = vadd.f32 0.0, %v2526
    %2528 = vmatprep.mubr.bf16.mxu0 0
    %2529 = vmatmul.mubr.bf16.gmra.mrb[0].mxu0 %v2346
    %v2530 = vpop.f32.mrb[0].mxu0
    %v2531 = vadd.f32 0.0, %v2530
    %v2532 = vpop.f32.mrb[0].mxu0
    %v2533 = vadd.f32 0.0, %v2532
    %v2534 = vpop.f32.mrb[0].mxu0
    %v2535 = vadd.f32 0.0, %v2534
    %v2536 = vpop.f32.mrb[0].mxu0
    %v2537 = vadd.f32 0.0, %v2536
    %2538 = vmatprep.mubr.bf16.mxu0 0
    %2539 = vmatmul.mubr.bf16.gmra.mrb[0].mxu0 %v2347
    %v2540 = vpop.f32.mrb[0].mxu0
    %v2541 = vadd.f32 0.0, %v2540
    %v2542 = vpop.f32.mrb[0].mxu0
    %v2543 = vadd.f32 0.0, %v2542
    %v2544 = vpop.f32.mrb[0].mxu0
    %v2545 = vadd.f32 0.0, %v2544
    %v2546 = vpop.f32.mrb[0].mxu0
    %v2547 = vadd.f32 0.0, %v2546
    %2548 = vmatprep.mubr.bf16.mxu0 0
    %2549 = vmatmul.mubr.bf16.gmra.mrb[0].mxu0 %v2348
    %v2550 = vpop.f32.mrb[0].mxu0
    %v2551 = vadd.f32 0.0, %v2550
    %v2552 = vpop.f32.mrb[0].mxu0
    %v2553 = vadd.f32 0.0, %v2552
    %v2554 = vpop.f32.mrb[0].mxu0
    %v2555 = vadd.f32 0.0, %v2554
    %v2556 = vpop.f32.mrb[0].mxu0
    %v2557 = vadd.f32 0.0, %v2556
    %2558 = vdwg.mxu0
    %v2559 = vadd.f32 %v2247, %v2481
    %v2560 = vadd.f32 %v2249, %v2483
    %v2561 = vadd.f32 %v2251, %v2485
    %v2562 = vadd.f32 %v2253, %v2487
    %v2563 = vadd.f32 %v2257, %v2491
    %v2564 = vadd.f32 %v2259, %v2493
    %v2565 = vadd.f32 %v2261, %v2495
    %v2566 = vadd.f32 %v2263, %v2497
    %v2567 = vadd.f32 %v2267, %v2501
    %v2568 = vadd.f32 %v2269, %v2503
    %v2569 = vadd.f32 %v2271, %v2505
    %v2570 = vadd.f32 %v2273, %v2507
    %v2571 = vadd.f32 %v2277, %v2511
    %v2572 = vadd.f32 %v2279, %v2513
    %v2573 = vadd.f32 %v2281, %v2515
    %v2574 = vadd.f32 %v2283, %v2517
    %v2575 = vadd.f32 %v2287, %v2521
    %v2576 = vadd.f32 %v2289, %v2523
    %v2577 = vadd.f32 %v2291, %v2525
    %v2578 = vadd.f32 %v2293, %v2527
    %v2579 = vadd.f32 %v2297, %v2531
    %v2580 = vadd.f32 %v2299, %v2533
    %v2581 = vadd.f32 %v2301, %v2535
    %v2582 = vadd.f32 %v2303, %v2537
    %v2583 = vadd.f32 %v2307, %v2541
    %v2584 = vadd.f32 %v2309, %v2543
    %v2585 = vadd.f32 %v2311, %v2545
    %v2586 = vadd.f32 %v2313, %v2547
    %v2587 = vadd.f32 %v2317, %v2551
    %v2588 = vadd.f32 %v2319, %v2553
    %v2589 = vadd.f32 %v2321, %v2555
    %v2590 = vadd.f32 %v2323, %v2557
    %v2591 = vld [vmem:[#allocation4 + $0x9] sm:$0xff]
    %v2592 = vld [vmem:[#allocation4 + $0x11] sm:$0xff]
    %v2593 = vld [vmem:[#allocation4 + $0x19] sm:$0xff]
    %v2594 = vld [vmem:[#allocation4 + $0x21] sm:$0xff]
    %v2595 = vld [vmem:[#allocation4 + $0x29] sm:$0xff]
    %v2596 = vld [vmem:[#allocation4 + $0x31] sm:$0xff]
    %v2597 = vld [vmem:[#allocation4 + $0x39] sm:$0xff]
    %v2598 = vld [vmem:[#allocation4 + $0x41] sm:$0xff]
    %v2599 = vld [vmem:[#allocation4 + $0x49] sm:$0xff]
    %v2600 = vld [vmem:[#allocation4 + $0x51] sm:$0xff]
    %v2601 = vld [vmem:[#allocation4 + $0x59] sm:$0xff]
    %v2602 = vld [vmem:[#allocation4 + $0x61] sm:$0xff]
    %v2603 = vld [vmem:[#allocation4 + $0x69] sm:$0xff]
    %v2604 = vld [vmem:[#allocation4 + $0x71] sm:$0xff]
    %v2605 = vld [vmem:[#allocation4 + $0x79] sm:$0xff]
    %v2606 = vld [vmem:[#allocation4 + $0x81] sm:$0xff]
    %v2607 = vpack.c.bf16 %v2592, %v2591
    %v2608 = vpack.c.bf16 %v2594, %v2593
    %v2609 = vpack.c.bf16 %v2596, %v2595
    %v2610 = vpack.c.bf16 %v2598, %v2597
    %v2611 = vpack.c.bf16 %v2600, %v2599
    %v2612 = vpack.c.bf16 %v2602, %v2601
    %v2613 = vpack.c.bf16 %v2604, %v2603
    %v2614 = vpack.c.bf16 %v2606, %v2605
    %s2615 = scalar_lea.vmem [#allocation7], 384
    %v2616 = vld [vmem:[%s2615] sm:$0xff]
    %v2617 = vld [vmem:[%s2615 + $0x8] sm:$0xff]
    %v2618 = vld [vmem:[%s2615 + $0x10] sm:$0xff]
    %v2619 = vld [vmem:[%s2615 + $0x18] sm:$0xff]
    %v2620 = vld [vmem:[%s2615 + $0x20] sm:$0xff]
    %v2621 = vld [vmem:[%s2615 + $0x28] sm:$0xff]
    %v2622 = vld [vmem:[%s2615 + $0x30] sm:$0xff]
    %v2623 = vld [vmem:[%s2615 + $0x38] sm:$0xff]
    %v2624 = vld [vmem:[%s2615 + $0x40] sm:$0xff]
    %v2625 = vld [vmem:[%s2615 + $0x48] sm:$0xff]
    %v2626 = vld [vmem:[%s2615 + $0x50] sm:$0xff]
    %v2627 = vld [vmem:[%s2615 + $0x58] sm:$0xff]
    %v2628 = vld [vmem:[%s2615 + $0x60] sm:$0xff]
    %v2629 = vld [vmem:[%s2615 + $0x68] sm:$0xff]
    %v2630 = vld [vmem:[%s2615 + $0x70] sm:$0xff]
    %v2631 = vld [vmem:[%s2615 + $0x78] sm:$0xff]
    %v2648 = vunpack.c.l.b16 %v2616
    %v2649 = vunpack.c.h.b16 %v2616
    %v2650 = vunpack.c.l.b16 %v2617
    %v2651 = vunpack.c.h.b16 %v2617
    %v2652 = vunpack.c.l.b16 %v2618
    %v2653 = vunpack.c.h.b16 %v2618
    %v2654 = vunpack.c.l.b16 %v2619
    %v2655 = vunpack.c.h.b16 %v2619
    %v2656 = vunpack.c.l.b16 %v2620
    %v2657 = vunpack.c.h.b16 %v2620
    %v2658 = vunpack.c.l.b16 %v2621
    %v2659 = vunpack.c.h.b16 %v2621
    %v2660 = vunpack.c.l.b16 %v2622
    %v2661 = vunpack.c.h.b16 %v2622
    %v2662 = vunpack.c.l.b16 %v2623
    %v2663 = vunpack.c.h.b16 %v2623
    %v2664 = vunpack.c.l.b16 %v2624
    %v2665 = vunpack.c.h.b16 %v2624
    %v2666 = vunpack.c.l.b16 %v2625
    %v2667 = vunpack.c.h.b16 %v2625
    %v2668 = vunpack.c.l.b16 %v2626
    %v2669 = vunpack.c.h.b16 %v2626
    %v2670 = vunpack.c.l.b16 %v2627
    %v2671 = vunpack.c.h.b16 %v2627
    %v2672 = vunpack.c.l.b16 %v2628
    %v2673 = vunpack.c.h.b16 %v2628
    %v2674 = vunpack.c.l.b16 %v2629
    %v2675 = vunpack.c.h.b16 %v2629
    %v2676 = vunpack.c.l.b16 %v2630
    %v2677 = vunpack.c.h.b16 %v2630
    %v2678 = vunpack.c.l.b16 %v2631
    %v2679 = vunpack.c.h.b16 %v2631
    %v2680 = vpack.c.b16 %v2650, %v2648
    %v2681 = vpack.c.b16 %v2651, %v2649
    %v2682 = vpack.c.b16 %v2654, %v2652
    %v2683 = vpack.c.b16 %v2655, %v2653
    %v2684 = vpack.c.b16 %v2658, %v2656
    %v2685 = vpack.c.b16 %v2659, %v2657
    %v2686 = vpack.c.b16 %v2662, %v2660
    %v2687 = vpack.c.b16 %v2663, %v2661
    %v2688 = vpack.c.b16 %v2666, %v2664
    %v2689 = vpack.c.b16 %v2667, %v2665
    %v2690 = vpack.c.b16 %v2670, %v2668
    %v2691 = vpack.c.b16 %v2671, %v2669
    %v2692 = vpack.c.b16 %v2674, %v2672
    %v2693 = vpack.c.b16 %v2675, %v2673
    %v2694 = vpack.c.b16 %v2678, %v2676
    %v2695 = vpack.c.b16 %v2679, %v2677
    %2712 = vmatprep.subr.bf16.mxu0 %v2681
    %2713 = vmatpush1.bf16.msra.mxu0 %v2680
    %2714 = vmatprep.subr.bf16.mxu0 %v2683
    %2715 = vmatpush1.bf16.msra.mxu0 %v2682
    %2716 = vmatprep.subr.bf16.mxu0 %v2685
    %2717 = vmatpush1.bf16.msra.mxu0 %v2684
    %2718 = vmatprep.subr.bf16.mxu0 %v2687
    %2719 = vmatpush1.bf16.msra.mxu0 %v2686
    %2720 = vmatprep.subr.bf16.mxu0 %v2689
    %2721 = vmatpush1.bf16.msra.mxu0 %v2688
    %2722 = vmatprep.subr.bf16.mxu0 %v2691
    %2723 = vmatpush1.bf16.msra.mxu0 %v2690
    %2724 = vmatprep.subr.bf16.mxu0 %v2693
    %2725 = vmatpush1.bf16.msra.mxu0 %v2692
    %2726 = vmatprep.subr.bf16.mxu0 %v2695
    %2727 = vmatpush1.bf16.msra.mxu0 %v2694
    %2728 = vmatprep.subr.bf16.mxu0 0
    %2729 = vmatpush1.bf16.msra.mxu0 0
    %2730 = vmatprep.subr.bf16.mxu0 0
    %2731 = vmatpush1.bf16.msra.mxu0 0
    %2732 = vmatprep.subr.bf16.mxu0 0
    %2733 = vmatpush1.bf16.msra.mxu0 0
    %2734 = vmatprep.subr.bf16.mxu0 0
    %2735 = vmatpush1.bf16.msra.mxu0 0
    %2736 = vmatprep.subr.bf16.mxu0 0
    %2737 = vmatpush1.bf16.msra.mxu0 0
    %2738 = vmatprep.subr.bf16.mxu0 0
    %2739 = vmatpush1.bf16.msra.mxu0 0
    %2740 = vmatprep.subr.bf16.mxu0 0
    %2741 = vmatpush1.bf16.msra.mxu0 0
    %2742 = vmatprep.subr.bf16.mxu0 0
    %2743 = vmatpush1.bf16.msra.mxu0 0
    %2744 = vmatprep.mubr.bf16.mxu0 0
    %2745 = vmatmul.mubr.bf16.gmra.mrb[0].mxu0 %v2607
    %v2746 = vpop.f32.mrb[0].mxu0
    %v2747 = vadd.f32 0.0, %v2746
    %v2748 = vpop.f32.mrb[0].mxu0
    %v2749 = vadd.f32 0.0, %v2748
    %v2750 = vpop.f32.mrb[0].mxu0
    %v2751 = vadd.f32 0.0, %v2750
    %v2752 = vpop.f32.mrb[0].mxu0
    %v2753 = vadd.f32 0.0, %v2752
    %2754 = vmatprep.mubr.bf16.mxu0 0
    %2755 = vmatmul.mubr.bf16.gmra.mrb[0].mxu0 %v2608
    %v2756 = vpop.f32.mrb[0].mxu0
    %v2757 = vadd.f32 0.0, %v2756
    %v2758 = vpop.f32.mrb[0].mxu0
    %v2759 = vadd.f32 0.0, %v2758
    %v2760 = vpop.f32.mrb[0].mxu0
    %v2761 = vadd.f32 0.0, %v2760
    %v2762 = vpop.f32.mrb[0].mxu0
    %v2763 = vadd.f32 0.0, %v2762
    %2764 = vmatprep.mubr.bf16.mxu0 0
    %2765 = vmatmul.mubr.bf16.gmra.mrb[0].mxu0 %v2609
    %v2766 = vpop.f32.mrb[0].mxu0
    %v2767 = vadd.f32 0.0, %v2766
    %v2768 = vpop.f32.mrb[0].mxu0
    %v2769 = vadd.f32 0.0, %v2768
    %v2770 = vpop.f32.mrb[0].mxu0
    %v2771 = vadd.f32 0.0, %v2770
    %v2772 = vpop.f32.mrb[0].mxu0
    %v2773 = vadd.f32 0.0, %v2772
    %2774 = vmatprep.mubr.bf16.mxu0 0
    %2775 = vmatmul.mubr.bf16.gmra.mrb[0].mxu0 %v2610
    %v2776 = vpop.f32.mrb[0].mxu0
    %v2777 = vadd.f32 0.0, %v2776
    %v2778 = vpop.f32.mrb[0].mxu0
    %v2779 = vadd.f32 0.0, %v2778
    %v2780 = vpop.f32.mrb[0].mxu0
    %v2781 = vadd.f32 0.0, %v2780
    %v2782 = vpop.f32.mrb[0].mxu0
    %v2783 = vadd.f32 0.0, %v2782
    %2784 = vmatprep.mubr.bf16.mxu0 0
    %2785 = vmatmul.mubr.bf16.gmra.mrb[0].mxu0 %v2611
    %v2786 = vpop.f32.mrb[0].mxu0
    %v2787 = vadd.f32 0.0, %v2786
    %v2788 = vpop.f32.mrb[0].mxu0
    %v2789 = vadd.f32 0.0, %v2788
    %v2790 = vpop.f32.mrb[0].mxu0
    %v2791 = vadd.f32 0.0, %v2790
    %v2792 = vpop.f32.mrb[0].mxu0
    %v2793 = vadd.f32 0.0, %v2792
    %2794 = vmatprep.mubr.bf16.mxu0 0
    %2795 = vmatmul.mubr.bf16.gmra.mrb[0].mxu0 %v2612
    %v2796 = vpop.f32.mrb[0].mxu0
    %v2797 = vadd.f32 0.0, %v2796
    %v2798 = vpop.f32.mrb[0].mxu0
    %v2799 = vadd.f32 0.0, %v2798
    %v2800 = vpop.f32.mrb[0].mxu0
    %v2801 = vadd.f32 0.0, %v2800
    %v2802 = vpop.f32.mrb[0].mxu0
    %v2803 = vadd.f32 0.0, %v2802
    %2804 = vmatprep.mubr.bf16.mxu0 0
    %2805 = vmatmul.mubr.bf16.gmra.mrb[0].mxu0 %v2613
    %v2806 = vpop.f32.mrb[0].mxu0
    %v2807 = vadd.f32 0.0, %v2806
    %v2808 = vpop.f32.mrb[0].mxu0
    %v2809 = vadd.f32 0.0, %v2808
    %v2810 = vpop.f32.mrb[0].mxu0
    %v2811 = vadd.f32 0.0, %v2810
    %v2812 = vpop.f32.mrb[0].mxu0
    %v2813 = vadd.f32 0.0, %v2812
    %2814 = vmatprep.mubr.bf16.mxu0 0
    %2815 = vmatmul.mubr.bf16.gmra.mrb[0].mxu0 %v2614
    %v2816 = vpop.f32.mrb[0].mxu0
    %v2817 = vadd.f32 0.0, %v2816
    %v2818 = vpop.f32.mrb[0].mxu0
    %v2819 = vadd.f32 0.0, %v2818
    %v2820 = vpop.f32.mrb[0].mxu0
    %v2821 = vadd.f32 0.0, %v2820
    %v2822 = vpop.f32.mrb[0].mxu0
    %v2823 = vadd.f32 0.0, %v2822
    %2824 = vdwg.mxu0
    %v2825 = vadd.f32 %v2559, %v2747
    %v2826 = vadd.f32 %v2560, %v2749
    %v2827 = vadd.f32 %v2561, %v2751
    %v2828 = vadd.f32 %v2562, %v2753
    %v2829 = vadd.f32 %v2563, %v2757
    %v2830 = vadd.f32 %v2564, %v2759
    %v2831 = vadd.f32 %v2565, %v2761
    %v2832 = vadd.f32 %v2566, %v2763
    %v2833 = vadd.f32 %v2567, %v2767
    %v2834 = vadd.f32 %v2568, %v2769
    %v2835 = vadd.f32 %v2569, %v2771
    %v2836 = vadd.f32 %v2570, %v2773
    %v2837 = vadd.f32 %v2571, %v2777
    %v2838 = vadd.f32 %v2572, %v2779
    %v2839 = vadd.f32 %v2573, %v2781
    %v2840 = vadd.f32 %v2574, %v2783
    %v2841 = vadd.f32 %v2575, %v2787
    %v2842 = vadd.f32 %v2576, %v2789
    %v2843 = vadd.f32 %v2577, %v2791
    %v2844 = vadd.f32 %v2578, %v2793
    %v2845 = vadd.f32 %v2579, %v2797
    %v2846 = vadd.f32 %v2580, %v2799
    %v2847 = vadd.f32 %v2581, %v2801
    %v2848 = vadd.f32 %v2582, %v2803
    %v2849 = vadd.f32 %v2583, %v2807
    %v2850 = vadd.f32 %v2584, %v2809
    %v2851 = vadd.f32 %v2585, %v2811
    %v2852 = vadd.f32 %v2586, %v2813
    %v2853 = vadd.f32 %v2587, %v2817
    %v2854 = vadd.f32 %v2588, %v2819
    %v2855 = vadd.f32 %v2589, %v2821
    %v2856 = vadd.f32 %v2590, %v2823
    %v2857 = vld [vmem:[%s8] sm:$0x3]
    %v2859 = vlaneseq
    %v2860 = vshrl.u32 %v2859, 7
    %v2861 = vsub.s32 0, %v2860
    %v2862 = vrot.slane %v2857, %v2861
    %v2863 = vlaneseq
    %v2864 = vshrl.u32 %v2863, 7
    %v2865 = vsub.s32 1, %v2864
    %v2866 = vrot.slane %v2857, %v2865
    %v2869 = vadd.f32 %v2825, %v2862
    %v2870 = vadd.f32 %v2826, %v2866
    %v2871 = vadd.f32 %v2827, %v2862
    %v2872 = vadd.f32 %v2828, %v2866
    %v2873 = vadd.f32 %v2829, %v2862
    %v2874 = vadd.f32 %v2830, %v2866
    %v2875 = vadd.f32 %v2831, %v2862
    %v2876 = vadd.f32 %v2832, %v2866
    %v2877 = vadd.f32 %v2833, %v2862
    %v2878 = vadd.f32 %v2834, %v2866
    %v2879 = vadd.f32 %v2835, %v2862
    %v2880 = vadd.f32 %v2836, %v2866
    %v2881 = vadd.f32 %v2837, %v2862
    %v2882 = vadd.f32 %v2838, %v2866
    %v2883 = vadd.f32 %v2839, %v2862
    %v2884 = vadd.f32 %v2840, %v2866
    %v2885 = vadd.f32 %v2841, %v2862
    %v2886 = vadd.f32 %v2842, %v2866
    %v2887 = vadd.f32 %v2843, %v2862
    %v2888 = vadd.f32 %v2844, %v2866
    %v2889 = vadd.f32 %v2845, %v2862
    %v2890 = vadd.f32 %v2846, %v2866
    %v2891 = vadd.f32 %v2847, %v2862
    %v2892 = vadd.f32 %v2848, %v2866
    %v2893 = vadd.f32 %v2849, %v2862
    %v2894 = vadd.f32 %v2850, %v2866
    %v2895 = vadd.f32 %v2851, %v2862
    %v2896 = vadd.f32 %v2852, %v2866
    %v2897 = vadd.f32 %v2853, %v2862
    %v2898 = vadd.f32 %v2854, %v2866
    %v2899 = vadd.f32 %v2855, %v2862
    %v2900 = vadd.f32 %v2856, %v2866
    %v2901 = vmax.f32 %v2869, 0.0
    %v2902 = vmax.f32 %v2870, 0.0
    %v2903 = vmax.f32 %v2871, 0.0
    %v2904 = vmax.f32 %v2872, 0.0
    %v2905 = vmax.f32 %v2873, 0.0
    %v2906 = vmax.f32 %v2874, 0.0
    %v2907 = vmax.f32 %v2875, 0.0
    %v2908 = vmax.f32 %v2876, 0.0
    %v2909 = vmax.f32 %v2877, 0.0
    %v2910 = vmax.f32 %v2878, 0.0
    %v2911 = vmax.f32 %v2879, 0.0
    %v2912 = vmax.f32 %v2880, 0.0
    %v2913 = vmax.f32 %v2881, 0.0
    %v2914 = vmax.f32 %v2882, 0.0
    %v2915 = vmax.f32 %v2883, 0.0
    %v2916 = vmax.f32 %v2884, 0.0
    %v2917 = vmax.f32 %v2885, 0.0
    %v2918 = vmax.f32 %v2886, 0.0
    %v2919 = vmax.f32 %v2887, 0.0
    %v2920 = vmax.f32 %v2888, 0.0
    %v2921 = vmax.f32 %v2889, 0.0
    %v2922 = vmax.f32 %v2890, 0.0
    %v2923 = vmax.f32 %v2891, 0.0
    %v2924 = vmax.f32 %v2892, 0.0
    %v2925 = vmax.f32 %v2893, 0.0
    %v2926 = vmax.f32 %v2894, 0.0
    %v2927 = vmax.f32 %v2895, 0.0
    %v2928 = vmax.f32 %v2896, 0.0
    %v2929 = vmax.f32 %v2897, 0.0
    %v2930 = vmax.f32 %v2898, 0.0
    %v2931 = vmax.f32 %v2899, 0.0
    %v2932 = vmax.f32 %v2900, 0.0
    %2933 = vst [vmem:[#allocation5] sm:$0xff] %v2901
    %2934 = vst [vmem:[#allocation5 + $0x8] sm:$0xff] %v2902
    %2935 = vst [vmem:[#allocation5 + $0x10] sm:$0xff] %v2903
    %2936 = vst [vmem:[#allocation5 + $0x18] sm:$0xff] %v2904
    %2937 = vst [vmem:[#allocation5 + $0x20] sm:$0xff] %v2905
    %2938 = vst [vmem:[#allocation5 + $0x28] sm:$0xff] %v2906
    %2939 = vst [vmem:[#allocation5 + $0x30] sm:$0xff] %v2907
    %2940 = vst [vmem:[#allocation5 + $0x38] sm:$0xff] %v2908
    %2941 = vst [vmem:[#allocation5 + $0x40] sm:$0xff] %v2909
    %2942 = vst [vmem:[#allocation5 + $0x48] sm:$0xff] %v2910
    %2943 = vst [vmem:[#allocation5 + $0x50] sm:$0xff] %v2911
    %2944 = vst [vmem:[#allocation5 + $0x58] sm:$0xff] %v2912
    %2945 = vst [vmem:[#allocation5 + $0x60] sm:$0xff] %v2913
    %2946 = vst [vmem:[#allocation5 + $0x68] sm:$0xff] %v2914
    %2947 = vst [vmem:[#allocation5 + $0x70] sm:$0xff] %v2915
    %2948 = vst [vmem:[#allocation5 + $0x78] sm:$0xff] %v2916
    %2949 = vst [vmem:[#allocation5 + $0x80] sm:$0xff] %v2917
    %2950 = vst [vmem:[#allocation5 + $0x88] sm:$0xff] %v2918
    %2951 = vst [vmem:[#allocation5 + $0x90] sm:$0xff] %v2919
    %2952 = vst [vmem:[#allocation5 + $0x98] sm:$0xff] %v2920
    %2953 = vst [vmem:[#allocation5 + $0xa0] sm:$0xff] %v2921
    %2954 = vst [vmem:[#allocation5 + $0xa8] sm:$0xff] %v2922
    %2955 = vst [vmem:[#allocation5 + $0xb0] sm:$0xff] %v2923
    %2956 = vst [vmem:[#allocation5 + $0xb8] sm:$0xff] %v2924
    %2957 = vst [vmem:[#allocation5 + $0xc0] sm:$0xff] %v2925
    %2958 = vst [vmem:[#allocation5 + $0xc8] sm:$0xff] %v2926
    %2959 = vst [vmem:[#allocation5 + $0xd0] sm:$0xff] %v2927
    %2960 = vst [vmem:[#allocation5 + $0xd8] sm:$0xff] %v2928
    %2961 = vst [vmem:[#allocation5 + $0xe0] sm:$0xff] %v2929
    %2962 = vst [vmem:[#allocation5 + $0xe8] sm:$0xff] %v2930
    %2963 = vst [vmem:[#allocation5 + $0xf0] sm:$0xff] %v2931
    %2964 = vst [vmem:[#allocation5 + $0xf8] sm:$0xff] %v2932
    %v2965 = vld [vmem:[#allocation5] sm:$0xff]
    %v2966 = vld [vmem:[#allocation5 + $0x8] sm:$0xff]
    %v2967 = vld [vmem:[#allocation5 + $0x10] sm:$0xff]
    %v2968 = vld [vmem:[#allocation5 + $0x18] sm:$0xff]
    %v2969 = vld [vmem:[#allocation5 + $0x20] sm:$0xff]
    %v2970 = vld [vmem:[#allocation5 + $0x28] sm:$0xff]
    %v2971 = vld [vmem:[#allocation5 + $0x30] sm:$0xff]
    %v2972 = vld [vmem:[#allocation5 + $0x38] sm:$0xff]
    %v2973 = vld [vmem:[#allocation5 + $0x40] sm:$0xff]
    %v2974 = vld [vmem:[#allocation5 + $0x48] sm:$0xff]
    %v2975 = vld [vmem:[#allocation5 + $0x50] sm:$0xff]
    %v2976 = vld [vmem:[#allocation5 + $0x58] sm:$0xff]
    %v2977 = vld [vmem:[#allocation5 + $0x60] sm:$0xff]
    %v2978 = vld [vmem:[#allocation5 + $0x68] sm:$0xff]
    %v2979 = vld [vmem:[#allocation5 + $0x70] sm:$0xff]
    %v2980 = vld [vmem:[#allocation5 + $0x78] sm:$0xff]
    %v2981 = vld [vmem:[#allocation5 + $0x80] sm:$0xff]
    %v2982 = vld [vmem:[#allocation5 + $0x88] sm:$0xff]
    %v2983 = vld [vmem:[#allocation5 + $0x90] sm:$0xff]
    %v2984 = vld [vmem:[#allocation5 + $0x98] sm:$0xff]
    %v2985 = vld [vmem:[#allocation5 + $0xa0] sm:$0xff]
    %v2986 = vld [vmem:[#allocation5 + $0xa8] sm:$0xff]
    %v2987 = vld [vmem:[#allocation5 + $0xb0] sm:$0xff]
    %v2988 = vld [vmem:[#allocation5 + $0xb8] sm:$0xff]
    %v2989 = vld [vmem:[#allocation5 + $0xc0] sm:$0xff]
    %v2990 = vld [vmem:[#allocation5 + $0xc8] sm:$0xff]
    %v2991 = vld [vmem:[#allocation5 + $0xd0] sm:$0xff]
    %v2992 = vld [vmem:[#allocation5 + $0xd8] sm:$0xff]
    %v2993 = vld [vmem:[#allocation5 + $0xe0] sm:$0xff]
    %v2994 = vld [vmem:[#allocation5 + $0xe8] sm:$0xff]
    %v2995 = vld [vmem:[#allocation5 + $0xf0] sm:$0xff]
    %v2996 = vld [vmem:[#allocation5 + $0xf8] sm:$0xff]
    %v2997 = vpack.c.bf16 %v2967, %v2965
    %v2998 = vpack.c.bf16 %v2968, %v2966
    %v2999 = vpack.c.bf16 %v2971, %v2969
    %v3000 = vpack.c.bf16 %v2972, %v2970
    %v3001 = vpack.c.bf16 %v2975, %v2973
    %v3002 = vpack.c.bf16 %v2976, %v2974
    %v3003 = vpack.c.bf16 %v2979, %v2977
    %v3004 = vpack.c.bf16 %v2980, %v2978
    %v3005 = vpack.c.bf16 %v2983, %v2981
    %v3006 = vpack.c.bf16 %v2984, %v2982
    %v3007 = vpack.c.bf16 %v2987, %v2985
    %v3008 = vpack.c.bf16 %v2988, %v2986
    %v3009 = vpack.c.bf16 %v2991, %v2989
    %v3010 = vpack.c.bf16 %v2992, %v2990
    %v3011 = vpack.c.bf16 %v2995, %v2993
    %v3012 = vpack.c.bf16 %v2996, %v2994
    %v3013 = vld [vmem:[#allocation9] sm:$0xff]
    %v3014 = vld [vmem:[#allocation9 + $0x8] sm:$0xff]
    %v3015 = vld [vmem:[#allocation9 + $0x10] sm:$0xff]
    %v3016 = vld [vmem:[#allocation9 + $0x18] sm:$0xff]
    %v3017 = vld [vmem:[#allocation9 + $0x20] sm:$0xff]
    %v3018 = vld [vmem:[#allocation9 + $0x28] sm:$0xff]
    %v3019 = vld [vmem:[#allocation9 + $0x30] sm:$0xff]
    %v3020 = vld [vmem:[#allocation9 + $0x38] sm:$0xff]
    %v3021 = vld [vmem:[#allocation9 + $0x40] sm:$0xff]
    %v3022 = vld [vmem:[#allocation9 + $0x48] sm:$0xff]
    %v3023 = vld [vmem:[#allocation9 + $0x50] sm:$0xff]
    %v3024 = vld [vmem:[#allocation9 + $0x58] sm:$0xff]
    %v3025 = vld [vmem:[#allocation9 + $0x60] sm:$0xff]
    %v3026 = vld [vmem:[#allocation9 + $0x68] sm:$0xff]
    %v3027 = vld [vmem:[#allocation9 + $0x70] sm:$0xff]
    %v3028 = vld [vmem:[#allocation9 + $0x78] sm:$0xff]
    %v3029 = vld [vmem:[#allocation9 + $0x80] sm:$0xff]
    %v3030 = vld [vmem:[#allocation9 + $0x88] sm:$0xff]
    %v3031 = vld [vmem:[#allocation9 + $0x90] sm:$0xff]
    %v3032 = vld [vmem:[#allocation9 + $0x98] sm:$0xff]
    %v3033 = vld [vmem:[#allocation9 + $0xa0] sm:$0xff]
    %v3034 = vld [vmem:[#allocation9 + $0xa8] sm:$0xff]
    %v3035 = vld [vmem:[#allocation9 + $0xb0] sm:$0xff]
    %v3036 = vld [vmem:[#allocation9 + $0xb8] sm:$0xff]
    %v3037 = vld [vmem:[#allocation9 + $0xc0] sm:$0xff]
    %v3038 = vld [vmem:[#allocation9 + $0xc8] sm:$0xff]
    %v3039 = vld [vmem:[#allocation9 + $0xd0] sm:$0xff]
    %v3040 = vld [vmem:[#allocation9 + $0xd8] sm:$0xff]
    %v3041 = vld [vmem:[#allocation9 + $0xe0] sm:$0xff]
    %v3042 = vld [vmem:[#allocation9 + $0xe8] sm:$0xff]
    %v3043 = vld [vmem:[#allocation9 + $0xf0] sm:$0xff]
    %v3044 = vld [vmem:[#allocation9 + $0xf8] sm:$0xff]
    %v3045 = vld [vmem:[#allocation5] sm:$0xfe]
    %v3046 = vld [vmem:[#allocation5 + $0x8] sm:$0xfe]
    %v3047 = vld [vmem:[#allocation5 + $0x100] sm:$0x1]
    %v3048 = vld [vmem:[#allocation5 + $0x108] sm:$0x1]
    %v3049 = vpack.c.bf16 %v2967, %v3045
    %v3050 = vpack.c.bf16 %v2968, %v3046
    %v3051 = vpack.c.bf16 %v3047, %v3047
    %v3052 = vpack.c.bf16 %v3048, %v3048
    %s3053 = scalar_lea.vmem [#allocation9], 256
    %v3054 = vld [vmem:[%s3053] sm:$0xff]
    %v3055 = vld [vmem:[%s3053 + $0x8] sm:$0xff]
    %v3056 = vld [vmem:[%s3053 + $0x10] sm:$0xff]
    %v3057 = vld [vmem:[%s3053 + $0x18] sm:$0xff]
    %v3058 = vld [vmem:[%s3053 + $0x20] sm:$0xff]
    %v3059 = vld [vmem:[%s3053 + $0x28] sm:$0xff]
    %v3060 = vld [vmem:[%s3053 + $0x30] sm:$0xff]
    %v3061 = vld [vmem:[%s3053 + $0x38] sm:$0xff]
    %v3062 = vld [vmem:[%s3053 + $0x40] sm:$0xff]
    %v3063 = vld [vmem:[%s3053 + $0x48] sm:$0xff]
    %v3064 = vld [vmem:[%s3053 + $0x50] sm:$0xff]
    %v3065 = vld [vmem:[%s3053 + $0x58] sm:$0xff]
    %v3066 = vld [vmem:[%s3053 + $0x60] sm:$0xff]
    %v3067 = vld [vmem:[%s3053 + $0x68] sm:$0xff]
    %v3068 = vld [vmem:[%s3053 + $0x70] sm:$0xff]
    %v3069 = vld [vmem:[%s3053 + $0x78] sm:$0xff]
    %v3070 = vld [vmem:[%s3053 + $0x80] sm:$0xff]
    %v3071 = vld [vmem:[%s3053 + $0x88] sm:$0xff]
    %v3072 = vld [vmem:[%s3053 + $0x90] sm:$0xff]
    %v3073 = vld [vmem:[%s3053 + $0x98] sm:$0xff]
    %v3074 = vld [vmem:[%s3053 + $0xa0] sm:$0xff]
    %v3075 = vld [vmem:[%s3053 + $0xa8] sm:$0xff]
    %v3076 = vld [vmem:[%s3053 + $0xb0] sm:$0xff]
    %v3077 = vld [vmem:[%s3053 + $0xb8] sm:$0xff]
    %v3078 = vld [vmem:[%s3053 + $0xc0] sm:$0xff]
    %v3079 = vld [vmem:[%s3053 + $0xc8] sm:$0xff]
    %v3080 = vld [vmem:[%s3053 + $0xd0] sm:$0xff]
    %v3081 = vld [vmem:[%s3053 + $0xd8] sm:$0xff]
    %v3082 = vld [vmem:[%s3053 + $0xe0] sm:$0xff]
    %v3083 = vld [vmem:[%s3053 + $0xe8] sm:$0xff]
    %v3084 = vld [vmem:[%s3053 + $0xf0] sm:$0xff]
    %v3085 = vld [vmem:[%s3053 + $0xf8] sm:$0xff]
    %vm3086 = vsmask.f32 7424
    %v3088 = vshrl.u32 %v3049, 16
    %v3090 = vshll.u32 %v3049, 16
    %v3092 = vrot.slane %v3090, 1
    %v3093 = vor.u32 %v3088, %v3092
    %v3095 = vshll.u32 %v2999, 16
    %v3097 = vrot.slane %v3095, 1
    %v3098 = vsel %vm3086, %v3093, %v3097
    %v3100 = vshrl.u32 %v3050, 16
    %v3102 = vshll.u32 %v3050, 16
    %v3104 = vrot.slane %v3102, 1
    %v3105 = vor.u32 %v3100, %v3104
    %v3107 = vshll.u32 %v3000, 16
    %v3109 = vrot.slane %v3107, 1
    %v3110 = vsel %vm3086, %v3105, %v3109
    %v3111 = vshrl.u32 %v2999, 16
    %v3113 = vor.u32 %v3111, %v3097
    %v3115 = vshll.u32 %v3001, 16
    %v3117 = vrot.slane %v3115, 1
    %v3118 = vsel %vm3086, %v3113, %v3117
    %v3119 = vshrl.u32 %v3000, 16
    %v3121 = vor.u32 %v3119, %v3109
    %v3123 = vshll.u32 %v3002, 16
    %v3125 = vrot.slane %v3123, 1
    %v3126 = vsel %vm3086, %v3121, %v3125
    %v3127 = vshrl.u32 %v3001, 16
    %v3129 = vor.u32 %v3127, %v3117
    %v3131 = vshll.u32 %v3003, 16
    %v3133 = vrot.slane %v3131, 1
    %v3134 = vsel %vm3086, %v3129, %v3133
    %v3135 = vshrl.u32 %v3002, 16
    %v3137 = vor.u32 %v3135, %v3125
    %v3139 = vshll.u32 %v3004, 16
    %v3141 = vrot.slane %v3139, 1
    %v3142 = vsel %vm3086, %v3137, %v3141
    %v3143 = vshrl.u32 %v3003, 16
    %v3145 = vor.u32 %v3143, %v3133
    %v3147 = vshll.u32 %v3005, 16
    %v3149 = vrot.slane %v3147, 1
    %v3150 = vsel %vm3086, %v3145, %v3149
    %v3151 = vshrl.u32 %v3004, 16
    %v3153 = vor.u32 %v3151, %v3141
    %v3155 = vshll.u32 %v3006, 16
    %v3157 = vrot.slane %v3155, 1
    %v3158 = vsel %vm3086, %v3153, %v3157
    %v3159 = vshrl.u32 %v3005, 16
    %v3161 = vor.u32 %v3159, %v3149
    %v3163 = vshll.u32 %v3007, 16
    %v3165 = vrot.slane %v3163, 1
    %v3166 = vsel %vm3086, %v3161, %v3165
    %v3167 = vshrl.u32 %v3006, 16
    %v3169 = vor.u32 %v3167, %v3157
    %v3171 = vshll.u32 %v3008, 16
    %v3173 = vrot.slane %v3171, 1
    %v3174 = vsel %vm3086, %v3169, %v3173
    %v3175 = vshrl.u32 %v3007, 16
    %v3177 = vor.u32 %v3175, %v3165
    %v3179 = vshll.u32 %v3009, 16
    %v3181 = vrot.slane %v3179, 1
    %v3182 = vsel %vm3086, %v3177, %v3181
    %v3183 = vshrl.u32 %v3008, 16
    %v3185 = vor.u32 %v3183, %v3173
    %v3187 = vshll.u32 %v3010, 16
    %v3189 = vrot.slane %v3187, 1
    %v3190 = vsel %vm3086, %v3185, %v3189
    %v3191 = vshrl.u32 %v3009, 16
    %v3193 = vor.u32 %v3191, %v3181
    %v3195 = vshll.u32 %v3011, 16
    %v3197 = vrot.slane %v3195, 1
    %v3198 = vsel %vm3086, %v3193, %v3197
    %v3199 = vshrl.u32 %v3010, 16
    %v3201 = vor.u32 %v3199, %v3189
    %v3203 = vshll.u32 %v3012, 16
    %v3205 = vrot.slane %v3203, 1
    %v3206 = vsel %vm3086, %v3201, %v3205
    %v3207 = vshrl.u32 %v3011, 16
    %v3209 = vor.u32 %v3207, %v3197
    %v3211 = vshll.u32 %v3051, 16
    %v3213 = vrot.slane %v3211, 1
    %v3214 = vsel %vm3086, %v3209, %v3213
    %v3215 = vshrl.u32 %v3012, 16
    %v3217 = vor.u32 %v3215, %v3205
    %v3219 = vshll.u32 %v3052, 16
    %v3221 = vrot.slane %v3219, 1
    %v3222 = vsel %vm3086, %v3217, %v3221
    %v3271 = vunpack.c.l.b16 %v3054
    %v3272 = vunpack.c.h.b16 %v3054
    %v3273 = vunpack.c.l.b16 %v3055
    %v3274 = vunpack.c.h.b16 %v3055
    %v3275 = vunpack.c.l.b16 %v3056
    %v3276 = vunpack.c.h.b16 %v3056
    %v3277 = vunpack.c.l.b16 %v3057
    %v3278 = vunpack.c.h.b16 %v3057
    %v3279 = vunpack.c.l.b16 %v3058
    %v3280 = vunpack.c.h.b16 %v3058
    %v3281 = vunpack.c.l.b16 %v3059
    %v3282 = vunpack.c.h.b16 %v3059
    %v3283 = vunpack.c.l.b16 %v3060
    %v3284 = vunpack.c.h.b16 %v3060
    %v3285 = vunpack.c.l.b16 %v3061
    %v3286 = vunpack.c.h.b16 %v3061
    %v3287 = vunpack.c.l.b16 %v3062
    %v3288 = vunpack.c.h.b16 %v3062
    %v3289 = vunpack.c.l.b16 %v3063
    %v3290 = vunpack.c.h.b16 %v3063
    %v3291 = vunpack.c.l.b16 %v3064
    %v3292 = vunpack.c.h.b16 %v3064
    %v3293 = vunpack.c.l.b16 %v3065
    %v3294 = vunpack.c.h.b16 %v3065
    %v3295 = vunpack.c.l.b16 %v3066
    %v3296 = vunpack.c.h.b16 %v3066
    %v3297 = vunpack.c.l.b16 %v3067
    %v3298 = vunpack.c.h.b16 %v3067
    %v3299 = vunpack.c.l.b16 %v3068
    %v3300 = vunpack.c.h.b16 %v3068
    %v3301 = vunpack.c.l.b16 %v3069
    %v3302 = vunpack.c.h.b16 %v3069
    %v3303 = vunpack.c.l.b16 %v3070
    %v3304 = vunpack.c.h.b16 %v3070
    %v3305 = vunpack.c.l.b16 %v3071
    %v3306 = vunpack.c.h.b16 %v3071
    %v3307 = vunpack.c.l.b16 %v3072
    %v3308 = vunpack.c.h.b16 %v3072
    %v3309 = vunpack.c.l.b16 %v3073
    %v3310 = vunpack.c.h.b16 %v3073
    %v3311 = vunpack.c.l.b16 %v3074
    %v3312 = vunpack.c.h.b16 %v3074
    %v3313 = vunpack.c.l.b16 %v3075
    %v3314 = vunpack.c.h.b16 %v3075
    %v3315 = vunpack.c.l.b16 %v3076
    %v3316 = vunpack.c.h.b16 %v3076
    %v3317 = vunpack.c.l.b16 %v3077
    %v3318 = vunpack.c.h.b16 %v3077
    %v3319 = vunpack.c.l.b16 %v3078
    %v3320 = vunpack.c.h.b16 %v3078
    %v3321 = vunpack.c.l.b16 %v3079
    %v3322 = vunpack.c.h.b16 %v3079
    %v3323 = vunpack.c.l.b16 %v3080
    %v3324 = vunpack.c.h.b16 %v3080
    %v3325 = vunpack.c.l.b16 %v3081
    %v3326 = vunpack.c.h.b16 %v3081
    %v3327 = vunpack.c.l.b16 %v3082
    %v3328 = vunpack.c.h.b16 %v3082
    %v3329 = vunpack.c.l.b16 %v3083
    %v3330 = vunpack.c.h.b16 %v3083
    %v3331 = vunpack.c.l.b16 %v3084
    %v3332 = vunpack.c.h.b16 %v3084
    %v3333 = vunpack.c.l.b16 %v3085
    %v3334 = vunpack.c.h.b16 %v3085
    %v3335 = vpack.c.b16 %v3273, %v3271
    %v3336 = vpack.c.b16 %v3274, %v3272
    %v3337 = vpack.c.b16 %v3277, %v3275
    %v3338 = vpack.c.b16 %v3278, %v3276
    %v3339 = vpack.c.b16 %v3281, %v3279
    %v3340 = vpack.c.b16 %v3282, %v3280
    %v3341 = vpack.c.b16 %v3285, %v3283
    %v3342 = vpack.c.b16 %v3286, %v3284
    %v3343 = vpack.c.b16 %v3289, %v3287
    %v3344 = vpack.c.b16 %v3290, %v3288
    %v3345 = vpack.c.b16 %v3293, %v3291
    %v3346 = vpack.c.b16 %v3294, %v3292
    %v3347 = vpack.c.b16 %v3297, %v3295
    %v3348 = vpack.c.b16 %v3298, %v3296
    %v3349 = vpack.c.b16 %v3301, %v3299
    %v3350 = vpack.c.b16 %v3302, %v3300
    %v3351 = vpack.c.b16 %v3305, %v3303
    %v3352 = vpack.c.b16 %v3306, %v3304
    %v3353 = vpack.c.b16 %v3309, %v3307
    %v3354 = vpack.c.b16 %v3310, %v3308
    %v3355 = vpack.c.b16 %v3313, %v3311
    %v3356 = vpack.c.b16 %v3314, %v3312
    %v3357 = vpack.c.b16 %v3317, %v3315
    %v3358 = vpack.c.b16 %v3318, %v3316
    %v3359 = vpack.c.b16 %v3321, %v3319
    %v3360 = vpack.c.b16 %v3322, %v3320
    %v3361 = vpack.c.b16 %v3325, %v3323
    %v3362 = vpack.c.b16 %v3326, %v3324
    %v3363 = vpack.c.b16 %v3329, %v3327
    %v3364 = vpack.c.b16 %v3330, %v3328
    %v3365 = vpack.c.b16 %v3333, %v3331
    %v3366 = vpack.c.b16 %v3334, %v3332
    %3399 = vmatprep.subr.bf16.mxu0 %v3336
    %3400 = vmatpush1.bf16.msra.mxu0 %v3335
    %3401 = vmatprep.subr.bf16.mxu0 %v3338
    %3402 = vmatpush1.bf16.msra.mxu0 %v3337
    %3403 = vmatprep.subr.bf16.mxu0 %v3340
    %3404 = vmatpush1.bf16.msra.mxu0 %v3339
    %3405 = vmatprep.subr.bf16.mxu0 %v3342
    %3406 = vmatpush1.bf16.msra.mxu0 %v3341
    %3407 = vmatprep.subr.bf16.mxu0 %v3344
    %3408 = vmatpush1.bf16.msra.mxu0 %v3343
    %3409 = vmatprep.subr.bf16.mxu0 %v3346
    %3410 = vmatpush1.bf16.msra.mxu0 %v3345
    %3411 = vmatprep.subr.bf16.mxu0 %v3348
    %3412 = vmatpush1.bf16.msra.mxu0 %v3347
    %3413 = vmatprep.subr.bf16.mxu0 %v3350
    %3414 = vmatpush1.bf16.msra.mxu0 %v3349
    %3415 = vmatprep.subr.bf16.mxu0 %v3352
    %3416 = vmatpush1.bf16.msra.mxu0 %v3351
    %3417 = vmatprep.subr.bf16.mxu0 %v3354
    %3418 = vmatpush1.bf16.msra.mxu0 %v3353
    %3419 = vmatprep.subr.bf16.mxu0 %v3356
    %3420 = vmatpush1.bf16.msra.mxu0 %v3355
    %3421 = vmatprep.subr.bf16.mxu0 %v3358
    %3422 = vmatpush1.bf16.msra.mxu0 %v3357
    %3423 = vmatprep.subr.bf16.mxu0 %v3360
    %3424 = vmatpush1.bf16.msra.mxu0 %v3359
    %3425 = vmatprep.subr.bf16.mxu0 %v3362
    %3426 = vmatpush1.bf16.msra.mxu0 %v3361
    %3427 = vmatprep.subr.bf16.mxu0 %v3364
    %3428 = vmatpush1.bf16.msra.mxu0 %v3363
    %3429 = vmatprep.subr.bf16.mxu0 %v3366
    %3430 = vmatpush1.bf16.msra.mxu0 %v3365
    %3431 = vmatprep.mubr.bf16.mxu0 %v3110
    %3432 = vmatmul.mubr.bf16.gmra.mrb[0].mxu0 %v3098
    %v3433 = vpop.f32.mrb[0].mxu0
    %v3434 = vadd.f32 0.0, %v3433
    %v3435 = vpop.f32.mrb[0].mxu0
    %v3436 = vadd.f32 0.0, %v3435
    %v3437 = vpop.f32.mrb[0].mxu0
    %v3438 = vadd.f32 0.0, %v3437
    %v3439 = vpop.f32.mrb[0].mxu0
    %v3440 = vadd.f32 0.0, %v3439
    %3441 = vmatprep.mubr.bf16.mxu0 %v3126
    %3442 = vmatmul.mubr.bf16.gmra.mrb[0].mxu0 %v3118
    %v3443 = vpop.f32.mrb[0].mxu0
    %v3444 = vadd.f32 0.0, %v3443
    %v3445 = vpop.f32.mrb[0].mxu0
    %v3446 = vadd.f32 0.0, %v3445
    %v3447 = vpop.f32.mrb[0].mxu0
    %v3448 = vadd.f32 0.0, %v3447
    %v3449 = vpop.f32.mrb[0].mxu0
    %v3450 = vadd.f32 0.0, %v3449
    %3451 = vmatprep.mubr.bf16.mxu0 %v3142
    %3452 = vmatmul.mubr.bf16.gmra.mrb[0].mxu0 %v3134
    %v3453 = vpop.f32.mrb[0].mxu0
    %v3454 = vadd.f32 0.0, %v3453
    %v3455 = vpop.f32.mrb[0].mxu0
    %v3456 = vadd.f32 0.0, %v3455
    %v3457 = vpop.f32.mrb[0].mxu0
    %v3458 = vadd.f32 0.0, %v3457
    %v3459 = vpop.f32.mrb[0].mxu0
    %v3460 = vadd.f32 0.0, %v3459
    %3461 = vmatprep.mubr.bf16.mxu0 %v3158
    %3462 = vmatmul.mubr.bf16.gmra.mrb[0].mxu0 %v3150
    %v3463 = vpop.f32.mrb[0].mxu0
    %v3464 = vadd.f32 0.0, %v3463
    %v3465 = vpop.f32.mrb[0].mxu0
    %v3466 = vadd.f32 0.0, %v3465
    %v3467 = vpop.f32.mrb[0].mxu0
    %v3468 = vadd.f32 0.0, %v3467
    %v3469 = vpop.f32.mrb[0].mxu0
    %v3470 = vadd.f32 0.0, %v3469
    %3471 = vmatprep.mubr.bf16.mxu0 %v3174
    %3472 = vmatmul.mubr.bf16.gmra.mrb[0].mxu0 %v3166
    %v3473 = vpop.f32.mrb[0].mxu0
    %v3474 = vadd.f32 0.0, %v3473
    %v3475 = vpop.f32.mrb[0].mxu0
    %v3476 = vadd.f32 0.0, %v3475
    %v3477 = vpop.f32.mrb[0].mxu0
    %v3478 = vadd.f32 0.0, %v3477
    %v3479 = vpop.f32.mrb[0].mxu0
    %v3480 = vadd.f32 0.0, %v3479
    %3481 = vmatprep.mubr.bf16.mxu0 %v3190
    %3482 = vmatmul.mubr.bf16.gmra.mrb[0].mxu0 %v3182
    %v3483 = vpop.f32.mrb[0].mxu0
    %v3484 = vadd.f32 0.0, %v3483
    %v3485 = vpop.f32.mrb[0].mxu0
    %v3486 = vadd.f32 0.0, %v3485
    %v3487 = vpop.f32.mrb[0].mxu0
    %v3488 = vadd.f32 0.0, %v3487
    %v3489 = vpop.f32.mrb[0].mxu0
    %v3490 = vadd.f32 0.0, %v3489
    %3491 = vmatprep.mubr.bf16.mxu0 %v3206
    %3492 = vmatmul.mubr.bf16.gmra.mrb[0].mxu0 %v3198
    %v3493 = vpop.f32.mrb[0].mxu0
    %v3494 = vadd.f32 0.0, %v3493
    %v3495 = vpop.f32.mrb[0].mxu0
    %v3496 = vadd.f32 0.0, %v3495
    %v3497 = vpop.f32.mrb[0].mxu0
    %v3498 = vadd.f32 0.0, %v3497
    %v3499 = vpop.f32.mrb[0].mxu0
    %v3500 = vadd.f32 0.0, %v3499
    %3501 = vmatprep.mubr.bf16.mxu0 %v3222
    %3502 = vmatmul.mubr.bf16.gmra.mrb[0].mxu0 %v3214
    %v3503 = vpop.f32.mrb[0].mxu0
    %v3504 = vadd.f32 0.0, %v3503
    %v3505 = vpop.f32.mrb[0].mxu0
    %v3506 = vadd.f32 0.0, %v3505
    %v3507 = vpop.f32.mrb[0].mxu0
    %v3508 = vadd.f32 0.0, %v3507
    %v3509 = vpop.f32.mrb[0].mxu0
    %v3510 = vadd.f32 0.0, %v3509
    %3511 = vdwg.mxu0
    %v3544 = vunpack.c.l.b16 %v3013
    %v3545 = vunpack.c.h.b16 %v3013
    %v3546 = vunpack.c.l.b16 %v3014
    %v3547 = vunpack.c.h.b16 %v3014
    %v3548 = vunpack.c.l.b16 %v3015
    %v3549 = vunpack.c.h.b16 %v3015
    %v3550 = vunpack.c.l.b16 %v3016
    %v3551 = vunpack.c.h.b16 %v3016
    %v3552 = vunpack.c.l.b16 %v3017
    %v3553 = vunpack.c.h.b16 %v3017
    %v3554 = vunpack.c.l.b16 %v3018
    %v3555 = vunpack.c.h.b16 %v3018
    %v3556 = vunpack.c.l.b16 %v3019
    %v3557 = vunpack.c.h.b16 %v3019
    %v3558 = vunpack.c.l.b16 %v3020
    %v3559 = vunpack.c.h.b16 %v3020
    %v3560 = vunpack.c.l.b16 %v3021
    %v3561 = vunpack.c.h.b16 %v3021
    %v3562 = vunpack.c.l.b16 %v3022
    %v3563 = vunpack.c.h.b16 %v3022
    %v3564 = vunpack.c.l.b16 %v3023
    %v3565 = vunpack.c.h.b16 %v3023
    %v3566 = vunpack.c.l.b16 %v3024
    %v3567 = vunpack.c.h.b16 %v3024
    %v3568 = vunpack.c.l.b16 %v3025
    %v3569 = vunpack.c.h.b16 %v3025
    %v3570 = vunpack.c.l.b16 %v3026
    %v3571 = vunpack.c.h.b16 %v3026
    %v3572 = vunpack.c.l.b16 %v3027
    %v3573 = vunpack.c.h.b16 %v3027
    %v3574 = vunpack.c.l.b16 %v3028
    %v3575 = vunpack.c.h.b16 %v3028
    %v3576 = vunpack.c.l.b16 %v3029
    %v3577 = vunpack.c.h.b16 %v3029
    %v3578 = vunpack.c.l.b16 %v3030
    %v3579 = vunpack.c.h.b16 %v3030
    %v3580 = vunpack.c.l.b16 %v3031
    %v3581 = vunpack.c.h.b16 %v3031
    %v3582 = vunpack.c.l.b16 %v3032
    %v3583 = vunpack.c.h.b16 %v3032
    %v3584 = vunpack.c.l.b16 %v3033
    %v3585 = vunpack.c.h.b16 %v3033
    %v3586 = vunpack.c.l.b16 %v3034
    %v3587 = vunpack.c.h.b16 %v3034
    %v3588 = vunpack.c.l.b16 %v3035
    %v3589 = vunpack.c.h.b16 %v3035
    %v3590 = vunpack.c.l.b16 %v3036
    %v3591 = vunpack.c.h.b16 %v3036
    %v3592 = vunpack.c.l.b16 %v3037
    %v3593 = vunpack.c.h.b16 %v3037
    %v3594 = vunpack.c.l.b16 %v3038
    %v3595 = vunpack.c.h.b16 %v3038
    %v3596 = vunpack.c.l.b16 %v3039
    %v3597 = vunpack.c.h.b16 %v3039
    %v3598 = vunpack.c.l.b16 %v3040
    %v3599 = vunpack.c.h.b16 %v3040
    %v3600 = vunpack.c.l.b16 %v3041
    %v3601 = vunpack.c.h.b16 %v3041
    %v3602 = vunpack.c.l.b16 %v3042
    %v3603 = vunpack.c.h.b16 %v3042
    %v3604 = vunpack.c.l.b16 %v3043
    %v3605 = vunpack.c.h.b16 %v3043
    %v3606 = vunpack.c.l.b16 %v3044
    %v3607 = vunpack.c.h.b16 %v3044
    %v3608 = vpack.c.b16 %v3546, %v3544
    %v3609 = vpack.c.b16 %v3547, %v3545
    %v3610 = vpack.c.b16 %v3550, %v3548
    %v3611 = vpack.c.b16 %v3551, %v3549
    %v3612 = vpack.c.b16 %v3554, %v3552
    %v3613 = vpack.c.b16 %v3555, %v3553
    %v3614 = vpack.c.b16 %v3558, %v3556
    %v3615 = vpack.c.b16 %v3559, %v3557
    %v3616 = vpack.c.b16 %v3562, %v3560
    %v3617 = vpack.c.b16 %v3563, %v3561
    %v3618 = vpack.c.b16 %v3566, %v3564
    %v3619 = vpack.c.b16 %v3567, %v3565
    %v3620 = vpack.c.b16 %v3570, %v3568
    %v3621 = vpack.c.b16 %v3571, %v3569
    %v3622 = vpack.c.b16 %v3574, %v3572
    %v3623 = vpack.c.b16 %v3575, %v3573
    %v3624 = vpack.c.b16 %v3578, %v3576
    %v3625 = vpack.c.b16 %v3579, %v3577
    %v3626 = vpack.c.b16 %v3582, %v3580
    %v3627 = vpack.c.b16 %v3583, %v3581
    %v3628 = vpack.c.b16 %v3586, %v3584
    %v3629 = vpack.c.b16 %v3587, %v3585
    %v3630 = vpack.c.b16 %v3590, %v3588
    %v3631 = vpack.c.b16 %v3591, %v3589
    %v3632 = vpack.c.b16 %v3594, %v3592
    %v3633 = vpack.c.b16 %v3595, %v3593
    %v3634 = vpack.c.b16 %v3598, %v3596
    %v3635 = vpack.c.b16 %v3599, %v3597
    %v3636 = vpack.c.b16 %v3602, %v3600
    %v3637 = vpack.c.b16 %v3603, %v3601
    %v3638 = vpack.c.b16 %v3606, %v3604
    %v3639 = vpack.c.b16 %v3607, %v3605
    %3672 = vmatprep.subr.bf16.mxu0 %v3609
    %3673 = vmatpush1.bf16.msra.mxu0 %v3608
    %3674 = vmatprep.subr.bf16.mxu0 %v3611
    %3675 = vmatpush1.bf16.msra.mxu0 %v3610
    %3676 = vmatprep.subr.bf16.mxu0 %v3613
    %3677 = vmatpush1.bf16.msra.mxu0 %v3612
    %3678 = vmatprep.subr.bf16.mxu0 %v3615
    %3679 = vmatpush1.bf16.msra.mxu0 %v3614
    %3680 = vmatprep.subr.bf16.mxu0 %v3617
    %3681 = vmatpush1.bf16.msra.mxu0 %v3616
    %3682 = vmatprep.subr.bf16.mxu0 %v3619
    %3683 = vmatpush1.bf16.msra.mxu0 %v3618
    %3684 = vmatprep.subr.bf16.mxu0 %v3621
    %3685 = vmatpush1.bf16.msra.mxu0 %v3620
    %3686 = vmatprep.subr.bf16.mxu0 %v3623
    %3687 = vmatpush1.bf16.msra.mxu0 %v3622
    %3688 = vmatprep.subr.bf16.mxu0 %v3625
    %3689 = vmatpush1.bf16.msra.mxu0 %v3624
    %3690 = vmatprep.subr.bf16.mxu0 %v3627
    %3691 = vmatpush1.bf16.msra.mxu0 %v3626
    %3692 = vmatprep.subr.bf16.mxu0 %v3629
    %3693 = vmatpush1.bf16.msra.mxu0 %v3628
    %3694 = vmatprep.subr.bf16.mxu0 %v3631
    %3695 = vmatpush1.bf16.msra.mxu0 %v3630
    %3696 = vmatprep.subr.bf16.mxu0 %v3633
    %3697 = vmatpush1.bf16.msra.mxu0 %v3632
    %3698 = vmatprep.subr.bf16.mxu0 %v3635
    %3699 = vmatpush1.bf16.msra.mxu0 %v3634
    %3700 = vmatprep.subr.bf16.mxu0 %v3637
    %3701 = vmatpush1.bf16.msra.mxu0 %v3636
    %3702 = vmatprep.subr.bf16.mxu0 %v3639
    %3703 = vmatpush1.bf16.msra.mxu0 %v3638
    %3704 = vmatprep.mubr.bf16.mxu0 %v2998
    %3705 = vmatmul.mubr.bf16.gmra.mrb[0].mxu0 %v2997
    %v3706 = vpop.f32.mrb[0].mxu0
    %v3707 = vadd.f32 %v3434, %v3706
    %v3708 = vpop.f32.mrb[0].mxu0
    %v3709 = vadd.f32 %v3436, %v3708
    %v3710 = vpop.f32.mrb[0].mxu0
    %v3711 = vadd.f32 %v3438, %v3710
    %v3712 = vpop.f32.mrb[0].mxu0
    %v3713 = vadd.f32 %v3440, %v3712
    %3714 = vmatprep.mubr.bf16.mxu0 %v3000
    %3715 = vmatmul.mubr.bf16.gmra.mrb[0].mxu0 %v2999
    %v3716 = vpop.f32.mrb[0].mxu0
    %v3717 = vadd.f32 %v3444, %v3716
    %v3718 = vpop.f32.mrb[0].mxu0
    %v3719 = vadd.f32 %v3446, %v3718
    %v3720 = vpop.f32.mrb[0].mxu0
    %v3721 = vadd.f32 %v3448, %v3720
    %v3722 = vpop.f32.mrb[0].mxu0
    %v3723 = vadd.f32 %v3450, %v3722
    %3724 = vmatprep.mubr.bf16.mxu0 %v3002
    %3725 = vmatmul.mubr.bf16.gmra.mrb[0].mxu0 %v3001
    %v3726 = vpop.f32.mrb[0].mxu0
    %v3727 = vadd.f32 %v3454, %v3726
    %v3728 = vpop.f32.mrb[0].mxu0
    %v3729 = vadd.f32 %v3456, %v3728
    %v3730 = vpop.f32.mrb[0].mxu0
    %v3731 = vadd.f32 %v3458, %v3730
    %v3732 = vpop.f32.mrb[0].mxu0
    %v3733 = vadd.f32 %v3460, %v3732
    %3734 = vmatprep.mubr.bf16.mxu0 %v3004
    %3735 = vmatmul.mubr.bf16.gmra.mrb[0].mxu0 %v3003
    %v3736 = vpop.f32.mrb[0].mxu0
    %v3737 = vadd.f32 %v3464, %v3736
    %v3738 = vpop.f32.mrb[0].mxu0
    %v3739 = vadd.f32 %v3466, %v3738
    %v3740 = vpop.f32.mrb[0].mxu0
    %v3741 = vadd.f32 %v3468, %v3740
    %v3742 = vpop.f32.mrb[0].mxu0
    %v3743 = vadd.f32 %v3470, %v3742
    %3744 = vmatprep.mubr.bf16.mxu0 %v3006
    %3745 = vmatmul.mubr.bf16.gmra.mrb[0].mxu0 %v3005
    %v3746 = vpop.f32.mrb[0].mxu0
    %v3747 = vadd.f32 %v3474, %v3746
    %v3748 = vpop.f32.mrb[0].mxu0
    %v3749 = vadd.f32 %v3476, %v3748
    %v3750 = vpop.f32.mrb[0].mxu0
    %v3751 = vadd.f32 %v3478, %v3750
    %v3752 = vpop.f32.mrb[0].mxu0
    %v3753 = vadd.f32 %v3480, %v3752
    %3754 = vmatprep.mubr.bf16.mxu0 %v3008
    %3755 = vmatmul.mubr.bf16.gmra.mrb[0].mxu0 %v3007
    %v3756 = vpop.f32.mrb[0].mxu0
    %v3757 = vadd.f32 %v3484, %v3756
    %v3758 = vpop.f32.mrb[0].mxu0
    %v3759 = vadd.f32 %v3486, %v3758
    %v3760 = vpop.f32.mrb[0].mxu0
    %v3761 = vadd.f32 %v3488, %v3760
    %v3762 = vpop.f32.mrb[0].mxu0
    %v3763 = vadd.f32 %v3490, %v3762
    %3764 = vmatprep.mubr.bf16.mxu0 %v3010
    %3765 = vmatmul.mubr.bf16.gmra.mrb[0].mxu0 %v3009
    %v3766 = vpop.f32.mrb[0].mxu0
    %v3767 = vadd.f32 %v3494, %v3766
    %v3768 = vpop.f32.mrb[0].mxu0
    %v3769 = vadd.f32 %v3496, %v3768
    %v3770 = vpop.f32.mrb[0].mxu0
    %v3771 = vadd.f32 %v3498, %v3770
    %v3772 = vpop.f32.mrb[0].mxu0
    %v3773 = vadd.f32 %v3500, %v3772
    %3774 = vmatprep.mubr.bf16.mxu0 %v3012
    %3775 = vmatmul.mubr.bf16.gmra.mrb[0].mxu0 %v3011
    %v3776 = vpop.f32.mrb[0].mxu0
    %v3777 = vadd.f32 %v3504, %v3776
    %v3778 = vpop.f32.mrb[0].mxu0
    %v3779 = vadd.f32 %v3506, %v3778
    %v3780 = vpop.f32.mrb[0].mxu0
    %v3781 = vadd.f32 %v3508, %v3780
    %v3782 = vpop.f32.mrb[0].mxu0
    %v3783 = vadd.f32 %v3510, %v3782
    %3784 = vdwg.mxu0
    %v3785 = vld [vmem:[#allocation5 + $0x100] sm:$0xff]
    %v3786 = vld [vmem:[#allocation5 + $0x108] sm:$0xff]
    %v3787 = vpack.c.bf16 %v2969, %v2967
    %v3788 = vpack.c.bf16 %v2970, %v2968
    %v3789 = vpack.c.bf16 %v2973, %v2971
    %v3790 = vpack.c.bf16 %v2974, %v2972
    %v3791 = vpack.c.bf16 %v2977, %v2975
    %v3792 = vpack.c.bf16 %v2978, %v2976
    %v3793 = vpack.c.bf16 %v2981, %v2979
    %v3794 = vpack.c.bf16 %v2982, %v2980
    %v3795 = vpack.c.bf16 %v2985, %v2983
    %v3796 = vpack.c.bf16 %v2986, %v2984
    %v3797 = vpack.c.bf16 %v2989, %v2987
    %v3798 = vpack.c.bf16 %v2990, %v2988
    %v3799 = vpack.c.bf16 %v2993, %v2991
    %v3800 = vpack.c.bf16 %v2994, %v2992
    %v3801 = vpack.c.bf16 %v3785, %v2995
    %v3802 = vpack.c.bf16 %v3786, %v2996
    %s3803 = scalar_lea.vmem [#allocation9], 512
    %v3804 = vld [vmem:[%s3803] sm:$0xff]
    %v3805 = vld [vmem:[%s3803 + $0x8] sm:$0xff]
    %v3806 = vld [vmem:[%s3803 + $0x10] sm:$0xff]
    %v3807 = vld [vmem:[%s3803 + $0x18] sm:$0xff]
    %v3808 = vld [vmem:[%s3803 + $0x20] sm:$0xff]
    %v3809 = vld [vmem:[%s3803 + $0x28] sm:$0xff]
    %v3810 = vld [vmem:[%s3803 + $0x30] sm:$0xff]
    %v3811 = vld [vmem:[%s3803 + $0x38] sm:$0xff]
    %v3812 = vld [vmem:[%s3803 + $0x40] sm:$0xff]
    %v3813 = vld [vmem:[%s3803 + $0x48] sm:$0xff]
    %v3814 = vld [vmem:[%s3803 + $0x50] sm:$0xff]
    %v3815 = vld [vmem:[%s3803 + $0x58] sm:$0xff]
    %v3816 = vld [vmem:[%s3803 + $0x60] sm:$0xff]
    %v3817 = vld [vmem:[%s3803 + $0x68] sm:$0xff]
    %v3818 = vld [vmem:[%s3803 + $0x70] sm:$0xff]
    %v3819 = vld [vmem:[%s3803 + $0x78] sm:$0xff]
    %v3820 = vld [vmem:[%s3803 + $0x80] sm:$0xff]
    %v3821 = vld [vmem:[%s3803 + $0x88] sm:$0xff]
    %v3822 = vld [vmem:[%s3803 + $0x90] sm:$0xff]
    %v3823 = vld [vmem:[%s3803 + $0x98] sm:$0xff]
    %v3824 = vld [vmem:[%s3803 + $0xa0] sm:$0xff]
    %v3825 = vld [vmem:[%s3803 + $0xa8] sm:$0xff]
    %v3826 = vld [vmem:[%s3803 + $0xb0] sm:$0xff]
    %v3827 = vld [vmem:[%s3803 + $0xb8] sm:$0xff]
    %v3828 = vld [vmem:[%s3803 + $0xc0] sm:$0xff]
    %v3829 = vld [vmem:[%s3803 + $0xc8] sm:$0xff]
    %v3830 = vld [vmem:[%s3803 + $0xd0] sm:$0xff]
    %v3831 = vld [vmem:[%s3803 + $0xd8] sm:$0xff]
    %v3832 = vld [vmem:[%s3803 + $0xe0] sm:$0xff]
    %v3833 = vld [vmem:[%s3803 + $0xe8] sm:$0xff]
    %v3834 = vld [vmem:[%s3803 + $0xf0] sm:$0xff]
    %v3835 = vld [vmem:[%s3803 + $0xf8] sm:$0xff]
    %v3868 = vunpack.c.l.b16 %v3804
    %v3869 = vunpack.c.h.b16 %v3804
    %v3870 = vunpack.c.l.b16 %v3805
    %v3871 = vunpack.c.h.b16 %v3805
    %v3872 = vunpack.c.l.b16 %v3806
    %v3873 = vunpack.c.h.b16 %v3806
    %v3874 = vunpack.c.l.b16 %v3807
    %v3875 = vunpack.c.h.b16 %v3807
    %v3876 = vunpack.c.l.b16 %v3808
    %v3877 = vunpack.c.h.b16 %v3808
    %v3878 = vunpack.c.l.b16 %v3809
    %v3879 = vunpack.c.h.b16 %v3809
    %v3880 = vunpack.c.l.b16 %v3810
    %v3881 = vunpack.c.h.b16 %v3810
    %v3882 = vunpack.c.l.b16 %v3811
    %v3883 = vunpack.c.h.b16 %v3811
    %v3884 = vunpack.c.l.b16 %v3812
    %v3885 = vunpack.c.h.b16 %v3812
    %v3886 = vunpack.c.l.b16 %v3813
    %v3887 = vunpack.c.h.b16 %v3813
    %v3888 = vunpack.c.l.b16 %v3814
    %v3889 = vunpack.c.h.b16 %v3814
    %v3890 = vunpack.c.l.b16 %v3815
    %v3891 = vunpack.c.h.b16 %v3815
    %v3892 = vunpack.c.l.b16 %v3816
    %v3893 = vunpack.c.h.b16 %v3816
    %v3894 = vunpack.c.l.b16 %v3817
    %v3895 = vunpack.c.h.b16 %v3817
    %v3896 = vunpack.c.l.b16 %v3818
    %v3897 = vunpack.c.h.b16 %v3818
    %v3898 = vunpack.c.l.b16 %v3819
    %v3899 = vunpack.c.h.b16 %v3819
    %v3900 = vunpack.c.l.b16 %v3820
    %v3901 = vunpack.c.h.b16 %v3820
    %v3902 = vunpack.c.l.b16 %v3821
    %v3903 = vunpack.c.h.b16 %v3821
    %v3904 = vunpack.c.l.b16 %v3822
    %v3905 = vunpack.c.h.b16 %v3822
    %v3906 = vunpack.c.l.b16 %v3823
    %v3907 = vunpack.c.h.b16 %v3823
    %v3908 = vunpack.c.l.b16 %v3824
    %v3909 = vunpack.c.h.b16 %v3824
    %v3910 = vunpack.c.l.b16 %v3825
    %v3911 = vunpack.c.h.b16 %v3825
    %v3912 = vunpack.c.l.b16 %v3826
    %v3913 = vunpack.c.h.b16 %v3826
    %v3914 = vunpack.c.l.b16 %v3827
    %v3915 = vunpack.c.h.b16 %v3827
    %v3916 = vunpack.c.l.b16 %v3828
    %v3917 = vunpack.c.h.b16 %v3828
    %v3918 = vunpack.c.l.b16 %v3829
    %v3919 = vunpack.c.h.b16 %v3829
    %v3920 = vunpack.c.l.b16 %v3830
    %v3921 = vunpack.c.h.b16 %v3830
    %v3922 = vunpack.c.l.b16 %v3831
    %v3923 = vunpack.c.h.b16 %v3831
    %v3924 = vunpack.c.l.b16 %v3832
    %v3925 = vunpack.c.h.b16 %v3832
    %v3926 = vunpack.c.l.b16 %v3833
    %v3927 = vunpack.c.h.b16 %v3833
    %v3928 = vunpack.c.l.b16 %v3834
    %v3929 = vunpack.c.h.b16 %v3834
    %v3930 = vunpack.c.l.b16 %v3835
    %v3931 = vunpack.c.h.b16 %v3835
    %v3932 = vpack.c.b16 %v3870, %v3868
    %v3933 = vpack.c.b16 %v3871, %v3869
    %v3934 = vpack.c.b16 %v3874, %v3872
    %v3935 = vpack.c.b16 %v3875, %v3873
    %v3936 = vpack.c.b16 %v3878, %v3876
    %v3937 = vpack.c.b16 %v3879, %v3877
    %v3938 = vpack.c.b16 %v3882, %v3880
    %v3939 = vpack.c.b16 %v3883, %v3881
    %v3940 = vpack.c.b16 %v3886, %v3884
    %v3941 = vpack.c.b16 %v3887, %v3885
    %v3942 = vpack.c.b16 %v3890, %v3888
    %v3943 = vpack.c.b16 %v3891, %v3889
    %v3944 = vpack.c.b16 %v3894, %v3892
    %v3945 = vpack.c.b16 %v3895, %v3893
    %v3946 = vpack.c.b16 %v3898, %v3896
    %v3947 = vpack.c.b16 %v3899, %v3897
    %v3948 = vpack.c.b16 %v3902, %v3900
    %v3949 = vpack.c.b16 %v3903, %v3901
    %v3950 = vpack.c.b16 %v3906, %v3904
    %v3951 = vpack.c.b16 %v3907, %v3905
    %v3952 = vpack.c.b16 %v3910, %v3908
    %v3953 = vpack.c.b16 %v3911, %v3909
    %v3954 = vpack.c.b16 %v3914, %v3912
    %v3955 = vpack.c.b16 %v3915, %v3913
    %v3956 = vpack.c.b16 %v3918, %v3916
    %v3957 = vpack.c.b16 %v3919, %v3917
    %v3958 = vpack.c.b16 %v3922, %v3920
    %v3959 = vpack.c.b16 %v3923, %v3921
    %v3960 = vpack.c.b16 %v3926, %v3924
    %v3961 = vpack.c.b16 %v3927, %v3925
    %v3962 = vpack.c.b16 %v3930, %v3928
    %v3963 = vpack.c.b16 %v3931, %v3929
    %3996 = vmatprep.subr.bf16.mxu0 %v3933
    %3997 = vmatpush1.bf16.msra.mxu0 %v3932
    %3998 = vmatprep.subr.bf16.mxu0 %v3935
    %3999 = vmatpush1.bf16.msra.mxu0 %v3934
    %4000 = vmatprep.subr.bf16.mxu0 %v3937
    %4001 = vmatpush1.bf16.msra.mxu0 %v3936
    %4002 = vmatprep.subr.bf16.mxu0 %v3939
    %4003 = vmatpush1.bf16.msra.mxu0 %v3938
    %4004 = vmatprep.subr.bf16.mxu0 %v3941
    %4005 = vmatpush1.bf16.msra.mxu0 %v3940
    %4006 = vmatprep.subr.bf16.mxu0 %v3943
    %4007 = vmatpush1.bf16.msra.mxu0 %v3942
    %4008 = vmatprep.subr.bf16.mxu0 %v3945
    %4009 = vmatpush1.bf16.msra.mxu0 %v3944
    %4010 = vmatprep.subr.bf16.mxu0 %v3947
    %4011 = vmatpush1.bf16.msra.mxu0 %v3946
    %4012 = vmatprep.subr.bf16.mxu0 %v3949
    %4013 = vmatpush1.bf16.msra.mxu0 %v3948
    %4014 = vmatprep.subr.bf16.mxu0 %v3951
    %4015 = vmatpush1.bf16.msra.mxu0 %v3950
    %4016 = vmatprep.subr.bf16.mxu0 %v3953
    %4017 = vmatpush1.bf16.msra.mxu0 %v3952
    %4018 = vmatprep.subr.bf16.mxu0 %v3955
    %4019 = vmatpush1.bf16.msra.mxu0 %v3954
    %4020 = vmatprep.subr.bf16.mxu0 %v3957
    %4021 = vmatpush1.bf16.msra.mxu0 %v3956
    %4022 = vmatprep.subr.bf16.mxu0 %v3959
    %4023 = vmatpush1.bf16.msra.mxu0 %v3958
    %4024 = vmatprep.subr.bf16.mxu0 %v3961
    %4025 = vmatpush1.bf16.msra.mxu0 %v3960
    %4026 = vmatprep.subr.bf16.mxu0 %v3963
    %4027 = vmatpush1.bf16.msra.mxu0 %v3962
    %4028 = vmatprep.mubr.bf16.mxu0 %v3788
    %4029 = vmatmul.mubr.bf16.gmra.mrb[0].mxu0 %v3787
    %v4030 = vpop.f32.mrb[0].mxu0
    %v4031 = vadd.f32 0.0, %v4030
    %v4032 = vpop.f32.mrb[0].mxu0
    %v4033 = vadd.f32 0.0, %v4032
    %v4034 = vpop.f32.mrb[0].mxu0
    %v4035 = vadd.f32 0.0, %v4034
    %v4036 = vpop.f32.mrb[0].mxu0
    %v4037 = vadd.f32 0.0, %v4036
    %4038 = vmatprep.mubr.bf16.mxu0 %v3790
    %4039 = vmatmul.mubr.bf16.gmra.mrb[0].mxu0 %v3789
    %v4040 = vpop.f32.mrb[0].mxu0
    %v4041 = vadd.f32 0.0, %v4040
    %v4042 = vpop.f32.mrb[0].mxu0
    %v4043 = vadd.f32 0.0, %v4042
    %v4044 = vpop.f32.mrb[0].mxu0
    %v4045 = vadd.f32 0.0, %v4044
    %v4046 = vpop.f32.mrb[0].mxu0
    %v4047 = vadd.f32 0.0, %v4046
    %4048 = vmatprep.mubr.bf16.mxu0 %v3792
    %4049 = vmatmul.mubr.bf16.gmra.mrb[0].mxu0 %v3791
    %v4050 = vpop.f32.mrb[0].mxu0
    %v4051 = vadd.f32 0.0, %v4050
    %v4052 = vpop.f32.mrb[0].mxu0
    %v4053 = vadd.f32 0.0, %v4052
    %v4054 = vpop.f32.mrb[0].mxu0
    %v4055 = vadd.f32 0.0, %v4054
    %v4056 = vpop.f32.mrb[0].mxu0
    %v4057 = vadd.f32 0.0, %v4056
    %4058 = vmatprep.mubr.bf16.mxu0 %v3794
    %4059 = vmatmul.mubr.bf16.gmra.mrb[0].mxu0 %v3793
    %v4060 = vpop.f32.mrb[0].mxu0
    %v4061 = vadd.f32 0.0, %v4060
    %v4062 = vpop.f32.mrb[0].mxu0
    %v4063 = vadd.f32 0.0, %v4062
    %v4064 = vpop.f32.mrb[0].mxu0
    %v4065 = vadd.f32 0.0, %v4064
    %v4066 = vpop.f32.mrb[0].mxu0
    %v4067 = vadd.f32 0.0, %v4066
    %4068 = vmatprep.mubr.bf16.mxu0 %v3796
    %4069 = vmatmul.mubr.bf16.gmra.mrb[0].mxu0 %v3795
    %v4070 = vpop.f32.mrb[0].mxu0
    %v4071 = vadd.f32 0.0, %v4070
    %v4072 = vpop.f32.mrb[0].mxu0
    %v4073 = vadd.f32 0.0, %v4072
    %v4074 = vpop.f32.mrb[0].mxu0
    %v4075 = vadd.f32 0.0, %v4074
    %v4076 = vpop.f32.mrb[0].mxu0
    %v4077 = vadd.f32 0.0, %v4076
    %4078 = vmatprep.mubr.bf16.mxu0 %v3798
    %4079 = vmatmul.mubr.bf16.gmra.mrb[0].mxu0 %v3797
    %v4080 = vpop.f32.mrb[0].mxu0
    %v4081 = vadd.f32 0.0, %v4080
    %v4082 = vpop.f32.mrb[0].mxu0
    %v4083 = vadd.f32 0.0, %v4082
    %v4084 = vpop.f32.mrb[0].mxu0
    %v4085 = vadd.f32 0.0, %v4084
    %v4086 = vpop.f32.mrb[0].mxu0
    %v4087 = vadd.f32 0.0, %v4086
    %4088 = vmatprep.mubr.bf16.mxu0 %v3800
    %4089 = vmatmul.mubr.bf16.gmra.mrb[0].mxu0 %v3799
    %v4090 = vpop.f32.mrb[0].mxu0
    %v4091 = vadd.f32 0.0, %v4090
    %v4092 = vpop.f32.mrb[0].mxu0
    %v4093 = vadd.f32 0.0, %v4092
    %v4094 = vpop.f32.mrb[0].mxu0
    %v4095 = vadd.f32 0.0, %v4094
    %v4096 = vpop.f32.mrb[0].mxu0
    %v4097 = vadd.f32 0.0, %v4096
    %4098 = vmatprep.mubr.bf16.mxu0 %v3802
    %4099 = vmatmul.mubr.bf16.gmra.mrb[0].mxu0 %v3801
    %v4100 = vpop.f32.mrb[0].mxu0
    %v4101 = vadd.f32 0.0, %v4100
    %v4102 = vpop.f32.mrb[0].mxu0
    %v4103 = vadd.f32 0.0, %v4102
    %v4104 = vpop.f32.mrb[0].mxu0
    %v4105 = vadd.f32 0.0, %v4104
    %v4106 = vpop.f32.mrb[0].mxu0
    %v4107 = vadd.f32 0.0, %v4106
    %4108 = vdwg.mxu0
    %v4109 = vadd.f32 %v3707, %v4031
    %v4110 = vadd.f32 %v3709, %v4033
    %v4111 = vadd.f32 %v3711, %v4035
    %v4112 = vadd.f32 %v3713, %v4037
    %v4113 = vadd.f32 %v3717, %v4041
    %v4114 = vadd.f32 %v3719, %v4043
    %v4115 = vadd.f32 %v3721, %v4045
    %v4116 = vadd.f32 %v3723, %v4047
    %v4117 = vadd.f32 %v3727, %v4051
    %v4118 = vadd.f32 %v3729, %v4053
    %v4119 = vadd.f32 %v3731, %v4055
    %v4120 = vadd.f32 %v3733, %v4057
    %v4121 = vadd.f32 %v3737, %v4061
    %v4122 = vadd.f32 %v3739, %v4063
    %v4123 = vadd.f32 %v3741, %v4065
    %v4124 = vadd.f32 %v3743, %v4067
    %v4125 = vadd.f32 %v3747, %v4071
    %v4126 = vadd.f32 %v3749, %v4073
    %v4127 = vadd.f32 %v3751, %v4075
    %v4128 = vadd.f32 %v3753, %v4077
    %v4129 = vadd.f32 %v3757, %v4081
    %v4130 = vadd.f32 %v3759, %v4083
    %v4131 = vadd.f32 %v3761, %v4085
    %v4132 = vadd.f32 %v3763, %v4087
    %v4133 = vadd.f32 %v3767, %v4091
    %v4134 = vadd.f32 %v3769, %v4093
    %v4135 = vadd.f32 %v3771, %v4095
    %v4136 = vadd.f32 %v3773, %v4097
    %v4137 = vadd.f32 %v3777, %v4101
    %v4138 = vadd.f32 %v3779, %v4103
    %v4139 = vadd.f32 %v3781, %v4105
    %v4140 = vadd.f32 %v3783, %v4107
    %v4141 = vld [vmem:[#allocation5 + $0x10] sm:$0xfe]
    %v4142 = vld [vmem:[#allocation5 + $0x18] sm:$0xfe]
    %v4143 = vld [vmem:[#allocation5 + $0x20] sm:$0xff]
    %v4144 = vld [vmem:[#allocation5 + $0x28] sm:$0xff]
    %v4145 = vld [vmem:[#allocation5 + $0x30] sm:$0xff]
    %v4146 = vld [vmem:[#allocation5 + $0x38] sm:$0xff]
    %v4147 = vld [vmem:[#allocation5 + $0x40] sm:$0xff]
    %v4148 = vld [vmem:[#allocation5 + $0x48] sm:$0xff]
    %v4149 = vld [vmem:[#allocation5 + $0x50] sm:$0xff]
    %v4150 = vld [vmem:[#allocation5 + $0x58] sm:$0xff]
    %v4151 = vld [vmem:[#allocation5 + $0x60] sm:$0xff]
    %v4152 = vld [vmem:[#allocation5 + $0x68] sm:$0xff]
    %v4153 = vld [vmem:[#allocation5 + $0x70] sm:$0xff]
    %v4154 = vld [vmem:[#allocation5 + $0x78] sm:$0xff]
    %v4155 = vld [vmem:[#allocation5 + $0x80] sm:$0xff]
    %v4156 = vld [vmem:[#allocation5 + $0x88] sm:$0xff]
    %v4157 = vld [vmem:[#allocation5 + $0x90] sm:$0xff]
    %v4158 = vld [vmem:[#allocation5 + $0x98] sm:$0xff]
    %v4159 = vld [vmem:[#allocation5 + $0xa0] sm:$0xff]
    %v4160 = vld [vmem:[#allocation5 + $0xa8] sm:$0xff]
    %v4161 = vld [vmem:[#allocation5 + $0xb0] sm:$0xff]
    %v4162 = vld [vmem:[#allocation5 + $0xb8] sm:$0xff]
    %v4163 = vld [vmem:[#allocation5 + $0xc0] sm:$0xff]
    %v4164 = vld [vmem:[#allocation5 + $0xc8] sm:$0xff]
    %v4165 = vld [vmem:[#allocation5 + $0xd0] sm:$0xff]
    %v4166 = vld [vmem:[#allocation5 + $0xd8] sm:$0xff]
    %v4167 = vld [vmem:[#allocation5 + $0xe0] sm:$0xff]
    %v4168 = vld [vmem:[#allocation5 + $0xe8] sm:$0xff]
    %v4169 = vld [vmem:[#allocation5 + $0xf0] sm:$0xff]
    %v4170 = vld [vmem:[#allocation5 + $0xf8] sm:$0xff]
    %v4171 = vld [vmem:[#allocation5 + $0x100] sm:$0xff]
    %v4172 = vld [vmem:[#allocation5 + $0x108] sm:$0xff]
    %v4173 = vld [vmem:[#allocation5 + $0x110] sm:$0x1]
    %v4174 = vld [vmem:[#allocation5 + $0x118] sm:$0x1]
    %v4175 = vpack.c.bf16 %v4143, %v4141
    %v4176 = vpack.c.bf16 %v4144, %v4142
    %v4177 = vpack.c.bf16 %v4147, %v4145
    %v4178 = vpack.c.bf16 %v4148, %v4146
    %v4179 = vpack.c.bf16 %v4151, %v4149
    %v4180 = vpack.c.bf16 %v4152, %v4150
    %v4181 = vpack.c.bf16 %v4155, %v4153
    %v4182 = vpack.c.bf16 %v4156, %v4154
    %v4183 = vpack.c.bf16 %v4159, %v4157
    %v4184 = vpack.c.bf16 %v4160, %v4158
    %v4185 = vpack.c.bf16 %v4163, %v4161
    %v4186 = vpack.c.bf16 %v4164, %v4162
    %v4187 = vpack.c.bf16 %v4167, %v4165
    %v4188 = vpack.c.bf16 %v4168, %v4166
    %v4189 = vpack.c.bf16 %v4171, %v4169
    %v4190 = vpack.c.bf16 %v4172, %v4170
    %v4191 = vpack.c.bf16 %v4173, %v4173
    %v4192 = vpack.c.bf16 %v4174, %v4174
    %s4193 = scalar_lea.vmem [#allocation9], 768
    %v4194 = vld [vmem:[%s4193] sm:$0xff]
    %v4195 = vld [vmem:[%s4193 + $0x8] sm:$0xff]
    %v4196 = vld [vmem:[%s4193 + $0x10] sm:$0xff]
    %v4197 = vld [vmem:[%s4193 + $0x18] sm:$0xff]
    %v4198 = vld [vmem:[%s4193 + $0x20] sm:$0xff]
    %v4199 = vld [vmem:[%s4193 + $0x28] sm:$0xff]
    %v4200 = vld [vmem:[%s4193 + $0x30] sm:$0xff]
    %v4201 = vld [vmem:[%s4193 + $0x38] sm:$0xff]
    %v4202 = vld [vmem:[%s4193 + $0x40] sm:$0xff]
    %v4203 = vld [vmem:[%s4193 + $0x48] sm:$0xff]
    %v4204 = vld [vmem:[%s4193 + $0x50] sm:$0xff]
    %v4205 = vld [vmem:[%s4193 + $0x58] sm:$0xff]
    %v4206 = vld [vmem:[%s4193 + $0x60] sm:$0xff]
    %v4207 = vld [vmem:[%s4193 + $0x68] sm:$0xff]
    %v4208 = vld [vmem:[%s4193 + $0x70] sm:$0xff]
    %v4209 = vld [vmem:[%s4193 + $0x78] sm:$0xff]
    %v4210 = vld [vmem:[%s4193 + $0x80] sm:$0xff]
    %v4211 = vld [vmem:[%s4193 + $0x88] sm:$0xff]
    %v4212 = vld [vmem:[%s4193 + $0x90] sm:$0xff]
    %v4213 = vld [vmem:[%s4193 + $0x98] sm:$0xff]
    %v4214 = vld [vmem:[%s4193 + $0xa0] sm:$0xff]
    %v4215 = vld [vmem:[%s4193 + $0xa8] sm:$0xff]
    %v4216 = vld [vmem:[%s4193 + $0xb0] sm:$0xff]
    %v4217 = vld [vmem:[%s4193 + $0xb8] sm:$0xff]
    %v4218 = vld [vmem:[%s4193 + $0xc0] sm:$0xff]
    %v4219 = vld [vmem:[%s4193 + $0xc8] sm:$0xff]
    %v4220 = vld [vmem:[%s4193 + $0xd0] sm:$0xff]
    %v4221 = vld [vmem:[%s4193 + $0xd8] sm:$0xff]
    %v4222 = vld [vmem:[%s4193 + $0xe0] sm:$0xff]
    %v4223 = vld [vmem:[%s4193 + $0xe8] sm:$0xff]
    %v4224 = vld [vmem:[%s4193 + $0xf0] sm:$0xff]
    %v4225 = vld [vmem:[%s4193 + $0xf8] sm:$0xff]
    %v4227 = vshrl.u32 %v4175, 16
    %v4229 = vshll.u32 %v4175, 16
    %v4231 = vrot.slane %v4229, 1
    %v4232 = vor.u32 %v4227, %v4231
    %v4234 = vshll.u32 %v4177, 16
    %v4236 = vrot.slane %v4234, 1
    %v4237 = vsel %vm3086, %v4232, %v4236
    %v4239 = vshrl.u32 %v4176, 16
    %v4241 = vshll.u32 %v4176, 16
    %v4243 = vrot.slane %v4241, 1
    %v4244 = vor.u32 %v4239, %v4243
    %v4246 = vshll.u32 %v4178, 16
    %v4248 = vrot.slane %v4246, 1
    %v4249 = vsel %vm3086, %v4244, %v4248
    %v4250 = vshrl.u32 %v4177, 16
    %v4252 = vor.u32 %v4250, %v4236
    %v4254 = vshll.u32 %v4179, 16
    %v4256 = vrot.slane %v4254, 1
    %v4257 = vsel %vm3086, %v4252, %v4256
    %v4258 = vshrl.u32 %v4178, 16
    %v4260 = vor.u32 %v4258, %v4248
    %v4262 = vshll.u32 %v4180, 16
    %v4264 = vrot.slane %v4262, 1
    %v4265 = vsel %vm3086, %v4260, %v4264
    %v4266 = vshrl.u32 %v4179, 16
    %v4268 = vor.u32 %v4266, %v4256
    %v4270 = vshll.u32 %v4181, 16
    %v4272 = vrot.slane %v4270, 1
    %v4273 = vsel %vm3086, %v4268, %v4272
    %v4274 = vshrl.u32 %v4180, 16
    %v4276 = vor.u32 %v4274, %v4264
    %v4278 = vshll.u32 %v4182, 16
    %v4280 = vrot.slane %v4278, 1
    %v4281 = vsel %vm3086, %v4276, %v4280
    %v4282 = vshrl.u32 %v4181, 16
    %v4284 = vor.u32 %v4282, %v4272
    %v4286 = vshll.u32 %v4183, 16
    %v4288 = vrot.slane %v4286, 1
    %v4289 = vsel %vm3086, %v4284, %v4288
    %v4290 = vshrl.u32 %v4182, 16
    %v4292 = vor.u32 %v4290, %v4280
    %v4294 = vshll.u32 %v4184, 16
    %v4296 = vrot.slane %v4294, 1
    %v4297 = vsel %vm3086, %v4292, %v4296
    %v4298 = vshrl.u32 %v4183, 16
    %v4300 = vor.u32 %v4298, %v4288
    %v4302 = vshll.u32 %v4185, 16
    %v4304 = vrot.slane %v4302, 1
    %v4305 = vsel %vm3086, %v4300, %v4304
    %v4306 = vshrl.u32 %v4184, 16
    %v4308 = vor.u32 %v4306, %v4296
    %v4310 = vshll.u32 %v4186, 16
    %v4312 = vrot.slane %v4310, 1
    %v4313 = vsel %vm3086, %v4308, %v4312
    %v4314 = vshrl.u32 %v4185, 16
    %v4316 = vor.u32 %v4314, %v4304
    %v4318 = vshll.u32 %v4187, 16
    %v4320 = vrot.slane %v4318, 1
    %v4321 = vsel %vm3086, %v4316, %v4320
    %v4322 = vshrl.u32 %v4186, 16
    %v4324 = vor.u32 %v4322, %v4312
    %v4326 = vshll.u32 %v4188, 16
    %v4328 = vrot.slane %v4326, 1
    %v4329 = vsel %vm3086, %v4324, %v4328
    %v4330 = vshrl.u32 %v4187, 16
    %v4332 = vor.u32 %v4330, %v4320
    %v4334 = vshll.u32 %v4189, 16
    %v4336 = vrot.slane %v4334, 1
    %v4337 = vsel %vm3086, %v4332, %v4336
    %v4338 = vshrl.u32 %v4188, 16
    %v4340 = vor.u32 %v4338, %v4328
    %v4342 = vshll.u32 %v4190, 16
    %v4344 = vrot.slane %v4342, 1
    %v4345 = vsel %vm3086, %v4340, %v4344
    %v4346 = vshrl.u32 %v4189, 16
    %v4348 = vor.u32 %v4346, %v4336
    %v4350 = vshll.u32 %v4191, 16
    %v4352 = vrot.slane %v4350, 1
    %v4353 = vsel %vm3086, %v4348, %v4352
    %v4354 = vshrl.u32 %v4190, 16
    %v4356 = vor.u32 %v4354, %v4344
    %v4358 = vshll.u32 %v4192, 16
    %v4360 = vrot.slane %v4358, 1
    %v4361 = vsel %vm3086, %v4356, %v4360
    %v4410 = vunpack.c.l.b16 %v4194
    %v4411 = vunpack.c.h.b16 %v4194
    %v4412 = vunpack.c.l.b16 %v4195
    %v4413 = vunpack.c.h.b16 %v4195
    %v4414 = vunpack.c.l.b16 %v4196
    %v4415 = vunpack.c.h.b16 %v4196
    %v4416 = vunpack.c.l.b16 %v4197
    %v4417 = vunpack.c.h.b16 %v4197
    %v4418 = vunpack.c.l.b16 %v4198
    %v4419 = vunpack.c.h.b16 %v4198
    %v4420 = vunpack.c.l.b16 %v4199
    %v4421 = vunpack.c.h.b16 %v4199
    %v4422 = vunpack.c.l.b16 %v4200
    %v4423 = vunpack.c.h.b16 %v4200
    %v4424 = vunpack.c.l.b16 %v4201
    %v4425 = vunpack.c.h.b16 %v4201
    %v4426 = vunpack.c.l.b16 %v4202
    %v4427 = vunpack.c.h.b16 %v4202
    %v4428 = vunpack.c.l.b16 %v4203
    %v4429 = vunpack.c.h.b16 %v4203
    %v4430 = vunpack.c.l.b16 %v4204
    %v4431 = vunpack.c.h.b16 %v4204
    %v4432 = vunpack.c.l.b16 %v4205
    %v4433 = vunpack.c.h.b16 %v4205
    %v4434 = vunpack.c.l.b16 %v4206
    %v4435 = vunpack.c.h.b16 %v4206
    %v4436 = vunpack.c.l.b16 %v4207
    %v4437 = vunpack.c.h.b16 %v4207
    %v4438 = vunpack.c.l.b16 %v4208
    %v4439 = vunpack.c.h.b16 %v4208
    %v4440 = vunpack.c.l.b16 %v4209
    %v4441 = vunpack.c.h.b16 %v4209
    %v4442 = vunpack.c.l.b16 %v4210
    %v4443 = vunpack.c.h.b16 %v4210
    %v4444 = vunpack.c.l.b16 %v4211
    %v4445 = vunpack.c.h.b16 %v4211
    %v4446 = vunpack.c.l.b16 %v4212
    %v4447 = vunpack.c.h.b16 %v4212
    %v4448 = vunpack.c.l.b16 %v4213
    %v4449 = vunpack.c.h.b16 %v4213
    %v4450 = vunpack.c.l.b16 %v4214
    %v4451 = vunpack.c.h.b16 %v4214
    %v4452 = vunpack.c.l.b16 %v4215
    %v4453 = vunpack.c.h.b16 %v4215
    %v4454 = vunpack.c.l.b16 %v4216
    %v4455 = vunpack.c.h.b16 %v4216
    %v4456 = vunpack.c.l.b16 %v4217
    %v4457 = vunpack.c.h.b16 %v4217
    %v4458 = vunpack.c.l.b16 %v4218
    %v4459 = vunpack.c.h.b16 %v4218
    %v4460 = vunpack.c.l.b16 %v4219
    %v4461 = vunpack.c.h.b16 %v4219
    %v4462 = vunpack.c.l.b16 %v4220
    %v4463 = vunpack.c.h.b16 %v4220
    %v4464 = vunpack.c.l.b16 %v4221
    %v4465 = vunpack.c.h.b16 %v4221
    %v4466 = vunpack.c.l.b16 %v4222
    %v4467 = vunpack.c.h.b16 %v4222
    %v4468 = vunpack.c.l.b16 %v4223
    %v4469 = vunpack.c.h.b16 %v4223
    %v4470 = vunpack.c.l.b16 %v4224
    %v4471 = vunpack.c.h.b16 %v4224
    %v4472 = vunpack.c.l.b16 %v4225
    %v4473 = vunpack.c.h.b16 %v4225
    %v4474 = vpack.c.b16 %v4412, %v4410
    %v4475 = vpack.c.b16 %v4413, %v4411
    %v4476 = vpack.c.b16 %v4416, %v4414
    %v4477 = vpack.c.b16 %v4417, %v4415
    %v4478 = vpack.c.b16 %v4420, %v4418
    %v4479 = vpack.c.b16 %v4421, %v4419
    %v4480 = vpack.c.b16 %v4424, %v4422
    %v4481 = vpack.c.b16 %v4425, %v4423
    %v4482 = vpack.c.b16 %v4428, %v4426
    %v4483 = vpack.c.b16 %v4429, %v4427
    %v4484 = vpack.c.b16 %v4432, %v4430
    %v4485 = vpack.c.b16 %v4433, %v4431
    %v4486 = vpack.c.b16 %v4436, %v4434
    %v4487 = vpack.c.b16 %v4437, %v4435
    %v4488 = vpack.c.b16 %v4440, %v4438
    %v4489 = vpack.c.b16 %v4441, %v4439
    %v4490 = vpack.c.b16 %v4444, %v4442
    %v4491 = vpack.c.b16 %v4445, %v4443
    %v4492 = vpack.c.b16 %v4448, %v4446
    %v4493 = vpack.c.b16 %v4449, %v4447
    %v4494 = vpack.c.b16 %v4452, %v4450
    %v4495 = vpack.c.b16 %v4453, %v4451
    %v4496 = vpack.c.b16 %v4456, %v4454
    %v4497 = vpack.c.b16 %v4457, %v4455
    %v4498 = vpack.c.b16 %v4460, %v4458
    %v4499 = vpack.c.b16 %v4461, %v4459
    %v4500 = vpack.c.b16 %v4464, %v4462
    %v4501 = vpack.c.b16 %v4465, %v4463
    %v4502 = vpack.c.b16 %v4468, %v4466
    %v4503 = vpack.c.b16 %v4469, %v4467
    %v4504 = vpack.c.b16 %v4472, %v4470
    %v4505 = vpack.c.b16 %v4473, %v4471
    %4538 = vmatprep.subr.bf16.mxu0 %v4475
    %4539 = vmatpush1.bf16.msra.mxu0 %v4474
    %4540 = vmatprep.subr.bf16.mxu0 %v4477
    %4541 = vmatpush1.bf16.msra.mxu0 %v4476
    %4542 = vmatprep.subr.bf16.mxu0 %v4479
    %4543 = vmatpush1.bf16.msra.mxu0 %v4478
    %4544 = vmatprep.subr.bf16.mxu0 %v4481
    %4545 = vmatpush1.bf16.msra.mxu0 %v4480
    %4546 = vmatprep.subr.bf16.mxu0 %v4483
    %4547 = vmatpush1.bf16.msra.mxu0 %v4482
    %4548 = vmatprep.subr.bf16.mxu0 %v4485
    %4549 = vmatpush1.bf16.msra.mxu0 %v4484
    %4550 = vmatprep.subr.bf16.mxu0 %v4487
    %4551 = vmatpush1.bf16.msra.mxu0 %v4486
    %4552 = vmatprep.subr.bf16.mxu0 %v4489
    %4553 = vmatpush1.bf16.msra.mxu0 %v4488
    %4554 = vmatprep.subr.bf16.mxu0 %v4491
    %4555 = vmatpush1.bf16.msra.mxu0 %v4490
    %4556 = vmatprep.subr.bf16.mxu0 %v4493
    %4557 = vmatpush1.bf16.msra.mxu0 %v4492
    %4558 = vmatprep.subr.bf16.mxu0 %v4495
    %4559 = vmatpush1.bf16.msra.mxu0 %v4494
    %4560 = vmatprep.subr.bf16.mxu0 %v4497
    %4561 = vmatpush1.bf16.msra.mxu0 %v4496
    %4562 = vmatprep.subr.bf16.mxu0 %v4499
    %4563 = vmatpush1.bf16.msra.mxu0 %v4498
    %4564 = vmatprep.subr.bf16.mxu0 %v4501
    %4565 = vmatpush1.bf16.msra.mxu0 %v4500
    %4566 = vmatprep.subr.bf16.mxu0 %v4503
    %4567 = vmatpush1.bf16.msra.mxu0 %v4502
    %4568 = vmatprep.subr.bf16.mxu0 %v4505
    %4569 = vmatpush1.bf16.msra.mxu0 %v4504
    %4570 = vmatprep.mubr.bf16.mxu0 %v4249
    %4571 = vmatmul.mubr.bf16.gmra.mrb[0].mxu0 %v4237
    %v4572 = vpop.f32.mrb[0].mxu0
    %v4573 = vadd.f32 0.0, %v4572
    %v4574 = vpop.f32.mrb[0].mxu0
    %v4575 = vadd.f32 0.0, %v4574
    %v4576 = vpop.f32.mrb[0].mxu0
    %v4577 = vadd.f32 0.0, %v4576
    %v4578 = vpop.f32.mrb[0].mxu0
    %v4579 = vadd.f32 0.0, %v4578
    %4580 = vmatprep.mubr.bf16.mxu0 %v4265
    %4581 = vmatmul.mubr.bf16.gmra.mrb[0].mxu0 %v4257
    %v4582 = vpop.f32.mrb[0].mxu0
    %v4583 = vadd.f32 0.0, %v4582
    %v4584 = vpop.f32.mrb[0].mxu0
    %v4585 = vadd.f32 0.0, %v4584
    %v4586 = vpop.f32.mrb[0].mxu0
    %v4587 = vadd.f32 0.0, %v4586
    %v4588 = vpop.f32.mrb[0].mxu0
    %v4589 = vadd.f32 0.0, %v4588
    %4590 = vmatprep.mubr.bf16.mxu0 %v4281
    %4591 = vmatmul.mubr.bf16.gmra.mrb[0].mxu0 %v4273
    %v4592 = vpop.f32.mrb[0].mxu0
    %v4593 = vadd.f32 0.0, %v4592
    %v4594 = vpop.f32.mrb[0].mxu0
    %v4595 = vadd.f32 0.0, %v4594
    %v4596 = vpop.f32.mrb[0].mxu0
    %v4597 = vadd.f32 0.0, %v4596
    %v4598 = vpop.f32.mrb[0].mxu0
    %v4599 = vadd.f32 0.0, %v4598
    %4600 = vmatprep.mubr.bf16.mxu0 %v4297
    %4601 = vmatmul.mubr.bf16.gmra.mrb[0].mxu0 %v4289
    %v4602 = vpop.f32.mrb[0].mxu0
    %v4603 = vadd.f32 0.0, %v4602
    %v4604 = vpop.f32.mrb[0].mxu0
    %v4605 = vadd.f32 0.0, %v4604
    %v4606 = vpop.f32.mrb[0].mxu0
    %v4607 = vadd.f32 0.0, %v4606
    %v4608 = vpop.f32.mrb[0].mxu0
    %v4609 = vadd.f32 0.0, %v4608
    %4610 = vmatprep.mubr.bf16.mxu0 %v4313
    %4611 = vmatmul.mubr.bf16.gmra.mrb[0].mxu0 %v4305
    %v4612 = vpop.f32.mrb[0].mxu0
    %v4613 = vadd.f32 0.0, %v4612
    %v4614 = vpop.f32.mrb[0].mxu0
    %v4615 = vadd.f32 0.0, %v4614
    %v4616 = vpop.f32.mrb[0].mxu0
    %v4617 = vadd.f32 0.0, %v4616
    %v4618 = vpop.f32.mrb[0].mxu0
    %v4619 = vadd.f32 0.0, %v4618
    %4620 = vmatprep.mubr.bf16.mxu0 %v4329
    %4621 = vmatmul.mubr.bf16.gmra.mrb[0].mxu0 %v4321
    %v4622 = vpop.f32.mrb[0].mxu0
    %v4623 = vadd.f32 0.0, %v4622
    %v4624 = vpop.f32.mrb[0].mxu0
    %v4625 = vadd.f32 0.0, %v4624
    %v4626 = vpop.f32.mrb[0].mxu0
    %v4627 = vadd.f32 0.0, %v4626
    %v4628 = vpop.f32.mrb[0].mxu0
    %v4629 = vadd.f32 0.0, %v4628
    %4630 = vmatprep.mubr.bf16.mxu0 %v4345
    %4631 = vmatmul.mubr.bf16.gmra.mrb[0].mxu0 %v4337
    %v4632 = vpop.f32.mrb[0].mxu0
    %v4633 = vadd.f32 0.0, %v4632
    %v4634 = vpop.f32.mrb[0].mxu0
    %v4635 = vadd.f32 0.0, %v4634
    %v4636 = vpop.f32.mrb[0].mxu0
    %v4637 = vadd.f32 0.0, %v4636
    %v4638 = vpop.f32.mrb[0].mxu0
    %v4639 = vadd.f32 0.0, %v4638
    %4640 = vmatprep.mubr.bf16.mxu0 %v4361
    %4641 = vmatmul.mubr.bf16.gmra.mrb[0].mxu0 %v4353
    %v4642 = vpop.f32.mrb[0].mxu0
    %v4643 = vadd.f32 0.0, %v4642
    %v4644 = vpop.f32.mrb[0].mxu0
    %v4645 = vadd.f32 0.0, %v4644
    %v4646 = vpop.f32.mrb[0].mxu0
    %v4647 = vadd.f32 0.0, %v4646
    %v4648 = vpop.f32.mrb[0].mxu0
    %v4649 = vadd.f32 0.0, %v4648
    %4650 = vdwg.mxu0
    %v4651 = vadd.f32 %v4109, %v4573
    %v4652 = vadd.f32 %v4110, %v4575
    %v4653 = vadd.f32 %v4111, %v4577
    %v4654 = vadd.f32 %v4112, %v4579
    %v4655 = vadd.f32 %v4113, %v4583
    %v4656 = vadd.f32 %v4114, %v4585
    %v4657 = vadd.f32 %v4115, %v4587
    %v4658 = vadd.f32 %v4116, %v4589
    %v4659 = vadd.f32 %v4117, %v4593
    %v4660 = vadd.f32 %v4118, %v4595
    %v4661 = vadd.f32 %v4119, %v4597
    %v4662 = vadd.f32 %v4120, %v4599
    %v4663 = vadd.f32 %v4121, %v4603
    %v4664 = vadd.f32 %v4122, %v4605
    %v4665 = vadd.f32 %v4123, %v4607
    %v4666 = vadd.f32 %v4124, %v4609
    %v4667 = vadd.f32 %v4125, %v4613
    %v4668 = vadd.f32 %v4126, %v4615
    %v4669 = vadd.f32 %v4127, %v4617
    %v4670 = vadd.f32 %v4128, %v4619
    %v4671 = vadd.f32 %v4129, %v4623
    %v4672 = vadd.f32 %v4130, %v4625
    %v4673 = vadd.f32 %v4131, %v4627
    %v4674 = vadd.f32 %v4132, %v4629
    %v4675 = vadd.f32 %v4133, %v4633
    %v4676 = vadd.f32 %v4134, %v4635
    %v4677 = vadd.f32 %v4135, %v4637
    %v4678 = vadd.f32 %v4136, %v4639
    %v4679 = vadd.f32 %v4137, %v4643
    %v4680 = vadd.f32 %v4138, %v4645
    %v4681 = vadd.f32 %v4139, %v4647
    %v4682 = vadd.f32 %v4140, %v4649
    %v4683 = vld [vmem:[%s10] sm:$0x3]
    %v4685 = vlaneseq
    %v4686 = vshrl.u32 %v4685, 7
    %v4687 = vsub.s32 0, %v4686
    %v4688 = vrot.slane %v4683, %v4687
    %v4689 = vlaneseq
    %v4690 = vshrl.u32 %v4689, 7
    %v4691 = vsub.s32 1, %v4690
    %v4692 = vrot.slane %v4683, %v4691
    %v4695 = vadd.f32 %v4651, %v4688
    %v4696 = vadd.f32 %v4652, %v4692
    %v4697 = vadd.f32 %v4653, %v4688
    %v4698 = vadd.f32 %v4654, %v4692
    %v4699 = vadd.f32 %v4655, %v4688
    %v4700 = vadd.f32 %v4656, %v4692
    %v4701 = vadd.f32 %v4657, %v4688
    %v4702 = vadd.f32 %v4658, %v4692
    %v4703 = vadd.f32 %v4659, %v4688
    %v4704 = vadd.f32 %v4660, %v4692
    %v4705 = vadd.f32 %v4661, %v4688
    %v4706 = vadd.f32 %v4662, %v4692
    %v4707 = vadd.f32 %v4663, %v4688
    %v4708 = vadd.f32 %v4664, %v4692
    %v4709 = vadd.f32 %v4665, %v4688
    %v4710 = vadd.f32 %v4666, %v4692
    %v4711 = vadd.f32 %v4667, %v4688
    %v4712 = vadd.f32 %v4668, %v4692
    %v4713 = vadd.f32 %v4669, %v4688
    %v4714 = vadd.f32 %v4670, %v4692
    %v4715 = vadd.f32 %v4671, %v4688
    %v4716 = vadd.f32 %v4672, %v4692
    %v4717 = vadd.f32 %v4673, %v4688
    %v4718 = vadd.f32 %v4674, %v4692
    %v4719 = vadd.f32 %v4675, %v4688
    %v4720 = vadd.f32 %v4676, %v4692
    %v4721 = vadd.f32 %v4677, %v4688
    %v4722 = vadd.f32 %v4678, %v4692
    %v4723 = vadd.f32 %v4679, %v4688
    %v4724 = vadd.f32 %v4680, %v4692
    %v4725 = vadd.f32 %v4681, %v4688
    %v4726 = vadd.f32 %v4682, %v4692
    %v4727 = vmax.f32 %v4695, 0.0
    %v4728 = vmax.f32 %v4696, 0.0
    %v4729 = vmax.f32 %v4697, 0.0
    %v4730 = vmax.f32 %v4698, 0.0
    %v4731 = vmax.f32 %v4699, 0.0
    %v4732 = vmax.f32 %v4700, 0.0
    %v4733 = vmax.f32 %v4701, 0.0
    %v4734 = vmax.f32 %v4702, 0.0
    %v4735 = vmax.f32 %v4703, 0.0
    %v4736 = vmax.f32 %v4704, 0.0
    %v4737 = vmax.f32 %v4705, 0.0
    %v4738 = vmax.f32 %v4706, 0.0
    %v4739 = vmax.f32 %v4707, 0.0
    %v4740 = vmax.f32 %v4708, 0.0
    %v4741 = vmax.f32 %v4709, 0.0
    %v4742 = vmax.f32 %v4710, 0.0
    %v4743 = vmax.f32 %v4711, 0.0
    %v4744 = vmax.f32 %v4712, 0.0
    %v4745 = vmax.f32 %v4713, 0.0
    %v4746 = vmax.f32 %v4714, 0.0
    %v4747 = vmax.f32 %v4715, 0.0
    %v4748 = vmax.f32 %v4716, 0.0
    %v4749 = vmax.f32 %v4717, 0.0
    %v4750 = vmax.f32 %v4718, 0.0
    %v4751 = vmax.f32 %v4719, 0.0
    %v4752 = vmax.f32 %v4720, 0.0
    %v4753 = vmax.f32 %v4721, 0.0
    %v4754 = vmax.f32 %v4722, 0.0
    %v4755 = vmax.f32 %v4723, 0.0
    %v4756 = vmax.f32 %v4724, 0.0
    %v4757 = vmax.f32 %v4725, 0.0
    %v4758 = vmax.f32 %v4726, 0.0
    %4759 = vst [vmem:[#allocation6] sm:$0xff] %v4727
    %4760 = vst [vmem:[#allocation6 + $0x8] sm:$0xff] %v4728
    %4761 = vst [vmem:[#allocation6 + $0x10] sm:$0xff] %v4729
    %4762 = vst [vmem:[#allocation6 + $0x18] sm:$0xff] %v4730
    %4763 = vst [vmem:[#allocation6 + $0x20] sm:$0xff] %v4731
    %4764 = vst [vmem:[#allocation6 + $0x28] sm:$0xff] %v4732
    %4765 = vst [vmem:[#allocation6 + $0x30] sm:$0xff] %v4733
    %4766 = vst [vmem:[#allocation6 + $0x38] sm:$0xff] %v4734
    %4767 = vst [vmem:[#allocation6 + $0x40] sm:$0xff] %v4735
    %4768 = vst [vmem:[#allocation6 + $0x48] sm:$0xff] %v4736
    %4769 = vst [vmem:[#allocation6 + $0x50] sm:$0xff] %v4737
    %4770 = vst [vmem:[#allocation6 + $0x58] sm:$0xff] %v4738
    %4771 = vst [vmem:[#allocation6 + $0x60] sm:$0xff] %v4739
    %4772 = vst [vmem:[#allocation6 + $0x68] sm:$0xff] %v4740
    %4773 = vst [vmem:[#allocation6 + $0x70] sm:$0xff] %v4741
    %4774 = vst [vmem:[#allocation6 + $0x78] sm:$0xff] %v4742
    %4775 = vst [vmem:[#allocation6 + $0x80] sm:$0xff] %v4743
    %4776 = vst [vmem:[#allocation6 + $0x88] sm:$0xff] %v4744
    %4777 = vst [vmem:[#allocation6 + $0x90] sm:$0xff] %v4745
    %4778 = vst [vmem:[#allocation6 + $0x98] sm:$0xff] %v4746
    %4779 = vst [vmem:[#allocation6 + $0xa0] sm:$0xff] %v4747
    %4780 = vst [vmem:[#allocation6 + $0xa8] sm:$0xff] %v4748
    %4781 = vst [vmem:[#allocation6 + $0xb0] sm:$0xff] %v4749
    %4782 = vst [vmem:[#allocation6 + $0xb8] sm:$0xff] %v4750
    %4783 = vst [vmem:[#allocation6 + $0xc0] sm:$0xff] %v4751
    %4784 = vst [vmem:[#allocation6 + $0xc8] sm:$0xff] %v4752
    %4785 = vst [vmem:[#allocation6 + $0xd0] sm:$0xff] %v4753
    %4786 = vst [vmem:[#allocation6 + $0xd8] sm:$0xff] %v4754
    %4787 = vst [vmem:[#allocation6 + $0xe0] sm:$0xff] %v4755
    %4788 = vst [vmem:[#allocation6 + $0xe8] sm:$0xff] %v4756
    %4789 = vst [vmem:[#allocation6 + $0xf0] sm:$0xff] %v4757
    %4790 = vst [vmem:[#allocation6 + $0xf8] sm:$0xff] %v4758
    %v4791 = vld [vmem:[#allocation6] sm:$0xff]
    %v4792 = vld [vmem:[#allocation6 + $0x8] sm:$0xff]
    %v4793 = vld [vmem:[#allocation6 + $0x10] sm:$0xff]
    %v4794 = vld [vmem:[#allocation6 + $0x18] sm:$0xff]
    %v4795 = vld [vmem:[#allocation6 + $0x20] sm:$0xff]
    %v4796 = vld [vmem:[#allocation6 + $0x28] sm:$0xff]
    %v4797 = vld [vmem:[#allocation6 + $0x30] sm:$0xff]
    %v4798 = vld [vmem:[#allocation6 + $0x38] sm:$0xff]
    %v4799 = vld [vmem:[#allocation6 + $0x40] sm:$0xff]
    %v4800 = vld [vmem:[#allocation6 + $0x48] sm:$0xff]
    %v4801 = vld [vmem:[#allocation6 + $0x50] sm:$0xff]
    %v4802 = vld [vmem:[#allocation6 + $0x58] sm:$0xff]
    %v4803 = vld [vmem:[#allocation6 + $0x60] sm:$0xff]
    %v4804 = vld [vmem:[#allocation6 + $0x68] sm:$0xff]
    %v4805 = vld [vmem:[#allocation6 + $0x70] sm:$0xff]
    %v4806 = vld [vmem:[#allocation6 + $0x78] sm:$0xff]
    %v4807 = vld [vmem:[#allocation6 + $0x80] sm:$0xff]
    %v4808 = vld [vmem:[#allocation6 + $0x88] sm:$0xff]
    %v4809 = vld [vmem:[#allocation6 + $0x90] sm:$0xff]
    %v4810 = vld [vmem:[#allocation6 + $0x98] sm:$0xff]
    %v4811 = vld [vmem:[#allocation6 + $0xa0] sm:$0xff]
    %v4812 = vld [vmem:[#allocation6 + $0xa8] sm:$0xff]
    %v4813 = vld [vmem:[#allocation6 + $0xb0] sm:$0xff]
    %v4814 = vld [vmem:[#allocation6 + $0xb8] sm:$0xff]
    %v4815 = vld [vmem:[#allocation6 + $0xc0] sm:$0xff]
    %v4816 = vld [vmem:[#allocation6 + $0xc8] sm:$0xff]
    %v4817 = vld [vmem:[#allocation6 + $0xd0] sm:$0xff]
    %v4818 = vld [vmem:[#allocation6 + $0xd8] sm:$0xff]
    %v4819 = vld [vmem:[#allocation6 + $0xe0] sm:$0xff]
    %v4820 = vld [vmem:[#allocation6 + $0xe8] sm:$0xff]
    %v4821 = vld [vmem:[#allocation6 + $0xf0] sm:$0xff]
    %v4822 = vld [vmem:[#allocation6 + $0xf8] sm:$0xff]
    %v4823 = vpack.c.bf16 %v4793, %v4791
    %v4824 = vpack.c.bf16 %v4794, %v4792
    %v4825 = vpack.c.bf16 %v4797, %v4795
    %v4826 = vpack.c.bf16 %v4798, %v4796
    %v4827 = vpack.c.bf16 %v4801, %v4799
    %v4828 = vpack.c.bf16 %v4802, %v4800
    %v4829 = vpack.c.bf16 %v4805, %v4803
    %v4830 = vpack.c.bf16 %v4806, %v4804
    %v4831 = vpack.c.bf16 %v4809, %v4807
    %v4832 = vpack.c.bf16 %v4810, %v4808
    %v4833 = vpack.c.bf16 %v4813, %v4811
    %v4834 = vpack.c.bf16 %v4814, %v4812
    %v4835 = vpack.c.bf16 %v4817, %v4815
    %v4836 = vpack.c.bf16 %v4818, %v4816
    %v4837 = vpack.c.bf16 %v4821, %v4819
    %v4838 = vpack.c.bf16 %v4822, %v4820
    %v4839 = vld [vmem:[#allocation11] sm:$0xf]
    %v4840 = vld [vmem:[#allocation11 + $0x4] sm:$0xf]
    %v4841 = vld [vmem:[#allocation11 + $0x8] sm:$0xf]
    %v4842 = vld [vmem:[#allocation11 + $0xc] sm:$0xf]
    %v4843 = vld [vmem:[#allocation11 + $0x10] sm:$0xf]
    %v4844 = vld [vmem:[#allocation11 + $0x14] sm:$0xf]
    %v4845 = vld [vmem:[#allocation11 + $0x18] sm:$0xf]
    %v4846 = vld [vmem:[#allocation11 + $0x1c] sm:$0xf]
    %v4847 = vld [vmem:[#allocation11 + $0x20] sm:$0xf]
    %v4848 = vld [vmem:[#allocation11 + $0x24] sm:$0xf]
    %v4849 = vld [vmem:[#allocation11 + $0x28] sm:$0xf]
    %v4850 = vld [vmem:[#allocation11 + $0x2c] sm:$0xf]
    %v4851 = vld [vmem:[#allocation11 + $0x30] sm:$0xf]
    %v4852 = vld [vmem:[#allocation11 + $0x34] sm:$0xf]
    %v4853 = vld [vmem:[#allocation11 + $0x38] sm:$0xf]
    %v4854 = vld [vmem:[#allocation11 + $0x3c] sm:$0xf]
    %v4855 = vld [vmem:[#allocation11 + $0x40] sm:$0xf]
    %v4856 = vld [vmem:[#allocation11 + $0x44] sm:$0xf]
    %v4857 = vld [vmem:[#allocation11 + $0x48] sm:$0xf]
    %v4858 = vld [vmem:[#allocation11 + $0x4c] sm:$0xf]
    %v4859 = vld [vmem:[#allocation11 + $0x50] sm:$0xf]
    %v4860 = vld [vmem:[#allocation11 + $0x54] sm:$0xf]
    %v4861 = vld [vmem:[#allocation11 + $0x58] sm:$0xf]
    %v4862 = vld [vmem:[#allocation11 + $0x5c] sm:$0xf]
    %v4863 = vld [vmem:[#allocation11 + $0x60] sm:$0xf]
    %v4864 = vld [vmem:[#allocation11 + $0x64] sm:$0xf]
    %v4865 = vld [vmem:[#allocation11 + $0x68] sm:$0xf]
    %v4866 = vld [vmem:[#allocation11 + $0x6c] sm:$0xf]
    %v4867 = vld [vmem:[#allocation11 + $0x70] sm:$0xf]
    %v4868 = vld [vmem:[#allocation11 + $0x74] sm:$0xf]
    %v4869 = vld [vmem:[#allocation11 + $0x78] sm:$0xf]
    %v4870 = vld [vmem:[#allocation11 + $0x7c] sm:$0xf]
    %v4871 = vld [vmem:[#allocation6] sm:$0xfe]
    %v4872 = vld [vmem:[#allocation6 + $0x8] sm:$0xfe]
    %v4873 = vld [vmem:[#allocation6 + $0x100] sm:$0x1]
    %v4874 = vld [vmem:[#allocation6 + $0x108] sm:$0x1]
    %v4875 = vpack.c.bf16 %v4793, %v4871
    %v4876 = vpack.c.bf16 %v4794, %v4872
    %v4877 = vpack.c.bf16 %v4873, %v4873
    %v4878 = vpack.c.bf16 %v4874, %v4874
    %s4879 = scalar_lea.vmem [#allocation11], 128
    %v4880 = vld [vmem:[%s4879] sm:$0xf]
    %v4881 = vld [vmem:[%s4879 + $0x4] sm:$0xf]
    %v4882 = vld [vmem:[%s4879 + $0x8] sm:$0xf]
    %v4883 = vld [vmem:[%s4879 + $0xc] sm:$0xf]
    %v4884 = vld [vmem:[%s4879 + $0x10] sm:$0xf]
    %v4885 = vld [vmem:[%s4879 + $0x14] sm:$0xf]
    %v4886 = vld [vmem:[%s4879 + $0x18] sm:$0xf]
    %v4887 = vld [vmem:[%s4879 + $0x1c] sm:$0xf]
    %v4888 = vld [vmem:[%s4879 + $0x20] sm:$0xf]
    %v4889 = vld [vmem:[%s4879 + $0x24] sm:$0xf]
    %v4890 = vld [vmem:[%s4879 + $0x28] sm:$0xf]
    %v4891 = vld [vmem:[%s4879 + $0x2c] sm:$0xf]
    %v4892 = vld [vmem:[%s4879 + $0x30] sm:$0xf]
    %v4893 = vld [vmem:[%s4879 + $0x34] sm:$0xf]
    %v4894 = vld [vmem:[%s4879 + $0x38] sm:$0xf]
    %v4895 = vld [vmem:[%s4879 + $0x3c] sm:$0xf]
    %v4896 = vld [vmem:[%s4879 + $0x40] sm:$0xf]
    %v4897 = vld [vmem:[%s4879 + $0x44] sm:$0xf]
    %v4898 = vld [vmem:[%s4879 + $0x48] sm:$0xf]
    %v4899 = vld [vmem:[%s4879 + $0x4c] sm:$0xf]
    %v4900 = vld [vmem:[%s4879 + $0x50] sm:$0xf]
    %v4901 = vld [vmem:[%s4879 + $0x54] sm:$0xf]
    %v4902 = vld [vmem:[%s4879 + $0x58] sm:$0xf]
    %v4903 = vld [vmem:[%s4879 + $0x5c] sm:$0xf]
    %v4904 = vld [vmem:[%s4879 + $0x60] sm:$0xf]
    %v4905 = vld [vmem:[%s4879 + $0x64] sm:$0xf]
    %v4906 = vld [vmem:[%s4879 + $0x68] sm:$0xf]
    %v4907 = vld [vmem:[%s4879 + $0x6c] sm:$0xf]
    %v4908 = vld [vmem:[%s4879 + $0x70] sm:$0xf]
    %v4909 = vld [vmem:[%s4879 + $0x74] sm:$0xf]
    %v4910 = vld [vmem:[%s4879 + $0x78] sm:$0xf]
    %v4911 = vld [vmem:[%s4879 + $0x7c] sm:$0xf]
    %v4913 = vshrl.u32 %v4875, 16
    %v4915 = vshll.u32 %v4875, 16
    %v4917 = vrot.slane %v4915, 1
    %v4918 = vor.u32 %v4913, %v4917
    %v4920 = vshll.u32 %v4825, 16
    %v4922 = vrot.slane %v4920, 1
    %v4923 = vsel %vm3086, %v4918, %v4922
    %v4925 = vshrl.u32 %v4876, 16
    %v4927 = vshll.u32 %v4876, 16
    %v4929 = vrot.slane %v4927, 1
    %v4930 = vor.u32 %v4925, %v4929
    %v4932 = vshll.u32 %v4826, 16
    %v4934 = vrot.slane %v4932, 1
    %v4935 = vsel %vm3086, %v4930, %v4934
    %v4936 = vshrl.u32 %v4825, 16
    %v4938 = vor.u32 %v4936, %v4922
    %v4940 = vshll.u32 %v4827, 16
    %v4942 = vrot.slane %v4940, 1
    %v4943 = vsel %vm3086, %v4938, %v4942
    %v4944 = vshrl.u32 %v4826, 16
    %v4946 = vor.u32 %v4944, %v4934
    %v4948 = vshll.u32 %v4828, 16
    %v4950 = vrot.slane %v4948, 1
    %v4951 = vsel %vm3086, %v4946, %v4950
    %v4952 = vshrl.u32 %v4827, 16
    %v4954 = vor.u32 %v4952, %v4942
    %v4956 = vshll.u32 %v4829, 16
    %v4958 = vrot.slane %v4956, 1
    %v4959 = vsel %vm3086, %v4954, %v4958
    %v4960 = vshrl.u32 %v4828, 16
    %v4962 = vor.u32 %v4960, %v4950
    %v4964 = vshll.u32 %v4830, 16
    %v4966 = vrot.slane %v4964, 1
    %v4967 = vsel %vm3086, %v4962, %v4966
    %v4968 = vshrl.u32 %v4829, 16
    %v4970 = vor.u32 %v4968, %v4958
    %v4972 = vshll.u32 %v4831, 16
    %v4974 = vrot.slane %v4972, 1
    %v4975 = vsel %vm3086, %v4970, %v4974
    %v4976 = vshrl.u32 %v4830, 16
    %v4978 = vor.u32 %v4976, %v4966
    %v4980 = vshll.u32 %v4832, 16
    %v4982 = vrot.slane %v4980, 1
    %v4983 = vsel %vm3086, %v4978, %v4982
    %v4984 = vshrl.u32 %v4831, 16
    %v4986 = vor.u32 %v4984, %v4974
    %v4988 = vshll.u32 %v4833, 16
    %v4990 = vrot.slane %v4988, 1
    %v4991 = vsel %vm3086, %v4986, %v4990
    %v4992 = vshrl.u32 %v4832, 16
    %v4994 = vor.u32 %v4992, %v4982
    %v4996 = vshll.u32 %v4834, 16
    %v4998 = vrot.slane %v4996, 1
    %v4999 = vsel %vm3086, %v4994, %v4998
    %v5000 = vshrl.u32 %v4833, 16
    %v5002 = vor.u32 %v5000, %v4990
    %v5004 = vshll.u32 %v4835, 16
    %v5006 = vrot.slane %v5004, 1
    %v5007 = vsel %vm3086, %v5002, %v5006
    %v5008 = vshrl.u32 %v4834, 16
    %v5010 = vor.u32 %v5008, %v4998
    %v5012 = vshll.u32 %v4836, 16
    %v5014 = vrot.slane %v5012, 1
    %v5015 = vsel %vm3086, %v5010, %v5014
    %v5016 = vshrl.u32 %v4835, 16
    %v5018 = vor.u32 %v5016, %v5006
    %v5020 = vshll.u32 %v4837, 16
    %v5022 = vrot.slane %v5020, 1
    %v5023 = vsel %vm3086, %v5018, %v5022
    %v5024 = vshrl.u32 %v4836, 16
    %v5026 = vor.u32 %v5024, %v5014
    %v5028 = vshll.u32 %v4838, 16
    %v5030 = vrot.slane %v5028, 1
    %v5031 = vsel %vm3086, %v5026, %v5030
    %v5032 = vshrl.u32 %v4837, 16
    %v5034 = vor.u32 %v5032, %v5022
    %v5036 = vshll.u32 %v4877, 16
    %v5038 = vrot.slane %v5036, 1
    %v5039 = vsel %vm3086, %v5034, %v5038
    %v5040 = vshrl.u32 %v4838, 16
    %v5042 = vor.u32 %v5040, %v5030
    %v5044 = vshll.u32 %v4878, 16
    %v5046 = vrot.slane %v5044, 1
    %v5047 = vsel %vm3086, %v5042, %v5046
    %v5096 = vunpack.c.l.b16 %v4880
    %v5097 = vunpack.c.l.b16 %v4881
    %v5098 = vunpack.c.l.b16 %v4882
    %v5099 = vunpack.c.l.b16 %v4883
    %v5100 = vunpack.c.l.b16 %v4884
    %v5101 = vunpack.c.l.b16 %v4885
    %v5102 = vunpack.c.l.b16 %v4886
    %v5103 = vunpack.c.l.b16 %v4887
    %v5104 = vunpack.c.l.b16 %v4888
    %v5105 = vunpack.c.l.b16 %v4889
    %v5106 = vunpack.c.l.b16 %v4890
    %v5107 = vunpack.c.l.b16 %v4891
    %v5108 = vunpack.c.l.b16 %v4892
    %v5109 = vunpack.c.l.b16 %v4893
    %v5110 = vunpack.c.l.b16 %v4894
    %v5111 = vunpack.c.l.b16 %v4895
    %v5112 = vunpack.c.l.b16 %v4896
    %v5113 = vunpack.c.l.b16 %v4897
    %v5114 = vunpack.c.l.b16 %v4898
    %v5115 = vunpack.c.l.b16 %v4899
    %v5116 = vunpack.c.l.b16 %v4900
    %v5117 = vunpack.c.l.b16 %v4901
    %v5118 = vunpack.c.l.b16 %v4902
    %v5119 = vunpack.c.l.b16 %v4903
    %v5120 = vunpack.c.l.b16 %v4904
    %v5121 = vunpack.c.l.b16 %v4905
    %v5122 = vunpack.c.l.b16 %v4906
    %v5123 = vunpack.c.l.b16 %v4907
    %v5124 = vunpack.c.l.b16 %v4908
    %v5125 = vunpack.c.l.b16 %v4909
    %v5126 = vunpack.c.l.b16 %v4910
    %v5127 = vunpack.c.l.b16 %v4911
    %v5128 = vpack.c.b16 %v5097, %v5096
    %v5129 = vpack.c.b16 %v5099, %v5098
    %v5130 = vpack.c.b16 %v5101, %v5100
    %v5131 = vpack.c.b16 %v5103, %v5102
    %v5132 = vpack.c.b16 %v5105, %v5104
    %v5133 = vpack.c.b16 %v5107, %v5106
    %v5134 = vpack.c.b16 %v5109, %v5108
    %v5135 = vpack.c.b16 %v5111, %v5110
    %v5136 = vpack.c.b16 %v5113, %v5112
    %v5137 = vpack.c.b16 %v5115, %v5114
    %v5138 = vpack.c.b16 %v5117, %v5116
    %v5139 = vpack.c.b16 %v5119, %v5118
    %v5140 = vpack.c.b16 %v5121, %v5120
    %v5141 = vpack.c.b16 %v5123, %v5122
    %v5142 = vpack.c.b16 %v5125, %v5124
    %v5143 = vpack.c.b16 %v5127, %v5126
    %5160 = vmatprep.subr.bf16.mxu0 0
    %5161 = vmatpush1.bf16.msra.mxu0 %v5128
    %5162 = vmatprep.subr.bf16.mxu0 0
    %5163 = vmatpush1.bf16.msra.mxu0 %v5129
    %5164 = vmatprep.subr.bf16.mxu0 0
    %5165 = vmatpush1.bf16.msra.mxu0 %v5130
    %5166 = vmatprep.subr.bf16.mxu0 0
    %5167 = vmatpush1.bf16.msra.mxu0 %v5131
    %5168 = vmatprep.subr.bf16.mxu0 0
    %5169 = vmatpush1.bf16.msra.mxu0 %v5132
    %5170 = vmatprep.subr.bf16.mxu0 0
    %5171 = vmatpush1.bf16.msra.mxu0 %v5133
    %5172 = vmatprep.subr.bf16.mxu0 0
    %5173 = vmatpush1.bf16.msra.mxu0 %v5134
    %5174 = vmatprep.subr.bf16.mxu0 0
    %5175 = vmatpush1.bf16.msra.mxu0 %v5135
    %5176 = vmatprep.subr.bf16.mxu0 0
    %5177 = vmatpush1.bf16.msra.mxu0 %v5136
    %5178 = vmatprep.subr.bf16.mxu0 0
    %5179 = vmatpush1.bf16.msra.mxu0 %v5137
    %5180 = vmatprep.subr.bf16.mxu0 0
    %5181 = vmatpush1.bf16.msra.mxu0 %v5138
    %5182 = vmatprep.subr.bf16.mxu0 0
    %5183 = vmatpush1.bf16.msra.mxu0 %v5139
    %5184 = vmatprep.subr.bf16.mxu0 0
    %5185 = vmatpush1.bf16.msra.mxu0 %v5140
    %5186 = vmatprep.subr.bf16.mxu0 0
    %5187 = vmatpush1.bf16.msra.mxu0 %v5141
    %5188 = vmatprep.subr.bf16.mxu0 0
    %5189 = vmatpush1.bf16.msra.mxu0 %v5142
    %5190 = vmatprep.subr.bf16.mxu0 0
    %5191 = vmatpush1.bf16.msra.mxu0 %v5143
    %5192 = vmatprep.mubr.bf16.mxu0 %v4935
    %5193 = vmatmul.mubr.bf16.gmra.mrb[0].mxu0 %v4923
    %v5194 = vpop.f32.mrb[0].mxu0
    %v5195 = vadd.f32 0.0, %v5194
    %v5196 = vpop.f32.mrb[0].mxu0
    %v5197 = vpop.f32.mrb[0].mxu0
    %v5198 = vadd.f32 0.0, %v5197
    %v5199 = vpop.f32.mrb[0].mxu0
    %5200 = vmatprep.mubr.bf16.mxu0 %v4951
    %5201 = vmatmul.mubr.bf16.gmra.mrb[0].mxu0 %v4943
    %v5202 = vpop.f32.mrb[0].mxu0
    %v5203 = vadd.f32 0.0, %v5202
    %v5204 = vpop.f32.mrb[0].mxu0
    %v5205 = vpop.f32.mrb[0].mxu0
    %v5206 = vadd.f32 0.0, %v5205
    %v5207 = vpop.f32.mrb[0].mxu0
    %5208 = vmatprep.mubr.bf16.mxu0 %v4967
    %5209 = vmatmul.mubr.bf16.gmra.mrb[0].mxu0 %v4959
    %v5210 = vpop.f32.mrb[0].mxu0
    %v5211 = vadd.f32 0.0, %v5210
    %v5212 = vpop.f32.mrb[0].mxu0
    %v5213 = vpop.f32.mrb[0].mxu0
    %v5214 = vadd.f32 0.0, %v5213
    %v5215 = vpop.f32.mrb[0].mxu0
    %5216 = vmatprep.mubr.bf16.mxu0 %v4983
    %5217 = vmatmul.mubr.bf16.gmra.mrb[0].mxu0 %v4975
    %v5218 = vpop.f32.mrb[0].mxu0
    %v5219 = vadd.f32 0.0, %v5218
    %v5220 = vpop.f32.mrb[0].mxu0
    %v5221 = vpop.f32.mrb[0].mxu0
    %v5222 = vadd.f32 0.0, %v5221
    %v5223 = vpop.f32.mrb[0].mxu0
    %5224 = vmatprep.mubr.bf16.mxu0 %v4999
    %5225 = vmatmul.mubr.bf16.gmra.mrb[0].mxu0 %v4991
    %v5226 = vpop.f32.mrb[0].mxu0
    %v5227 = vadd.f32 0.0, %v5226
    %v5228 = vpop.f32.mrb[0].mxu0
    %v5229 = vpop.f32.mrb[0].mxu0
    %v5230 = vadd.f32 0.0, %v5229
    %v5231 = vpop.f32.mrb[0].mxu0
    %5232 = vmatprep.mubr.bf16.mxu0 %v5015
    %5233 = vmatmul.mubr.bf16.gmra.mrb[0].mxu0 %v5007
    %v5234 = vpop.f32.mrb[0].mxu0
    %v5235 = vadd.f32 0.0, %v5234
    %v5236 = vpop.f32.mrb[0].mxu0
    %v5237 = vpop.f32.mrb[0].mxu0
    %v5238 = vadd.f32 0.0, %v5237
    %v5239 = vpop.f32.mrb[0].mxu0
    %5240 = vmatprep.mubr.bf16.mxu0 %v5031
    %5241 = vmatmul.mubr.bf16.gmra.mrb[0].mxu0 %v5023
    %v5242 = vpop.f32.mrb[0].mxu0
    %v5243 = vadd.f32 0.0, %v5242
    %v5244 = vpop.f32.mrb[0].mxu0
    %v5245 = vpop.f32.mrb[0].mxu0
    %v5246 = vadd.f32 0.0, %v5245
    %v5247 = vpop.f32.mrb[0].mxu0
    %5248 = vmatprep.mubr.bf16.mxu0 %v5047
    %5249 = vmatmul.mubr.bf16.gmra.mrb[0].mxu0 %v5039
    %v5250 = vpop.f32.mrb[0].mxu0
    %v5251 = vadd.f32 0.0, %v5250
    %v5252 = vpop.f32.mrb[0].mxu0
    %v5253 = vpop.f32.mrb[0].mxu0
    %v5254 = vadd.f32 0.0, %v5253
    %v5255 = vpop.f32.mrb[0].mxu0
    %5256 = vdwg.mxu0
    %v5289 = vunpack.c.l.b16 %v4839
    %v5290 = vunpack.c.l.b16 %v4840
    %v5291 = vunpack.c.l.b16 %v4841
    %v5292 = vunpack.c.l.b16 %v4842
    %v5293 = vunpack.c.l.b16 %v4843
    %v5294 = vunpack.c.l.b16 %v4844
    %v5295 = vunpack.c.l.b16 %v4845
    %v5296 = vunpack.c.l.b16 %v4846
    %v5297 = vunpack.c.l.b16 %v4847
    %v5298 = vunpack.c.l.b16 %v4848
    %v5299 = vunpack.c.l.b16 %v4849
    %v5300 = vunpack.c.l.b16 %v4850
    %v5301 = vunpack.c.l.b16 %v4851
    %v5302 = vunpack.c.l.b16 %v4852
    %v5303 = vunpack.c.l.b16 %v4853
    %v5304 = vunpack.c.l.b16 %v4854
    %v5305 = vunpack.c.l.b16 %v4855
    %v5306 = vunpack.c.l.b16 %v4856
    %v5307 = vunpack.c.l.b16 %v4857
    %v5308 = vunpack.c.l.b16 %v4858
    %v5309 = vunpack.c.l.b16 %v4859
    %v5310 = vunpack.c.l.b16 %v4860
    %v5311 = vunpack.c.l.b16 %v4861
    %v5312 = vunpack.c.l.b16 %v4862
    %v5313 = vunpack.c.l.b16 %v4863
    %v5314 = vunpack.c.l.b16 %v4864
    %v5315 = vunpack.c.l.b16 %v4865
    %v5316 = vunpack.c.l.b16 %v4866
    %v5317 = vunpack.c.l.b16 %v4867
    %v5318 = vunpack.c.l.b16 %v4868
    %v5319 = vunpack.c.l.b16 %v4869
    %v5320 = vunpack.c.l.b16 %v4870
    %v5321 = vpack.c.b16 %v5290, %v5289
    %v5322 = vpack.c.b16 %v5292, %v5291
    %v5323 = vpack.c.b16 %v5294, %v5293
    %v5324 = vpack.c.b16 %v5296, %v5295
    %v5325 = vpack.c.b16 %v5298, %v5297
    %v5326 = vpack.c.b16 %v5300, %v5299
    %v5327 = vpack.c.b16 %v5302, %v5301
    %v5328 = vpack.c.b16 %v5304, %v5303
    %v5329 = vpack.c.b16 %v5306, %v5305
    %v5330 = vpack.c.b16 %v5308, %v5307
    %v5331 = vpack.c.b16 %v5310, %v5309
    %v5332 = vpack.c.b16 %v5312, %v5311
    %v5333 = vpack.c.b16 %v5314, %v5313
    %v5334 = vpack.c.b16 %v5316, %v5315
    %v5335 = vpack.c.b16 %v5318, %v5317
    %v5336 = vpack.c.b16 %v5320, %v5319
    %5353 = vmatprep.subr.bf16.mxu0 0
    %5354 = vmatpush1.bf16.msra.mxu0 %v5321
    %5355 = vmatprep.subr.bf16.mxu0 0
    %5356 = vmatpush1.bf16.msra.mxu0 %v5322
    %5357 = vmatprep.subr.bf16.mxu0 0
    %5358 = vmatpush1.bf16.msra.mxu0 %v5323
    %5359 = vmatprep.subr.bf16.mxu0 0
    %5360 = vmatpush1.bf16.msra.mxu0 %v5324
    %5361 = vmatprep.subr.bf16.mxu0 0
    %5362 = vmatpush1.bf16.msra.mxu0 %v5325
    %5363 = vmatprep.subr.bf16.mxu0 0
    %5364 = vmatpush1.bf16.msra.mxu0 %v5326
    %5365 = vmatprep.subr.bf16.mxu0 0
    %5366 = vmatpush1.bf16.msra.mxu0 %v5327
    %5367 = vmatprep.subr.bf16.mxu0 0
    %5368 = vmatpush1.bf16.msra.mxu0 %v5328
    %5369 = vmatprep.subr.bf16.mxu0 0
    %5370 = vmatpush1.bf16.msra.mxu0 %v5329
    %5371 = vmatprep.subr.bf16.mxu0 0
    %5372 = vmatpush1.bf16.msra.mxu0 %v5330
    %5373 = vmatprep.subr.bf16.mxu0 0
    %5374 = vmatpush1.bf16.msra.mxu0 %v5331
    %5375 = vmatprep.subr.bf16.mxu0 0
    %5376 = vmatpush1.bf16.msra.mxu0 %v5332
    %5377 = vmatprep.subr.bf16.mxu0 0
    %5378 = vmatpush1.bf16.msra.mxu0 %v5333
    %5379 = vmatprep.subr.bf16.mxu0 0
    %5380 = vmatpush1.bf16.msra.mxu0 %v5334
    %5381 = vmatprep.subr.bf16.mxu0 0
    %5382 = vmatpush1.bf16.msra.mxu0 %v5335
    %5383 = vmatprep.subr.bf16.mxu0 0
    %5384 = vmatpush1.bf16.msra.mxu0 %v5336
    %5385 = vmatprep.mubr.bf16.mxu0 %v4824
    %5386 = vmatmul.mubr.bf16.gmra.mrb[0].mxu0 %v4823
    %v5387 = vpop.f32.mrb[0].mxu0
    %v5388 = vadd.f32 %v5195, %v5387
    %v5389 = vpop.f32.mrb[0].mxu0
    %v5390 = vpop.f32.mrb[0].mxu0
    %v5391 = vadd.f32 %v5198, %v5390
    %v5392 = vpop.f32.mrb[0].mxu0
    %5393 = vmatprep.mubr.bf16.mxu0 %v4826
    %5394 = vmatmul.mubr.bf16.gmra.mrb[0].mxu0 %v4825
    %v5395 = vpop.f32.mrb[0].mxu0
    %v5396 = vadd.f32 %v5203, %v5395
    %v5397 = vpop.f32.mrb[0].mxu0
    %v5398 = vpop.f32.mrb[0].mxu0
    %v5399 = vadd.f32 %v5206, %v5398
    %v5400 = vpop.f32.mrb[0].mxu0
    %5401 = vmatprep.mubr.bf16.mxu0 %v4828
    %5402 = vmatmul.mubr.bf16.gmra.mrb[0].mxu0 %v4827
    %v5403 = vpop.f32.mrb[0].mxu0
    %v5404 = vadd.f32 %v5211, %v5403
    %v5405 = vpop.f32.mrb[0].mxu0
    %v5406 = vpop.f32.mrb[0].mxu0
    %v5407 = vadd.f32 %v5214, %v5406
    %v5408 = vpop.f32.mrb[0].mxu0
    %5409 = vmatprep.mubr.bf16.mxu0 %v4830
    %5410 = vmatmul.mubr.bf16.gmra.mrb[0].mxu0 %v4829
    %v5411 = vpop.f32.mrb[0].mxu0
    %v5412 = vadd.f32 %v5219, %v5411
    %v5413 = vpop.f32.mrb[0].mxu0
    %v5414 = vpop.f32.mrb[0].mxu0
    %v5415 = vadd.f32 %v5222, %v5414
    %v5416 = vpop.f32.mrb[0].mxu0
    %5417 = vmatprep.mubr.bf16.mxu0 %v4832
    %5418 = vmatmul.mubr.bf16.gmra.mrb[0].mxu0 %v4831
    %v5419 = vpop.f32.mrb[0].mxu0
    %v5420 = vadd.f32 %v5227, %v5419
    %v5421 = vpop.f32.mrb[0].mxu0
    %v5422 = vpop.f32.mrb[0].mxu0
    %v5423 = vadd.f32 %v5230, %v5422
    %v5424 = vpop.f32.mrb[0].mxu0
    %5425 = vmatprep.mubr.bf16.mxu0 %v4834
    %5426 = vmatmul.mubr.bf16.gmra.mrb[0].mxu0 %v4833
    %v5427 = vpop.f32.mrb[0].mxu0
    %v5428 = vadd.f32 %v5235, %v5427
    %v5429 = vpop.f32.mrb[0].mxu0
    %v5430 = vpop.f32.mrb[0].mxu0
    %v5431 = vadd.f32 %v5238, %v5430
    %v5432 = vpop.f32.mrb[0].mxu0
    %5433 = vmatprep.mubr.bf16.mxu0 %v4836
    %5434 = vmatmul.mubr.bf16.gmra.mrb[0].mxu0 %v4835
    %v5435 = vpop.f32.mrb[0].mxu0
    %v5436 = vadd.f32 %v5243, %v5435
    %v5437 = vpop.f32.mrb[0].mxu0
    %v5438 = vpop.f32.mrb[0].mxu0
    %v5439 = vadd.f32 %v5246, %v5438
    %v5440 = vpop.f32.mrb[0].mxu0
    %5441 = vmatprep.mubr.bf16.mxu0 %v4838
    %5442 = vmatmul.mubr.bf16.gmra.mrb[0].mxu0 %v4837
    %v5443 = vpop.f32.mrb[0].mxu0
    %v5444 = vadd.f32 %v5251, %v5443
    %v5445 = vpop.f32.mrb[0].mxu0
    %v5446 = vpop.f32.mrb[0].mxu0
    %v5447 = vadd.f32 %v5254, %v5446
    %v5448 = vpop.f32.mrb[0].mxu0
    %5449 = vdwg.mxu0
    %v5450 = vld [vmem:[#allocation6] sm:$0xfc]
    %v5451 = vld [vmem:[#allocation6 + $0x8] sm:$0xfc]
    %v5452 = vld [vmem:[#allocation6 + $0x100] sm:$0x3]
    %v5453 = vld [vmem:[#allocation6 + $0x108] sm:$0x3]
    %v5454 = vpack.c.bf16 %v4793, %v5450
    %v5455 = vpack.c.bf16 %v4794, %v5451
    %v5456 = vpack.c.bf16 %v5452, %v5452
    %v5457 = vpack.c.bf16 %v5453, %v5453
    %s5458 = scalar_lea.vmem [#allocation11], 256
    %v5459 = vld [vmem:[%s5458] sm:$0xf]
    %v5460 = vld [vmem:[%s5458 + $0x4] sm:$0xf]
    %v5461 = vld [vmem:[%s5458 + $0x8] sm:$0xf]
    %v5462 = vld [vmem:[%s5458 + $0xc] sm:$0xf]
    %v5463 = vld [vmem:[%s5458 + $0x10] sm:$0xf]
    %v5464 = vld [vmem:[%s5458 + $0x14] sm:$0xf]
    %v5465 = vld [vmem:[%s5458 + $0x18] sm:$0xf]
    %v5466 = vld [vmem:[%s5458 + $0x1c] sm:$0xf]
    %v5467 = vld [vmem:[%s5458 + $0x20] sm:$0xf]
    %v5468 = vld [vmem:[%s5458 + $0x24] sm:$0xf]
    %v5469 = vld [vmem:[%s5458 + $0x28] sm:$0xf]
    %v5470 = vld [vmem:[%s5458 + $0x2c] sm:$0xf]
    %v5471 = vld [vmem:[%s5458 + $0x30] sm:$0xf]
    %v5472 = vld [vmem:[%s5458 + $0x34] sm:$0xf]
    %v5473 = vld [vmem:[%s5458 + $0x38] sm:$0xf]
    %v5474 = vld [vmem:[%s5458 + $0x3c] sm:$0xf]
    %v5475 = vld [vmem:[%s5458 + $0x40] sm:$0xf]
    %v5476 = vld [vmem:[%s5458 + $0x44] sm:$0xf]
    %v5477 = vld [vmem:[%s5458 + $0x48] sm:$0xf]
    %v5478 = vld [vmem:[%s5458 + $0x4c] sm:$0xf]
    %v5479 = vld [vmem:[%s5458 + $0x50] sm:$0xf]
    %v5480 = vld [vmem:[%s5458 + $0x54] sm:$0xf]
    %v5481 = vld [vmem:[%s5458 + $0x58] sm:$0xf]
    %v5482 = vld [vmem:[%s5458 + $0x5c] sm:$0xf]
    %v5483 = vld [vmem:[%s5458 + $0x60] sm:$0xf]
    %v5484 = vld [vmem:[%s5458 + $0x64] sm:$0xf]
    %v5485 = vld [vmem:[%s5458 + $0x68] sm:$0xf]
    %v5486 = vld [vmem:[%s5458 + $0x6c] sm:$0xf]
    %v5487 = vld [vmem:[%s5458 + $0x70] sm:$0xf]
    %v5488 = vld [vmem:[%s5458 + $0x74] sm:$0xf]
    %v5489 = vld [vmem:[%s5458 + $0x78] sm:$0xf]
    %v5490 = vld [vmem:[%s5458 + $0x7c] sm:$0xf]
    %vm5509 = vcmask 1046528
    %v5510 = vrot.slane %v5454, 1
    %v5511 = vrot.slane %v4825, 1
    %v5512 = vsel %vm5509, %v5510, %v5511
    %v5513 = vrot.slane %v5455, 1
    %v5514 = vrot.slane %v4826, 1
    %v5515 = vsel %vm5509, %v5513, %v5514
    %v5516 = vrot.slane %v4827, 1
    %v5517 = vsel %vm5509, %v5511, %v5516
    %v5518 = vrot.slane %v4828, 1
    %v5519 = vsel %vm5509, %v5514, %v5518
    %v5520 = vrot.slane %v4829, 1
    %v5521 = vsel %vm5509, %v5516, %v5520
    %v5522 = vrot.slane %v4830, 1
    %v5523 = vsel %vm5509, %v5518, %v5522
    %v5524 = vrot.slane %v4831, 1
    %v5525 = vsel %vm5509, %v5520, %v5524
    %v5526 = vrot.slane %v4832, 1
    %v5527 = vsel %vm5509, %v5522, %v5526
    %v5528 = vrot.slane %v4833, 1
    %v5529 = vsel %vm5509, %v5524, %v5528
    %v5530 = vrot.slane %v4834, 1
    %v5531 = vsel %vm5509, %v5526, %v5530
    %v5532 = vrot.slane %v4835, 1
    %v5533 = vsel %vm5509, %v5528, %v5532
    %v5534 = vrot.slane %v4836, 1
    %v5535 = vsel %vm5509, %v5530, %v5534
    %v5536 = vrot.slane %v4837, 1
    %v5537 = vsel %vm5509, %v5532, %v5536
    %v5538 = vrot.slane %v4838, 1
    %v5539 = vsel %vm5509, %v5534, %v5538
    %v5540 = vrot.slane %v5456, 1
    %v5541 = vsel %vm5509, %v5536, %v5540
    %v5542 = vrot.slane %v5457, 1
    %v5543 = vsel %vm5509, %v5538, %v5542
    %v5592 = vunpack.c.l.b16 %v5459
    %v5593 = vunpack.c.l.b16 %v5460
    %v5594 = vunpack.c.l.b16 %v5461
    %v5595 = vunpack.c.l.b16 %v5462
    %v5596 = vunpack.c.l.b16 %v5463
    %v5597 = vunpack.c.l.b16 %v5464
    %v5598 = vunpack.c.l.b16 %v5465
    %v5599 = vunpack.c.l.b16 %v5466
    %v5600 = vunpack.c.l.b16 %v5467
    %v5601 = vunpack.c.l.b16 %v5468
    %v5602 = vunpack.c.l.b16 %v5469
    %v5603 = vunpack.c.l.b16 %v5470
    %v5604 = vunpack.c.l.b16 %v5471
    %v5605 = vunpack.c.l.b16 %v5472
    %v5606 = vunpack.c.l.b16 %v5473
    %v5607 = vunpack.c.l.b16 %v5474
    %v5608 = vunpack.c.l.b16 %v5475
    %v5609 = vunpack.c.l.b16 %v5476
    %v5610 = vunpack.c.l.b16 %v5477
    %v5611 = vunpack.c.l.b16 %v5478
    %v5612 = vunpack.c.l.b16 %v5479
    %v5613 = vunpack.c.l.b16 %v5480
    %v5614 = vunpack.c.l.b16 %v5481
    %v5615 = vunpack.c.l.b16 %v5482
    %v5616 = vunpack.c.l.b16 %v5483
    %v5617 = vunpack.c.l.b16 %v5484
    %v5618 = vunpack.c.l.b16 %v5485
    %v5619 = vunpack.c.l.b16 %v5486
    %v5620 = vunpack.c.l.b16 %v5487
    %v5621 = vunpack.c.l.b16 %v5488
    %v5622 = vunpack.c.l.b16 %v5489
    %v5623 = vunpack.c.l.b16 %v5490
    %v5624 = vpack.c.b16 %v5593, %v5592
    %v5625 = vpack.c.b16 %v5595, %v5594
    %v5626 = vpack.c.b16 %v5597, %v5596
    %v5627 = vpack.c.b16 %v5599, %v5598
    %v5628 = vpack.c.b16 %v5601, %v5600
    %v5629 = vpack.c.b16 %v5603, %v5602
    %v5630 = vpack.c.b16 %v5605, %v5604
    %v5631 = vpack.c.b16 %v5607, %v5606
    %v5632 = vpack.c.b16 %v5609, %v5608
    %v5633 = vpack.c.b16 %v5611, %v5610
    %v5634 = vpack.c.b16 %v5613, %v5612
    %v5635 = vpack.c.b16 %v5615, %v5614
    %v5636 = vpack.c.b16 %v5617, %v5616
    %v5637 = vpack.c.b16 %v5619, %v5618
    %v5638 = vpack.c.b16 %v5621, %v5620
    %v5639 = vpack.c.b16 %v5623, %v5622
    %5656 = vmatprep.subr.bf16.mxu0 0
    %5657 = vmatpush1.bf16.msra.mxu0 %v5624
    %5658 = vmatprep.subr.bf16.mxu0 0
    %5659 = vmatpush1.bf16.msra.mxu0 %v5625
    %5660 = vmatprep.subr.bf16.mxu0 0
    %5661 = vmatpush1.bf16.msra.mxu0 %v5626
    %5662 = vmatprep.subr.bf16.mxu0 0
    %5663 = vmatpush1.bf16.msra.mxu0 %v5627
    %5664 = vmatprep.subr.bf16.mxu0 0
    %5665 = vmatpush1.bf16.msra.mxu0 %v5628
    %5666 = vmatprep.subr.bf16.mxu0 0
    %5667 = vmatpush1.bf16.msra.mxu0 %v5629
    %5668 = vmatprep.subr.bf16.mxu0 0
    %5669 = vmatpush1.bf16.msra.mxu0 %v5630
    %5670 = vmatprep.subr.bf16.mxu0 0
    %5671 = vmatpush1.bf16.msra.mxu0 %v5631
    %5672 = vmatprep.subr.bf16.mxu0 0
    %5673 = vmatpush1.bf16.msra.mxu0 %v5632
    %5674 = vmatprep.subr.bf16.mxu0 0
    %5675 = vmatpush1.bf16.msra.mxu0 %v5633
    %5676 = vmatprep.subr.bf16.mxu0 0
    %5677 = vmatpush1.bf16.msra.mxu0 %v5634
    %5678 = vmatprep.subr.bf16.mxu0 0
    %5679 = vmatpush1.bf16.msra.mxu0 %v5635
    %5680 = vmatprep.subr.bf16.mxu0 0
    %5681 = vmatpush1.bf16.msra.mxu0 %v5636
    %5682 = vmatprep.subr.bf16.mxu0 0
    %5683 = vmatpush1.bf16.msra.mxu0 %v5637
    %5684 = vmatprep.subr.bf16.mxu0 0
    %5685 = vmatpush1.bf16.msra.mxu0 %v5638
    %5686 = vmatprep.subr.bf16.mxu0 0
    %5687 = vmatpush1.bf16.msra.mxu0 %v5639
    %5688 = vmatprep.mubr.bf16.mxu0 %v5515
    %5689 = vmatmul.mubr.bf16.gmra.mrb[0].mxu0 %v5512
    %v5690 = vpop.f32.mrb[0].mxu0
    %v5691 = vadd.f32 0.0, %v5690
    %v5692 = vpop.f32.mrb[0].mxu0
    %v5693 = vpop.f32.mrb[0].mxu0
    %v5694 = vadd.f32 0.0, %v5693
    %v5695 = vpop.f32.mrb[0].mxu0
    %5696 = vmatprep.mubr.bf16.mxu0 %v5519
    %5697 = vmatmul.mubr.bf16.gmra.mrb[0].mxu0 %v5517
    %v5698 = vpop.f32.mrb[0].mxu0
    %v5699 = vadd.f32 0.0, %v5698
    %v5700 = vpop.f32.mrb[0].mxu0
    %v5701 = vpop.f32.mrb[0].mxu0
    %v5702 = vadd.f32 0.0, %v5701
    %v5703 = vpop.f32.mrb[0].mxu0
    %5704 = vmatprep.mubr.bf16.mxu0 %v5523
    %5705 = vmatmul.mubr.bf16.gmra.mrb[0].mxu0 %v5521
    %v5706 = vpop.f32.mrb[0].mxu0
    %v5707 = vadd.f32 0.0, %v5706
    %v5708 = vpop.f32.mrb[0].mxu0
    %v5709 = vpop.f32.mrb[0].mxu0
    %v5710 = vadd.f32 0.0, %v5709
    %v5711 = vpop.f32.mrb[0].mxu0
    %5712 = vmatprep.mubr.bf16.mxu0 %v5527
    %5713 = vmatmul.mubr.bf16.gmra.mrb[0].mxu0 %v5525
    %v5714 = vpop.f32.mrb[0].mxu0
    %v5715 = vadd.f32 0.0, %v5714
    %v5716 = vpop.f32.mrb[0].mxu0
    %v5717 = vpop.f32.mrb[0].mxu0
    %v5718 = vadd.f32 0.0, %v5717
    %v5719 = vpop.f32.mrb[0].mxu0
    %5720 = vmatprep.mubr.bf16.mxu0 %v5531
    %5721 = vmatmul.mubr.bf16.gmra.mrb[0].mxu0 %v5529
    %v5722 = vpop.f32.mrb[0].mxu0
    %v5723 = vadd.f32 0.0, %v5722
    %v5724 = vpop.f32.mrb[0].mxu0
    %v5725 = vpop.f32.mrb[0].mxu0
    %v5726 = vadd.f32 0.0, %v5725
    %v5727 = vpop.f32.mrb[0].mxu0
    %5728 = vmatprep.mubr.bf16.mxu0 %v5535
    %5729 = vmatmul.mubr.bf16.gmra.mrb[0].mxu0 %v5533
    %v5730 = vpop.f32.mrb[0].mxu0
    %v5731 = vadd.f32 0.0, %v5730
    %v5732 = vpop.f32.mrb[0].mxu0
    %v5733 = vpop.f32.mrb[0].mxu0
    %v5734 = vadd.f32 0.0, %v5733
    %v5735 = vpop.f32.mrb[0].mxu0
    %5736 = vmatprep.mubr.bf16.mxu0 %v5539
    %5737 = vmatmul.mubr.bf16.gmra.mrb[0].mxu0 %v5537
    %v5738 = vpop.f32.mrb[0].mxu0
    %v5739 = vadd.f32 0.0, %v5738
    %v5740 = vpop.f32.mrb[0].mxu0
    %v5741 = vpop.f32.mrb[0].mxu0
    %v5742 = vadd.f32 0.0, %v5741
    %v5743 = vpop.f32.mrb[0].mxu0
    %5744 = vmatprep.mubr.bf16.mxu0 %v5543
    %5745 = vmatmul.mubr.bf16.gmra.mrb[0].mxu0 %v5541
    %v5746 = vpop.f32.mrb[0].mxu0
    %v5747 = vadd.f32 0.0, %v5746
    %v5748 = vpop.f32.mrb[0].mxu0
    %v5749 = vpop.f32.mrb[0].mxu0
    %v5750 = vadd.f32 0.0, %v5749
    %v5751 = vpop.f32.mrb[0].mxu0
    %5752 = vdwg.mxu0
    %v5753 = vadd.f32 %v5388, %v5691
    %v5754 = vadd.f32 %v5391, %v5694
    %v5755 = vadd.f32 %v5396, %v5699
    %v5756 = vadd.f32 %v5399, %v5702
    %v5757 = vadd.f32 %v5404, %v5707
    %v5758 = vadd.f32 %v5407, %v5710
    %v5759 = vadd.f32 %v5412, %v5715
    %v5760 = vadd.f32 %v5415, %v5718
    %v5761 = vadd.f32 %v5420, %v5723
    %v5762 = vadd.f32 %v5423, %v5726
    %v5763 = vadd.f32 %v5428, %v5731
    %v5764 = vadd.f32 %v5431, %v5734
    %v5765 = vadd.f32 %v5436, %v5739
    %v5766 = vadd.f32 %v5439, %v5742
    %v5767 = vadd.f32 %v5444, %v5747
    %v5768 = vadd.f32 %v5447, %v5750
    %v5769 = vld [vmem:[#allocation6 + $0x100] sm:$0xff]
    %v5770 = vld [vmem:[#allocation6 + $0x108] sm:$0xff]
    %v5771 = vpack.c.bf16 %v4795, %v4793
    %v5772 = vpack.c.bf16 %v4796, %v4794
    %v5773 = vpack.c.bf16 %v4799, %v4797
    %v5774 = vpack.c.bf16 %v4800, %v4798
    %v5775 = vpack.c.bf16 %v4803, %v4801
    %v5776 = vpack.c.bf16 %v4804, %v4802
    %v5777 = vpack.c.bf16 %v4807, %v4805
    %v5778 = vpack.c.bf16 %v4808, %v4806
    %v5779 = vpack.c.bf16 %v4811, %v4809
    %v5780 = vpack.c.bf16 %v4812, %v4810
    %v5781 = vpack.c.bf16 %v4815, %v4813
    %v5782 = vpack.c.bf16 %v4816, %v4814
    %v5783 = vpack.c.bf16 %v4819, %v4817
    %v5784 = vpack.c.bf16 %v4820, %v4818
    %v5785 = vpack.c.bf16 %v5769, %v4821
    %v5786 = vpack.c.bf16 %v5770, %v4822
    %s5787 = scalar_lea.vmem [#allocation11], 384
    %v5788 = vld [vmem:[%s5787] sm:$0xf]
    %v5789 = vld [vmem:[%s5787 + $0x4] sm:$0xf]
    %v5790 = vld [vmem:[%s5787 + $0x8] sm:$0xf]
    %v5791 = vld [vmem:[%s5787 + $0xc] sm:$0xf]
    %v5792 = vld [vmem:[%s5787 + $0x10] sm:$0xf]
    %v5793 = vld [vmem:[%s5787 + $0x14] sm:$0xf]
    %v5794 = vld [vmem:[%s5787 + $0x18] sm:$0xf]
    %v5795 = vld [vmem:[%s5787 + $0x1c] sm:$0xf]
    %v5796 = vld [vmem:[%s5787 + $0x20] sm:$0xf]
    %v5797 = vld [vmem:[%s5787 + $0x24] sm:$0xf]
    %v5798 = vld [vmem:[%s5787 + $0x28] sm:$0xf]
    %v5799 = vld [vmem:[%s5787 + $0x2c] sm:$0xf]
    %v5800 = vld [vmem:[%s5787 + $0x30] sm:$0xf]
    %v5801 = vld [vmem:[%s5787 + $0x34] sm:$0xf]
    %v5802 = vld [vmem:[%s5787 + $0x38] sm:$0xf]
    %v5803 = vld [vmem:[%s5787 + $0x3c] sm:$0xf]
    %v5804 = vld [vmem:[%s5787 + $0x40] sm:$0xf]
    %v5805 = vld [vmem:[%s5787 + $0x44] sm:$0xf]
    %v5806 = vld [vmem:[%s5787 + $0x48] sm:$0xf]
    %v5807 = vld [vmem:[%s5787 + $0x4c] sm:$0xf]
    %v5808 = vld [vmem:[%s5787 + $0x50] sm:$0xf]
    %v5809 = vld [vmem:[%s5787 + $0x54] sm:$0xf]
    %v5810 = vld [vmem:[%s5787 + $0x58] sm:$0xf]
    %v5811 = vld [vmem:[%s5787 + $0x5c] sm:$0xf]
    %v5812 = vld [vmem:[%s5787 + $0x60] sm:$0xf]
    %v5813 = vld [vmem:[%s5787 + $0x64] sm:$0xf]
    %v5814 = vld [vmem:[%s5787 + $0x68] sm:$0xf]
    %v5815 = vld [vmem:[%s5787 + $0x6c] sm:$0xf]
    %v5816 = vld [vmem:[%s5787 + $0x70] sm:$0xf]
    %v5817 = vld [vmem:[%s5787 + $0x74] sm:$0xf]
    %v5818 = vld [vmem:[%s5787 + $0x78] sm:$0xf]
    %v5819 = vld [vmem:[%s5787 + $0x7c] sm:$0xf]
    %v5852 = vunpack.c.l.b16 %v5788
    %v5853 = vunpack.c.l.b16 %v5789
    %v5854 = vunpack.c.l.b16 %v5790
    %v5855 = vunpack.c.l.b16 %v5791
    %v5856 = vunpack.c.l.b16 %v5792
    %v5857 = vunpack.c.l.b16 %v5793
    %v5858 = vunpack.c.l.b16 %v5794
    %v5859 = vunpack.c.l.b16 %v5795
    %v5860 = vunpack.c.l.b16 %v5796
    %v5861 = vunpack.c.l.b16 %v5797
    %v5862 = vunpack.c.l.b16 %v5798
    %v5863 = vunpack.c.l.b16 %v5799
    %v5864 = vunpack.c.l.b16 %v5800
    %v5865 = vunpack.c.l.b16 %v5801
    %v5866 = vunpack.c.l.b16 %v5802
    %v5867 = vunpack.c.l.b16 %v5803
    %v5868 = vunpack.c.l.b16 %v5804
    %v5869 = vunpack.c.l.b16 %v5805
    %v5870 = vunpack.c.l.b16 %v5806
    %v5871 = vunpack.c.l.b16 %v5807
    %v5872 = vunpack.c.l.b16 %v5808
    %v5873 = vunpack.c.l.b16 %v5809
    %v5874 = vunpack.c.l.b16 %v5810
    %v5875 = vunpack.c.l.b16 %v5811
    %v5876 = vunpack.c.l.b16 %v5812
    %v5877 = vunpack.c.l.b16 %v5813
    %v5878 = vunpack.c.l.b16 %v5814
    %v5879 = vunpack.c.l.b16 %v5815
    %v5880 = vunpack.c.l.b16 %v5816
    %v5881 = vunpack.c.l.b16 %v5817
    %v5882 = vunpack.c.l.b16 %v5818
    %v5883 = vunpack.c.l.b16 %v5819
    %v5884 = vpack.c.b16 %v5853, %v5852
    %v5885 = vpack.c.b16 %v5855, %v5854
    %v5886 = vpack.c.b16 %v5857, %v5856
    %v5887 = vpack.c.b16 %v5859, %v5858
    %v5888 = vpack.c.b16 %v5861, %v5860
    %v5889 = vpack.c.b16 %v5863, %v5862
    %v5890 = vpack.c.b16 %v5865, %v5864
    %v5891 = vpack.c.b16 %v5867, %v5866
    %v5892 = vpack.c.b16 %v5869, %v5868
    %v5893 = vpack.c.b16 %v5871, %v5870
    %v5894 = vpack.c.b16 %v5873, %v5872
    %v5895 = vpack.c.b16 %v5875, %v5874
    %v5896 = vpack.c.b16 %v5877, %v5876
    %v5897 = vpack.c.b16 %v5879, %v5878
    %v5898 = vpack.c.b16 %v5881, %v5880
    %v5899 = vpack.c.b16 %v5883, %v5882
    %5916 = vmatprep.subr.bf16.mxu0 0
    %5917 = vmatpush1.bf16.msra.mxu0 %v5884
    %5918 = vmatprep.subr.bf16.mxu0 0
    %5919 = vmatpush1.bf16.msra.mxu0 %v5885
    %5920 = vmatprep.subr.bf16.mxu0 0
    %5921 = vmatpush1.bf16.msra.mxu0 %v5886
    %5922 = vmatprep.subr.bf16.mxu0 0
    %5923 = vmatpush1.bf16.msra.mxu0 %v5887
    %5924 = vmatprep.subr.bf16.mxu0 0
    %5925 = vmatpush1.bf16.msra.mxu0 %v5888
    %5926 = vmatprep.subr.bf16.mxu0 0
    %5927 = vmatpush1.bf16.msra.mxu0 %v5889
    %5928 = vmatprep.subr.bf16.mxu0 0
    %5929 = vmatpush1.bf16.msra.mxu0 %v5890
    %5930 = vmatprep.subr.bf16.mxu0 0
    %5931 = vmatpush1.bf16.msra.mxu0 %v5891
    %5932 = vmatprep.subr.bf16.mxu0 0
    %5933 = vmatpush1.bf16.msra.mxu0 %v5892
    %5934 = vmatprep.subr.bf16.mxu0 0
    %5935 = vmatpush1.bf16.msra.mxu0 %v5893
    %5936 = vmatprep.subr.bf16.mxu0 0
    %5937 = vmatpush1.bf16.msra.mxu0 %v5894
    %5938 = vmatprep.subr.bf16.mxu0 0
    %5939 = vmatpush1.bf16.msra.mxu0 %v5895
    %5940 = vmatprep.subr.bf16.mxu0 0
    %5941 = vmatpush1.bf16.msra.mxu0 %v5896
    %5942 = vmatprep.subr.bf16.mxu0 0
    %5943 = vmatpush1.bf16.msra.mxu0 %v5897
    %5944 = vmatprep.subr.bf16.mxu0 0
    %5945 = vmatpush1.bf16.msra.mxu0 %v5898
    %5946 = vmatprep.subr.bf16.mxu0 0
    %5947 = vmatpush1.bf16.msra.mxu0 %v5899
    %5948 = vmatprep.mubr.bf16.mxu0 %v5772
    %5949 = vmatmul.mubr.bf16.gmra.mrb[0].mxu0 %v5771
    %v5950 = vpop.f32.mrb[0].mxu0
    %v5951 = vadd.f32 0.0, %v5950
    %v5952 = vpop.f32.mrb[0].mxu0
    %v5953 = vpop.f32.mrb[0].mxu0
    %v5954 = vadd.f32 0.0, %v5953
    %v5955 = vpop.f32.mrb[0].mxu0
    %5956 = vmatprep.mubr.bf16.mxu0 %v5774
    %5957 = vmatmul.mubr.bf16.gmra.mrb[0].mxu0 %v5773
    %v5958 = vpop.f32.mrb[0].mxu0
    %v5959 = vadd.f32 0.0, %v5958
    %v5960 = vpop.f32.mrb[0].mxu0
    %v5961 = vpop.f32.mrb[0].mxu0
    %v5962 = vadd.f32 0.0, %v5961
    %v5963 = vpop.f32.mrb[0].mxu0
    %5964 = vmatprep.mubr.bf16.mxu0 %v5776
    %5965 = vmatmul.mubr.bf16.gmra.mrb[0].mxu0 %v5775
    %v5966 = vpop.f32.mrb[0].mxu0
    %v5967 = vadd.f32 0.0, %v5966
    %v5968 = vpop.f32.mrb[0].mxu0
    %v5969 = vpop.f32.mrb[0].mxu0
    %v5970 = vadd.f32 0.0, %v5969
    %v5971 = vpop.f32.mrb[0].mxu0
    %5972 = vmatprep.mubr.bf16.mxu0 %v5778
    %5973 = vmatmul.mubr.bf16.gmra.mrb[0].mxu0 %v5777
    %v5974 = vpop.f32.mrb[0].mxu0
    %v5975 = vadd.f32 0.0, %v5974
    %v5976 = vpop.f32.mrb[0].mxu0
    %v5977 = vpop.f32.mrb[0].mxu0
    %v5978 = vadd.f32 0.0, %v5977
    %v5979 = vpop.f32.mrb[0].mxu0
    %5980 = vmatprep.mubr.bf16.mxu0 %v5780
    %5981 = vmatmul.mubr.bf16.gmra.mrb[0].mxu0 %v5779
    %v5982 = vpop.f32.mrb[0].mxu0
    %v5983 = vadd.f32 0.0, %v5982
    %v5984 = vpop.f32.mrb[0].mxu0
    %v5985 = vpop.f32.mrb[0].mxu0
    %v5986 = vadd.f32 0.0, %v5985
    %v5987 = vpop.f32.mrb[0].mxu0
    %5988 = vmatprep.mubr.bf16.mxu0 %v5782
    %5989 = vmatmul.mubr.bf16.gmra.mrb[0].mxu0 %v5781
    %v5990 = vpop.f32.mrb[0].mxu0
    %v5991 = vadd.f32 0.0, %v5990
    %v5992 = vpop.f32.mrb[0].mxu0
    %v5993 = vpop.f32.mrb[0].mxu0
    %v5994 = vadd.f32 0.0, %v5993
    %v5995 = vpop.f32.mrb[0].mxu0
    %5996 = vmatprep.mubr.bf16.mxu0 %v5784
    %5997 = vmatmul.mubr.bf16.gmra.mrb[0].mxu0 %v5783
    %v5998 = vpop.f32.mrb[0].mxu0
    %v5999 = vadd.f32 0.0, %v5998
    %v6000 = vpop.f32.mrb[0].mxu0
    %v6001 = vpop.f32.mrb[0].mxu0
    %v6002 = vadd.f32 0.0, %v6001
    %v6003 = vpop.f32.mrb[0].mxu0
    %6004 = vmatprep.mubr.bf16.mxu0 %v5786
    %6005 = vmatmul.mubr.bf16.gmra.mrb[0].mxu0 %v5785
    %v6006 = vpop.f32.mrb[0].mxu0
    %v6007 = vadd.f32 0.0, %v6006
    %v6008 = vpop.f32.mrb[0].mxu0
    %v6009 = vpop.f32.mrb[0].mxu0
    %v6010 = vadd.f32 0.0, %v6009
    %v6011 = vpop.f32.mrb[0].mxu0
    %6012 = vdwg.mxu0
    %v6013 = vadd.f32 %v5753, %v5951
    %v6014 = vadd.f32 %v5754, %v5954
    %v6015 = vadd.f32 %v5755, %v5959
    %v6016 = vadd.f32 %v5756, %v5962
    %v6017 = vadd.f32 %v5757, %v5967
    %v6018 = vadd.f32 %v5758, %v5970
    %v6019 = vadd.f32 %v5759, %v5975
    %v6020 = vadd.f32 %v5760, %v5978
    %v6021 = vadd.f32 %v5761, %v5983
    %v6022 = vadd.f32 %v5762, %v5986
    %v6023 = vadd.f32 %v5763, %v5991
    %v6024 = vadd.f32 %v5764, %v5994
    %v6025 = vadd.f32 %v5765, %v5999
    %v6026 = vadd.f32 %v5766, %v6002
    %v6027 = vadd.f32 %v5767, %v6007
    %v6028 = vadd.f32 %v5768, %v6010
    %v6029 = vld [vmem:[#allocation6 + $0x10] sm:$0xfe]
    %v6030 = vld [vmem:[#allocation6 + $0x18] sm:$0xfe]
    %v6031 = vld [vmem:[#allocation6 + $0x20] sm:$0xff]
    %v6032 = vld [vmem:[#allocation6 + $0x28] sm:$0xff]
    %v6033 = vld [vmem:[#allocation6 + $0x30] sm:$0xff]
    %v6034 = vld [vmem:[#allocation6 + $0x38] sm:$0xff]
    %v6035 = vld [vmem:[#allocation6 + $0x40] sm:$0xff]
    %v6036 = vld [vmem:[#allocation6 + $0x48] sm:$0xff]
    %v6037 = vld [vmem:[#allocation6 + $0x50] sm:$0xff]
    %v6038 = vld [vmem:[#allocation6 + $0x58] sm:$0xff]
    %v6039 = vld [vmem:[#allocation6 + $0x60] sm:$0xff]
    %v6040 = vld [vmem:[#allocation6 + $0x68] sm:$0xff]
    %v6041 = vld [vmem:[#allocation6 + $0x70] sm:$0xff]
    %v6042 = vld [vmem:[#allocation6 + $0x78] sm:$0xff]
    %v6043 = vld [vmem:[#allocation6 + $0x80] sm:$0xff]
    %v6044 = vld [vmem:[#allocation6 + $0x88] sm:$0xff]
    %v6045 = vld [vmem:[#allocation6 + $0x90] sm:$0xff]
    %v6046 = vld [vmem:[#allocation6 + $0x98] sm:$0xff]
    %v6047 = vld [vmem:[#allocation6 + $0xa0] sm:$0xff]
    %v6048 = vld [vmem:[#allocation6 + $0xa8] sm:$0xff]
    %v6049 = vld [vmem:[#allocation6 + $0xb0] sm:$0xff]
    %v6050 = vld [vmem:[#allocation6 + $0xb8] sm:$0xff]
    %v6051 = vld [vmem:[#allocation6 + $0xc0] sm:$0xff]
    %v6052 = vld [vmem:[#allocation6 + $0xc8] sm:$0xff]
    %v6053 = vld [vmem:[#allocation6 + $0xd0] sm:$0xff]
    %v6054 = vld [vmem:[#allocation6 + $0xd8] sm:$0xff]
    %v6055 = vld [vmem:[#allocation6 + $0xe0] sm:$0xff]
    %v6056 = vld [vmem:[#allocation6 + $0xe8] sm:$0xff]
    %v6057 = vld [vmem:[#allocation6 + $0xf0] sm:$0xff]
    %v6058 = vld [vmem:[#allocation6 + $0xf8] sm:$0xff]
    %v6059 = vld [vmem:[#allocation6 + $0x100] sm:$0xff]
    %v6060 = vld [vmem:[#allocation6 + $0x108] sm:$0xff]
    %v6061 = vld [vmem:[#allocation6 + $0x110] sm:$0x1]
    %v6062 = vld [vmem:[#allocation6 + $0x118] sm:$0x1]
    %v6063 = vpack.c.bf16 %v6031, %v6029
    %v6064 = vpack.c.bf16 %v6032, %v6030
    %v6065 = vpack.c.bf16 %v6035, %v6033
    %v6066 = vpack.c.bf16 %v6036, %v6034
    %v6067 = vpack.c.bf16 %v6039, %v6037
    %v6068 = vpack.c.bf16 %v6040, %v6038
    %v6069 = vpack.c.bf16 %v6043, %v6041
    %v6070 = vpack.c.bf16 %v6044, %v6042
    %v6071 = vpack.c.bf16 %v6047, %v6045
    %v6072 = vpack.c.bf16 %v6048, %v6046
    %v6073 = vpack.c.bf16 %v6051, %v6049
    %v6074 = vpack.c.bf16 %v6052, %v6050
    %v6075 = vpack.c.bf16 %v6055, %v6053
    %v6076 = vpack.c.bf16 %v6056, %v6054
    %v6077 = vpack.c.bf16 %v6059, %v6057
    %v6078 = vpack.c.bf16 %v6060, %v6058
    %v6079 = vpack.c.bf16 %v6061, %v6061
    %v6080 = vpack.c.bf16 %v6062, %v6062
    %s6081 = scalar_lea.vmem [#allocation11], 512
    %v6082 = vld [vmem:[%s6081] sm:$0xf]
    %v6083 = vld [vmem:[%s6081 + $0x4] sm:$0xf]
    %v6084 = vld [vmem:[%s6081 + $0x8] sm:$0xf]
    %v6085 = vld [vmem:[%s6081 + $0xc] sm:$0xf]
    %v6086 = vld [vmem:[%s6081 + $0x10] sm:$0xf]
    %v6087 = vld [vmem:[%s6081 + $0x14] sm:$0xf]
    %v6088 = vld [vmem:[%s6081 + $0x18] sm:$0xf]
    %v6089 = vld [vmem:[%s6081 + $0x1c] sm:$0xf]
    %v6090 = vld [vmem:[%s6081 + $0x20] sm:$0xf]
    %v6091 = vld [vmem:[%s6081 + $0x24] sm:$0xf]
    %v6092 = vld [vmem:[%s6081 + $0x28] sm:$0xf]
    %v6093 = vld [vmem:[%s6081 + $0x2c] sm:$0xf]
    %v6094 = vld [vmem:[%s6081 + $0x30] sm:$0xf]
    %v6095 = vld [vmem:[%s6081 + $0x34] sm:$0xf]
    %v6096 = vld [vmem:[%s6081 + $0x38] sm:$0xf]
    %v6097 = vld [vmem:[%s6081 + $0x3c] sm:$0xf]
    %v6098 = vld [vmem:[%s6081 + $0x40] sm:$0xf]
    %v6099 = vld [vmem:[%s6081 + $0x44] sm:$0xf]
    %v6100 = vld [vmem:[%s6081 + $0x48] sm:$0xf]
    %v6101 = vld [vmem:[%s6081 + $0x4c] sm:$0xf]
    %v6102 = vld [vmem:[%s6081 + $0x50] sm:$0xf]
    %v6103 = vld [vmem:[%s6081 + $0x54] sm:$0xf]
    %v6104 = vld [vmem:[%s6081 + $0x58] sm:$0xf]
    %v6105 = vld [vmem:[%s6081 + $0x5c] sm:$0xf]
    %v6106 = vld [vmem:[%s6081 + $0x60] sm:$0xf]
    %v6107 = vld [vmem:[%s6081 + $0x64] sm:$0xf]
    %v6108 = vld [vmem:[%s6081 + $0x68] sm:$0xf]
    %v6109 = vld [vmem:[%s6081 + $0x6c] sm:$0xf]
    %v6110 = vld [vmem:[%s6081 + $0x70] sm:$0xf]
    %v6111 = vld [vmem:[%s6081 + $0x74] sm:$0xf]
    %v6112 = vld [vmem:[%s6081 + $0x78] sm:$0xf]
    %v6113 = vld [vmem:[%s6081 + $0x7c] sm:$0xf]
    %v6115 = vshrl.u32 %v6063, 16
    %v6117 = vshll.u32 %v6063, 16
    %v6119 = vrot.slane %v6117, 1
    %v6120 = vor.u32 %v6115, %v6119
    %v6122 = vshll.u32 %v6065, 16
    %v6124 = vrot.slane %v6122, 1
    %v6125 = vsel %vm3086, %v6120, %v6124
    %v6127 = vshrl.u32 %v6064, 16
    %v6129 = vshll.u32 %v6064, 16
    %v6131 = vrot.slane %v6129, 1
    %v6132 = vor.u32 %v6127, %v6131
    %v6134 = vshll.u32 %v6066, 16
    %v6136 = vrot.slane %v6134, 1
    %v6137 = vsel %vm3086, %v6132, %v6136
    %v6138 = vshrl.u32 %v6065, 16
    %v6140 = vor.u32 %v6138, %v6124
    %v6142 = vshll.u32 %v6067, 16
    %v6144 = vrot.slane %v6142, 1
    %v6145 = vsel %vm3086, %v6140, %v6144
    %v6146 = vshrl.u32 %v6066, 16
    %v6148 = vor.u32 %v6146, %v6136
    %v6150 = vshll.u32 %v6068, 16
    %v6152 = vrot.slane %v6150, 1
    %v6153 = vsel %vm3086, %v6148, %v6152
    %v6154 = vshrl.u32 %v6067, 16
    %v6156 = vor.u32 %v6154, %v6144
    %v6158 = vshll.u32 %v6069, 16
    %v6160 = vrot.slane %v6158, 1
    %v6161 = vsel %vm3086, %v6156, %v6160
    %v6162 = vshrl.u32 %v6068, 16
    %v6164 = vor.u32 %v6162, %v6152
    %v6166 = vshll.u32 %v6070, 16
    %v6168 = vrot.slane %v6166, 1
    %v6169 = vsel %vm3086, %v6164, %v6168
    %v6170 = vshrl.u32 %v6069, 16
    %v6172 = vor.u32 %v6170, %v6160
    %v6174 = vshll.u32 %v6071, 16
    %v6176 = vrot.slane %v6174, 1
    %v6177 = vsel %vm3086, %v6172, %v6176
    %v6178 = vshrl.u32 %v6070, 16
    %v6180 = vor.u32 %v6178, %v6168
    %v6182 = vshll.u32 %v6072, 16
    %v6184 = vrot.slane %v6182, 1
    %v6185 = vsel %vm3086, %v6180, %v6184
    %v6186 = vshrl.u32 %v6071, 16
    %v6188 = vor.u32 %v6186, %v6176
    %v6190 = vshll.u32 %v6073, 16
    %v6192 = vrot.slane %v6190, 1
    %v6193 = vsel %vm3086, %v6188, %v6192
    %v6194 = vshrl.u32 %v6072, 16
    %v6196 = vor.u32 %v6194, %v6184
    %v6198 = vshll.u32 %v6074, 16
    %v6200 = vrot.slane %v6198, 1
    %v6201 = vsel %vm3086, %v6196, %v6200
    %v6202 = vshrl.u32 %v6073, 16
    %v6204 = vor.u32 %v6202, %v6192
    %v6206 = vshll.u32 %v6075, 16
    %v6208 = vrot.slane %v6206, 1
    %v6209 = vsel %vm3086, %v6204, %v6208
    %v6210 = vshrl.u32 %v6074, 16
    %v6212 = vor.u32 %v6210, %v6200
    %v6214 = vshll.u32 %v6076, 16
    %v6216 = vrot.slane %v6214, 1
    %v6217 = vsel %vm3086, %v6212, %v6216
    %v6218 = vshrl.u32 %v6075, 16
    %v6220 = vor.u32 %v6218, %v6208
    %v6222 = vshll.u32 %v6077, 16
    %v6224 = vrot.slane %v6222, 1
    %v6225 = vsel %vm3086, %v6220, %v6224
    %v6226 = vshrl.u32 %v6076, 16
    %v6228 = vor.u32 %v6226, %v6216
    %v6230 = vshll.u32 %v6078, 16
    %v6232 = vrot.slane %v6230, 1
    %v6233 = vsel %vm3086, %v6228, %v6232
    %v6234 = vshrl.u32 %v6077, 16
    %v6236 = vor.u32 %v6234, %v6224
    %v6238 = vshll.u32 %v6079, 16
    %v6240 = vrot.slane %v6238, 1
    %v6241 = vsel %vm3086, %v6236, %v6240
    %v6242 = vshrl.u32 %v6078, 16
    %v6244 = vor.u32 %v6242, %v6232
    %v6246 = vshll.u32 %v6080, 16
    %v6248 = vrot.slane %v6246, 1
    %v6249 = vsel %vm3086, %v6244, %v6248
    %v6298 = vunpack.c.l.b16 %v6082
    %v6299 = vunpack.c.l.b16 %v6083
    %v6300 = vunpack.c.l.b16 %v6084
    %v6301 = vunpack.c.l.b16 %v6085
    %v6302 = vunpack.c.l.b16 %v6086
    %v6303 = vunpack.c.l.b16 %v6087
    %v6304 = vunpack.c.l.b16 %v6088
    %v6305 = vunpack.c.l.b16 %v6089
    %v6306 = vunpack.c.l.b16 %v6090
    %v6307 = vunpack.c.l.b16 %v6091
    %v6308 = vunpack.c.l.b16 %v6092
    %v6309 = vunpack.c.l.b16 %v6093
    %v6310 = vunpack.c.l.b16 %v6094
    %v6311 = vunpack.c.l.b16 %v6095
    %v6312 = vunpack.c.l.b16 %v6096
    %v6313 = vunpack.c.l.b16 %v6097
    %v6314 = vunpack.c.l.b16 %v6098
    %v6315 = vunpack.c.l.b16 %v6099
    %v6316 = vunpack.c.l.b16 %v6100
    %v6317 = vunpack.c.l.b16 %v6101
    %v6318 = vunpack.c.l.b16 %v6102
    %v6319 = vunpack.c.l.b16 %v6103
    %v6320 = vunpack.c.l.b16 %v6104
    %v6321 = vunpack.c.l.b16 %v6105
    %v6322 = vunpack.c.l.b16 %v6106
    %v6323 = vunpack.c.l.b16 %v6107
    %v6324 = vunpack.c.l.b16 %v6108
    %v6325 = vunpack.c.l.b16 %v6109
    %v6326 = vunpack.c.l.b16 %v6110
    %v6327 = vunpack.c.l.b16 %v6111
    %v6328 = vunpack.c.l.b16 %v6112
    %v6329 = vunpack.c.l.b16 %v6113
    %v6330 = vpack.c.b16 %v6299, %v6298
    %v6331 = vpack.c.b16 %v6301, %v6300
    %v6332 = vpack.c.b16 %v6303, %v6302
    %v6333 = vpack.c.b16 %v6305, %v6304
    %v6334 = vpack.c.b16 %v6307, %v6306
    %v6335 = vpack.c.b16 %v6309, %v6308
    %v6336 = vpack.c.b16 %v6311, %v6310
    %v6337 = vpack.c.b16 %v6313, %v6312
    %v6338 = vpack.c.b16 %v6315, %v6314
    %v6339 = vpack.c.b16 %v6317, %v6316
    %v6340 = vpack.c.b16 %v6319, %v6318
    %v6341 = vpack.c.b16 %v6321, %v6320
    %v6342 = vpack.c.b16 %v6323, %v6322
    %v6343 = vpack.c.b16 %v6325, %v6324
    %v6344 = vpack.c.b16 %v6327, %v6326
    %v6345 = vpack.c.b16 %v6329, %v6328
    %6362 = vmatprep.subr.bf16.mxu0 0
    %6363 = vmatpush1.bf16.msra.mxu0 %v6330
    %6364 = vmatprep.subr.bf16.mxu0 0
    %6365 = vmatpush1.bf16.msra.mxu0 %v6331
    %6366 = vmatprep.subr.bf16.mxu0 0
    %6367 = vmatpush1.bf16.msra.mxu0 %v6332
    %6368 = vmatprep.subr.bf16.mxu0 0
    %6369 = vmatpush1.bf16.msra.mxu0 %v6333
    %6370 = vmatprep.subr.bf16.mxu0 0
    %6371 = vmatpush1.bf16.msra.mxu0 %v6334
    %6372 = vmatprep.subr.bf16.mxu0 0
    %6373 = vmatpush1.bf16.msra.mxu0 %v6335
    %6374 = vmatprep.subr.bf16.mxu0 0
    %6375 = vmatpush1.bf16.msra.mxu0 %v6336
    %6376 = vmatprep.subr.bf16.mxu0 0
    %6377 = vmatpush1.bf16.msra.mxu0 %v6337
    %6378 = vmatprep.subr.bf16.mxu0 0
    %6379 = vmatpush1.bf16.msra.mxu0 %v6338
    %6380 = vmatprep.subr.bf16.mxu0 0
    %6381 = vmatpush1.bf16.msra.mxu0 %v6339
    %6382 = vmatprep.subr.bf16.mxu0 0
    %6383 = vmatpush1.bf16.msra.mxu0 %v6340
    %6384 = vmatprep.subr.bf16.mxu0 0
    %6385 = vmatpush1.bf16.msra.mxu0 %v6341
    %6386 = vmatprep.subr.bf16.mxu0 0
    %6387 = vmatpush1.bf16.msra.mxu0 %v6342
    %6388 = vmatprep.subr.bf16.mxu0 0
    %6389 = vmatpush1.bf16.msra.mxu0 %v6343
    %6390 = vmatprep.subr.bf16.mxu0 0
    %6391 = vmatpush1.bf16.msra.mxu0 %v6344
    %6392 = vmatprep.subr.bf16.mxu0 0
    %6393 = vmatpush1.bf16.msra.mxu0 %v6345
    %6394 = vmatprep.mubr.bf16.mxu0 %v6137
    %6395 = vmatmul.mubr.bf16.gmra.mrb[0].mxu0 %v6125
    %v6396 = vpop.f32.mrb[0].mxu0
    %v6397 = vadd.f32 0.0, %v6396
    %v6398 = vpop.f32.mrb[0].mxu0
    %v6399 = vpop.f32.mrb[0].mxu0
    %v6400 = vadd.f32 0.0, %v6399
    %v6401 = vpop.f32.mrb[0].mxu0
    %6402 = vmatprep.mubr.bf16.mxu0 %v6153
    %6403 = vmatmul.mubr.bf16.gmra.mrb[0].mxu0 %v6145
    %v6404 = vpop.f32.mrb[0].mxu0
    %v6405 = vadd.f32 0.0, %v6404
    %v6406 = vpop.f32.mrb[0].mxu0
    %v6407 = vpop.f32.mrb[0].mxu0
    %v6408 = vadd.f32 0.0, %v6407
    %v6409 = vpop.f32.mrb[0].mxu0
    %6410 = vmatprep.mubr.bf16.mxu0 %v6169
    %6411 = vmatmul.mubr.bf16.gmra.mrb[0].mxu0 %v6161
    %v6412 = vpop.f32.mrb[0].mxu0
    %v6413 = vadd.f32 0.0, %v6412
    %v6414 = vpop.f32.mrb[0].mxu0
    %v6415 = vpop.f32.mrb[0].mxu0
    %v6416 = vadd.f32 0.0, %v6415
    %v6417 = vpop.f32.mrb[0].mxu0
    %6418 = vmatprep.mubr.bf16.mxu0 %v6185
    %6419 = vmatmul.mubr.bf16.gmra.mrb[0].mxu0 %v6177
    %v6420 = vpop.f32.mrb[0].mxu0
    %v6421 = vadd.f32 0.0, %v6420
    %v6422 = vpop.f32.mrb[0].mxu0
    %v6423 = vpop.f32.mrb[0].mxu0
    %v6424 = vadd.f32 0.0, %v6423
    %v6425 = vpop.f32.mrb[0].mxu0
    %6426 = vmatprep.mubr.bf16.mxu0 %v6201
    %6427 = vmatmul.mubr.bf16.gmra.mrb[0].mxu0 %v6193
    %v6428 = vpop.f32.mrb[0].mxu0
    %v6429 = vadd.f32 0.0, %v6428
    %v6430 = vpop.f32.mrb[0].mxu0
    %v6431 = vpop.f32.mrb[0].mxu0
    %v6432 = vadd.f32 0.0, %v6431
    %v6433 = vpop.f32.mrb[0].mxu0
    %6434 = vmatprep.mubr.bf16.mxu0 %v6217
    %6435 = vmatmul.mubr.bf16.gmra.mrb[0].mxu0 %v6209
    %v6436 = vpop.f32.mrb[0].mxu0
    %v6437 = vadd.f32 0.0, %v6436
    %v6438 = vpop.f32.mrb[0].mxu0
    %v6439 = vpop.f32.mrb[0].mxu0
    %v6440 = vadd.f32 0.0, %v6439
    %v6441 = vpop.f32.mrb[0].mxu0
    %6442 = vmatprep.mubr.bf16.mxu0 %v6233
    %6443 = vmatmul.mubr.bf16.gmra.mrb[0].mxu0 %v6225
    %v6444 = vpop.f32.mrb[0].mxu0
    %v6445 = vadd.f32 0.0, %v6444
    %v6446 = vpop.f32.mrb[0].mxu0
    %v6447 = vpop.f32.mrb[0].mxu0
    %v6448 = vadd.f32 0.0, %v6447
    %v6449 = vpop.f32.mrb[0].mxu0
    %6450 = vmatprep.mubr.bf16.mxu0 %v6249
    %6451 = vmatmul.mubr.bf16.gmra.mrb[0].mxu0 %v6241
    %v6452 = vpop.f32.mrb[0].mxu0
    %v6453 = vadd.f32 0.0, %v6452
    %v6454 = vpop.f32.mrb[0].mxu0
    %v6455 = vpop.f32.mrb[0].mxu0
    %v6456 = vadd.f32 0.0, %v6455
    %v6457 = vpop.f32.mrb[0].mxu0
    %6458 = vdwg.mxu0
    %v6459 = vadd.f32 %v6013, %v6397
    %v6460 = vadd.f32 %v6014, %v6400
    %v6461 = vadd.f32 %v6015, %v6405
    %v6462 = vadd.f32 %v6016, %v6408
    %v6463 = vadd.f32 %v6017, %v6413
    %v6464 = vadd.f32 %v6018, %v6416
    %v6465 = vadd.f32 %v6019, %v6421
    %v6466 = vadd.f32 %v6020, %v6424
    %v6467 = vadd.f32 %v6021, %v6429
    %v6468 = vadd.f32 %v6022, %v6432
    %v6469 = vadd.f32 %v6023, %v6437
    %v6470 = vadd.f32 %v6024, %v6440
    %v6471 = vadd.f32 %v6025, %v6445
    %v6472 = vadd.f32 %v6026, %v6448
    %v6473 = vadd.f32 %v6027, %v6453
    %v6474 = vadd.f32 %v6028, %v6456
    %v6475 = vld [vmem:[#allocation6 + $0x10] sm:$0xfc]
    %v6476 = vld [vmem:[#allocation6 + $0x18] sm:$0xfc]
    %v6477 = vld [vmem:[#allocation6 + $0x110] sm:$0x3]
    %v6478 = vld [vmem:[#allocation6 + $0x118] sm:$0x3]
    %v6479 = vpack.c.bf16 %v6031, %v6475
    %v6480 = vpack.c.bf16 %v6032, %v6476
    %v6481 = vpack.c.bf16 %v6477, %v6477
    %v6482 = vpack.c.bf16 %v6478, %v6478
    %s6483 = scalar_lea.vmem [#allocation11], 640
    %v6484 = vld [vmem:[%s6483] sm:$0xf]
    %v6485 = vld [vmem:[%s6483 + $0x4] sm:$0xf]
    %v6486 = vld [vmem:[%s6483 + $0x8] sm:$0xf]
    %v6487 = vld [vmem:[%s6483 + $0xc] sm:$0xf]
    %v6488 = vld [vmem:[%s6483 + $0x10] sm:$0xf]
    %v6489 = vld [vmem:[%s6483 + $0x14] sm:$0xf]
    %v6490 = vld [vmem:[%s6483 + $0x18] sm:$0xf]
    %v6491 = vld [vmem:[%s6483 + $0x1c] sm:$0xf]
    %v6492 = vld [vmem:[%s6483 + $0x20] sm:$0xf]
    %v6493 = vld [vmem:[%s6483 + $0x24] sm:$0xf]
    %v6494 = vld [vmem:[%s6483 + $0x28] sm:$0xf]
    %v6495 = vld [vmem:[%s6483 + $0x2c] sm:$0xf]
    %v6496 = vld [vmem:[%s6483 + $0x30] sm:$0xf]
    %v6497 = vld [vmem:[%s6483 + $0x34] sm:$0xf]
    %v6498 = vld [vmem:[%s6483 + $0x38] sm:$0xf]
    %v6499 = vld [vmem:[%s6483 + $0x3c] sm:$0xf]
    %v6500 = vld [vmem:[%s6483 + $0x40] sm:$0xf]
    %v6501 = vld [vmem:[%s6483 + $0x44] sm:$0xf]
    %v6502 = vld [vmem:[%s6483 + $0x48] sm:$0xf]
    %v6503 = vld [vmem:[%s6483 + $0x4c] sm:$0xf]
    %v6504 = vld [vmem:[%s6483 + $0x50] sm:$0xf]
    %v6505 = vld [vmem:[%s6483 + $0x54] sm:$0xf]
    %v6506 = vld [vmem:[%s6483 + $0x58] sm:$0xf]
    %v6507 = vld [vmem:[%s6483 + $0x5c] sm:$0xf]
    %v6508 = vld [vmem:[%s6483 + $0x60] sm:$0xf]
    %v6509 = vld [vmem:[%s6483 + $0x64] sm:$0xf]
    %v6510 = vld [vmem:[%s6483 + $0x68] sm:$0xf]
    %v6511 = vld [vmem:[%s6483 + $0x6c] sm:$0xf]
    %v6512 = vld [vmem:[%s6483 + $0x70] sm:$0xf]
    %v6513 = vld [vmem:[%s6483 + $0x74] sm:$0xf]
    %v6514 = vld [vmem:[%s6483 + $0x78] sm:$0xf]
    %v6515 = vld [vmem:[%s6483 + $0x7c] sm:$0xf]
    %v6534 = vrot.slane %v6479, 1
    %v6535 = vrot.slane %v6065, 1
    %v6536 = vsel %vm5509, %v6534, %v6535
    %v6537 = vrot.slane %v6480, 1
    %v6538 = vrot.slane %v6066, 1
    %v6539 = vsel %vm5509, %v6537, %v6538
    %v6540 = vrot.slane %v6067, 1
    %v6541 = vsel %vm5509, %v6535, %v6540
    %v6542 = vrot.slane %v6068, 1
    %v6543 = vsel %vm5509, %v6538, %v6542
    %v6544 = vrot.slane %v6069, 1
    %v6545 = vsel %vm5509, %v6540, %v6544
    %v6546 = vrot.slane %v6070, 1
    %v6547 = vsel %vm5509, %v6542, %v6546
    %v6548 = vrot.slane %v6071, 1
    %v6549 = vsel %vm5509, %v6544, %v6548
    %v6550 = vrot.slane %v6072, 1
    %v6551 = vsel %vm5509, %v6546, %v6550
    %v6552 = vrot.slane %v6073, 1
    %v6553 = vsel %vm5509, %v6548, %v6552
    %v6554 = vrot.slane %v6074, 1
    %v6555 = vsel %vm5509, %v6550, %v6554
    %v6556 = vrot.slane %v6075, 1
    %v6557 = vsel %vm5509, %v6552, %v6556
    %v6558 = vrot.slane %v6076, 1
    %v6559 = vsel %vm5509, %v6554, %v6558
    %v6560 = vrot.slane %v6077, 1
    %v6561 = vsel %vm5509, %v6556, %v6560
    %v6562 = vrot.slane %v6078, 1
    %v6563 = vsel %vm5509, %v6558, %v6562
    %v6564 = vrot.slane %v6481, 1
    %v6565 = vsel %vm5509, %v6560, %v6564
    %v6566 = vrot.slane %v6482, 1
    %v6567 = vsel %vm5509, %v6562, %v6566
    %v6616 = vunpack.c.l.b16 %v6484
    %v6617 = vunpack.c.l.b16 %v6485
    %v6618 = vunpack.c.l.b16 %v6486
    %v6619 = vunpack.c.l.b16 %v6487
    %v6620 = vunpack.c.l.b16 %v6488
    %v6621 = vunpack.c.l.b16 %v6489
    %v6622 = vunpack.c.l.b16 %v6490
    %v6623 = vunpack.c.l.b16 %v6491
    %v6624 = vunpack.c.l.b16 %v6492
    %v6625 = vunpack.c.l.b16 %v6493
    %v6626 = vunpack.c.l.b16 %v6494
    %v6627 = vunpack.c.l.b16 %v6495
    %v6628 = vunpack.c.l.b16 %v6496
    %v6629 = vunpack.c.l.b16 %v6497
    %v6630 = vunpack.c.l.b16 %v6498
    %v6631 = vunpack.c.l.b16 %v6499
    %v6632 = vunpack.c.l.b16 %v6500
    %v6633 = vunpack.c.l.b16 %v6501
    %v6634 = vunpack.c.l.b16 %v6502
    %v6635 = vunpack.c.l.b16 %v6503
    %v6636 = vunpack.c.l.b16 %v6504
    %v6637 = vunpack.c.l.b16 %v6505
    %v6638 = vunpack.c.l.b16 %v6506
    %v6639 = vunpack.c.l.b16 %v6507
    %v6640 = vunpack.c.l.b16 %v6508
    %v6641 = vunpack.c.l.b16 %v6509
    %v6642 = vunpack.c.l.b16 %v6510
    %v6643 = vunpack.c.l.b16 %v6511
    %v6644 = vunpack.c.l.b16 %v6512
    %v6645 = vunpack.c.l.b16 %v6513
    %v6646 = vunpack.c.l.b16 %v6514
    %v6647 = vunpack.c.l.b16 %v6515
    %v6648 = vpack.c.b16 %v6617, %v6616
    %v6649 = vpack.c.b16 %v6619, %v6618
    %v6650 = vpack.c.b16 %v6621, %v6620
    %v6651 = vpack.c.b16 %v6623, %v6622
    %v6652 = vpack.c.b16 %v6625, %v6624
    %v6653 = vpack.c.b16 %v6627, %v6626
    %v6654 = vpack.c.b16 %v6629, %v6628
    %v6655 = vpack.c.b16 %v6631, %v6630
    %v6656 = vpack.c.b16 %v6633, %v6632
    %v6657 = vpack.c.b16 %v6635, %v6634
    %v6658 = vpack.c.b16 %v6637, %v6636
    %v6659 = vpack.c.b16 %v6639, %v6638
    %v6660 = vpack.c.b16 %v6641, %v6640
    %v6661 = vpack.c.b16 %v6643, %v6642
    %v6662 = vpack.c.b16 %v6645, %v6644
    %v6663 = vpack.c.b16 %v6647, %v6646
    %6680 = vmatprep.subr.bf16.mxu0 0
    %6681 = vmatpush1.bf16.msra.mxu0 %v6648
    %6682 = vmatprep.subr.bf16.mxu0 0
    %6683 = vmatpush1.bf16.msra.mxu0 %v6649
    %6684 = vmatprep.subr.bf16.mxu0 0
    %6685 = vmatpush1.bf16.msra.mxu0 %v6650
    %6686 = vmatprep.subr.bf16.mxu0 0
    %6687 = vmatpush1.bf16.msra.mxu0 %v6651
    %6688 = vmatprep.subr.bf16.mxu0 0
    %6689 = vmatpush1.bf16.msra.mxu0 %v6652
    %6690 = vmatprep.subr.bf16.mxu0 0
    %6691 = vmatpush1.bf16.msra.mxu0 %v6653
    %6692 = vmatprep.subr.bf16.mxu0 0
    %6693 = vmatpush1.bf16.msra.mxu0 %v6654
    %6694 = vmatprep.subr.bf16.mxu0 0
    %6695 = vmatpush1.bf16.msra.mxu0 %v6655
    %6696 = vmatprep.subr.bf16.mxu0 0
    %6697 = vmatpush1.bf16.msra.mxu0 %v6656
    %6698 = vmatprep.subr.bf16.mxu0 0
    %6699 = vmatpush1.bf16.msra.mxu0 %v6657
    %6700 = vmatprep.subr.bf16.mxu0 0
    %6701 = vmatpush1.bf16.msra.mxu0 %v6658
    %6702 = vmatprep.subr.bf16.mxu0 0
    %6703 = vmatpush1.bf16.msra.mxu0 %v6659
    %6704 = vmatprep.subr.bf16.mxu0 0
    %6705 = vmatpush1.bf16.msra.mxu0 %v6660
    %6706 = vmatprep.subr.bf16.mxu0 0
    %6707 = vmatpush1.bf16.msra.mxu0 %v6661
    %6708 = vmatprep.subr.bf16.mxu0 0
    %6709 = vmatpush1.bf16.msra.mxu0 %v6662
    %6710 = vmatprep.subr.bf16.mxu0 0
    %6711 = vmatpush1.bf16.msra.mxu0 %v6663
    %6712 = vmatprep.mubr.bf16.mxu0 %v6539
    %6713 = vmatmul.mubr.bf16.gmra.mrb[0].mxu0 %v6536
    %v6714 = vpop.f32.mrb[0].mxu0
    %v6715 = vadd.f32 0.0, %v6714
    %v6716 = vpop.f32.mrb[0].mxu0
    %v6717 = vpop.f32.mrb[0].mxu0
    %v6718 = vadd.f32 0.0, %v6717
    %v6719 = vpop.f32.mrb[0].mxu0
    %6720 = vmatprep.mubr.bf16.mxu0 %v6543
    %6721 = vmatmul.mubr.bf16.gmra.mrb[0].mxu0 %v6541
    %v6722 = vpop.f32.mrb[0].mxu0
    %v6723 = vadd.f32 0.0, %v6722
    %v6724 = vpop.f32.mrb[0].mxu0
    %v6725 = vpop.f32.mrb[0].mxu0
    %v6726 = vadd.f32 0.0, %v6725
    %v6727 = vpop.f32.mrb[0].mxu0
    %6728 = vmatprep.mubr.bf16.mxu0 %v6547
    %6729 = vmatmul.mubr.bf16.gmra.mrb[0].mxu0 %v6545
    %v6730 = vpop.f32.mrb[0].mxu0
    %v6731 = vadd.f32 0.0, %v6730
    %v6732 = vpop.f32.mrb[0].mxu0
    %v6733 = vpop.f32.mrb[0].mxu0
    %v6734 = vadd.f32 0.0, %v6733
    %v6735 = vpop.f32.mrb[0].mxu0
    %6736 = vmatprep.mubr.bf16.mxu0 %v6551
    %6737 = vmatmul.mubr.bf16.gmra.mrb[0].mxu0 %v6549
    %v6738 = vpop.f32.mrb[0].mxu0
    %v6739 = vadd.f32 0.0, %v6738
    %v6740 = vpop.f32.mrb[0].mxu0
    %v6741 = vpop.f32.mrb[0].mxu0
    %v6742 = vadd.f32 0.0, %v6741
    %v6743 = vpop.f32.mrb[0].mxu0
    %6744 = vmatprep.mubr.bf16.mxu0 %v6555
    %6745 = vmatmul.mubr.bf16.gmra.mrb[0].mxu0 %v6553
    %v6746 = vpop.f32.mrb[0].mxu0
    %v6747 = vadd.f32 0.0, %v6746
    %v6748 = vpop.f32.mrb[0].mxu0
    %v6749 = vpop.f32.mrb[0].mxu0
    %v6750 = vadd.f32 0.0, %v6749
    %v6751 = vpop.f32.mrb[0].mxu0
    %6752 = vmatprep.mubr.bf16.mxu0 %v6559
    %6753 = vmatmul.mubr.bf16.gmra.mrb[0].mxu0 %v6557
    %v6754 = vpop.f32.mrb[0].mxu0
    %v6755 = vadd.f32 0.0, %v6754
    %v6756 = vpop.f32.mrb[0].mxu0
    %v6757 = vpop.f32.mrb[0].mxu0
    %v6758 = vadd.f32 0.0, %v6757
    %v6759 = vpop.f32.mrb[0].mxu0
    %6760 = vmatprep.mubr.bf16.mxu0 %v6563
    %6761 = vmatmul.mubr.bf16.gmra.mrb[0].mxu0 %v6561
    %v6762 = vpop.f32.mrb[0].mxu0
    %v6763 = vadd.f32 0.0, %v6762
    %v6764 = vpop.f32.mrb[0].mxu0
    %v6765 = vpop.f32.mrb[0].mxu0
    %v6766 = vadd.f32 0.0, %v6765
    %v6767 = vpop.f32.mrb[0].mxu0
    %6768 = vmatprep.mubr.bf16.mxu0 %v6567
    %6769 = vmatmul.mubr.bf16.gmra.mrb[0].mxu0 %v6565
    %v6770 = vpop.f32.mrb[0].mxu0
    %v6771 = vadd.f32 0.0, %v6770
    %v6772 = vpop.f32.mrb[0].mxu0
    %v6773 = vpop.f32.mrb[0].mxu0
    %v6774 = vadd.f32 0.0, %v6773
    %v6775 = vpop.f32.mrb[0].mxu0
    %6776 = vdwg.mxu0
    %v6777 = vadd.f32 %v6459, %v6715
    %v6778 = vadd.f32 %v6460, %v6718
    %v6779 = vadd.f32 %v6461, %v6723
    %v6780 = vadd.f32 %v6462, %v6726
    %v6781 = vadd.f32 %v6463, %v6731
    %v6782 = vadd.f32 %v6464, %v6734
    %v6783 = vadd.f32 %v6465, %v6739
    %v6784 = vadd.f32 %v6466, %v6742
    %v6785 = vadd.f32 %v6467, %v6747
    %v6786 = vadd.f32 %v6468, %v6750
    %v6787 = vadd.f32 %v6469, %v6755
    %v6788 = vadd.f32 %v6470, %v6758
    %v6789 = vadd.f32 %v6471, %v6763
    %v6790 = vadd.f32 %v6472, %v6766
    %v6791 = vadd.f32 %v6473, %v6771
    %v6792 = vadd.f32 %v6474, %v6774
    %v6793 = vld [vmem:[#allocation6 + $0x110] sm:$0xff]
    %v6794 = vld [vmem:[#allocation6 + $0x118] sm:$0xff]
    %v6795 = vpack.c.bf16 %v6033, %v6031
    %v6796 = vpack.c.bf16 %v6034, %v6032
    %v6797 = vpack.c.bf16 %v6037, %v6035
    %v6798 = vpack.c.bf16 %v6038, %v6036
    %v6799 = vpack.c.bf16 %v6041, %v6039
    %v6800 = vpack.c.bf16 %v6042, %v6040
    %v6801 = vpack.c.bf16 %v6045, %v6043
    %v6802 = vpack.c.bf16 %v6046, %v6044
    %v6803 = vpack.c.bf16 %v6049, %v6047
    %v6804 = vpack.c.bf16 %v6050, %v6048
    %v6805 = vpack.c.bf16 %v6053, %v6051
    %v6806 = vpack.c.bf16 %v6054, %v6052
    %v6807 = vpack.c.bf16 %v6057, %v6055
    %v6808 = vpack.c.bf16 %v6058, %v6056
    %v6809 = vpack.c.bf16 %v6793, %v6059
    %v6810 = vpack.c.bf16 %v6794, %v6060
    %s6811 = scalar_lea.vmem [#allocation11], 768
    %v6812 = vld [vmem:[%s6811] sm:$0xf]
    %v6813 = vld [vmem:[%s6811 + $0x4] sm:$0xf]
    %v6814 = vld [vmem:[%s6811 + $0x8] sm:$0xf]
    %v6815 = vld [vmem:[%s6811 + $0xc] sm:$0xf]
    %v6816 = vld [vmem:[%s6811 + $0x10] sm:$0xf]
    %v6817 = vld [vmem:[%s6811 + $0x14] sm:$0xf]
    %v6818 = vld [vmem:[%s6811 + $0x18] sm:$0xf]
    %v6819 = vld [vmem:[%s6811 + $0x1c] sm:$0xf]
    %v6820 = vld [vmem:[%s6811 + $0x20] sm:$0xf]
    %v6821 = vld [vmem:[%s6811 + $0x24] sm:$0xf]
    %v6822 = vld [vmem:[%s6811 + $0x28] sm:$0xf]
    %v6823 = vld [vmem:[%s6811 + $0x2c] sm:$0xf]
    %v6824 = vld [vmem:[%s6811 + $0x30] sm:$0xf]
    %v6825 = vld [vmem:[%s6811 + $0x34] sm:$0xf]
    %v6826 = vld [vmem:[%s6811 + $0x38] sm:$0xf]
    %v6827 = vld [vmem:[%s6811 + $0x3c] sm:$0xf]
    %v6828 = vld [vmem:[%s6811 + $0x40] sm:$0xf]
    %v6829 = vld [vmem:[%s6811 + $0x44] sm:$0xf]
    %v6830 = vld [vmem:[%s6811 + $0x48] sm:$0xf]
    %v6831 = vld [vmem:[%s6811 + $0x4c] sm:$0xf]
    %v6832 = vld [vmem:[%s6811 + $0x50] sm:$0xf]
    %v6833 = vld [vmem:[%s6811 + $0x54] sm:$0xf]
    %v6834 = vld [vmem:[%s6811 + $0x58] sm:$0xf]
    %v6835 = vld [vmem:[%s6811 + $0x5c] sm:$0xf]
    %v6836 = vld [vmem:[%s6811 + $0x60] sm:$0xf]
    %v6837 = vld [vmem:[%s6811 + $0x64] sm:$0xf]
    %v6838 = vld [vmem:[%s6811 + $0x68] sm:$0xf]
    %v6839 = vld [vmem:[%s6811 + $0x6c] sm:$0xf]
    %v6840 = vld [vmem:[%s6811 + $0x70] sm:$0xf]
    %v6841 = vld [vmem:[%s6811 + $0x74] sm:$0xf]
    %v6842 = vld [vmem:[%s6811 + $0x78] sm:$0xf]
    %v6843 = vld [vmem:[%s6811 + $0x7c] sm:$0xf]
    %v6876 = vunpack.c.l.b16 %v6812
    %v6877 = vunpack.c.l.b16 %v6813
    %v6878 = vunpack.c.l.b16 %v6814
    %v6879 = vunpack.c.l.b16 %v6815
    %v6880 = vunpack.c.l.b16 %v6816
    %v6881 = vunpack.c.l.b16 %v6817
    %v6882 = vunpack.c.l.b16 %v6818
    %v6883 = vunpack.c.l.b16 %v6819
    %v6884 = vunpack.c.l.b16 %v6820
    %v6885 = vunpack.c.l.b16 %v6821
    %v6886 = vunpack.c.l.b16 %v6822
    %v6887 = vunpack.c.l.b16 %v6823
    %v6888 = vunpack.c.l.b16 %v6824
    %v6889 = vunpack.c.l.b16 %v6825
    %v6890 = vunpack.c.l.b16 %v6826
    %v6891 = vunpack.c.l.b16 %v6827
    %v6892 = vunpack.c.l.b16 %v6828
    %v6893 = vunpack.c.l.b16 %v6829
    %v6894 = vunpack.c.l.b16 %v6830
    %v6895 = vunpack.c.l.b16 %v6831
    %v6896 = vunpack.c.l.b16 %v6832
    %v6897 = vunpack.c.l.b16 %v6833
    %v6898 = vunpack.c.l.b16 %v6834
    %v6899 = vunpack.c.l.b16 %v6835
    %v6900 = vunpack.c.l.b16 %v6836
    %v6901 = vunpack.c.l.b16 %v6837
    %v6902 = vunpack.c.l.b16 %v6838
    %v6903 = vunpack.c.l.b16 %v6839
    %v6904 = vunpack.c.l.b16 %v6840
    %v6905 = vunpack.c.l.b16 %v6841
    %v6906 = vunpack.c.l.b16 %v6842
    %v6907 = vunpack.c.l.b16 %v6843
    %v6908 = vpack.c.b16 %v6877, %v6876
    %v6909 = vpack.c.b16 %v6879, %v6878
    %v6910 = vpack.c.b16 %v6881, %v6880
    %v6911 = vpack.c.b16 %v6883, %v6882
    %v6912 = vpack.c.b16 %v6885, %v6884
    %v6913 = vpack.c.b16 %v6887, %v6886
    %v6914 = vpack.c.b16 %v6889, %v6888
    %v6915 = vpack.c.b16 %v6891, %v6890
    %v6916 = vpack.c.b16 %v6893, %v6892
    %v6917 = vpack.c.b16 %v6895, %v6894
    %v6918 = vpack.c.b16 %v6897, %v6896
    %v6919 = vpack.c.b16 %v6899, %v6898
    %v6920 = vpack.c.b16 %v6901, %v6900
    %v6921 = vpack.c.b16 %v6903, %v6902
    %v6922 = vpack.c.b16 %v6905, %v6904
    %v6923 = vpack.c.b16 %v6907, %v6906
    %6940 = vmatprep.subr.bf16.mxu0 0
    %6941 = vmatpush1.bf16.msra.mxu0 %v6908
    %6942 = vmatprep.subr.bf16.mxu0 0
    %6943 = vmatpush1.bf16.msra.mxu0 %v6909
    %6944 = vmatprep.subr.bf16.mxu0 0
    %6945 = vmatpush1.bf16.msra.mxu0 %v6910
    %6946 = vmatprep.subr.bf16.mxu0 0
    %6947 = vmatpush1.bf16.msra.mxu0 %v6911
    %6948 = vmatprep.subr.bf16.mxu0 0
    %6949 = vmatpush1.bf16.msra.mxu0 %v6912
    %6950 = vmatprep.subr.bf16.mxu0 0
    %6951 = vmatpush1.bf16.msra.mxu0 %v6913
    %6952 = vmatprep.subr.bf16.mxu0 0
    %6953 = vmatpush1.bf16.msra.mxu0 %v6914
    %6954 = vmatprep.subr.bf16.mxu0 0
    %6955 = vmatpush1.bf16.msra.mxu0 %v6915
    %6956 = vmatprep.subr.bf16.mxu0 0
    %6957 = vmatpush1.bf16.msra.mxu0 %v6916
    %6958 = vmatprep.subr.bf16.mxu0 0
    %6959 = vmatpush1.bf16.msra.mxu0 %v6917
    %6960 = vmatprep.subr.bf16.mxu0 0
    %6961 = vmatpush1.bf16.msra.mxu0 %v6918
    %6962 = vmatprep.subr.bf16.mxu0 0
    %6963 = vmatpush1.bf16.msra.mxu0 %v6919
    %6964 = vmatprep.subr.bf16.mxu0 0
    %6965 = vmatpush1.bf16.msra.mxu0 %v6920
    %6966 = vmatprep.subr.bf16.mxu0 0
    %6967 = vmatpush1.bf16.msra.mxu0 %v6921
    %6968 = vmatprep.subr.bf16.mxu0 0
    %6969 = vmatpush1.bf16.msra.mxu0 %v6922
    %6970 = vmatprep.subr.bf16.mxu0 0
    %6971 = vmatpush1.bf16.msra.mxu0 %v6923
    %6972 = vmatprep.mubr.bf16.mxu0 %v6796
    %6973 = vmatmul.mubr.bf16.gmra.mrb[0].mxu0 %v6795
    %v6974 = vpop.f32.mrb[0].mxu0
    %v6975 = vadd.f32 0.0, %v6974
    %v6976 = vpop.f32.mrb[0].mxu0
    %v6977 = vpop.f32.mrb[0].mxu0
    %v6978 = vadd.f32 0.0, %v6977
    %v6979 = vpop.f32.mrb[0].mxu0
    %6980 = vmatprep.mubr.bf16.mxu0 %v6798
    %6981 = vmatmul.mubr.bf16.gmra.mrb[0].mxu0 %v6797
    %v6982 = vpop.f32.mrb[0].mxu0
    %v6983 = vadd.f32 0.0, %v6982
    %v6984 = vpop.f32.mrb[0].mxu0
    %v6985 = vpop.f32.mrb[0].mxu0
    %v6986 = vadd.f32 0.0, %v6985
    %v6987 = vpop.f32.mrb[0].mxu0
    %6988 = vmatprep.mubr.bf16.mxu0 %v6800
    %6989 = vmatmul.mubr.bf16.gmra.mrb[0].mxu0 %v6799
    %v6990 = vpop.f32.mrb[0].mxu0
    %v6991 = vadd.f32 0.0, %v6990
    %v6992 = vpop.f32.mrb[0].mxu0
    %v6993 = vpop.f32.mrb[0].mxu0
    %v6994 = vadd.f32 0.0, %v6993
    %v6995 = vpop.f32.mrb[0].mxu0
    %6996 = vmatprep.mubr.bf16.mxu0 %v6802
    %6997 = vmatmul.mubr.bf16.gmra.mrb[0].mxu0 %v6801
    %v6998 = vpop.f32.mrb[0].mxu0
    %v6999 = vadd.f32 0.0, %v6998
    %v7000 = vpop.f32.mrb[0].mxu0
    %v7001 = vpop.f32.mrb[0].mxu0
    %v7002 = vadd.f32 0.0, %v7001
    %v7003 = vpop.f32.mrb[0].mxu0
    %7004 = vmatprep.mubr.bf16.mxu0 %v6804
    %7005 = vmatmul.mubr.bf16.gmra.mrb[0].mxu0 %v6803
    %v7006 = vpop.f32.mrb[0].mxu0
    %v7007 = vadd.f32 0.0, %v7006
    %v7008 = vpop.f32.mrb[0].mxu0
    %v7009 = vpop.f32.mrb[0].mxu0
    %v7010 = vadd.f32 0.0, %v7009
    %v7011 = vpop.f32.mrb[0].mxu0
    %7012 = vmatprep.mubr.bf16.mxu0 %v6806
    %7013 = vmatmul.mubr.bf16.gmra.mrb[0].mxu0 %v6805
    %v7014 = vpop.f32.mrb[0].mxu0
    %v7015 = vadd.f32 0.0, %v7014
    %v7016 = vpop.f32.mrb[0].mxu0
    %v7017 = vpop.f32.mrb[0].mxu0
    %v7018 = vadd.f32 0.0, %v7017
    %v7019 = vpop.f32.mrb[0].mxu0
    %7020 = vmatprep.mubr.bf16.mxu0 %v6808
    %7021 = vmatmul.mubr.bf16.gmra.mrb[0].mxu0 %v6807
    %v7022 = vpop.f32.mrb[0].mxu0
    %v7023 = vadd.f32 0.0, %v7022
    %v7024 = vpop.f32.mrb[0].mxu0
    %v7025 = vpop.f32.mrb[0].mxu0
    %v7026 = vadd.f32 0.0, %v7025
    %v7027 = vpop.f32.mrb[0].mxu0
    %7028 = vmatprep.mubr.bf16.mxu0 %v6810
    %7029 = vmatmul.mubr.bf16.gmra.mrb[0].mxu0 %v6809
    %v7030 = vpop.f32.mrb[0].mxu0
    %v7031 = vadd.f32 0.0, %v7030
    %v7032 = vpop.f32.mrb[0].mxu0
    %v7033 = vpop.f32.mrb[0].mxu0
    %v7034 = vadd.f32 0.0, %v7033
    %v7035 = vpop.f32.mrb[0].mxu0
    %7036 = vdwg.mxu0
    %v7037 = vadd.f32 %v6777, %v6975
    %v7038 = vadd.f32 %v6778, %v6978
    %v7039 = vadd.f32 %v6779, %v6983
    %v7040 = vadd.f32 %v6780, %v6986
    %v7041 = vadd.f32 %v6781, %v6991
    %v7042 = vadd.f32 %v6782, %v6994
    %v7043 = vadd.f32 %v6783, %v6999
    %v7044 = vadd.f32 %v6784, %v7002
    %v7045 = vadd.f32 %v6785, %v7007
    %v7046 = vadd.f32 %v6786, %v7010
    %v7047 = vadd.f32 %v6787, %v7015
    %v7048 = vadd.f32 %v6788, %v7018
    %v7049 = vadd.f32 %v6789, %v7023
    %v7050 = vadd.f32 %v6790, %v7026
    %v7051 = vadd.f32 %v6791, %v7031
    %v7052 = vadd.f32 %v6792, %v7034
    %v7053 = vld [vmem:[#allocation6 + $0x20] sm:$0xfe]
    %v7054 = vld [vmem:[#allocation6 + $0x28] sm:$0xfe]
    %v7055 = vld [vmem:[#allocation6 + $0x30] sm:$0xff]
    %v7056 = vld [vmem:[#allocation6 + $0x38] sm:$0xff]
    %v7057 = vld [vmem:[#allocation6 + $0x40] sm:$0xff]
    %v7058 = vld [vmem:[#allocation6 + $0x48] sm:$0xff]
    %v7059 = vld [vmem:[#allocation6 + $0x50] sm:$0xff]
    %v7060 = vld [vmem:[#allocation6 + $0x58] sm:$0xff]
    %v7061 = vld [vmem:[#allocation6 + $0x60] sm:$0xff]
    %v7062 = vld [vmem:[#allocation6 + $0x68] sm:$0xff]
    %v7063 = vld [vmem:[#allocation6 + $0x70] sm:$0xff]
    %v7064 = vld [vmem:[#allocation6 + $0x78] sm:$0xff]
    %v7065 = vld [vmem:[#allocation6 + $0x80] sm:$0xff]
    %v7066 = vld [vmem:[#allocation6 + $0x88] sm:$0xff]
    %v7067 = vld [vmem:[#allocation6 + $0x90] sm:$0xff]
    %v7068 = vld [vmem:[#allocation6 + $0x98] sm:$0xff]
    %v7069 = vld [vmem:[#allocation6 + $0xa0] sm:$0xff]
    %v7070 = vld [vmem:[#allocation6 + $0xa8] sm:$0xff]
    %v7071 = vld [vmem:[#allocation6 + $0xb0] sm:$0xff]
    %v7072 = vld [vmem:[#allocation6 + $0xb8] sm:$0xff]
    %v7073 = vld [vmem:[#allocation6 + $0xc0] sm:$0xff]
    %v7074 = vld [vmem:[#allocation6 + $0xc8] sm:$0xff]
    %v7075 = vld [vmem:[#allocation6 + $0xd0] sm:$0xff]
    %v7076 = vld [vmem:[#allocation6 + $0xd8] sm:$0xff]
    %v7077 = vld [vmem:[#allocation6 + $0xe0] sm:$0xff]
    %v7078 = vld [vmem:[#allocation6 + $0xe8] sm:$0xff]
    %v7079 = vld [vmem:[#allocation6 + $0xf0] sm:$0xff]
    %v7080 = vld [vmem:[#allocation6 + $0xf8] sm:$0xff]
    %v7081 = vld [vmem:[#allocation6 + $0x100] sm:$0xff]
    %v7082 = vld [vmem:[#allocation6 + $0x108] sm:$0xff]
    %v7083 = vld [vmem:[#allocation6 + $0x110] sm:$0xff]
    %v7084 = vld [vmem:[#allocation6 + $0x118] sm:$0xff]
    %v7085 = vld [vmem:[#allocation6 + $0x120] sm:$0x1]
    %v7086 = vld [vmem:[#allocation6 + $0x128] sm:$0x1]
    %v7087 = vpack.c.bf16 %v7055, %v7053
    %v7088 = vpack.c.bf16 %v7056, %v7054
    %v7089 = vpack.c.bf16 %v7059, %v7057
    %v7090 = vpack.c.bf16 %v7060, %v7058
    %v7091 = vpack.c.bf16 %v7063, %v7061
    %v7092 = vpack.c.bf16 %v7064, %v7062
    %v7093 = vpack.c.bf16 %v7067, %v7065
    %v7094 = vpack.c.bf16 %v7068, %v7066
    %v7095 = vpack.c.bf16 %v7071, %v7069
    %v7096 = vpack.c.bf16 %v7072, %v7070
    %v7097 = vpack.c.bf16 %v7075, %v7073
    %v7098 = vpack.c.bf16 %v7076, %v7074
    %v7099 = vpack.c.bf16 %v7079, %v7077
    %v7100 = vpack.c.bf16 %v7080, %v7078
    %v7101 = vpack.c.bf16 %v7083, %v7081
    %v7102 = vpack.c.bf16 %v7084, %v7082
    %v7103 = vpack.c.bf16 %v7085, %v7085
    %v7104 = vpack.c.bf16 %v7086, %v7086
    %s7105 = scalar_lea.vmem [#allocation11], 896
    %v7106 = vld [vmem:[%s7105] sm:$0xf]
    %v7107 = vld [vmem:[%s7105 + $0x4] sm:$0xf]
    %v7108 = vld [vmem:[%s7105 + $0x8] sm:$0xf]
    %v7109 = vld [vmem:[%s7105 + $0xc] sm:$0xf]
    %v7110 = vld [vmem:[%s7105 + $0x10] sm:$0xf]
    %v7111 = vld [vmem:[%s7105 + $0x14] sm:$0xf]
    %v7112 = vld [vmem:[%s7105 + $0x18] sm:$0xf]
    %v7113 = vld [vmem:[%s7105 + $0x1c] sm:$0xf]
    %v7114 = vld [vmem:[%s7105 + $0x20] sm:$0xf]
    %v7115 = vld [vmem:[%s7105 + $0x24] sm:$0xf]
    %v7116 = vld [vmem:[%s7105 + $0x28] sm:$0xf]
    %v7117 = vld [vmem:[%s7105 + $0x2c] sm:$0xf]
    %v7118 = vld [vmem:[%s7105 + $0x30] sm:$0xf]
    %v7119 = vld [vmem:[%s7105 + $0x34] sm:$0xf]
    %v7120 = vld [vmem:[%s7105 + $0x38] sm:$0xf]
    %v7121 = vld [vmem:[%s7105 + $0x3c] sm:$0xf]
    %v7122 = vld [vmem:[%s7105 + $0x40] sm:$0xf]
    %v7123 = vld [vmem:[%s7105 + $0x44] sm:$0xf]
    %v7124 = vld [vmem:[%s7105 + $0x48] sm:$0xf]
    %v7125 = vld [vmem:[%s7105 + $0x4c] sm:$0xf]
    %v7126 = vld [vmem:[%s7105 + $0x50] sm:$0xf]
    %v7127 = vld [vmem:[%s7105 + $0x54] sm:$0xf]
    %v7128 = vld [vmem:[%s7105 + $0x58] sm:$0xf]
    %v7129 = vld [vmem:[%s7105 + $0x5c] sm:$0xf]
    %v7130 = vld [vmem:[%s7105 + $0x60] sm:$0xf]
    %v7131 = vld [vmem:[%s7105 + $0x64] sm:$0xf]
    %v7132 = vld [vmem:[%s7105 + $0x68] sm:$0xf]
    %v7133 = vld [vmem:[%s7105 + $0x6c] sm:$0xf]
    %v7134 = vld [vmem:[%s7105 + $0x70] sm:$0xf]
    %v7135 = vld [vmem:[%s7105 + $0x74] sm:$0xf]
    %v7136 = vld [vmem:[%s7105 + $0x78] sm:$0xf]
    %v7137 = vld [vmem:[%s7105 + $0x7c] sm:$0xf]
    %v7139 = vshrl.u32 %v7087, 16
    %v7141 = vshll.u32 %v7087, 16
    %v7143 = vrot.slane %v7141, 1
    %v7144 = vor.u32 %v7139, %v7143
    %v7146 = vshll.u32 %v7089, 16
    %v7148 = vrot.slane %v7146, 1
    %v7149 = vsel %vm3086, %v7144, %v7148
    %v7151 = vshrl.u32 %v7088, 16
    %v7153 = vshll.u32 %v7088, 16
    %v7155 = vrot.slane %v7153, 1
    %v7156 = vor.u32 %v7151, %v7155
    %v7158 = vshll.u32 %v7090, 16
    %v7160 = vrot.slane %v7158, 1
    %v7161 = vsel %vm3086, %v7156, %v7160
    %v7162 = vshrl.u32 %v7089, 16
    %v7164 = vor.u32 %v7162, %v7148
    %v7166 = vshll.u32 %v7091, 16
    %v7168 = vrot.slane %v7166, 1
    %v7169 = vsel %vm3086, %v7164, %v7168
    %v7170 = vshrl.u32 %v7090, 16
    %v7172 = vor.u32 %v7170, %v7160
    %v7174 = vshll.u32 %v7092, 16
    %v7176 = vrot.slane %v7174, 1
    %v7177 = vsel %vm3086, %v7172, %v7176
    %v7178 = vshrl.u32 %v7091, 16
    %v7180 = vor.u32 %v7178, %v7168
    %v7182 = vshll.u32 %v7093, 16
    %v7184 = vrot.slane %v7182, 1
    %v7185 = vsel %vm3086, %v7180, %v7184
    %v7186 = vshrl.u32 %v7092, 16
    %v7188 = vor.u32 %v7186, %v7176
    %v7190 = vshll.u32 %v7094, 16
    %v7192 = vrot.slane %v7190, 1
    %v7193 = vsel %vm3086, %v7188, %v7192
    %v7194 = vshrl.u32 %v7093, 16
    %v7196 = vor.u32 %v7194, %v7184
    %v7198 = vshll.u32 %v7095, 16
    %v7200 = vrot.slane %v7198, 1
    %v7201 = vsel %vm3086, %v7196, %v7200
    %v7202 = vshrl.u32 %v7094, 16
    %v7204 = vor.u32 %v7202, %v7192
    %v7206 = vshll.u32 %v7096, 16
    %v7208 = vrot.slane %v7206, 1
    %v7209 = vsel %vm3086, %v7204, %v7208
    %v7210 = vshrl.u32 %v7095, 16
    %v7212 = vor.u32 %v7210, %v7200
    %v7214 = vshll.u32 %v7097, 16
    %v7216 = vrot.slane %v7214, 1
    %v7217 = vsel %vm3086, %v7212, %v7216
    %v7218 = vshrl.u32 %v7096, 16
    %v7220 = vor.u32 %v7218, %v7208
    %v7222 = vshll.u32 %v7098, 16
    %v7224 = vrot.slane %v7222, 1
    %v7225 = vsel %vm3086, %v7220, %v7224
    %v7226 = vshrl.u32 %v7097, 16
    %v7228 = vor.u32 %v7226, %v7216
    %v7230 = vshll.u32 %v7099, 16
    %v7232 = vrot.slane %v7230, 1
    %v7233 = vsel %vm3086, %v7228, %v7232
    %v7234 = vshrl.u32 %v7098, 16
    %v7236 = vor.u32 %v7234, %v7224
    %v7238 = vshll.u32 %v7100, 16
    %v7240 = vrot.slane %v7238, 1
    %v7241 = vsel %vm3086, %v7236, %v7240
    %v7242 = vshrl.u32 %v7099, 16
    %v7244 = vor.u32 %v7242, %v7232
    %v7246 = vshll.u32 %v7101, 16
    %v7248 = vrot.slane %v7246, 1
    %v7249 = vsel %vm3086, %v7244, %v7248
    %v7250 = vshrl.u32 %v7100, 16
    %v7252 = vor.u32 %v7250, %v7240
    %v7254 = vshll.u32 %v7102, 16
    %v7256 = vrot.slane %v7254, 1
    %v7257 = vsel %vm3086, %v7252, %v7256
    %v7258 = vshrl.u32 %v7101, 16
    %v7260 = vor.u32 %v7258, %v7248
    %v7262 = vshll.u32 %v7103, 16
    %v7264 = vrot.slane %v7262, 1
    %v7265 = vsel %vm3086, %v7260, %v7264
    %v7266 = vshrl.u32 %v7102, 16
    %v7268 = vor.u32 %v7266, %v7256
    %v7270 = vshll.u32 %v7104, 16
    %v7272 = vrot.slane %v7270, 1
    %v7273 = vsel %vm3086, %v7268, %v7272
    %v7322 = vunpack.c.l.b16 %v7106
    %v7323 = vunpack.c.l.b16 %v7107
    %v7324 = vunpack.c.l.b16 %v7108
    %v7325 = vunpack.c.l.b16 %v7109
    %v7326 = vunpack.c.l.b16 %v7110
    %v7327 = vunpack.c.l.b16 %v7111
    %v7328 = vunpack.c.l.b16 %v7112
    %v7329 = vunpack.c.l.b16 %v7113
    %v7330 = vunpack.c.l.b16 %v7114
    %v7331 = vunpack.c.l.b16 %v7115
    %v7332 = vunpack.c.l.b16 %v7116
    %v7333 = vunpack.c.l.b16 %v7117
    %v7334 = vunpack.c.l.b16 %v7118
    %v7335 = vunpack.c.l.b16 %v7119
    %v7336 = vunpack.c.l.b16 %v7120
    %v7337 = vunpack.c.l.b16 %v7121
    %v7338 = vunpack.c.l.b16 %v7122
    %v7339 = vunpack.c.l.b16 %v7123
    %v7340 = vunpack.c.l.b16 %v7124
    %v7341 = vunpack.c.l.b16 %v7125
    %v7342 = vunpack.c.l.b16 %v7126
    %v7343 = vunpack.c.l.b16 %v7127
    %v7344 = vunpack.c.l.b16 %v7128
    %v7345 = vunpack.c.l.b16 %v7129
    %v7346 = vunpack.c.l.b16 %v7130
    %v7347 = vunpack.c.l.b16 %v7131
    %v7348 = vunpack.c.l.b16 %v7132
    %v7349 = vunpack.c.l.b16 %v7133
    %v7350 = vunpack.c.l.b16 %v7134
    %v7351 = vunpack.c.l.b16 %v7135
    %v7352 = vunpack.c.l.b16 %v7136
    %v7353 = vunpack.c.l.b16 %v7137
    %v7354 = vpack.c.b16 %v7323, %v7322
    %v7355 = vpack.c.b16 %v7325, %v7324
    %v7356 = vpack.c.b16 %v7327, %v7326
    %v7357 = vpack.c.b16 %v7329, %v7328
    %v7358 = vpack.c.b16 %v7331, %v7330
    %v7359 = vpack.c.b16 %v7333, %v7332
    %v7360 = vpack.c.b16 %v7335, %v7334
    %v7361 = vpack.c.b16 %v7337, %v7336
    %v7362 = vpack.c.b16 %v7339, %v7338
    %v7363 = vpack.c.b16 %v7341, %v7340
    %v7364 = vpack.c.b16 %v7343, %v7342
    %v7365 = vpack.c.b16 %v7345, %v7344
    %v7366 = vpack.c.b16 %v7347, %v7346
    %v7367 = vpack.c.b16 %v7349, %v7348
    %v7368 = vpack.c.b16 %v7351, %v7350
    %v7369 = vpack.c.b16 %v7353, %v7352
    %7386 = vmatprep.subr.bf16.mxu0 0
    %7387 = vmatpush1.bf16.msra.mxu0 %v7354
    %7388 = vmatprep.subr.bf16.mxu0 0
    %7389 = vmatpush1.bf16.msra.mxu0 %v7355
    %7390 = vmatprep.subr.bf16.mxu0 0
    %7391 = vmatpush1.bf16.msra.mxu0 %v7356
    %7392 = vmatprep.subr.bf16.mxu0 0
    %7393 = vmatpush1.bf16.msra.mxu0 %v7357
    %7394 = vmatprep.subr.bf16.mxu0 0
    %7395 = vmatpush1.bf16.msra.mxu0 %v7358
    %7396 = vmatprep.subr.bf16.mxu0 0
    %7397 = vmatpush1.bf16.msra.mxu0 %v7359
    %7398 = vmatprep.subr.bf16.mxu0 0
    %7399 = vmatpush1.bf16.msra.mxu0 %v7360
    %7400 = vmatprep.subr.bf16.mxu0 0
    %7401 = vmatpush1.bf16.msra.mxu0 %v7361
    %7402 = vmatprep.subr.bf16.mxu0 0
    %7403 = vmatpush1.bf16.msra.mxu0 %v7362
    %7404 = vmatprep.subr.bf16.mxu0 0
    %7405 = vmatpush1.bf16.msra.mxu0 %v7363
    %7406 = vmatprep.subr.bf16.mxu0 0
    %7407 = vmatpush1.bf16.msra.mxu0 %v7364
    %7408 = vmatprep.subr.bf16.mxu0 0
    %7409 = vmatpush1.bf16.msra.mxu0 %v7365
    %7410 = vmatprep.subr.bf16.mxu0 0
    %7411 = vmatpush1.bf16.msra.mxu0 %v7366
    %7412 = vmatprep.subr.bf16.mxu0 0
    %7413 = vmatpush1.bf16.msra.mxu0 %v7367
    %7414 = vmatprep.subr.bf16.mxu0 0
    %7415 = vmatpush1.bf16.msra.mxu0 %v7368
    %7416 = vmatprep.subr.bf16.mxu0 0
    %7417 = vmatpush1.bf16.msra.mxu0 %v7369
    %7418 = vmatprep.mubr.bf16.mxu0 %v7161
    %7419 = vmatmul.mubr.bf16.gmra.mrb[0].mxu0 %v7149
    %v7420 = vpop.f32.mrb[0].mxu0
    %v7421 = vadd.f32 0.0, %v7420
    %v7422 = vpop.f32.mrb[0].mxu0
    %v7423 = vpop.f32.mrb[0].mxu0
    %v7424 = vadd.f32 0.0, %v7423
    %v7425 = vpop.f32.mrb[0].mxu0
    %7426 = vmatprep.mubr.bf16.mxu0 %v7177
    %7427 = vmatmul.mubr.bf16.gmra.mrb[0].mxu0 %v7169
    %v7428 = vpop.f32.mrb[0].mxu0
    %v7429 = vadd.f32 0.0, %v7428
    %v7430 = vpop.f32.mrb[0].mxu0
    %v7431 = vpop.f32.mrb[0].mxu0
    %v7432 = vadd.f32 0.0, %v7431
    %v7433 = vpop.f32.mrb[0].mxu0
    %7434 = vmatprep.mubr.bf16.mxu0 %v7193
    %7435 = vmatmul.mubr.bf16.gmra.mrb[0].mxu0 %v7185
    %v7436 = vpop.f32.mrb[0].mxu0
    %v7437 = vadd.f32 0.0, %v7436
    %v7438 = vpop.f32.mrb[0].mxu0
    %v7439 = vpop.f32.mrb[0].mxu0
    %v7440 = vadd.f32 0.0, %v7439
    %v7441 = vpop.f32.mrb[0].mxu0
    %7442 = vmatprep.mubr.bf16.mxu0 %v7209
    %7443 = vmatmul.mubr.bf16.gmra.mrb[0].mxu0 %v7201
    %v7444 = vpop.f32.mrb[0].mxu0
    %v7445 = vadd.f32 0.0, %v7444
    %v7446 = vpop.f32.mrb[0].mxu0
    %v7447 = vpop.f32.mrb[0].mxu0
    %v7448 = vadd.f32 0.0, %v7447
    %v7449 = vpop.f32.mrb[0].mxu0
    %7450 = vmatprep.mubr.bf16.mxu0 %v7225
    %7451 = vmatmul.mubr.bf16.gmra.mrb[0].mxu0 %v7217
    %v7452 = vpop.f32.mrb[0].mxu0
    %v7453 = vadd.f32 0.0, %v7452
    %v7454 = vpop.f32.mrb[0].mxu0
    %v7455 = vpop.f32.mrb[0].mxu0
    %v7456 = vadd.f32 0.0, %v7455
    %v7457 = vpop.f32.mrb[0].mxu0
    %7458 = vmatprep.mubr.bf16.mxu0 %v7241
    %7459 = vmatmul.mubr.bf16.gmra.mrb[0].mxu0 %v7233
    %v7460 = vpop.f32.mrb[0].mxu0
    %v7461 = vadd.f32 0.0, %v7460
    %v7462 = vpop.f32.mrb[0].mxu0
    %v7463 = vpop.f32.mrb[0].mxu0
    %v7464 = vadd.f32 0.0, %v7463
    %v7465 = vpop.f32.mrb[0].mxu0
    %7466 = vmatprep.mubr.bf16.mxu0 %v7257
    %7467 = vmatmul.mubr.bf16.gmra.mrb[0].mxu0 %v7249
    %v7468 = vpop.f32.mrb[0].mxu0
    %v7469 = vadd.f32 0.0, %v7468
    %v7470 = vpop.f32.mrb[0].mxu0
    %v7471 = vpop.f32.mrb[0].mxu0
    %v7472 = vadd.f32 0.0, %v7471
    %v7473 = vpop.f32.mrb[0].mxu0
    %7474 = vmatprep.mubr.bf16.mxu0 %v7273
    %7475 = vmatmul.mubr.bf16.gmra.mrb[0].mxu0 %v7265
    %v7476 = vpop.f32.mrb[0].mxu0
    %v7477 = vadd.f32 0.0, %v7476
    %v7478 = vpop.f32.mrb[0].mxu0
    %v7479 = vpop.f32.mrb[0].mxu0
    %v7480 = vadd.f32 0.0, %v7479
    %v7481 = vpop.f32.mrb[0].mxu0
    %7482 = vdwg.mxu0
    %v7483 = vadd.f32 %v7037, %v7421
    %v7484 = vadd.f32 %v7038, %v7424
    %v7485 = vadd.f32 %v7039, %v7429
    %v7486 = vadd.f32 %v7040, %v7432
    %v7487 = vadd.f32 %v7041, %v7437
    %v7488 = vadd.f32 %v7042, %v7440
    %v7489 = vadd.f32 %v7043, %v7445
    %v7490 = vadd.f32 %v7044, %v7448
    %v7491 = vadd.f32 %v7045, %v7453
    %v7492 = vadd.f32 %v7046, %v7456
    %v7493 = vadd.f32 %v7047, %v7461
    %v7494 = vadd.f32 %v7048, %v7464
    %v7495 = vadd.f32 %v7049, %v7469
    %v7496 = vadd.f32 %v7050, %v7472
    %v7497 = vadd.f32 %v7051, %v7477
    %v7498 = vadd.f32 %v7052, %v7480
    %v7499 = vld [vmem:[#allocation6 + $0x20] sm:$0xfc]
    %v7500 = vld [vmem:[#allocation6 + $0x28] sm:$0xfc]
    %v7501 = vld [vmem:[#allocation6 + $0x120] sm:$0x3]
    %v7502 = vld [vmem:[#allocation6 + $0x128] sm:$0x3]
    %v7503 = vpack.c.bf16 %v7055, %v7499
    %v7504 = vpack.c.bf16 %v7056, %v7500
    %v7505 = vpack.c.bf16 %v7501, %v7501
    %v7506 = vpack.c.bf16 %v7502, %v7502
    %s7507 = scalar_lea.vmem [#allocation11], 1024
    %v7508 = vld [vmem:[%s7507] sm:$0xf]
    %v7509 = vld [vmem:[%s7507 + $0x4] sm:$0xf]
    %v7510 = vld [vmem:[%s7507 + $0x8] sm:$0xf]
    %v7511 = vld [vmem:[%s7507 + $0xc] sm:$0xf]
    %v7512 = vld [vmem:[%s7507 + $0x10] sm:$0xf]
    %v7513 = vld [vmem:[%s7507 + $0x14] sm:$0xf]
    %v7514 = vld [vmem:[%s7507 + $0x18] sm:$0xf]
    %v7515 = vld [vmem:[%s7507 + $0x1c] sm:$0xf]
    %v7516 = vld [vmem:[%s7507 + $0x20] sm:$0xf]
    %v7517 = vld [vmem:[%s7507 + $0x24] sm:$0xf]
    %v7518 = vld [vmem:[%s7507 + $0x28] sm:$0xf]
    %v7519 = vld [vmem:[%s7507 + $0x2c] sm:$0xf]
    %v7520 = vld [vmem:[%s7507 + $0x30] sm:$0xf]
    %v7521 = vld [vmem:[%s7507 + $0x34] sm:$0xf]
    %v7522 = vld [vmem:[%s7507 + $0x38] sm:$0xf]
    %v7523 = vld [vmem:[%s7507 + $0x3c] sm:$0xf]
    %v7524 = vld [vmem:[%s7507 + $0x40] sm:$0xf]
    %v7525 = vld [vmem:[%s7507 + $0x44] sm:$0xf]
    %v7526 = vld [vmem:[%s7507 + $0x48] sm:$0xf]
    %v7527 = vld [vmem:[%s7507 + $0x4c] sm:$0xf]
    %v7528 = vld [vmem:[%s7507 + $0x50] sm:$0xf]
    %v7529 = vld [vmem:[%s7507 + $0x54] sm:$0xf]
    %v7530 = vld [vmem:[%s7507 + $0x58] sm:$0xf]
    %v7531 = vld [vmem:[%s7507 + $0x5c] sm:$0xf]
    %v7532 = vld [vmem:[%s7507 + $0x60] sm:$0xf]
    %v7533 = vld [vmem:[%s7507 + $0x64] sm:$0xf]
    %v7534 = vld [vmem:[%s7507 + $0x68] sm:$0xf]
    %v7535 = vld [vmem:[%s7507 + $0x6c] sm:$0xf]
    %v7536 = vld [vmem:[%s7507 + $0x70] sm:$0xf]
    %v7537 = vld [vmem:[%s7507 + $0x74] sm:$0xf]
    %v7538 = vld [vmem:[%s7507 + $0x78] sm:$0xf]
    %v7539 = vld [vmem:[%s7507 + $0x7c] sm:$0xf]
    %v7558 = vrot.slane %v7503, 1
    %v7559 = vrot.slane %v7089, 1
    %v7560 = vsel %vm5509, %v7558, %v7559
    %v7561 = vrot.slane %v7504, 1
    %v7562 = vrot.slane %v7090, 1
    %v7563 = vsel %vm5509, %v7561, %v7562
    %v7564 = vrot.slane %v7091, 1
    %v7565 = vsel %vm5509, %v7559, %v7564
    %v7566 = vrot.slane %v7092, 1
    %v7567 = vsel %vm5509, %v7562, %v7566
    %v7568 = vrot.slane %v7093, 1
    %v7569 = vsel %vm5509, %v7564, %v7568
    %v7570 = vrot.slane %v7094, 1
    %v7571 = vsel %vm5509, %v7566, %v7570
    %v7572 = vrot.slane %v7095, 1
    %v7573 = vsel %vm5509, %v7568, %v7572
    %v7574 = vrot.slane %v7096, 1
    %v7575 = vsel %vm5509, %v7570, %v7574
    %v7576 = vrot.slane %v7097, 1
    %v7577 = vsel %vm5509, %v7572, %v7576
    %v7578 = vrot.slane %v7098, 1
    %v7579 = vsel %vm5509, %v7574, %v7578
    %v7580 = vrot.slane %v7099, 1
    %v7581 = vsel %vm5509, %v7576, %v7580
    %v7582 = vrot.slane %v7100, 1
    %v7583 = vsel %vm5509, %v7578, %v7582
    %v7584 = vrot.slane %v7101, 1
    %v7585 = vsel %vm5509, %v7580, %v7584
    %v7586 = vrot.slane %v7102, 1
    %v7587 = vsel %vm5509, %v7582, %v7586
    %v7588 = vrot.slane %v7505, 1
    %v7589 = vsel %vm5509, %v7584, %v7588
    %v7590 = vrot.slane %v7506, 1
    %v7591 = vsel %vm5509, %v7586, %v7590
    %v7640 = vunpack.c.l.b16 %v7508
    %v7641 = vunpack.c.l.b16 %v7509
    %v7642 = vunpack.c.l.b16 %v7510
    %v7643 = vunpack.c.l.b16 %v7511
    %v7644 = vunpack.c.l.b16 %v7512
    %v7645 = vunpack.c.l.b16 %v7513
    %v7646 = vunpack.c.l.b16 %v7514
    %v7647 = vunpack.c.l.b16 %v7515
    %v7648 = vunpack.c.l.b16 %v7516
    %v7649 = vunpack.c.l.b16 %v7517
    %v7650 = vunpack.c.l.b16 %v7518
    %v7651 = vunpack.c.l.b16 %v7519
    %v7652 = vunpack.c.l.b16 %v7520
    %v7653 = vunpack.c.l.b16 %v7521
    %v7654 = vunpack.c.l.b16 %v7522
    %v7655 = vunpack.c.l.b16 %v7523
    %v7656 = vunpack.c.l.b16 %v7524
    %v7657 = vunpack.c.l.b16 %v7525
    %v7658 = vunpack.c.l.b16 %v7526
    %v7659 = vunpack.c.l.b16 %v7527
    %v7660 = vunpack.c.l.b16 %v7528
    %v7661 = vunpack.c.l.b16 %v7529
    %v7662 = vunpack.c.l.b16 %v7530
    %v7663 = vunpack.c.l.b16 %v7531
    %v7664 = vunpack.c.l.b16 %v7532
    %v7665 = vunpack.c.l.b16 %v7533
    %v7666 = vunpack.c.l.b16 %v7534
    %v7667 = vunpack.c.l.b16 %v7535
    %v7668 = vunpack.c.l.b16 %v7536
    %v7669 = vunpack.c.l.b16 %v7537
    %v7670 = vunpack.c.l.b16 %v7538
    %v7671 = vunpack.c.l.b16 %v7539
    %v7672 = vpack.c.b16 %v7641, %v7640
    %v7673 = vpack.c.b16 %v7643, %v7642
    %v7674 = vpack.c.b16 %v7645, %v7644
    %v7675 = vpack.c.b16 %v7647, %v7646
    %v7676 = vpack.c.b16 %v7649, %v7648
    %v7677 = vpack.c.b16 %v7651, %v7650
    %v7678 = vpack.c.b16 %v7653, %v7652
    %v7679 = vpack.c.b16 %v7655, %v7654
    %v7680 = vpack.c.b16 %v7657, %v7656
    %v7681 = vpack.c.b16 %v7659, %v7658
    %v7682 = vpack.c.b16 %v7661, %v7660
    %v7683 = vpack.c.b16 %v7663, %v7662
    %v7684 = vpack.c.b16 %v7665, %v7664
    %v7685 = vpack.c.b16 %v7667, %v7666
    %v7686 = vpack.c.b16 %v7669, %v7668
    %v7687 = vpack.c.b16 %v7671, %v7670
    %7704 = vmatprep.subr.bf16.mxu0 0
    %7705 = vmatpush1.bf16.msra.mxu0 %v7672
    %7706 = vmatprep.subr.bf16.mxu0 0
    %7707 = vmatpush1.bf16.msra.mxu0 %v7673
    %7708 = vmatprep.subr.bf16.mxu0 0
    %7709 = vmatpush1.bf16.msra.mxu0 %v7674
    %7710 = vmatprep.subr.bf16.mxu0 0
    %7711 = vmatpush1.bf16.msra.mxu0 %v7675
    %7712 = vmatprep.subr.bf16.mxu0 0
    %7713 = vmatpush1.bf16.msra.mxu0 %v7676
    %7714 = vmatprep.subr.bf16.mxu0 0
    %7715 = vmatpush1.bf16.msra.mxu0 %v7677
    %7716 = vmatprep.subr.bf16.mxu0 0
    %7717 = vmatpush1.bf16.msra.mxu0 %v7678
    %7718 = vmatprep.subr.bf16.mxu0 0
    %7719 = vmatpush1.bf16.msra.mxu0 %v7679
    %7720 = vmatprep.subr.bf16.mxu0 0
    %7721 = vmatpush1.bf16.msra.mxu0 %v7680
    %7722 = vmatprep.subr.bf16.mxu0 0
    %7723 = vmatpush1.bf16.msra.mxu0 %v7681
    %7724 = vmatprep.subr.bf16.mxu0 0
    %7725 = vmatpush1.bf16.msra.mxu0 %v7682
    %7726 = vmatprep.subr.bf16.mxu0 0
    %7727 = vmatpush1.bf16.msra.mxu0 %v7683
    %7728 = vmatprep.subr.bf16.mxu0 0
    %7729 = vmatpush1.bf16.msra.mxu0 %v7684
    %7730 = vmatprep.subr.bf16.mxu0 0
    %7731 = vmatpush1.bf16.msra.mxu0 %v7685
    %7732 = vmatprep.subr.bf16.mxu0 0
    %7733 = vmatpush1.bf16.msra.mxu0 %v7686
    %7734 = vmatprep.subr.bf16.mxu0 0
    %7735 = vmatpush1.bf16.msra.mxu0 %v7687
    %7736 = vmatprep.mubr.bf16.mxu0 %v7563
    %7737 = vmatmul.mubr.bf16.gmra.mrb[0].mxu0 %v7560
    %v7738 = vpop.f32.mrb[0].mxu0
    %v7739 = vadd.f32 0.0, %v7738
    %v7740 = vpop.f32.mrb[0].mxu0
    %v7741 = vpop.f32.mrb[0].mxu0
    %v7742 = vadd.f32 0.0, %v7741
    %v7743 = vpop.f32.mrb[0].mxu0
    %7744 = vmatprep.mubr.bf16.mxu0 %v7567
    %7745 = vmatmul.mubr.bf16.gmra.mrb[0].mxu0 %v7565
    %v7746 = vpop.f32.mrb[0].mxu0
    %v7747 = vadd.f32 0.0, %v7746
    %v7748 = vpop.f32.mrb[0].mxu0
    %v7749 = vpop.f32.mrb[0].mxu0
    %v7750 = vadd.f32 0.0, %v7749
    %v7751 = vpop.f32.mrb[0].mxu0
    %7752 = vmatprep.mubr.bf16.mxu0 %v7571
    %7753 = vmatmul.mubr.bf16.gmra.mrb[0].mxu0 %v7569
    %v7754 = vpop.f32.mrb[0].mxu0
    %v7755 = vadd.f32 0.0, %v7754
    %v7756 = vpop.f32.mrb[0].mxu0
    %v7757 = vpop.f32.mrb[0].mxu0
    %v7758 = vadd.f32 0.0, %v7757
    %v7759 = vpop.f32.mrb[0].mxu0
    %7760 = vmatprep.mubr.bf16.mxu0 %v7575
    %7761 = vmatmul.mubr.bf16.gmra.mrb[0].mxu0 %v7573
    %v7762 = vpop.f32.mrb[0].mxu0
    %v7763 = vadd.f32 0.0, %v7762
    %v7764 = vpop.f32.mrb[0].mxu0
    %v7765 = vpop.f32.mrb[0].mxu0
    %v7766 = vadd.f32 0.0, %v7765
    %v7767 = vpop.f32.mrb[0].mxu0
    %7768 = vmatprep.mubr.bf16.mxu0 %v7579
    %7769 = vmatmul.mubr.bf16.gmra.mrb[0].mxu0 %v7577
    %v7770 = vpop.f32.mrb[0].mxu0
    %v7771 = vadd.f32 0.0, %v7770
    %v7772 = vpop.f32.mrb[0].mxu0
    %v7773 = vpop.f32.mrb[0].mxu0
    %v7774 = vadd.f32 0.0, %v7773
    %v7775 = vpop.f32.mrb[0].mxu0
    %7776 = vmatprep.mubr.bf16.mxu0 %v7583
    %7777 = vmatmul.mubr.bf16.gmra.mrb[0].mxu0 %v7581
    %v7778 = vpop.f32.mrb[0].mxu0
    %v7779 = vadd.f32 0.0, %v7778
    %v7780 = vpop.f32.mrb[0].mxu0
    %v7781 = vpop.f32.mrb[0].mxu0
    %v7782 = vadd.f32 0.0, %v7781
    %v7783 = vpop.f32.mrb[0].mxu0
    %7784 = vmatprep.mubr.bf16.mxu0 %v7587
    %7785 = vmatmul.mubr.bf16.gmra.mrb[0].mxu0 %v7585
    %v7786 = vpop.f32.mrb[0].mxu0
    %v7787 = vadd.f32 0.0, %v7786
    %v7788 = vpop.f32.mrb[0].mxu0
    %v7789 = vpop.f32.mrb[0].mxu0
    %v7790 = vadd.f32 0.0, %v7789
    %v7791 = vpop.f32.mrb[0].mxu0
    %7792 = vmatprep.mubr.bf16.mxu0 %v7591
    %7793 = vmatmul.mubr.bf16.gmra.mrb[0].mxu0 %v7589
    %v7794 = vpop.f32.mrb[0].mxu0
    %v7795 = vadd.f32 0.0, %v7794
    %v7796 = vpop.f32.mrb[0].mxu0
    %v7797 = vpop.f32.mrb[0].mxu0
    %v7798 = vadd.f32 0.0, %v7797
    %v7799 = vpop.f32.mrb[0].mxu0
    %7800 = vdwg.mxu0
    %v7801 = vadd.f32 %v7483, %v7739
    %v7802 = vadd.f32 %v7484, %v7742
    %v7803 = vadd.f32 %v7485, %v7747
    %v7804 = vadd.f32 %v7486, %v7750
    %v7805 = vadd.f32 %v7487, %v7755
    %v7806 = vadd.f32 %v7488, %v7758
    %v7807 = vadd.f32 %v7489, %v7763
    %v7808 = vadd.f32 %v7490, %v7766
    %v7809 = vadd.f32 %v7491, %v7771
    %v7810 = vadd.f32 %v7492, %v7774
    %v7811 = vadd.f32 %v7493, %v7779
    %v7812 = vadd.f32 %v7494, %v7782
    %v7813 = vadd.f32 %v7495, %v7787
    %v7814 = vadd.f32 %v7496, %v7790
    %v7815 = vadd.f32 %v7497, %v7795
    %v7816 = vadd.f32 %v7498, %v7798
    %v7817 = vld [vmem:[%s12] sm:$0x1]
    %v7819 = vlaneseq
    %v7820 = vshrl.u32 %v7819, 7
    %v7821 = vsub.s32 0, %v7820
    %v7822 = vrot.slane %v7817, %v7821
    %v7824 = vadd.f32 %v7801, %v7822
    %v7825 = vadd.f32 %v7802, %v7822
    %v7826 = vadd.f32 %v7803, %v7822
    %v7827 = vadd.f32 %v7804, %v7822
    %v7828 = vadd.f32 %v7805, %v7822
    %v7829 = vadd.f32 %v7806, %v7822
    %v7830 = vadd.f32 %v7807, %v7822
    %v7831 = vadd.f32 %v7808, %v7822
    %v7832 = vadd.f32 %v7809, %v7822
    %v7833 = vadd.f32 %v7810, %v7822
    %v7834 = vadd.f32 %v7811, %v7822
    %v7835 = vadd.f32 %v7812, %v7822
    %v7836 = vadd.f32 %v7813, %v7822
    %v7837 = vadd.f32 %v7814, %v7822
    %v7838 = vadd.f32 %v7815, %v7822
    %v7839 = vadd.f32 %v7816, %v7822
    %v7840 = vmax.f32 %v7824, 0.0
    %v7841 = vmax.f32 %v7825, 0.0
    %v7842 = vmax.f32 %v7826, 0.0
    %v7843 = vmax.f32 %v7827, 0.0
    %v7844 = vmax.f32 %v7828, 0.0
    %v7845 = vmax.f32 %v7829, 0.0
    %v7846 = vmax.f32 %v7830, 0.0
    %v7847 = vmax.f32 %v7831, 0.0
    %v7848 = vmax.f32 %v7832, 0.0
    %v7849 = vmax.f32 %v7833, 0.0
    %v7850 = vmax.f32 %v7834, 0.0
    %v7851 = vmax.f32 %v7835, 0.0
    %v7852 = vmax.f32 %v7836, 0.0
    %v7853 = vmax.f32 %v7837, 0.0
    %v7854 = vmax.f32 %v7838, 0.0
    %v7855 = vmax.f32 %v7839, 0.0
    %7856 = vst [vmem:[%s13] sm:$0xff] %v7840
    %7857 = vst [vmem:[%s13 + $0x8] sm:$0xff] %v7841
    %7858 = vst [vmem:[%s13 + $0x10] sm:$0xff] %v7842
    %7859 = vst [vmem:[%s13 + $0x18] sm:$0xff] %v7843
    %7860 = vst [vmem:[%s13 + $0x20] sm:$0xff] %v7844
    %7861 = vst [vmem:[%s13 + $0x28] sm:$0xff] %v7845
    %7862 = vst [vmem:[%s13 + $0x30] sm:$0xff] %v7846
    %7863 = vst [vmem:[%s13 + $0x38] sm:$0xff] %v7847
    %7864 = vst [vmem:[%s13 + $0x40] sm:$0xff] %v7848
    %7865 = vst [vmem:[%s13 + $0x48] sm:$0xff] %v7849
    %7866 = vst [vmem:[%s13 + $0x50] sm:$0xff] %v7850
    %7867 = vst [vmem:[%s13 + $0x58] sm:$0xff] %v7851
    %7868 = vst [vmem:[%s13 + $0x60] sm:$0xff] %v7852
    %7869 = vst [vmem:[%s13 + $0x68] sm:$0xff] %v7853
    %7870 = vst [vmem:[%s13 + $0x70] sm:$0xff] %v7854
    %7871 = vst [vmem:[%s13 + $0x78] sm:$0xff] %v7855
    // Predicated region
    $region66: #{cnn_up_forward.1} parent=1 // pred_check
      _
    $region67: #{cnn_up_forward.1} parent=1 // pred_check_branch
      %7873 = sbr.rel (0) target = $region69
    $region68: #{cnn_up_forward.1} parent=1 // pred_region
      _
    $region69: #{cnn_up_forward.1} parent=1 // pred_fallthru
      _
    // Predicated region
    $region70: #{cnn_up_forward.1} parent=1 // pred_check
      _
    $region71: #{cnn_up_forward.1} parent=1 // pred_check_branch
      %7875 = sbr.rel (0) target = $region73
    $region72: #{cnn_up_forward.1} parent=1 // pred_region
      _
    $region73: #{cnn_up_forward.1} parent=1 // pred_fallthru
      _
    %7876 = vsyncpa [#allocation8], 1
    %7877 = vsyncpa [#allocation10], 1

</llo_original>
